<compile_context>
chip_gen: v5e
topology: v5e:2x2
jax: 0.10.0
libtpu: 0.0.40
codegen_flags: <defaults>
</compile_context>

<pallas_src>
import functools
import numpy as np

import jax
import jax.numpy as jnp
from jax.experimental import pallas as pl
from jax.experimental.pallas import tpu as pltpu


LN_EPS = 1e-5
_INV_SQRT2 = 0.7071067811865476
_VMEM_LIMIT_BYTES = 64 * 1024 * 1024     # explicit scoped-VMEM limit (review)


# ----------------------------------------------------------------------------
# Single-buffer constant-index (weight) operands when supported.
# ----------------------------------------------------------------------------
def _make_const_spec_factory():
    try:
        # Probe: does this jax support pipeline_mode=pl.Buffered(...)?
        pl.BlockSpec((8, 128), lambda i: (0, 0), pipeline_mode=pl.Buffered(1))

        def make(shape, index_map):
            return pl.BlockSpec(shape, index_map, pipeline_mode=pl.Buffered(1))
        return make
    except Exception:                                    # older jax: default 2-buf
        def make(shape, index_map):
            return pl.BlockSpec(shape, index_map)
        return make


_const_spec = _make_const_spec_factory()


# ----------------------------------------------------------------------------
# In-kernel math helpers
# ----------------------------------------------------------------------------
def _erf(x):
    # Numerical-Recipes erfc approximation (|err| < 1.3e-7), exp + polynomial
    # only, matches PyTorch's exact erf-GELU to f32 noise level.
    a = jnp.abs(x)
    t = 1.0 / (1.0 + 0.5 * a)
    poly = -1.26551223 + t * (1.00002368 + t * (0.37409196 + t * (0.09678418
        + t * (-0.18628806 + t * (0.27886807 + t * (-1.13520398 + t * (1.48851587
        + t * (-0.82215223 + t * 0.17087277))))))))
    erfc = t * jnp.exp(-a * a + poly)
    return jnp.where(x >= 0.0, 1.0 - erfc, erfc - 1.0)


def _gelu_exact(x):
    # PyTorch nn.GELU() default (exact, erf-based).
    return 0.5 * x * (1.0 + _erf(x * _INV_SQRT2))


def _layer_norm_f32(x, gamma, beta):
    mean = jnp.mean(x, axis=-1, keepdims=True)
    var = jnp.mean(jnp.square(x - mean), axis=-1, keepdims=True)
    return (x - mean) * jax.lax.rsqrt(var + LN_EPS) * gamma + beta


# ----------------------------------------------------------------------------
# Pallas kernels
# ----------------------------------------------------------------------------
def window_attn_kernel(x_ref, g_ref, b_ref, wqkv_ref, bqkv_ref, wp_ref, bp_ref,
                       rel_ref, *rest, num_heads, scale, nW, has_mask, has_valid):
    """Fused LN1 + window MSA (fused bf16 QKV) + output proj + residual."""
    idx = 0
    valid_ref = mask_ref = None
    if has_valid:
        valid_ref = rest[idx]; idx += 1
    if has_mask:
        mask_ref = rest[idx]; idx += 1
    o_ref = rest[idx]

    Wb, N, C = x_ref.shape
    b_block = Wb // nW
    hd = C // num_heads

    x = x_ref[...].astype(jnp.float32)                    # (Wb, N, C) residual
    xn = _layer_norm_f32(x, g_ref[...], b_ref[...])       # fused LayerNorm1
    if has_valid:
        # PyTorch zero-pads *after* norm1 -> re-zero padded tokens post-LN.
        xn = (xn.reshape(b_block, nW, N, C)
              * valid_ref[...][None]).reshape(Wb, N, C)

    # Fused Q|K|V projection: one bf16 (Wb*N, C) x (C, 3C) GEMM, f32 accumulate.
    xn_b = xn.reshape(Wb * N, C).astype(jnp.bfloat16)
    qkv = (jnp.dot(xn_b, wqkv_ref[...], preferred_element_type=jnp.float32)
           + bqkv_ref[...])
    q = qkv[:, 0 * C:1 * C].reshape(Wb, N, C)
    k = qkv[:, 1 * C:2 * C].reshape(Wb, N, C)
    v = qkv[:, 2 * C:3 * C].reshape(Wb, N, C)

    rel = rel_ref[...].astype(jnp.float32)                 # (nh, N, N)
    if has_mask:
        msk = mask_ref[...].astype(jnp.float32)            # (nW, N, N)

    q_b = q.astype(jnp.bfloat16)
    k_b = k.astype(jnp.bfloat16)
    v_b = v.astype(jnp.bfloat16)

    if C >= 128:
        # Head-batched path (realistic Swin dims): contract only head_dim,
        # avoiding the nh-times-redundant full-C contraction.
        q4 = q_b.reshape(Wb, N, num_heads, hd)
        k4 = k_b.reshape(Wb, N, num_heads, hd)
        v4 = v_b.reshape(Wb, N, num_heads, hd)
        s = jnp.einsum('wnhd,wmhd->whnm', q4, k4,
                       preferred_element_type=jnp.float32) * scale
        s = s + rel[None]                                  # (Wb, nh, N, N)
        if has_mask:
            s = (s.reshape(b_block, nW, num_heads, N, N)
                 + msk[None, :, None]).reshape(Wb, num_heads, N, N)
        s = s - jnp.max(s, axis=-1, keepdims=True)
        p = jnp.exp(s)
        p = p / jnp.sum(p, axis=-1, keepdims=True)         # exact softmax divide
        out = jnp.einsum('whnm,wmhd->wnhd', p.astype(jnp.bfloat16), v4,
                         preferred_element_type=jnp.float32).reshape(Wb, N, C)
    else:
        # Small-C path: per-head 0/1 channel masks keep everything lane-dense
        # (Wb,N,C)/(Wb,N,N) with no head-dim relayouts; the padded contraction
        # width is free because C < one 128-lane tile.
        ch = jax.lax.broadcasted_iota(jnp.int32, (1, 1, C), 2)
        out = jnp.zeros((Wb, N, C), jnp.float32)
        for h in range(num_heads):                         # static, small
            hm = jnp.logical_and(ch >= h * hd, ch < (h + 1) * hd)
            hm = hm.astype(jnp.bfloat16)
            s = jnp.einsum('wnc,wmc->wnm', q_b * hm, k_b,
                           preferred_element_type=jnp.float32) * scale
            s = s + rel[h][None]
            if has_mask:
                s = (s.reshape(b_block, nW, N, N) + msk[None]).reshape(Wb, N, N)
            s = s - jnp.max(s, axis=-1, keepdims=True)
            p = jnp.exp(s)
            p = p / jnp.sum(p, axis=-1, keepdims=True)     # exact softmax divide
            # V masked per head -> contributions land in disjoint channel ranges,
            # so summing over heads reproduces the concat-over-heads exactly.
            out = out + jnp.einsum('wnm,wmc->wnc', p.astype(jnp.bfloat16),
                                   v_b * hm, preferred_element_type=jnp.float32)

    proj = (jnp.dot(out.reshape(Wb * N, C).astype(jnp.bfloat16), wp_ref[...],
                    preferred_element_type=jnp.float32) + bp_ref[...])
    o_ref[...] = (x + proj.reshape(Wb, N, C)).astype(o_ref.dtype)   # fused residual


def ffn_ln_kernel(x_ref, g_ref, b_ref, w1_ref, b1_ref, w2_ref, b2_ref, o_ref):
    """Fused LN2 + Linear -> exact GELU -> Linear + residual on a row tile."""
    x = x_ref[...].astype(jnp.float32)                     # (rt, C)
    xn = _layer_norm_f32(x, g_ref[...], b_ref[...])
    h = (jnp.dot(xn.astype(jnp.bfloat16), w1_ref[...],
                 preferred_element_type=jnp.float32) + b1_ref[...])
    h = _gelu_exact(h)
    out = (jnp.dot(h.astype(jnp.bfloat16), w2_ref[...],
                   preferred_element_type=jnp.float32) + b2_ref[...])
    o_ref[...] = (x + out).astype(o_ref.dtype)


# ----------------------------------------------------------------------------
# Tiling choices (review: >=2 grid steps for v7x megacore, M-dim <= 512 rows)
# ----------------------------------------------------------------------------
def _choose_b_block(B, nW, N, row_cap=512):
    best_multi, best_any = None, None
    for d in range(1, B + 1):
        if B % d != 0 or d * nW * N > row_cap:
            continue
        best_any = d
        if B // d >= 2:
            best_multi = d            # largest divisor still giving >=2 steps
    if best_multi is not None:
        return best_multi
    if best_any is not None:
        return best_any
    return 1


def _choose_row_tile(T, cap=512):
    # cap=512 is safe for v7x's 64 MiB VMEM; v5e could raise toward 1024.
    best_any = None
    for d in range(min(cap, T), 7, -1):
        if T % d == 0 and d % 8 == 0:
            if best_any is None:
                best_any = d
            if T // d >= 2:
                return d, 0
    if best_any is not None:
        return best_any, 0
    # No aligned divisor: pad the token dim and crop afterwards.
    rt = min(cap, ((T + 7) // 8) * 8)
    pad = (-T) % rt
    return rt, pad


# ----------------------------------------------------------------------------
# Pallas wrappers
# ----------------------------------------------------------------------------
def window_attention(xw, p, num_heads, scale, Wb, nW, valid, mask):
    nWB, N, C = xw.shape
    assert nWB % Wb == 0
    has_mask = mask is not None
    has_valid = valid is not None
    kern = functools.partial(window_attn_kernel, num_heads=num_heads,
                             scale=scale, nW=nW,
                             has_mask=has_mask, has_valid=has_valid)

    in_specs = [
        pl.BlockSpec((Wb, N, C), lambda i: (i, 0, 0)),          # x windows
        _const_spec((1, 1, C), lambda i: (0, 0, 0)),            # LN1 gamma
        _const_spec((1, 1, C), lambda i: (0, 0, 0)),            # LN1 beta
        _const_spec((C, 3 * C), lambda i: (0, 0)),              # W_qkv (bf16)
        _const_spec((1, 3 * C), lambda i: (0, 0)),              # b_qkv
        _const_spec((C, C), lambda i: (0, 0)),                  # W_proj (bf16)
        _const_spec((1, C), lambda i: (0, 0)),                  # b_proj
        _const_spec((num_heads, N, N), lambda i: (0, 0, 0)),    # rel pos bias
    ]
    args = [xw, p['ln1_g'], p['ln1_b'], p['w_qkv_b'], p['b_qkv'],
            p['w_proj_b'], p['b_proj'], p['rel_bias']]
    if has_valid:
        in_specs.append(_const_spec((nW, N, 1), lambda i: (0, 0, 0)))
        args.append(valid)
    if has_mask:
        in_specs.append(_const_spec((nW, N, N), lambda i: (0, 0, 0)))
        args.append(mask)

    return pl.pallas_call(
        kern,
        out_shape=jax.ShapeDtypeStruct((nWB, N, C), xw.dtype),
        grid=(nWB // Wb,),
        in_specs=in_specs,
        out_specs=pl.BlockSpec((Wb, N, C), lambda i: (i, 0, 0)),
        compiler_params=pltpu.CompilerParams(
            dimension_semantics=("parallel",),
            vmem_limit_bytes=_VMEM_LIMIT_BYTES),
    )(*args)


def ffn_ln(x2d, p):
    T, C = x2d.shape
    FF = p['w1_b'].shape[1]
    rt, pad = _choose_row_tile(T)
    xin = jnp.pad(x2d, ((0, pad), (0, 0))) if pad else x2d
    Tp = T + pad
    out = pl.pallas_call(
        ffn_ln_kernel,
        out_shape=jax.ShapeDtypeStruct((Tp, C), x2d.dtype),
        grid=(Tp // rt,),
        in_specs=[pl.BlockSpec((rt, C), lambda i: (i, 0)),
                  _const_spec((1, C), lambda i: (0, 0)),
                  _const_spec((1, C), lambda i: (0, 0)),
                  _const_spec((C, FF), lambda i: (0, 0)),
                  _const_spec((1, FF), lambda i: (0, 0)),
                  _const_spec((FF, C), lambda i: (0, 0)),
                  _const_spec((1, C), lambda i: (0, 0))],
        out_specs=pl.BlockSpec((rt, C), lambda i: (i, 0)),
        compiler_params=pltpu.CompilerParams(
            dimension_semantics=("parallel",),
            vmem_limit_bytes=_VMEM_LIMIT_BYTES),
    )(xin, p['ln2_g'], p['ln2_b'], p['w1_b'], p['b1'], p['w2_b'], p['b2'])
    return out[:T] if pad else out


# ----------------------------------------------------------------------------
# Plain-JAX glue (window partition/reverse, shift, masks)
# ----------------------------------------------------------------------------
def window_partition(x, ws):
    B, H, W, C = x.shape
    x = x.reshape(B, H // ws, ws, W // ws, ws, C)
    return x.transpose(0, 1, 3, 2, 4, 5).reshape(-1, ws, ws, C)


def window_reverse(windows, ws, H, W):
    B = windows.shape[0] // (H * W // ws // ws)
    x = windows.reshape(B, H // ws, W // ws, ws, ws, -1)
    return x.transpose(0, 1, 3, 2, 4, 5).reshape(B, H, W, -1)


def compute_shift_attn_mask(H_pad, W_pad, ws, shift):
    img_mask = np.zeros((1, H_pad, W_pad, 1), dtype=np.float32)
    h_slices = (slice(0, -ws), slice(-ws, -shift), slice(-shift, None))
    w_slices = (slice(0, -ws), slice(-ws, -shift), slice(-shift, None))
    cnt = 0
    for h in h_slices:
        for w in w_slices:
            img_mask[:, h, w, :] = cnt
            cnt += 1
    mw = img_mask.reshape(1, H_pad // ws, ws, W_pad // ws, ws, 1)
    mw = mw.transpose(0, 1, 3, 2, 4, 5).reshape(-1, ws * ws)
    attn_mask = mw[:, None, :] - mw[:, :, None]
    attn_mask = np.where(attn_mask != 0, -100.0, 0.0).astype(np.float32)
    return attn_mask                                       # (nW, N, N)


def compute_valid_tokens(H, W, H_pad, W_pad, ws, shift):
    """(nW, N, 1) multiplier that re-zeroes padded tokens after the fused LN."""
    valid = np.zeros((H_pad, W_pad), np.float32)
    valid[:H, :W] = 1.0
    if shift > 0:
        valid = np.roll(valid, (-shift, -shift), axis=(0, 1))
    v = valid.reshape(H_pad // ws, ws, W_pad // ws, ws).transpose(0, 2, 1, 3)
    return v.reshape(-1, ws * ws, 1)


def shift_window_msa(x, hw_shape, p, ws, shift, num_heads):
    """Returns x + ShiftWindowMSA(LN1(x))  (LN1 and residual fused in-kernel)."""
    B, L, C = x.shape
    H, W = hw_shape
    assert L == H * W
    xs = x.reshape(B, H, W, C)
    pad_r = (ws - W % ws) % ws
    pad_b = (ws - H % ws) % ws
    if pad_r or pad_b:
        xs = jnp.pad(xs, ((0, 0), (0, pad_b), (0, pad_r), (0, 0)))
    H_pad, W_pad = xs.shape[1], xs.shape[2]
    nW = (H_pad // ws) * (W_pad // ws)
    N = ws * ws

    # TODO(synk): fold roll + window partition/reverse into BlockSpec index_maps
    # (grid over (B, H/ws, W/ws)) to remove these XLA HBM passes.
    if shift > 0:
        xs = jnp.roll(xs, shift=(-shift, -shift), axis=(1, 2))
        attn_mask = jnp.asarray(compute_shift_attn_mask(H_pad, W_pad, ws, shift))
    else:
        attn_mask = None

    xw = window_partition(xs, ws).reshape(-1, N, C)        # (B*nW, N, C)

    b_block = _choose_b_block(B, nW, N)
    Wb = b_block * nW

    valid = None
    if pad_r or pad_b:
        valid = jnp.asarray(compute_valid_tokens(H, W, H_pad, W_pad, ws, shift))

    head_dim = C // num_heads
    scale = head_dim ** (-0.5)
    attn_out = window_attention(xw, p, num_heads, scale, Wb, nW, valid, attn_mask)

    attn_out = attn_out.reshape(-1, ws, ws, C)
    shifted = window_reverse(attn_out, ws, H_pad, W_pad)
    if shift > 0:
        shifted = jnp.roll(shifted, shift=(shift, shift), axis=(1, 2))
    return shifted[:, :H, :W, :].reshape(B, H * W, C)


def swin_block(x, hw_shape, p, ws, shift, num_heads):
    B, L, C = x.shape
    x = shift_window_msa(x, hw_shape, p, ws, shift, num_heads)   # LN1+MSA+res
    out = ffn_ln(x.reshape(B * L, C), p)                         # LN2+FFN+res
    return out.reshape(B, L, C)


def swin_block_sequence(x, hw_shape, params, ws, num_heads):
    for i, p in enumerate(params):
        shift = 0 if i % 2 == 0 else ws // 2
        x = swin_block(x, hw_shape, p, ws, shift, num_heads)
    # downsample is None -> (x, hw_shape, x, hw_shape)
    return x, hw_shape, x, hw_shape


# ----------------------------------------------------------------------------
# Deterministic parameter construction
# ----------------------------------------------------------------------------
def make_rel_position_index(ws):
    Wh = Ww = ws
    seq1 = np.arange(0, (2 * Ww - 1) * Wh, 2 * Ww - 1)
    seq2 = np.arange(0, Ww)
    coords = (seq1[:, None] + seq2[None, :]).reshape(1, -1)     # (1, N)
    rel_idx = coords + coords.T                                 # (N, N)
    rel_idx = rel_idx[:, ::-1].copy()                           # flip dim 1
    return rel_idx


def init_params(key, depth, C, num_heads, FF, ws):
    N = ws * ws
    rel_idx = make_rel_position_index(ws)

    def rnd(k, shape):
        return 0.02 * jax.random.normal(k, shape, dtype=jnp.float32)

    params = []
    for _ in range(depth):
        key, kqkv, kp, k1, k2, kt, kb = jax.random.split(key, 7)
        kb1, kb2, kb3, kb4, kb5, kb6, kb7, kb8 = jax.random.split(kb, 8)
        table = rnd(kt, ((2 * ws - 1) * (2 * ws - 1), num_heads))
        rel_bias = table[jnp.asarray(rel_idx.reshape(-1))]
        rel_bias = rel_bias.reshape(N, N, num_heads).transpose(2, 0, 1)  # (nh,N,N)
        p = dict(
            ln1_g=1.0 + rnd(kb1, (1, 1, C)), ln1_b=rnd(kb2, (1, 1, C)),
            ln2_g=1.0 + rnd(kb3, (1, C)), ln2_b=rnd(kb4, (1, C)),
            w_qkv=rnd(kqkv, (C, 3 * C)), b_qkv=rnd(kb5, (1, 3 * C)),
            w_proj=rnd(kp, (C, C)), b_proj=rnd(kb6, (1, C)),
            w1=rnd(k1, (C, FF)), b1=rnd(kb7, (1, FF)),
            w2=rnd(k2, (FF, C)), b2=rnd(kb8, (1, C)),
            rel_bias=rel_bias,
        )
        # bf16 weight copies for the MXU (f32 masters kept for the reference).
        p['w_qkv_b'] = p['w_qkv'].astype(jnp.bfloat16)
        p['w_proj_b'] = p['w_proj'].astype(jnp.bfloat16)
        p['w1_b'] = p['w1'].astype(jnp.bfloat16)
        p['w2_b'] = p['w2'].astype(jnp.bfloat16)
        params.append(p)
    return params


# ----------------------------------------------------------------------------
# Pure-JAX (f32) reference of the PyTorch module for self-checking
# ----------------------------------------------------------------------------
def reference_forward(x, hw_shape, params, ws, num_heads):
    B, L, C = x.shape
    H, W = hw_shape
    hd = C // num_heads
    scale = hd ** (-0.5)
    N = ws * ws
    for i, p in enumerate(params):
        shift = 0 if i % 2 == 0 else ws // 2
        identity = x
        xn = _layer_norm_f32(x, p['ln1_g'], p['ln1_b'])
        q4 = xn.reshape(B, H, W, C)
        pad_r = (ws - W % ws) % ws
        pad_b = (ws - H % ws) % ws
        q4 = jnp.pad(q4, ((0, 0), (0, pad_b), (0, pad_r), (0, 0)))
        Hp, Wp = q4.shape[1], q4.shape[2]
        if shift > 0:
            q4 = jnp.roll(q4, (-shift, -shift), axis=(1, 2))
            attn_mask = jnp.asarray(compute_shift_attn_mask(Hp, Wp, ws, shift))
        else:
            attn_mask = None
        win = window_partition(q4, ws).reshape(-1, N, C)
        nWB = win.shape[0]
        qkv = (win.reshape(nWB * N, C) @ p['w_qkv'] + p['b_qkv'])
        qkv = qkv.reshape(nWB, N, 3, num_heads, hd).transpose(2, 0, 3, 1, 4)
        q, k, v = qkv[0] * scale, qkv[1], qkv[2]
        attn = q @ jnp.swapaxes(k, -2, -1) + p['rel_bias'][None]
        if attn_mask is not None:
            nW = attn_mask.shape[0]
            attn = (attn.reshape(nWB // nW, nW, num_heads, N, N)
                    + attn_mask[None, :, None]).reshape(nWB, num_heads, N, N)
        attn = jax.nn.softmax(attn, axis=-1)
        out = jnp.swapaxes(attn @ v, 1, 2).reshape(nWB, N, C)
        out = out @ p['w_proj'] + p['b_proj']
        sx = window_reverse(out.reshape(-1, ws, ws, C), ws, Hp, Wp)
        if shift > 0:
            sx = jnp.roll(sx, (shift, shift), axis=(1, 2))
        x = identity + sx[:, :H, :W, :].reshape(B, L, C)
        xn2 = _layer_norm_f32(x, p['ln2_g'], p['ln2_b'])
        h = jax.nn.gelu(xn2 @ p['w1'] + p['b1'], approximate=False)
        x = x + (h @ p['w2'] + p['b2'])
    return x


# ----------------------------------------------------------------------------
if __name__ == "__main__":
    # Small config: embed_dims=32, num_heads=4, feedforward_channels=64,
    # depth=2, window_size=4, spatial 8x8, batch 2.
    B, H, W = 2, 8, 8
    C, num_heads, FF, depth, ws = 32, 4, 64, 2, 4
    hw_shape = (H, W)

    key = jax.random.PRNGKey(0)
    key, kx = jax.random.split(key)
    x = jax.random.normal(kx, (B, H * W, C), dtype=jnp.float32)
    params = init_params(key, depth, C, num_heads, FF, ws)

    @jax.jit
    def run(x_in):
        out, _, feat, _ = swin_block_sequence(x_in, hw_shape, params, ws, num_heads)
        return out, feat

    out, feat = run(x)
    out = jax.block_until_ready(out)
    feat = jax.block_until_ready(feat)

    ref = jax.jit(lambda xi: reference_forward(xi, hw_shape, params, ws,
                                               num_heads))(x)
    ref = jax.block_until_ready(ref)

    assert out.shape == (B, H * W, C)
    assert feat.shape == (B, H * W, C)
    assert bool(jnp.all(jnp.isfinite(out)))
    # bf16 MXU operands vs f32 reference -> loose tolerance (documented).
    max_err = float(jnp.max(jnp.abs(out - ref)))
    assert max_err < 2e-2, f"max abs error vs reference: {max_err}"
    print("KERNEL_OK")
</pallas_src>

<mosaic_0001>
module attributes {stable_mosaic.version = 11 : i64} {
  func.func @window_attn_kernel(%arg0: i32, %arg1: memref<4x16x32xf32, #tpu.memory_space<vmem>>, %arg2: memref<1x1x32xf32, #tpu.memory_space<vmem>>, %arg3: memref<1x1x32xf32, #tpu.memory_space<vmem>>, %arg4: memref<32x96xbf16, #tpu.memory_space<vmem>>, %arg5: memref<1x96xf32, #tpu.memory_space<vmem>>, %arg6: memref<32x32xbf16, #tpu.memory_space<vmem>>, %arg7: memref<1x32xf32, #tpu.memory_space<vmem>>, %arg8: memref<4x16x16xf32, #tpu.memory_space<vmem>>, %arg9: memref<4x16x32xf32, #tpu.memory_space<vmem>>) attributes {dimension_semantics = [#tpu.dimension_semantics<parallel>], iteration_bounds = array<i64: 2>, scalar_prefetch = 0 : i64, scratch_operands = 0 : i64, tpu.core_type = #tpu.core_type<tc>, window_params = [{transform_indices = @transform_0, window_bounds = array<i64: 4, 16, 32>}, {pipeline_mode = #tpu.pipeline_mode<synchronous>, transform_indices = @transform_1, window_bounds = array<i64: 1, 1, 32>}, {pipeline_mode = #tpu.pipeline_mode<synchronous>, transform_indices = @transform_2, window_bounds = array<i64: 1, 1, 32>}, {pipeline_mode = #tpu.pipeline_mode<synchronous>, transform_indices = @transform_3, window_bounds = array<i64: 32, 96>}, {pipeline_mode = #tpu.pipeline_mode<synchronous>, transform_indices = @transform_4, window_bounds = array<i64: 1, 96>}, {pipeline_mode = #tpu.pipeline_mode<synchronous>, transform_indices = @transform_5, window_bounds = array<i64: 32, 32>}, {pipeline_mode = #tpu.pipeline_mode<synchronous>, transform_indices = @transform_6, window_bounds = array<i64: 1, 32>}, {pipeline_mode = #tpu.pipeline_mode<synchronous>, transform_indices = @transform_7, window_bounds = array<i64: 4, 16, 16>}, {transform_indices = @transform_8, window_bounds = array<i64: 4, 16, 32>}]} {
    %c0 = arith.constant 0 : index
    %c0_0 = arith.constant 0 : index
    %c0_1 = arith.constant 0 : index
    %0 = vector.load %arg1[%c0, %c0_0, %c0_1] : memref<4x16x32xf32, #tpu.memory_space<vmem>>, vector<4x16x32xf32>
    %c0_2 = arith.constant 0 : index
    %c0_3 = arith.constant 0 : index
    %c0_4 = arith.constant 0 : index
    %1 = vector.load %arg2[%c0_2, %c0_3, %c0_4] : memref<1x1x32xf32, #tpu.memory_space<vmem>>, vector<1x1x32xf32>
    %c0_5 = arith.constant 0 : index
    %c0_6 = arith.constant 0 : index
    %c0_7 = arith.constant 0 : index
    %2 = vector.load %arg3[%c0_5, %c0_6, %c0_7] : memref<1x1x32xf32, #tpu.memory_space<vmem>>, vector<1x1x32xf32>
    %cst = arith.constant dense<0.000000e+00> : vector<4x16xf32>
    %3 = vector.multi_reduction <add>, %0, %cst [2] : vector<4x16x32xf32> to vector<4x16xf32>
    %4 = vector.shape_cast %3 : vector<4x16xf32> to vector<4x16x1xf32>
    %cst_8 = arith.constant 3.200000e+01 : f32
    %5 = vector.broadcast %cst_8 : f32 to vector<4x16x1xf32>
    %6 = arith.divf %4, %5 : vector<4x16x1xf32>
    %7 = vector.broadcast %6 : vector<4x16x1xf32> to vector<4x16x32xf32>
    %8 = arith.subf %0, %7 : vector<4x16x32xf32>
    %9 = arith.mulf %8, %8 : vector<4x16x32xf32>
    %cst_9 = arith.constant dense<0.000000e+00> : vector<4x16xf32>
    %10 = vector.multi_reduction <add>, %9, %cst_9 [2] : vector<4x16x32xf32> to vector<4x16xf32>
    %11 = vector.shape_cast %10 : vector<4x16xf32> to vector<4x16x1xf32>
    %cst_10 = arith.constant 3.200000e+01 : f32
    %12 = vector.broadcast %cst_10 : f32 to vector<4x16x1xf32>
    %13 = arith.divf %11, %12 : vector<4x16x1xf32>
    %14 = vector.broadcast %6 : vector<4x16x1xf32> to vector<4x16x32xf32>
    %15 = arith.subf %0, %14 : vector<4x16x32xf32>
    %cst_11 = arith.constant 9.99999974E-6 : f32
    %16 = vector.broadcast %cst_11 : f32 to vector<4x16x1xf32>
    %17 = arith.addf %13, %16 : vector<4x16x1xf32>
    %18 = math.rsqrt %17 : vector<4x16x1xf32>
    %19 = vector.broadcast %18 : vector<4x16x1xf32> to vector<4x16x32xf32>
    %20 = arith.mulf %15, %19 : vector<4x16x32xf32>
    %21 = vector.broadcast %1 : vector<1x1x32xf32> to vector<4x16x32xf32>
    %22 = arith.mulf %20, %21 : vector<4x16x32xf32>
    %23 = vector.broadcast %2 : vector<1x1x32xf32> to vector<4x16x32xf32>
    %24 = arith.addf %22, %23 : vector<4x16x32xf32>
    %25 = vector.shape_cast %24 : vector<4x16x32xf32> to vector<64x32xf32>
    %26 = arith.truncf %25 : vector<64x32xf32> to vector<64x32xbf16>
    %c0_12 = arith.constant 0 : index
    %c0_13 = arith.constant 0 : index
    %27 = vector.load %arg4[%c0_12, %c0_13] : memref<32x96xbf16, #tpu.memory_space<vmem>>, vector<32x96xbf16>
    %cst_14 = arith.constant dense<0.000000e+00> : vector<64x96xf32>
    %28 = tpu.matmul %26, %27, %cst_14 {dimension_numbers = #tpu.dot_dimension_numbers<[1], [0], [0], [1], [0, 0, 1, 1], [], []>} : vector<64x32xbf16>, vector<32x96xbf16>, vector<64x96xf32> -> vector<64x96xf32>
    %c0_15 = arith.constant 0 : index
    %c0_16 = arith.constant 0 : index
    %29 = vector.load %arg5[%c0_15, %c0_16] : memref<1x96xf32, #tpu.memory_space<vmem>>, vector<1x96xf32>
    %30 = vector.broadcast %29 : vector<1x96xf32> to vector<64x96xf32>
    %31 = arith.addf %28, %30 : vector<64x96xf32>
    %32 = vector.extract_strided_slice %31 {offsets = [0, 0], sizes = [64, 32], strides = [1, 1]} : vector<64x96xf32> to vector<64x32xf32>
    %33 = vector.shape_cast %32 : vector<64x32xf32> to vector<4x16x32xf32>
    %34 = vector.extract_strided_slice %31 {offsets = [0, 32], sizes = [64, 32], strides = [1, 1]} : vector<64x96xf32> to vector<64x32xf32>
    %35 = vector.shape_cast %34 : vector<64x32xf32> to vector<4x16x32xf32>
    %36 = vector.extract_strided_slice %31 {offsets = [0, 64], sizes = [64, 32], strides = [1, 1]} : vector<64x96xf32> to vector<64x32xf32>
    %37 = vector.shape_cast %36 : vector<64x32xf32> to vector<4x16x32xf32>
    %c0_17 = arith.constant 0 : index
    %c0_18 = arith.constant 0 : index
    %c0_19 = arith.constant 0 : index
    %38 = vector.load %arg8[%c0_17, %c0_18, %c0_19] : memref<4x16x16xf32, #tpu.memory_space<vmem>>, vector<4x16x16xf32>
    %39 = arith.truncf %33 : vector<4x16x32xf32> to vector<4x16x32xbf16>
    %40 = arith.truncf %35 : vector<4x16x32xf32> to vector<4x16x32xbf16>
    %41 = arith.truncf %37 : vector<4x16x32xf32> to vector<4x16x32xbf16>
    %42 = tpu.iota {dimensions = array<i32: 2>} : vector<1x1x32xi32>
    %cst_20 = arith.constant 0.000000e+00 : f32
    %43 = vector.broadcast %cst_20 : f32 to vector<4x16x32xf32>
    %c0_i32 = arith.constant 0 : i32
    %44 = vector.broadcast %c0_i32 : i32 to vector<1x1x32xi32>
    %45 = arith.cmpi sge, %42, %44 : vector<1x1x32xi32>
    %c8_i32 = arith.constant 8 : i32
    %46 = vector.broadcast %c8_i32 : i32 to vector<1x1x32xi32>
    %47 = arith.cmpi slt, %42, %46 : vector<1x1x32xi32>
    %48 = arith.andi %45, %47 : vector<1x1x32xi1>
    %49 = arith.extui %48 : vector<1x1x32xi1> to vector<1x1x32xi32>
    %50 = arith.sitofp %49 : vector<1x1x32xi32> to vector<1x1x32xf32>
    %51 = arith.truncf %50 : vector<1x1x32xf32> to vector<1x1x32xbf16>
    %52 = vector.broadcast %51 : vector<1x1x32xbf16> to vector<4x16x32xbf16>
    %53 = arith.mulf %39, %52 : vector<4x16x32xbf16>
    "tpu.trace_start"() <{level = 10 : i32, message = "wnc,wmc->wnm"}> : () -> ()
    %cst_21 = arith.constant dense<0.000000e+00> : vector<4x16x16xf32>
    %54 = tpu.matmul %53, %40, %cst_21 {dimension_numbers = #tpu.dot_dimension_numbers<[2], [2], [1], [1], [0, 0, 0, 1, 1, 1], [0], [0]>} : vector<4x16x32xbf16>, vector<4x16x32xbf16>, vector<4x16x16xf32> -> vector<4x16x16xf32>
    "tpu.trace_stop"() : () -> ()
    %cst_22 = arith.constant 0.353553385 : f32
    %55 = vector.broadcast %cst_22 : f32 to vector<4x16x16xf32>
    %56 = arith.mulf %54, %55 : vector<4x16x16xf32>
    %57 = vector.extract_strided_slice %38 {offsets = [0, 0, 0], sizes = [1, 16, 16], strides = [1, 1, 1]} : vector<4x16x16xf32> to vector<1x16x16xf32>
    %58 = vector.shape_cast %57 : vector<1x16x16xf32> to vector<16x16xf32>
    %59 = vector.shape_cast %58 : vector<16x16xf32> to vector<1x16x16xf32>
    %60 = vector.broadcast %59 : vector<1x16x16xf32> to vector<4x16x16xf32>
    %61 = arith.addf %56, %60 : vector<4x16x16xf32>
    %cst_23 = arith.constant dense<0xFF800000> : vector<4x16xf32>
    %62 = vector.multi_reduction <maximumf>, %61, %cst_23 [2] : vector<4x16x16xf32> to vector<4x16xf32>
    %63 = vector.shape_cast %62 : vector<4x16xf32> to vector<4x16x1xf32>
    %64 = vector.broadcast %63 : vector<4x16x1xf32> to vector<4x16x16xf32>
    %65 = arith.subf %61, %64 : vector<4x16x16xf32>
    %66 = math.exp %65 : vector<4x16x16xf32>
    %cst_24 = arith.constant dense<0.000000e+00> : vector<4x16xf32>
    %67 = vector.multi_reduction <add>, %66, %cst_24 [2] : vector<4x16x16xf32> to vector<4x16xf32>
    %68 = vector.shape_cast %67 : vector<4x16xf32> to vector<4x16x1xf32>
    %69 = vector.broadcast %68 : vector<4x16x1xf32> to vector<4x16x16xf32>
    %70 = arith.divf %66, %69 : vector<4x16x16xf32>
    %71 = arith.truncf %70 : vector<4x16x16xf32> to vector<4x16x16xbf16>
    %72 = vector.broadcast %51 : vector<1x1x32xbf16> to vector<4x16x32xbf16>
    %73 = arith.mulf %41, %72 : vector<4x16x32xbf16>
    "tpu.trace_start"() <{level = 10 : i32, message = "wnm,wmc->wnc"}> : () -> ()
    %cst_25 = arith.constant dense<0.000000e+00> : vector<4x16x32xf32>
    %74 = tpu.matmul %71, %73, %cst_25 {dimension_numbers = #tpu.dot_dimension_numbers<[2], [1], [1], [2], [0, 0, 0, 1, 1, 2], [0], [0]>} : vector<4x16x16xbf16>, vector<4x16x32xbf16>, vector<4x16x32xf32> -> vector<4x16x32xf32>
    "tpu.trace_stop"() : () -> ()
    %75 = arith.addf %43, %74 : vector<4x16x32xf32>
    %c8_i32_26 = arith.constant 8 : i32
    %76 = vector.broadcast %c8_i32_26 : i32 to vector<1x1x32xi32>
    %77 = arith.cmpi sge, %42, %76 : vector<1x1x32xi32>
    %c16_i32 = arith.constant 16 : i32
    %78 = vector.broadcast %c16_i32 : i32 to vector<1x1x32xi32>
    %79 = arith.cmpi slt, %42, %78 : vector<1x1x32xi32>
    %80 = arith.andi %77, %79 : vector<1x1x32xi1>
    %81 = arith.extui %80 : vector<1x1x32xi1> to vector<1x1x32xi32>
    %82 = arith.sitofp %81 : vector<1x1x32xi32> to vector<1x1x32xf32>
    %83 = arith.truncf %82 : vector<1x1x32xf32> to vector<1x1x32xbf16>
    %84 = vector.broadcast %83 : vector<1x1x32xbf16> to vector<4x16x32xbf16>
    %85 = arith.mulf %39, %84 : vector<4x16x32xbf16>
    "tpu.trace_start"() <{level = 10 : i32, message = "wnc,wmc->wnm"}> : () -> ()
    %cst_27 = arith.constant dense<0.000000e+00> : vector<4x16x16xf32>
    %86 = tpu.matmul %85, %40, %cst_27 {dimension_numbers = #tpu.dot_dimension_numbers<[2], [2], [1], [1], [0, 0, 0, 1, 1, 1], [0], [0]>} : vector<4x16x32xbf16>, vector<4x16x32xbf16>, vector<4x16x16xf32> -> vector<4x16x16xf32>
    "tpu.trace_stop"() : () -> ()
    %cst_28 = arith.constant 0.353553385 : f32
    %87 = vector.broadcast %cst_28 : f32 to vector<4x16x16xf32>
    %88 = arith.mulf %86, %87 : vector<4x16x16xf32>
    %89 = vector.extract_strided_slice %38 {offsets = [1, 0, 0], sizes = [1, 16, 16], strides = [1, 1, 1]} : vector<4x16x16xf32> to vector<1x16x16xf32>
    %90 = vector.shape_cast %89 : vector<1x16x16xf32> to vector<16x16xf32>
    %91 = vector.shape_cast %90 : vector<16x16xf32> to vector<1x16x16xf32>
    %92 = vector.broadcast %91 : vector<1x16x16xf32> to vector<4x16x16xf32>
    %93 = arith.addf %88, %92 : vector<4x16x16xf32>
    %cst_29 = arith.constant dense<0xFF800000> : vector<4x16xf32>
    %94 = vector.multi_reduction <maximumf>, %93, %cst_29 [2] : vector<4x16x16xf32> to vector<4x16xf32>
    %95 = vector.shape_cast %94 : vector<4x16xf32> to vector<4x16x1xf32>
    %96 = vector.broadcast %95 : vector<4x16x1xf32> to vector<4x16x16xf32>
    %97 = arith.subf %93, %96 : vector<4x16x16xf32>
    %98 = math.exp %97 : vector<4x16x16xf32>
    %cst_30 = arith.constant dense<0.000000e+00> : vector<4x16xf32>
    %99 = vector.multi_reduction <add>, %98, %cst_30 [2] : vector<4x16x16xf32> to vector<4x16xf32>
    %100 = vector.shape_cast %99 : vector<4x16xf32> to vector<4x16x1xf32>
    %101 = vector.broadcast %100 : vector<4x16x1xf32> to vector<4x16x16xf32>
    %102 = arith.divf %98, %101 : vector<4x16x16xf32>
    %103 = arith.truncf %102 : vector<4x16x16xf32> to vector<4x16x16xbf16>
    %104 = vector.broadcast %83 : vector<1x1x32xbf16> to vector<4x16x32xbf16>
    %105 = arith.mulf %41, %104 : vector<4x16x32xbf16>
    "tpu.trace_start"() <{level = 10 : i32, message = "wnm,wmc->wnc"}> : () -> ()
    %cst_31 = arith.constant dense<0.000000e+00> : vector<4x16x32xf32>
    %106 = tpu.matmul %103, %105, %cst_31 {dimension_numbers = #tpu.dot_dimension_numbers<[2], [1], [1], [2], [0, 0, 0, 1, 1, 2], [0], [0]>} : vector<4x16x16xbf16>, vector<4x16x32xbf16>, vector<4x16x32xf32> -> vector<4x16x32xf32>
    "tpu.trace_stop"() : () -> ()
    %107 = arith.addf %75, %106 : vector<4x16x32xf32>
    %c16_i32_32 = arith.constant 16 : i32
    %108 = vector.broadcast %c16_i32_32 : i32 to vector<1x1x32xi32>
    %109 = arith.cmpi sge, %42, %108 : vector<1x1x32xi32>
    %c24_i32 = arith.constant 24 : i32
    %110 = vector.broadcast %c24_i32 : i32 to vector<1x1x32xi32>
    %111 = arith.cmpi slt, %42, %110 : vector<1x1x32xi32>
    %112 = arith.andi %109, %111 : vector<1x1x32xi1>
    %113 = arith.extui %112 : vector<1x1x32xi1> to vector<1x1x32xi32>
    %114 = arith.sitofp %113 : vector<1x1x32xi32> to vector<1x1x32xf32>
    %115 = arith.truncf %114 : vector<1x1x32xf32> to vector<1x1x32xbf16>
    %116 = vector.broadcast %115 : vector<1x1x32xbf16> to vector<4x16x32xbf16>
    %117 = arith.mulf %39, %116 : vector<4x16x32xbf16>
    "tpu.trace_start"() <{level = 10 : i32, message = "wnc,wmc->wnm"}> : () -> ()
    %cst_33 = arith.constant dense<0.000000e+00> : vector<4x16x16xf32>
    %118 = tpu.matmul %117, %40, %cst_33 {dimension_numbers = #tpu.dot_dimension_numbers<[2], [2], [1], [1], [0, 0, 0, 1, 1, 1], [0], [0]>} : vector<4x16x32xbf16>, vector<4x16x32xbf16>, vector<4x16x16xf32> -> vector<4x16x16xf32>
    "tpu.trace_stop"() : () -> ()
    %cst_34 = arith.constant 0.353553385 : f32
    %119 = vector.broadcast %cst_34 : f32 to vector<4x16x16xf32>
    %120 = arith.mulf %118, %119 : vector<4x16x16xf32>
    %121 = vector.extract_strided_slice %38 {offsets = [2, 0, 0], sizes = [1, 16, 16], strides = [1, 1, 1]} : vector<4x16x16xf32> to vector<1x16x16xf32>
    %122 = vector.shape_cast %121 : vector<1x16x16xf32> to vector<16x16xf32>
    %123 = vector.shape_cast %122 : vector<16x16xf32> to vector<1x16x16xf32>
    %124 = vector.broadcast %123 : vector<1x16x16xf32> to vector<4x16x16xf32>
    %125 = arith.addf %120, %124 : vector<4x16x16xf32>
    %cst_35 = arith.constant dense<0xFF800000> : vector<4x16xf32>
    %126 = vector.multi_reduction <maximumf>, %125, %cst_35 [2] : vector<4x16x16xf32> to vector<4x16xf32>
    %127 = vector.shape_cast %126 : vector<4x16xf32> to vector<4x16x1xf32>
    %128 = vector.broadcast %127 : vector<4x16x1xf32> to vector<4x16x16xf32>
    %129 = arith.subf %125, %128 : vector<4x16x16xf32>
    %130 = math.exp %129 : vector<4x16x16xf32>
    %cst_36 = arith.constant dense<0.000000e+00> : vector<4x16xf32>
    %131 = vector.multi_reduction <add>, %130, %cst_36 [2] : vector<4x16x16xf32> to vector<4x16xf32>
    %132 = vector.shape_cast %131 : vector<4x16xf32> to vector<4x16x1xf32>
    %133 = vector.broadcast %132 : vector<4x16x1xf32> to vector<4x16x16xf32>
    %134 = arith.divf %130, %133 : vector<4x16x16xf32>
    %135 = arith.truncf %134 : vector<4x16x16xf32> to vector<4x16x16xbf16>
    %136 = vector.broadcast %115 : vector<1x1x32xbf16> to vector<4x16x32xbf16>
    %137 = arith.mulf %41, %136 : vector<4x16x32xbf16>
    "tpu.trace_start"() <{level = 10 : i32, message = "wnm,wmc->wnc"}> : () -> ()
    %cst_37 = arith.constant dense<0.000000e+00> : vector<4x16x32xf32>
    %138 = tpu.matmul %135, %137, %cst_37 {dimension_numbers = #tpu.dot_dimension_numbers<[2], [1], [1], [2], [0, 0, 0, 1, 1, 2], [0], [0]>} : vector<4x16x16xbf16>, vector<4x16x32xbf16>, vector<4x16x32xf32> -> vector<4x16x32xf32>
    "tpu.trace_stop"() : () -> ()
    %139 = arith.addf %107, %138 : vector<4x16x32xf32>
    %c24_i32_38 = arith.constant 24 : i32
    %140 = vector.broadcast %c24_i32_38 : i32 to vector<1x1x32xi32>
    %141 = arith.cmpi sge, %42, %140 : vector<1x1x32xi32>
    %c32_i32 = arith.constant 32 : i32
    %142 = vector.broadcast %c32_i32 : i32 to vector<1x1x32xi32>
    %143 = arith.cmpi slt, %42, %142 : vector<1x1x32xi32>
    %144 = arith.andi %141, %143 : vector<1x1x32xi1>
    %145 = arith.extui %144 : vector<1x1x32xi1> to vector<1x1x32xi32>
    %146 = arith.sitofp %145 : vector<1x1x32xi32> to vector<1x1x32xf32>
    %147 = arith.truncf %146 : vector<1x1x32xf32> to vector<1x1x32xbf16>
    %148 = vector.broadcast %147 : vector<1x1x32xbf16> to vector<4x16x32xbf16>
    %149 = arith.mulf %39, %148 : vector<4x16x32xbf16>
    "tpu.trace_start"() <{level = 10 : i32, message = "wnc,wmc->wnm"}> : () -> ()
    %cst_39 = arith.constant dense<0.000000e+00> : vector<4x16x16xf32>
    %150 = tpu.matmul %149, %40, %cst_39 {dimension_numbers = #tpu.dot_dimension_numbers<[2], [2], [1], [1], [0, 0, 0, 1, 1, 1], [0], [0]>} : vector<4x16x32xbf16>, vector<4x16x32xbf16>, vector<4x16x16xf32> -> vector<4x16x16xf32>
    "tpu.trace_stop"() : () -> ()
    %cst_40 = arith.constant 0.353553385 : f32
    %151 = vector.broadcast %cst_40 : f32 to vector<4x16x16xf32>
    %152 = arith.mulf %150, %151 : vector<4x16x16xf32>
    %153 = vector.extract_strided_slice %38 {offsets = [3, 0, 0], sizes = [1, 16, 16], strides = [1, 1, 1]} : vector<4x16x16xf32> to vector<1x16x16xf32>
    %154 = vector.shape_cast %153 : vector<1x16x16xf32> to vector<16x16xf32>
    %155 = vector.shape_cast %154 : vector<16x16xf32> to vector<1x16x16xf32>
    %156 = vector.broadcast %155 : vector<1x16x16xf32> to vector<4x16x16xf32>
    %157 = arith.addf %152, %156 : vector<4x16x16xf32>
    %cst_41 = arith.constant dense<0xFF800000> : vector<4x16xf32>
    %158 = vector.multi_reduction <maximumf>, %157, %cst_41 [2] : vector<4x16x16xf32> to vector<4x16xf32>
    %159 = vector.shape_cast %158 : vector<4x16xf32> to vector<4x16x1xf32>
    %160 = vector.broadcast %159 : vector<4x16x1xf32> to vector<4x16x16xf32>
    %161 = arith.subf %157, %160 : vector<4x16x16xf32>
    %162 = math.exp %161 : vector<4x16x16xf32>
    %cst_42 = arith.constant dense<0.000000e+00> : vector<4x16xf32>
    %163 = vector.multi_reduction <add>, %162, %cst_42 [2] : vector<4x16x16xf32> to vector<4x16xf32>
    %164 = vector.shape_cast %163 : vector<4x16xf32> to vector<4x16x1xf32>
    %165 = vector.broadcast %164 : vector<4x16x1xf32> to vector<4x16x16xf32>
    %166 = arith.divf %162, %165 : vector<4x16x16xf32>
    %167 = arith.truncf %166 : vector<4x16x16xf32> to vector<4x16x16xbf16>
    %168 = vector.broadcast %147 : vector<1x1x32xbf16> to vector<4x16x32xbf16>
    %169 = arith.mulf %41, %168 : vector<4x16x32xbf16>
    "tpu.trace_start"() <{level = 10 : i32, message = "wnm,wmc->wnc"}> : () -> ()
    %cst_43 = arith.constant dense<0.000000e+00> : vector<4x16x32xf32>
    %170 = tpu.matmul %167, %169, %cst_43 {dimension_numbers = #tpu.dot_dimension_numbers<[2], [1], [1], [2], [0, 0, 0, 1, 1, 2], [0], [0]>} : vector<4x16x16xbf16>, vector<4x16x32xbf16>, vector<4x16x32xf32> -> vector<4x16x32xf32>
    "tpu.trace_stop"() : () -> ()
    %171 = arith.addf %139, %170 : vector<4x16x32xf32>
    %172 = vector.shape_cast %171 : vector<4x16x32xf32> to vector<64x32xf32>
    %173 = arith.truncf %172 : vector<64x32xf32> to vector<64x32xbf16>
    %c0_44 = arith.constant 0 : index
    %c0_45 = arith.constant 0 : index
    %174 = vector.load %arg6[%c0_44, %c0_45] : memref<32x32xbf16, #tpu.memory_space<vmem>>, vector<32x32xbf16>
    %cst_46 = arith.constant dense<0.000000e+00> : vector<64x32xf32>
    %175 = tpu.matmul %173, %174, %cst_46 {dimension_numbers = #tpu.dot_dimension_numbers<[1], [0], [0], [1], [0, 0, 1, 1], [], []>} : vector<64x32xbf16>, vector<32x32xbf16>, vector<64x32xf32> -> vector<64x32xf32>
    %c0_47 = arith.constant 0 : index
    %c0_48 = arith.constant 0 : index
    %176 = vector.load %arg7[%c0_47, %c0_48] : memref<1x32xf32, #tpu.memory_space<vmem>>, vector<1x32xf32>
    %177 = vector.broadcast %176 : vector<1x32xf32> to vector<64x32xf32>
    %178 = arith.addf %175, %177 : vector<64x32xf32>
    %179 = vector.shape_cast %178 : vector<64x32xf32> to vector<4x16x32xf32>
    %180 = arith.addf %0, %179 : vector<4x16x32xf32>
    %c0_49 = arith.constant 0 : index
    %c0_50 = arith.constant 0 : index
    %c0_51 = arith.constant 0 : index
    %181 = vector.load %arg9[%c0_49, %c0_50, %c0_51] : memref<4x16x32xf32, #tpu.memory_space<vmem>>, vector<4x16x32xf32>
    tpu.vector_store %arg9[%c0_49, %c0_50, %c0_51], %180 {strides = array<i32>} : memref<4x16x32xf32, #tpu.memory_space<vmem>>, vector<4x16x32xf32>,
    return
  }
  func.func @transform_0(%arg0: i32) -> (i32, i32, i32) {
    %c0_i32 = arith.constant 0 : i32
    %c0_i32_0 = arith.constant 0 : i32
    %c0_i32_1 = arith.constant 0 : i32
    return %arg0, %c0_i32, %c0_i32_0 : i32, i32, i32
  }
  func.func @transform_1(%arg0: i32) -> (i32, i32, i32) {
    %c0_i32 = arith.constant 0 : i32
    %c0_i32_0 = arith.constant 0 : i32
    %c0_i32_1 = arith.constant 0 : i32
    %c0_i32_2 = arith.constant 0 : i32
    return %c0_i32, %c0_i32_0, %c0_i32_1 : i32, i32, i32
  }
  func.func @transform_2(%arg0: i32) -> (i32, i32, i32) {
    %c0_i32 = arith.constant 0 : i32
    %c0_i32_0 = arith.constant 0 : i32
    %c0_i32_1 = arith.constant 0 : i32
    %c0_i32_2 = arith.constant 0 : i32
    return %c0_i32, %c0_i32_0, %c0_i32_1 : i32, i32, i32
  }
  func.func @transform_3(%arg0: i32) -> (i32, i32) {
    %c0_i32 = arith.constant 0 : i32
    %c0_i32_0 = arith.constant 0 : i32
    %c0_i32_1 = arith.constant 0 : i32
    return %c0_i32, %c0_i32_0 : i32, i32
  }
  func.func @transform_4(%arg0: i32) -> (i32, i32) {
    %c0_i32 = arith.constant 0 : i32
    %c0_i32_0 = arith.constant 0 : i32
    %c0_i32_1 = arith.constant 0 : i32
    return %c0_i32, %c0_i32_0 : i32, i32
  }
  func.func @transform_5(%arg0: i32) -> (i32, i32) {
    %c0_i32 = arith.constant 0 : i32
    %c0_i32_0 = arith.constant 0 : i32
    %c0_i32_1 = arith.constant 0 : i32
    return %c0_i32, %c0_i32_0 : i32, i32
  }
  func.func @transform_6(%arg0: i32) -> (i32, i32) {
    %c0_i32 = arith.constant 0 : i32
    %c0_i32_0 = arith.constant 0 : i32
    %c0_i32_1 = arith.constant 0 : i32
    return %c0_i32, %c0_i32_0 : i32, i32
  }
  func.func @transform_7(%arg0: i32) -> (i32, i32, i32) {
    %c0_i32 = arith.constant 0 : i32
    %c0_i32_0 = arith.constant 0 : i32
    %c0_i32_1 = arith.constant 0 : i32
    %c0_i32_2 = arith.constant 0 : i32
    return %c0_i32, %c0_i32_0, %c0_i32_1 : i32, i32, i32
  }
  func.func @transform_8(%arg0: i32) -> (i32, i32, i32) {
    %c0_i32 = arith.constant 0 : i32
    %c0_i32_0 = arith.constant 0 : i32
    %c0_i32_1 = arith.constant 0 : i32
    return %arg0, %c0_i32, %c0_i32_0 : i32, i32, i32
  }
}

module attributes {stable_mosaic.version = 11 : i64} {
  func.func @ffn_ln_kernel(%arg0: i32, %arg1: memref<64x32xf32, #tpu.memory_space<vmem>>, %arg2: memref<1x32xf32, #tpu.memory_space<vmem>>, %arg3: memref<1x32xf32, #tpu.memory_space<vmem>>, %arg4: memref<32x64xbf16, #tpu.memory_space<vmem>>, %arg5: memref<1x64xf32, #tpu.memory_space<vmem>>, %arg6: memref<64x32xbf16, #tpu.memory_space<vmem>>, %arg7: memref<1x32xf32, #tpu.memory_space<vmem>>, %arg8: memref<64x32xf32, #tpu.memory_space<vmem>>) attributes {dimension_semantics = [#tpu.dimension_semantics<parallel>], iteration_bounds = array<i64: 2>, scalar_prefetch = 0 : i64, scratch_operands = 0 : i64, tpu.core_type = #tpu.core_type<tc>, window_params = [{transform_indices = @transform_0, window_bounds = array<i64: 64, 32>}, {pipeline_mode = #tpu.pipeline_mode<synchronous>, transform_indices = @transform_1, window_bounds = array<i64: 1, 32>}, {pipeline_mode = #tpu.pipeline_mode<synchronous>, transform_indices = @transform_2, window_bounds = array<i64: 1, 32>}, {pipeline_mode = #tpu.pipeline_mode<synchronous>, transform_indices = @transform_3, window_bounds = array<i64: 32, 64>}, {pipeline_mode = #tpu.pipeline_mode<synchronous>, transform_indices = @transform_4, window_bounds = array<i64: 1, 64>}, {pipeline_mode = #tpu.pipeline_mode<synchronous>, transform_indices = @transform_5, window_bounds = array<i64: 64, 32>}, {pipeline_mode = #tpu.pipeline_mode<synchronous>, transform_indices = @transform_6, window_bounds = array<i64: 1, 32>}, {transform_indices = @transform_7, window_bounds = array<i64: 64, 32>}]} {
    %c0 = arith.constant 0 : index
    %c0_0 = arith.constant 0 : index
    %0 = vector.load %arg1[%c0, %c0_0] : memref<64x32xf32, #tpu.memory_space<vmem>>, vector<64x32xf32>
    %c0_1 = arith.constant 0 : index
    %c0_2 = arith.constant 0 : index
    %1 = vector.load %arg2[%c0_1, %c0_2] : memref<1x32xf32, #tpu.memory_space<vmem>>, vector<1x32xf32>
    %c0_3 = arith.constant 0 : index
    %c0_4 = arith.constant 0 : index
    %2 = vector.load %arg3[%c0_3, %c0_4] : memref<1x32xf32, #tpu.memory_space<vmem>>, vector<1x32xf32>
    %cst = arith.constant dense<0.000000e+00> : vector<64xf32>
    %3 = vector.multi_reduction <add>, %0, %cst [1] : vector<64x32xf32> to vector<64xf32>
    %4 = vector.shape_cast %3 : vector<64xf32> to vector<64x1xf32>
    %cst_5 = arith.constant 3.200000e+01 : f32
    %5 = vector.broadcast %cst_5 : f32 to vector<64x1xf32>
    %6 = arith.divf %4, %5 : vector<64x1xf32>
    %7 = vector.broadcast %6 : vector<64x1xf32> to vector<64x32xf32>
    %8 = arith.subf %0, %7 : vector<64x32xf32>
    %9 = arith.mulf %8, %8 : vector<64x32xf32>
    %cst_6 = arith.constant dense<0.000000e+00> : vector<64xf32>
    %10 = vector.multi_reduction <add>, %9, %cst_6 [1] : vector<64x32xf32> to vector<64xf32>
    %11 = vector.shape_cast %10 : vector<64xf32> to vector<64x1xf32>
    %cst_7 = arith.constant 3.200000e+01 : f32
    %12 = vector.broadcast %cst_7 : f32 to vector<64x1xf32>
    %13 = arith.divf %11, %12 : vector<64x1xf32>
    %14 = vector.broadcast %6 : vector<64x1xf32> to vector<64x32xf32>
    %15 = arith.subf %0, %14 : vector<64x32xf32>
    %cst_8 = arith.constant 9.99999974E-6 : f32
    %16 = vector.broadcast %cst_8 : f32 to vector<64x1xf32>
    %17 = arith.addf %13, %16 : vector<64x1xf32>
    %18 = math.rsqrt %17 : vector<64x1xf32>
    %19 = vector.broadcast %18 : vector<64x1xf32> to vector<64x32xf32>
    %20 = arith.mulf %15, %19 : vector<64x32xf32>
    %21 = vector.broadcast %1 : vector<1x32xf32> to vector<64x32xf32>
    %22 = arith.mulf %20, %21 : vector<64x32xf32>
    %23 = vector.broadcast %2 : vector<1x32xf32> to vector<64x32xf32>
    %24 = arith.addf %22, %23 : vector<64x32xf32>
    %25 = arith.truncf %24 : vector<64x32xf32> to vector<64x32xbf16>
    %c0_9 = arith.constant 0 : index
    %c0_10 = arith.constant 0 : index
    %26 = vector.load %arg4[%c0_9, %c0_10] : memref<32x64xbf16, #tpu.memory_space<vmem>>, vector<32x64xbf16>
    %cst_11 = arith.constant dense<0.000000e+00> : vector<64x64xf32>
    %27 = tpu.matmul %25, %26, %cst_11 {dimension_numbers = #tpu.dot_dimension_numbers<[1], [0], [0], [1], [0, 0, 1, 1], [], []>} : vector<64x32xbf16>, vector<32x64xbf16>, vector<64x64xf32> -> vector<64x64xf32>
    %c0_12 = arith.constant 0 : index
    %c0_13 = arith.constant 0 : index
    %28 = vector.load %arg5[%c0_12, %c0_13] : memref<1x64xf32, #tpu.memory_space<vmem>>, vector<1x64xf32>
    %29 = vector.broadcast %28 : vector<1x64xf32> to vector<64x64xf32>
    %30 = arith.addf %27, %29 : vector<64x64xf32>
    %cst_14 = arith.constant 5.000000e-01 : f32
    %31 = vector.broadcast %cst_14 : f32 to vector<64x64xf32>
    %32 = arith.mulf %31, %30 : vector<64x64xf32>
    %cst_15 = arith.constant 0.707106769 : f32
    %33 = vector.broadcast %cst_15 : f32 to vector<64x64xf32>
    %34 = arith.mulf %30, %33 : vector<64x64xf32>
    %35 = math.absf %34 : vector<64x64xf32>
    %cst_16 = arith.constant 5.000000e-01 : f32
    %36 = vector.broadcast %cst_16 : f32 to vector<64x64xf32>
    %37 = arith.mulf %36, %35 : vector<64x64xf32>
    %cst_17 = arith.constant 1.000000e+00 : f32
    %38 = vector.broadcast %cst_17 : f32 to vector<64x64xf32>
    %39 = arith.addf %38, %37 : vector<64x64xf32>
    %cst_18 = arith.constant 1.000000e+00 : f32
    %40 = vector.broadcast %cst_18 : f32 to vector<64x64xf32>
    %41 = arith.divf %40, %39 : vector<64x64xf32>
    %cst_19 = arith.constant 0.170872763 : f32
    %42 = vector.broadcast %cst_19 : f32 to vector<64x64xf32>
    %43 = arith.mulf %41, %42 : vector<64x64xf32>
    %cst_20 = arith.constant -0.822152256 : f32
    %44 = vector.broadcast %cst_20 : f32 to vector<64x64xf32>
    %45 = arith.addf %44, %43 : vector<64x64xf32>
    %46 = arith.mulf %41, %45 : vector<64x64xf32>
    %cst_21 = arith.constant 1.48851585 : f32
    %47 = vector.broadcast %cst_21 : f32 to vector<64x64xf32>
    %48 = arith.addf %47, %46 : vector<64x64xf32>
    %49 = arith.mulf %41, %48 : vector<64x64xf32>
    %cst_22 = arith.constant -1.13520396 : f32
    %50 = vector.broadcast %cst_22 : f32 to vector<64x64xf32>
    %51 = arith.addf %50, %49 : vector<64x64xf32>
    %52 = arith.mulf %41, %51 : vector<64x64xf32>
    %cst_23 = arith.constant 0.278868079 : f32
    %53 = vector.broadcast %cst_23 : f32 to vector<64x64xf32>
    %54 = arith.addf %53, %52 : vector<64x64xf32>
    %55 = arith.mulf %41, %54 : vector<64x64xf32>
    %cst_24 = arith.constant -0.186288059 : f32
    %56 = vector.broadcast %cst_24 : f32 to vector<64x64xf32>
    %57 = arith.addf %56, %55 : vector<64x64xf32>
    %58 = arith.mulf %41, %57 : vector<64x64xf32>
    %cst_25 = arith.constant 0.0967841818 : f32
    %59 = vector.broadcast %cst_25 : f32 to vector<64x64xf32>
    %60 = arith.addf %59, %58 : vector<64x64xf32>
    %61 = arith.mulf %41, %60 : vector<64x64xf32>
    %cst_26 = arith.constant 0.374091953 : f32
    %62 = vector.broadcast %cst_26 : f32 to vector<64x64xf32>
    %63 = arith.addf %62, %61 : vector<64x64xf32>
    %64 = arith.mulf %41, %63 : vector<64x64xf32>
    %cst_27 = arith.constant 1.00002372 : f32
    %65 = vector.broadcast %cst_27 : f32 to vector<64x64xf32>
    %66 = arith.addf %65, %64 : vector<64x64xf32>
    %67 = arith.mulf %41, %66 : vector<64x64xf32>
    %cst_28 = arith.constant -1.26551223 : f32
    %68 = vector.broadcast %cst_28 : f32 to vector<64x64xf32>
    %69 = arith.addf %68, %67 : vector<64x64xf32>
    %cst_29 = arith.constant 0.000000e+00 : f32
    %70 = vector.broadcast %cst_29 : f32 to vector<64x64xf32>
    %71 = arith.subf %70, %35 : vector<64x64xf32>
    %72 = arith.mulf %71, %35 : vector<64x64xf32>
    %73 = arith.addf %72, %69 : vector<64x64xf32>
    %74 = math.exp %73 : vector<64x64xf32>
    %75 = arith.mulf %41, %74 : vector<64x64xf32>
    %cst_30 = arith.constant 0.000000e+00 : f32
    %76 = vector.broadcast %cst_30 : f32 to vector<64x64xf32>
    %77 = arith.cmpf oge, %34, %76 : vector<64x64xf32>
    %cst_31 = arith.constant 1.000000e+00 : f32
    %78 = vector.broadcast %cst_31 : f32 to vector<64x64xf32>
    %79 = arith.subf %78, %75 : vector<64x64xf32>
    %cst_32 = arith.constant 1.000000e+00 : f32
    %80 = vector.broadcast %cst_32 : f32 to vector<64x64xf32>
    %81 = arith.subf %75, %80 : vector<64x64xf32>
    %82 = arith.select %77, %79, %81 : vector<64x64xi1>, vector<64x64xf32>
    %cst_33 = arith.constant 1.000000e+00 : f32
    %83 = vector.broadcast %cst_33 : f32 to vector<64x64xf32>
    %84 = arith.addf %83, %82 : vector<64x64xf32>
    %85 = arith.mulf %32, %84 : vector<64x64xf32>
    %86 = arith.truncf %85 : vector<64x64xf32> to vector<64x64xbf16>
    %c0_34 = arith.constant 0 : index
    %c0_35 = arith.constant 0 : index
    %87 = vector.load %arg6[%c0_34, %c0_35] : memref<64x32xbf16, #tpu.memory_space<vmem>>, vector<64x32xbf16>
    %cst_36 = arith.constant dense<0.000000e+00> : vector<64x32xf32>
    %88 = tpu.matmul %86, %87, %cst_36 {dimension_numbers = #tpu.dot_dimension_numbers<[1], [0], [0], [1], [0, 0, 1, 1], [], []>} : vector<64x64xbf16>, vector<64x32xbf16>, vector<64x32xf32> -> vector<64x32xf32>
    %c0_37 = arith.constant 0 : index
    %c0_38 = arith.constant 0 : index
    %89 = vector.load %arg7[%c0_37, %c0_38] : memref<1x32xf32, #tpu.memory_space<vmem>>, vector<1x32xf32>
    %90 = vector.broadcast %89 : vector<1x32xf32> to vector<64x32xf32>
    %91 = arith.addf %88, %90 : vector<64x32xf32>
    %92 = arith.addf %0, %91 : vector<64x32xf32>
    %c0_39 = arith.constant 0 : index
    %c0_40 = arith.constant 0 : index
    %93 = vector.load %arg8[%c0_39, %c0_40] : memref<64x32xf32, #tpu.memory_space<vmem>>, vector<64x32xf32>
    tpu.vector_store %arg8[%c0_39, %c0_40], %92 {strides = array<i32>} : memref<64x32xf32, #tpu.memory_space<vmem>>, vector<64x32xf32>,
    return
  }
  func.func @transform_0(%arg0: i32) -> (i32, i32) {
    %c0_i32 = arith.constant 0 : i32
    %c0_i32_0 = arith.constant 0 : i32
    return %arg0, %c0_i32 : i32, i32
  }
  func.func @transform_1(%arg0: i32) -> (i32, i32) {
    %c0_i32 = arith.constant 0 : i32
    %c0_i32_0 = arith.constant 0 : i32
    %c0_i32_1 = arith.constant 0 : i32
    return %c0_i32, %c0_i32_0 : i32, i32
  }
  func.func @transform_2(%arg0: i32) -> (i32, i32) {
    %c0_i32 = arith.constant 0 : i32
    %c0_i32_0 = arith.constant 0 : i32
    %c0_i32_1 = arith.constant 0 : i32
    return %c0_i32, %c0_i32_0 : i32, i32
  }
  func.func @transform_3(%arg0: i32) -> (i32, i32) {
    %c0_i32 = arith.constant 0 : i32
    %c0_i32_0 = arith.constant 0 : i32
    %c0_i32_1 = arith.constant 0 : i32
    return %c0_i32, %c0_i32_0 : i32, i32
  }
  func.func @transform_4(%arg0: i32) -> (i32, i32) {
    %c0_i32 = arith.constant 0 : i32
    %c0_i32_0 = arith.constant 0 : i32
    %c0_i32_1 = arith.constant 0 : i32
    return %c0_i32, %c0_i32_0 : i32, i32
  }
  func.func @transform_5(%arg0: i32) -> (i32, i32) {
    %c0_i32 = arith.constant 0 : i32
    %c0_i32_0 = arith.constant 0 : i32
    %c0_i32_1 = arith.constant 0 : i32
    return %c0_i32, %c0_i32_0 : i32, i32
  }
  func.func @transform_6(%arg0: i32) -> (i32, i32) {
    %c0_i32 = arith.constant 0 : i32
    %c0_i32_0 = arith.constant 0 : i32
    %c0_i32_1 = arith.constant 0 : i32
    return %c0_i32, %c0_i32_0 : i32, i32
  }
  func.func @transform_7(%arg0: i32) -> (i32, i32) {
    %c0_i32 = arith.constant 0 : i32
    %c0_i32_0 = arith.constant 0 : i32
    return %arg0, %c0_i32 : i32, i32
  }
}

module attributes {stable_mosaic.version = 11 : i64} {
  func.func @window_attn_kernel(%arg0: i32, %arg1: memref<4x16x32xf32, #tpu.memory_space<vmem>>, %arg2: memref<1x1x32xf32, #tpu.memory_space<vmem>>, %arg3: memref<1x1x32xf32, #tpu.memory_space<vmem>>, %arg4: memref<32x96xbf16, #tpu.memory_space<vmem>>, %arg5: memref<1x96xf32, #tpu.memory_space<vmem>>, %arg6: memref<32x32xbf16, #tpu.memory_space<vmem>>, %arg7: memref<1x32xf32, #tpu.memory_space<vmem>>, %arg8: memref<4x16x16xf32, #tpu.memory_space<vmem>>, %arg9: memref<4x16x16xf32, #tpu.memory_space<vmem>>, %arg10: memref<4x16x32xf32, #tpu.memory_space<vmem>>) attributes {dimension_semantics = [#tpu.dimension_semantics<parallel>], iteration_bounds = array<i64: 2>, scalar_prefetch = 0 : i64, scratch_operands = 0 : i64, tpu.core_type = #tpu.core_type<tc>, window_params = [{transform_indices = @transform_0, window_bounds = array<i64: 4, 16, 32>}, {pipeline_mode = #tpu.pipeline_mode<synchronous>, transform_indices = @transform_1, window_bounds = array<i64: 1, 1, 32>}, {pipeline_mode = #tpu.pipeline_mode<synchronous>, transform_indices = @transform_2, window_bounds = array<i64: 1, 1, 32>}, {pipeline_mode = #tpu.pipeline_mode<synchronous>, transform_indices = @transform_3, window_bounds = array<i64: 32, 96>}, {pipeline_mode = #tpu.pipeline_mode<synchronous>, transform_indices = @transform_4, window_bounds = array<i64: 1, 96>}, {pipeline_mode = #tpu.pipeline_mode<synchronous>, transform_indices = @transform_5, window_bounds = array<i64: 32, 32>}, {pipeline_mode = #tpu.pipeline_mode<synchronous>, transform_indices = @transform_6, window_bounds = array<i64: 1, 32>}, {pipeline_mode = #tpu.pipeline_mode<synchronous>, transform_indices = @transform_7, window_bounds = array<i64: 4, 16, 16>}, {pipeline_mode = #tpu.pipeline_mode<synchronous>, transform_indices = @transform_8, window_bounds = array<i64: 4, 16, 16>}, {transform_indices = @transform_9, window_bounds = array<i64: 4, 16, 32>}]} {
    %c0 = arith.constant 0 : index
    %c0_0 = arith.constant 0 : index
    %c0_1 = arith.constant 0 : index
    %0 = vector.load %arg1[%c0, %c0_0, %c0_1] : memref<4x16x32xf32, #tpu.memory_space<vmem>>, vector<4x16x32xf32>
    %c0_2 = arith.constant 0 : index
    %c0_3 = arith.constant 0 : index
    %c0_4 = arith.constant 0 : index
    %1 = vector.load %arg2[%c0_2, %c0_3, %c0_4] : memref<1x1x32xf32, #tpu.memory_space<vmem>>, vector<1x1x32xf32>
    %c0_5 = arith.constant 0 : index
    %c0_6 = arith.constant 0 : index
    %c0_7 = arith.constant 0 : index
    %2 = vector.load %arg3[%c0_5, %c0_6, %c0_7] : memref<1x1x32xf32, #tpu.memory_space<vmem>>, vector<1x1x32xf32>
    %cst = arith.constant dense<0.000000e+00> : vector<4x16xf32>
    %3 = vector.multi_reduction <add>, %0, %cst [2] : vector<4x16x32xf32> to vector<4x16xf32>
    %4 = vector.shape_cast %3 : vector<4x16xf32> to vector<4x16x1xf32>
    %cst_8 = arith.constant 3.200000e+01 : f32
    %5 = vector.broadcast %cst_8 : f32 to vector<4x16x1xf32>
    %6 = arith.divf %4, %5 : vector<4x16x1xf32>
    %7 = vector.broadcast %6 : vector<4x16x1xf32> to vector<4x16x32xf32>
    %8 = arith.subf %0, %7 : vector<4x16x32xf32>
    %9 = arith.mulf %8, %8 : vector<4x16x32xf32>
    %cst_9 = arith.constant dense<0.000000e+00> : vector<4x16xf32>
    %10 = vector.multi_reduction <add>, %9, %cst_9 [2] : vector<4x16x32xf32> to vector<4x16xf32>
    %11 = vector.shape_cast %10 : vector<4x16xf32> to vector<4x16x1xf32>
    %cst_10 = arith.constant 3.200000e+01 : f32
    %12 = vector.broadcast %cst_10 : f32 to vector<4x16x1xf32>
    %13 = arith.divf %11, %12 : vector<4x16x1xf32>
    %14 = vector.broadcast %6 : vector<4x16x1xf32> to vector<4x16x32xf32>
    %15 = arith.subf %0, %14 : vector<4x16x32xf32>
    %cst_11 = arith.constant 9.99999974E-6 : f32
    %16 = vector.broadcast %cst_11 : f32 to vector<4x16x1xf32>
    %17 = arith.addf %13, %16 : vector<4x16x1xf32>
    %18 = math.rsqrt %17 : vector<4x16x1xf32>
    %19 = vector.broadcast %18 : vector<4x16x1xf32> to vector<4x16x32xf32>
    %20 = arith.mulf %15, %19 : vector<4x16x32xf32>
    %21 = vector.broadcast %1 : vector<1x1x32xf32> to vector<4x16x32xf32>
    %22 = arith.mulf %20, %21 : vector<4x16x32xf32>
    %23 = vector.broadcast %2 : vector<1x1x32xf32> to vector<4x16x32xf32>
    %24 = arith.addf %22, %23 : vector<4x16x32xf32>
    %25 = vector.shape_cast %24 : vector<4x16x32xf32> to vector<64x32xf32>
    %26 = arith.truncf %25 : vector<64x32xf32> to vector<64x32xbf16>
    %c0_12 = arith.constant 0 : index
    %c0_13 = arith.constant 0 : index
    %27 = vector.load %arg4[%c0_12, %c0_13] : memref<32x96xbf16, #tpu.memory_space<vmem>>, vector<32x96xbf16>
    %cst_14 = arith.constant dense<0.000000e+00> : vector<64x96xf32>
    %28 = tpu.matmul %26, %27, %cst_14 {dimension_numbers = #tpu.dot_dimension_numbers<[1], [0], [0], [1], [0, 0, 1, 1], [], []>} : vector<64x32xbf16>, vector<32x96xbf16>, vector<64x96xf32> -> vector<64x96xf32>
    %c0_15 = arith.constant 0 : index
    %c0_16 = arith.constant 0 : index
    %29 = vector.load %arg5[%c0_15, %c0_16] : memref<1x96xf32, #tpu.memory_space<vmem>>, vector<1x96xf32>
    %30 = vector.broadcast %29 : vector<1x96xf32> to vector<64x96xf32>
    %31 = arith.addf %28, %30 : vector<64x96xf32>
    %32 = vector.extract_strided_slice %31 {offsets = [0, 0], sizes = [64, 32], strides = [1, 1]} : vector<64x96xf32> to vector<64x32xf32>
    %33 = vector.shape_cast %32 : vector<64x32xf32> to vector<4x16x32xf32>
    %34 = vector.extract_strided_slice %31 {offsets = [0, 32], sizes = [64, 32], strides = [1, 1]} : vector<64x96xf32> to vector<64x32xf32>
    %35 = vector.shape_cast %34 : vector<64x32xf32> to vector<4x16x32xf32>
    %36 = vector.extract_strided_slice %31 {offsets = [0, 64], sizes = [64, 32], strides = [1, 1]} : vector<64x96xf32> to vector<64x32xf32>
    %37 = vector.shape_cast %36 : vector<64x32xf32> to vector<4x16x32xf32>
    %c0_17 = arith.constant 0 : index
    %c0_18 = arith.constant 0 : index
    %c0_19 = arith.constant 0 : index
    %38 = vector.load %arg8[%c0_17, %c0_18, %c0_19] : memref<4x16x16xf32, #tpu.memory_space<vmem>>, vector<4x16x16xf32>
    %c0_20 = arith.constant 0 : index
    %c0_21 = arith.constant 0 : index
    %c0_22 = arith.constant 0 : index
    %39 = vector.load %arg9[%c0_20, %c0_21, %c0_22] : memref<4x16x16xf32, #tpu.memory_space<vmem>>, vector<4x16x16xf32>
    %40 = arith.truncf %33 : vector<4x16x32xf32> to vector<4x16x32xbf16>
    %41 = arith.truncf %35 : vector<4x16x32xf32> to vector<4x16x32xbf16>
    %42 = arith.truncf %37 : vector<4x16x32xf32> to vector<4x16x32xbf16>
    %43 = tpu.iota {dimensions = array<i32: 2>} : vector<1x1x32xi32>
    %cst_23 = arith.constant 0.000000e+00 : f32
    %44 = vector.broadcast %cst_23 : f32 to vector<4x16x32xf32>
    %c0_i32 = arith.constant 0 : i32
    %45 = vector.broadcast %c0_i32 : i32 to vector<1x1x32xi32>
    %46 = arith.cmpi sge, %43, %45 : vector<1x1x32xi32>
    %c8_i32 = arith.constant 8 : i32
    %47 = vector.broadcast %c8_i32 : i32 to vector<1x1x32xi32>
    %48 = arith.cmpi slt, %43, %47 : vector<1x1x32xi32>
    %49 = arith.andi %46, %48 : vector<1x1x32xi1>
    %50 = arith.extui %49 : vector<1x1x32xi1> to vector<1x1x32xi32>
    %51 = arith.sitofp %50 : vector<1x1x32xi32> to vector<1x1x32xf32>
    %52 = arith.truncf %51 : vector<1x1x32xf32> to vector<1x1x32xbf16>
    %53 = vector.broadcast %52 : vector<1x1x32xbf16> to vector<4x16x32xbf16>
    %54 = arith.mulf %40, %53 : vector<4x16x32xbf16>
    "tpu.trace_start"() <{level = 10 : i32, message = "wnc,wmc->wnm"}> : () -> ()
    %cst_24 = arith.constant dense<0.000000e+00> : vector<4x16x16xf32>
    %55 = tpu.matmul %54, %41, %cst_24 {dimension_numbers = #tpu.dot_dimension_numbers<[2], [2], [1], [1], [0, 0, 0, 1, 1, 1], [0], [0]>} : vector<4x16x32xbf16>, vector<4x16x32xbf16>, vector<4x16x16xf32> -> vector<4x16x16xf32>
    "tpu.trace_stop"() : () -> ()
    %cst_25 = arith.constant 0.353553385 : f32
    %56 = vector.broadcast %cst_25 : f32 to vector<4x16x16xf32>
    %57 = arith.mulf %55, %56 : vector<4x16x16xf32>
    %58 = vector.extract_strided_slice %38 {offsets = [0, 0, 0], sizes = [1, 16, 16], strides = [1, 1, 1]} : vector<4x16x16xf32> to vector<1x16x16xf32>
    %59 = vector.shape_cast %58 : vector<1x16x16xf32> to vector<16x16xf32>
    %60 = vector.shape_cast %59 : vector<16x16xf32> to vector<1x16x16xf32>
    %61 = vector.broadcast %60 : vector<1x16x16xf32> to vector<4x16x16xf32>
    %62 = arith.addf %57, %61 : vector<4x16x16xf32>
    %63 = vector.shape_cast %62 : vector<4x16x16xf32> to vector<1x4x16x16xf32>
    %64 = vector.shape_cast %39 : vector<4x16x16xf32> to vector<1x4x16x16xf32>
    %65 = arith.addf %63, %64 : vector<1x4x16x16xf32>
    %66 = vector.shape_cast %65 : vector<1x4x16x16xf32> to vector<4x16x16xf32>
    %cst_26 = arith.constant dense<0xFF800000> : vector<4x16xf32>
    %67 = vector.multi_reduction <maximumf>, %66, %cst_26 [2] : vector<4x16x16xf32> to vector<4x16xf32>
    %68 = vector.shape_cast %67 : vector<4x16xf32> to vector<4x16x1xf32>
    %69 = vector.broadcast %68 : vector<4x16x1xf32> to vector<4x16x16xf32>
    %70 = arith.subf %66, %69 : vector<4x16x16xf32>
    %71 = math.exp %70 : vector<4x16x16xf32>
    %cst_27 = arith.constant dense<0.000000e+00> : vector<4x16xf32>
    %72 = vector.multi_reduction <add>, %71, %cst_27 [2] : vector<4x16x16xf32> to vector<4x16xf32>
    %73 = vector.shape_cast %72 : vector<4x16xf32> to vector<4x16x1xf32>
    %74 = vector.broadcast %73 : vector<4x16x1xf32> to vector<4x16x16xf32>
    %75 = arith.divf %71, %74 : vector<4x16x16xf32>
    %76 = arith.truncf %75 : vector<4x16x16xf32> to vector<4x16x16xbf16>
    %77 = vector.broadcast %52 : vector<1x1x32xbf16> to vector<4x16x32xbf16>
    %78 = arith.mulf %42, %77 : vector<4x16x32xbf16>
    "tpu.trace_start"() <{level = 10 : i32, message = "wnm,wmc->wnc"}> : () -> ()
    %cst_28 = arith.constant dense<0.000000e+00> : vector<4x16x32xf32>
    %79 = tpu.matmul %76, %78, %cst_28 {dimension_numbers = #tpu.dot_dimension_numbers<[2], [1], [1], [2], [0, 0, 0, 1, 1, 2], [0], [0]>} : vector<4x16x16xbf16>, vector<4x16x32xbf16>, vector<4x16x32xf32> -> vector<4x16x32xf32>
    "tpu.trace_stop"() : () -> ()
    %80 = arith.addf %44, %79 : vector<4x16x32xf32>
    %c8_i32_29 = arith.constant 8 : i32
    %81 = vector.broadcast %c8_i32_29 : i32 to vector<1x1x32xi32>
    %82 = arith.cmpi sge, %43, %81 : vector<1x1x32xi32>
    %c16_i32 = arith.constant 16 : i32
    %83 = vector.broadcast %c16_i32 : i32 to vector<1x1x32xi32>
    %84 = arith.cmpi slt, %43, %83 : vector<1x1x32xi32>
    %85 = arith.andi %82, %84 : vector<1x1x32xi1>
    %86 = arith.extui %85 : vector<1x1x32xi1> to vector<1x1x32xi32>
    %87 = arith.sitofp %86 : vector<1x1x32xi32> to vector<1x1x32xf32>
    %88 = arith.truncf %87 : vector<1x1x32xf32> to vector<1x1x32xbf16>
    %89 = vector.broadcast %88 : vector<1x1x32xbf16> to vector<4x16x32xbf16>
    %90 = arith.mulf %40, %89 : vector<4x16x32xbf16>
    "tpu.trace_start"() <{level = 10 : i32, message = "wnc,wmc->wnm"}> : () -> ()
    %cst_30 = arith.constant dense<0.000000e+00> : vector<4x16x16xf32>
    %91 = tpu.matmul %90, %41, %cst_30 {dimension_numbers = #tpu.dot_dimension_numbers<[2], [2], [1], [1], [0, 0, 0, 1, 1, 1], [0], [0]>} : vector<4x16x32xbf16>, vector<4x16x32xbf16>, vector<4x16x16xf32> -> vector<4x16x16xf32>
    "tpu.trace_stop"() : () -> ()
    %cst_31 = arith.constant 0.353553385 : f32
    %92 = vector.broadcast %cst_31 : f32 to vector<4x16x16xf32>
    %93 = arith.mulf %91, %92 : vector<4x16x16xf32>
    %94 = vector.extract_strided_slice %38 {offsets = [1, 0, 0], sizes = [1, 16, 16], strides = [1, 1, 1]} : vector<4x16x16xf32> to vector<1x16x16xf32>
    %95 = vector.shape_cast %94 : vector<1x16x16xf32> to vector<16x16xf32>
    %96 = vector.shape_cast %95 : vector<16x16xf32> to vector<1x16x16xf32>
    %97 = vector.broadcast %96 : vector<1x16x16xf32> to vector<4x16x16xf32>
    %98 = arith.addf %93, %97 : vector<4x16x16xf32>
    %99 = vector.shape_cast %98 : vector<4x16x16xf32> to vector<1x4x16x16xf32>
    %100 = vector.shape_cast %39 : vector<4x16x16xf32> to vector<1x4x16x16xf32>
    %101 = arith.addf %99, %100 : vector<1x4x16x16xf32>
    %102 = vector.shape_cast %101 : vector<1x4x16x16xf32> to vector<4x16x16xf32>
    %cst_32 = arith.constant dense<0xFF800000> : vector<4x16xf32>
    %103 = vector.multi_reduction <maximumf>, %102, %cst_32 [2] : vector<4x16x16xf32> to vector<4x16xf32>
    %104 = vector.shape_cast %103 : vector<4x16xf32> to vector<4x16x1xf32>
    %105 = vector.broadcast %104 : vector<4x16x1xf32> to vector<4x16x16xf32>
    %106 = arith.subf %102, %105 : vector<4x16x16xf32>
    %107 = math.exp %106 : vector<4x16x16xf32>
    %cst_33 = arith.constant dense<0.000000e+00> : vector<4x16xf32>
    %108 = vector.multi_reduction <add>, %107, %cst_33 [2] : vector<4x16x16xf32> to vector<4x16xf32>
    %109 = vector.shape_cast %108 : vector<4x16xf32> to vector<4x16x1xf32>
    %110 = vector.broadcast %109 : vector<4x16x1xf32> to vector<4x16x16xf32>
    %111 = arith.divf %107, %110 : vector<4x16x16xf32>
    %112 = arith.truncf %111 : vector<4x16x16xf32> to vector<4x16x16xbf16>
    %113 = vector.broadcast %88 : vector<1x1x32xbf16> to vector<4x16x32xbf16>
    %114 = arith.mulf %42, %113 : vector<4x16x32xbf16>
    "tpu.trace_start"() <{level = 10 : i32, message = "wnm,wmc->wnc"}> : () -> ()
    %cst_34 = arith.constant dense<0.000000e+00> : vector<4x16x32xf32>
    %115 = tpu.matmul %112, %114, %cst_34 {dimension_numbers = #tpu.dot_dimension_numbers<[2], [1], [1], [2], [0, 0, 0, 1, 1, 2], [0], [0]>} : vector<4x16x16xbf16>, vector<4x16x32xbf16>, vector<4x16x32xf32> -> vector<4x16x32xf32>
    "tpu.trace_stop"() : () -> ()
    %116 = arith.addf %80, %115 : vector<4x16x32xf32>
    %c16_i32_35 = arith.constant 16 : i32
    %117 = vector.broadcast %c16_i32_35 : i32 to vector<1x1x32xi32>
    %118 = arith.cmpi sge, %43, %117 : vector<1x1x32xi32>
    %c24_i32 = arith.constant 24 : i32
    %119 = vector.broadcast %c24_i32 : i32 to vector<1x1x32xi32>
    %120 = arith.cmpi slt, %43, %119 : vector<1x1x32xi32>
    %121 = arith.andi %118, %120 : vector<1x1x32xi1>
    %122 = arith.extui %121 : vector<1x1x32xi1> to vector<1x1x32xi32>
    %123 = arith.sitofp %122 : vector<1x1x32xi32> to vector<1x1x32xf32>
    %124 = arith.truncf %123 : vector<1x1x32xf32> to vector<1x1x32xbf16>
    %125 = vector.broadcast %124 : vector<1x1x32xbf16> to vector<4x16x32xbf16>
    %126 = arith.mulf %40, %125 : vector<4x16x32xbf16>
    "tpu.trace_start"() <{level = 10 : i32, message = "wnc,wmc->wnm"}> : () -> ()
    %cst_36 = arith.constant dense<0.000000e+00> : vector<4x16x16xf32>
    %127 = tpu.matmul %126, %41, %cst_36 {dimension_numbers = #tpu.dot_dimension_numbers<[2], [2], [1], [1], [0, 0, 0, 1, 1, 1], [0], [0]>} : vector<4x16x32xbf16>, vector<4x16x32xbf16>, vector<4x16x16xf32> -> vector<4x16x16xf32>
    "tpu.trace_stop"() : () -> ()
    %cst_37 = arith.constant 0.353553385 : f32
    %128 = vector.broadcast %cst_37 : f32 to vector<4x16x16xf32>
    %129 = arith.mulf %127, %128 : vector<4x16x16xf32>
    %130 = vector.extract_strided_slice %38 {offsets = [2, 0, 0], sizes = [1, 16, 16], strides = [1, 1, 1]} : vector<4x16x16xf32> to vector<1x16x16xf32>
    %131 = vector.shape_cast %130 : vector<1x16x16xf32> to vector<16x16xf32>
    %132 = vector.shape_cast %131 : vector<16x16xf32> to vector<1x16x16xf32>
    %133 = vector.broadcast %132 : vector<1x16x16xf32> to vector<4x16x16xf32>
    %134 = arith.addf %129, %133 : vector<4x16x16xf32>
    %135 = vector.shape_cast %134 : vector<4x16x16xf32> to vector<1x4x16x16xf32>
    %136 = vector.shape_cast %39 : vector<4x16x16xf32> to vector<1x4x16x16xf32>
    %137 = arith.addf %135, %136 : vector<1x4x16x16xf32>
    %138 = vector.shape_cast %137 : vector<1x4x16x16xf32> to vector<4x16x16xf32>
    %cst_38 = arith.constant dense<0xFF800000> : vector<4x16xf32>
    %139 = vector.multi_reduction <maximumf>, %138, %cst_38 [2] : vector<4x16x16xf32> to vector<4x16xf32>
    %140 = vector.shape_cast %139 : vector<4x16xf32> to vector<4x16x1xf32>
    %141 = vector.broadcast %140 : vector<4x16x1xf32> to vector<4x16x16xf32>
    %142 = arith.subf %138, %141 : vector<4x16x16xf32>
    %143 = math.exp %142 : vector<4x16x16xf32>
    %cst_39 = arith.constant dense<0.000000e+00> : vector<4x16xf32>
    %144 = vector.multi_reduction <add>, %143, %cst_39 [2] : vector<4x16x16xf32> to vector<4x16xf32>
    %145 = vector.shape_cast %144 : vector<4x16xf32> to vector<4x16x1xf32>
    %146 = vector.broadcast %145 : vector<4x16x1xf32> to vector<4x16x16xf32>
    %147 = arith.divf %143, %146 : vector<4x16x16xf32>
    %148 = arith.truncf %147 : vector<4x16x16xf32> to vector<4x16x16xbf16>
    %149 = vector.broadcast %124 : vector<1x1x32xbf16> to vector<4x16x32xbf16>
    %150 = arith.mulf %42, %149 : vector<4x16x32xbf16>
    "tpu.trace_start"() <{level = 10 : i32, message = "wnm,wmc->wnc"}> : () -> ()
    %cst_40 = arith.constant dense<0.000000e+00> : vector<4x16x32xf32>
    %151 = tpu.matmul %148, %150, %cst_40 {dimension_numbers = #tpu.dot_dimension_numbers<[2], [1], [1], [2], [0, 0, 0, 1, 1, 2], [0], [0]>} : vector<4x16x16xbf16>, vector<4x16x32xbf16>, vector<4x16x32xf32> -> vector<4x16x32xf32>
    "tpu.trace_stop"() : () -> ()
    %152 = arith.addf %116, %151 : vector<4x16x32xf32>
    %c24_i32_41 = arith.constant 24 : i32
    %153 = vector.broadcast %c24_i32_41 : i32 to vector<1x1x32xi32>
    %154 = arith.cmpi sge, %43, %153 : vector<1x1x32xi32>
    %c32_i32 = arith.constant 32 : i32
    %155 = vector.broadcast %c32_i32 : i32 to vector<1x1x32xi32>
    %156 = arith.cmpi slt, %43, %155 : vector<1x1x32xi32>
    %157 = arith.andi %154, %156 : vector<1x1x32xi1>
    %158 = arith.extui %157 : vector<1x1x32xi1> to vector<1x1x32xi32>
    %159 = arith.sitofp %158 : vector<1x1x32xi32> to vector<1x1x32xf32>
    %160 = arith.truncf %159 : vector<1x1x32xf32> to vector<1x1x32xbf16>
    %161 = vector.broadcast %160 : vector<1x1x32xbf16> to vector<4x16x32xbf16>
    %162 = arith.mulf %40, %161 : vector<4x16x32xbf16>
    "tpu.trace_start"() <{level = 10 : i32, message = "wnc,wmc->wnm"}> : () -> ()
    %cst_42 = arith.constant dense<0.000000e+00> : vector<4x16x16xf32>
    %163 = tpu.matmul %162, %41, %cst_42 {dimension_numbers = #tpu.dot_dimension_numbers<[2], [2], [1], [1], [0, 0, 0, 1, 1, 1], [0], [0]>} : vector<4x16x32xbf16>, vector<4x16x32xbf16>, vector<4x16x16xf32> -> vector<4x16x16xf32>
    "tpu.trace_stop"() : () -> ()
    %cst_43 = arith.constant 0.353553385 : f32
    %164 = vector.broadcast %cst_43 : f32 to vector<4x16x16xf32>
    %165 = arith.mulf %163, %164 : vector<4x16x16xf32>
    %166 = vector.extract_strided_slice %38 {offsets = [3, 0, 0], sizes = [1, 16, 16], strides = [1, 1, 1]} : vector<4x16x16xf32> to vector<1x16x16xf32>
    %167 = vector.shape_cast %166 : vector<1x16x16xf32> to vector<16x16xf32>
    %168 = vector.shape_cast %167 : vector<16x16xf32> to vector<1x16x16xf32>
    %169 = vector.broadcast %168 : vector<1x16x16xf32> to vector<4x16x16xf32>
    %170 = arith.addf %165, %169 : vector<4x16x16xf32>
    %171 = vector.shape_cast %170 : vector<4x16x16xf32> to vector<1x4x16x16xf32>
    %172 = vector.shape_cast %39 : vector<4x16x16xf32> to vector<1x4x16x16xf32>
    %173 = arith.addf %171, %172 : vector<1x4x16x16xf32>
    %174 = vector.shape_cast %173 : vector<1x4x16x16xf32> to vector<4x16x16xf32>
    %cst_44 = arith.constant dense<0xFF800000> : vector<4x16xf32>
    %175 = vector.multi_reduction <maximumf>, %174, %cst_44 [2] : vector<4x16x16xf32> to vector<4x16xf32>
    %176 = vector.shape_cast %175 : vector<4x16xf32> to vector<4x16x1xf32>
    %177 = vector.broadcast %176 : vector<4x16x1xf32> to vector<4x16x16xf32>
    %178 = arith.subf %174, %177 : vector<4x16x16xf32>
    %179 = math.exp %178 : vector<4x16x16xf32>
    %cst_45 = arith.constant dense<0.000000e+00> : vector<4x16xf32>
    %180 = vector.multi_reduction <add>, %179, %cst_45 [2] : vector<4x16x16xf32> to vector<4x16xf32>
    %181 = vector.shape_cast %180 : vector<4x16xf32> to vector<4x16x1xf32>
    %182 = vector.broadcast %181 : vector<4x16x1xf32> to vector<4x16x16xf32>
    %183 = arith.divf %179, %182 : vector<4x16x16xf32>
    %184 = arith.truncf %183 : vector<4x16x16xf32> to vector<4x16x16xbf16>
    %185 = vector.broadcast %160 : vector<1x1x32xbf16> to vector<4x16x32xbf16>
    %186 = arith.mulf %42, %185 : vector<4x16x32xbf16>
    "tpu.trace_start"() <{level = 10 : i32, message = "wnm,wmc->wnc"}> : () -> ()
    %cst_46 = arith.constant dense<0.000000e+00> : vector<4x16x32xf32>
    %187 = tpu.matmul %184, %186, %cst_46 {dimension_numbers = #tpu.dot_dimension_numbers<[2], [1], [1], [2], [0, 0, 0, 1, 1, 2], [0], [0]>} : vector<4x16x16xbf16>, vector<4x16x32xbf16>, vector<4x16x32xf32> -> vector<4x16x32xf32>
    "tpu.trace_stop"() : () -> ()
    %188 = arith.addf %152, %187 : vector<4x16x32xf32>
    %189 = vector.shape_cast %188 : vector<4x16x32xf32> to vector<64x32xf32>
    %190 = arith.truncf %189 : vector<64x32xf32> to vector<64x32xbf16>
    %c0_47 = arith.constant 0 : index
    %c0_48 = arith.constant 0 : index
    %191 = vector.load %arg6[%c0_47, %c0_48] : memref<32x32xbf16, #tpu.memory_space<vmem>>, vector<32x32xbf16>
    %cst_49 = arith.constant dense<0.000000e+00> : vector<64x32xf32>
    %192 = tpu.matmul %190, %191, %cst_49 {dimension_numbers = #tpu.dot_dimension_numbers<[1], [0], [0], [1], [0, 0, 1, 1], [], []>} : vector<64x32xbf16>, vector<32x32xbf16>, vector<64x32xf32> -> vector<64x32xf32>
    %c0_50 = arith.constant 0 : index
    %c0_51 = arith.constant 0 : index
    %193 = vector.load %arg7[%c0_50, %c0_51] : memref<1x32xf32, #tpu.memory_space<vmem>>, vector<1x32xf32>
    %194 = vector.broadcast %193 : vector<1x32xf32> to vector<64x32xf32>
    %195 = arith.addf %192, %194 : vector<64x32xf32>
    %196 = vector.shape_cast %195 : vector<64x32xf32> to vector<4x16x32xf32>
    %197 = arith.addf %0, %196 : vector<4x16x32xf32>
    %c0_52 = arith.constant 0 : index
    %c0_53 = arith.constant 0 : index
    %c0_54 = arith.constant 0 : index
    %198 = vector.load %arg10[%c0_52, %c0_53, %c0_54] : memref<4x16x32xf32, #tpu.memory_space<vmem>>, vector<4x16x32xf32>
    tpu.vector_store %arg10[%c0_52, %c0_53, %c0_54], %197 {strides = array<i32>} : memref<4x16x32xf32, #tpu.memory_space<vmem>>, vector<4x16x32xf32>,
    return
  }
  func.func @transform_0(%arg0: i32) -> (i32, i32, i32) {
    %c0_i32 = arith.constant 0 : i32
    %c0_i32_0 = arith.constant 0 : i32
    %c0_i32_1 = arith.constant 0 : i32
    return %arg0, %c0_i32, %c0_i32_0 : i32, i32, i32
  }
  func.func @transform_1(%arg0: i32) -> (i32, i32, i32) {
    %c0_i32 = arith.constant 0 : i32
    %c0_i32_0 = arith.constant 0 : i32
    %c0_i32_1 = arith.constant 0 : i32
    %c0_i32_2 = arith.constant 0 : i32
    return %c0_i32, %c0_i32_0, %c0_i32_1 : i32, i32, i32
  }
  func.func @transform_2(%arg0: i32) -> (i32, i32, i32) {
    %c0_i32 = arith.constant 0 : i32
    %c0_i32_0 = arith.constant 0 : i32
    %c0_i32_1 = arith.constant 0 : i32
    %c0_i32_2 = arith.constant 0 : i32
    return %c0_i32, %c0_i32_0, %c0_i32_1 : i32, i32, i32
  }
  func.func @transform_3(%arg0: i32) -> (i32, i32) {
    %c0_i32 = arith.constant 0 : i32
    %c0_i32_0 = arith.constant 0 : i32
    %c0_i32_1 = arith.constant 0 : i32
    return %c0_i32, %c0_i32_0 : i32, i32
  }
  func.func @transform_4(%arg0: i32) -> (i32, i32) {
    %c0_i32 = arith.constant 0 : i32
    %c0_i32_0 = arith.constant 0 : i32
    %c0_i32_1 = arith.constant 0 : i32
    return %c0_i32, %c0_i32_0 : i32, i32
  }
  func.func @transform_5(%arg0: i32) -> (i32, i32) {
    %c0_i32 = arith.constant 0 : i32
    %c0_i32_0 = arith.constant 0 : i32
    %c0_i32_1 = arith.constant 0 : i32
    return %c0_i32, %c0_i32_0 : i32, i32
  }
  func.func @transform_6(%arg0: i32) -> (i32, i32) {
    %c0_i32 = arith.constant 0 : i32
    %c0_i32_0 = arith.constant 0 : i32
    %c0_i32_1 = arith.constant 0 : i32
    return %c0_i32, %c0_i32_0 : i32, i32
  }
  func.func @transform_7(%arg0: i32) -> (i32, i32, i32) {
    %c0_i32 = arith.constant 0 : i32
    %c0_i32_0 = arith.constant 0 : i32
    %c0_i32_1 = arith.constant 0 : i32
    %c0_i32_2 = arith.constant 0 : i32
    return %c0_i32, %c0_i32_0, %c0_i32_1 : i32, i32, i32
  }
  func.func @transform_8(%arg0: i32) -> (i32, i32, i32) {
    %c0_i32 = arith.constant 0 : i32
    %c0_i32_0 = arith.constant 0 : i32
    %c0_i32_1 = arith.constant 0 : i32
    %c0_i32_2 = arith.constant 0 : i32
    return %c0_i32, %c0_i32_0, %c0_i32_1 : i32, i32, i32
  }
  func.func @transform_9(%arg0: i32) -> (i32, i32, i32) {
    %c0_i32 = arith.constant 0 : i32
    %c0_i32_0 = arith.constant 0 : i32
    %c0_i32_1 = arith.constant 0 : i32
    return %arg0, %c0_i32, %c0_i32_0 : i32, i32, i32
  }
}

</mosaic_0001>

<llo_original>
// kernel: run.5
$region0: #{run.5}
  #allocation0 [shape = 'u32[]', space=smem, size = 0x4, offset = 0x4, fixed_abs, tag = 'smem constant byte address 0x4 - core index']
  #allocation1 [shape = 'u32[72,128]{1,0:T(1,128)}', space=vmem, size = 0x9000, scoped, tag = 'internal scratch']
  %s0 = inlined_call_operand.vmem [shape: f32[128,32], index: 0, kind: input, shape index: {}]
  %s1 = inlined_call_operand.vmem [shape: f32[1,32], index: 1, kind: input, shape index: {}]
  %s2 = inlined_call_operand.vmem [shape: f32[1,32], index: 2, kind: input, shape index: {}]
  %s3 = inlined_call_operand.vmem [shape: bf16[32,64], index: 3, kind: input, shape index: {}]
  %s4 = inlined_call_operand.vmem [shape: f32[1,64], index: 4, kind: input, shape index: {}]
  %s5 = inlined_call_operand.vmem [shape: bf16[64,32], index: 5, kind: input, shape index: {}]
  %s6 = inlined_call_operand.vmem [shape: f32[1,32], index: 6, kind: input, shape index: {}]
  %s7 = inlined_call_operand.vmem [shape: f32[128,32], index: 7, kind: output, shape index: {}]
  %s8 = sld [smem:[#allocation0]]
  $region61: #{run.5} parent=0
    _
  %s10 = ssub.s32 1, %s8
  %s11 = scalar_select 0, %s10, %s8
  loop: start=0, step=1, limit=4
  $region2: #{run.5} parent=0 // loop_pre_header
    _
  $region3: #{run.5} parent=0 // loop_header
    %s13 = sphi 0, %s17
    %p14 = scmp.ge.s32.totalorder %s13, 4
    %s23 = sphi 0, %s25
    %s26 = sphi 0, %s23
    %s27 = sphi 0, %s26
    %s43 = sphi 0, %s27
    %s47 = sphi 0, %s47
    %s49 = sphi 0, %s47
    %s50 = sphi 0, %s49
    %s64 = sphi 0, %s50
    %s68 = sphi 0, %s68
    %s70 = sphi 0, %s68
    %s71 = sphi 0, %s70
    %s85 = sphi 0, %s71
    %s89 = sphi 0, %s89
    %s91 = sphi 0, %s89
    %s92 = sphi 0, %s91
    %s106 = sphi 0, %s92
    %s110 = sphi 0, %s110
    %s112 = sphi 0, %s110
    %s113 = sphi 0, %s112
    %s127 = sphi 0, %s113
    %s131 = sphi 0, %s131
    %s133 = sphi 0, %s131
    %s134 = sphi 0, %s133
    %s148 = sphi 0, %s134
    %s152 = sphi 0, %s152
    %s154 = sphi 0, %s152
    %s155 = sphi 0, %s154
    %s169 = sphi 0, %s155
    %s175 = sphi 0, %s177
    %s178 = sphi 0, %s175
    %s179 = sphi 0, %s178
    %s195 = sphi 0, %s179
  $region4: #{run.5} parent=0 // loop_header_branch
    %16 = sbr.rel (%p14) target = $region8
  $region5: #{run.5} parent=0 // loop_body
    %s18 = ssub.s32 %s13, 1
    %s19 = ssub.s32 %s13, 2
    %s20 = sadd.s32 %s13, 1
    %s21 = ssub.s32 %s13, %s20
    %p22 = scmp.eq.s32.totalorder %s21, 0
    %s24 = sadd.s32 %s23, 1
    %s25 = scalar_select %p22, %s23, %s24
    %p28 = pneg %p22
    %p29 = scmp.eq.s32.totalorder %s13, 1
    %p30 = por %p28, %p29
    %p31 = scmp.ne.s32.totalorder %s23, %s26
    %p32 = scmp.eq.s32.totalorder %s13, 0
    %p33 = por %p31, %p32
    %p34 = scmp.ne.s32.totalorder %s23, %s26
    %p35 = scmp.eq.s32.totalorder %s18, 1
    %p36 = por %p34, %p35
    %p37 = scmp.ne.s32.totalorder %s26, %s27
    %p38 = scmp.eq.s32.totalorder %s18, 0
    %p39 = por %p37, %p38
    %p40 = scmp.ne.s32.totalorder %s26, %s27
    %p41 = scmp.eq.s32.totalorder %s19, 1
    %p42 = por %p40, %p41
    %p44 = scmp.ne.s32.totalorder %s27, %s43
    %p45 = scmp.eq.s32.totalorder %s19, 0
    %p46 = por %p44, %p45
    %s48 = sadd.s32 %s47, 1
    %p51 = scmp.eq.s32.totalorder %s13, 1
    %p52 = scmp.ne.s32.totalorder %s47, %s49
    %p53 = scmp.eq.s32.totalorder %s13, 0
    %p54 = por %p52, %p53
    %p55 = scmp.ne.s32.totalorder %s47, %s49
    %p56 = scmp.eq.s32.totalorder %s18, 1
    %p57 = por %p55, %p56
    %p58 = scmp.ne.s32.totalorder %s49, %s50
    %p59 = scmp.eq.s32.totalorder %s18, 0
    %p60 = por %p58, %p59
    %p61 = scmp.ne.s32.totalorder %s49, %s50
    %p62 = scmp.eq.s32.totalorder %s19, 1
    %p63 = por %p61, %p62
    %p65 = scmp.ne.s32.totalorder %s50, %s64
    %p66 = scmp.eq.s32.totalorder %s19, 0
    %p67 = por %p65, %p66
    %s69 = sadd.s32 %s68, 1
    %p72 = scmp.eq.s32.totalorder %s13, 1
    %p73 = scmp.ne.s32.totalorder %s68, %s70
    %p74 = scmp.eq.s32.totalorder %s13, 0
    %p75 = por %p73, %p74
    %p76 = scmp.ne.s32.totalorder %s68, %s70
    %p77 = scmp.eq.s32.totalorder %s18, 1
    %p78 = por %p76, %p77
    %p79 = scmp.ne.s32.totalorder %s70, %s71
    %p80 = scmp.eq.s32.totalorder %s18, 0
    %p81 = por %p79, %p80
    %p82 = scmp.ne.s32.totalorder %s70, %s71
    %p83 = scmp.eq.s32.totalorder %s19, 1
    %p84 = por %p82, %p83
    %p86 = scmp.ne.s32.totalorder %s71, %s85
    %p87 = scmp.eq.s32.totalorder %s19, 0
    %p88 = por %p86, %p87
    %s90 = sadd.s32 %s89, 1
    %p93 = scmp.eq.s32.totalorder %s13, 1
    %p94 = scmp.ne.s32.totalorder %s89, %s91
    %p95 = scmp.eq.s32.totalorder %s13, 0
    %p96 = por %p94, %p95
    %p97 = scmp.ne.s32.totalorder %s89, %s91
    %p98 = scmp.eq.s32.totalorder %s18, 1
    %p99 = por %p97, %p98
    %p100 = scmp.ne.s32.totalorder %s91, %s92
    %p101 = scmp.eq.s32.totalorder %s18, 0
    %p102 = por %p100, %p101
    %p103 = scmp.ne.s32.totalorder %s91, %s92
    %p104 = scmp.eq.s32.totalorder %s19, 1
    %p105 = por %p103, %p104
    %p107 = scmp.ne.s32.totalorder %s92, %s106
    %p108 = scmp.eq.s32.totalorder %s19, 0
    %p109 = por %p107, %p108
    %s111 = sadd.s32 %s110, 1
    %p114 = scmp.eq.s32.totalorder %s13, 1
    %p115 = scmp.ne.s32.totalorder %s110, %s112
    %p116 = scmp.eq.s32.totalorder %s13, 0
    %p117 = por %p115, %p116
    %p118 = scmp.ne.s32.totalorder %s110, %s112
    %p119 = scmp.eq.s32.totalorder %s18, 1
    %p120 = por %p118, %p119
    %p121 = scmp.ne.s32.totalorder %s112, %s113
    %p122 = scmp.eq.s32.totalorder %s18, 0
    %p123 = por %p121, %p122
    %p124 = scmp.ne.s32.totalorder %s112, %s113
    %p125 = scmp.eq.s32.totalorder %s19, 1
    %p126 = por %p124, %p125
    %p128 = scmp.ne.s32.totalorder %s113, %s127
    %p129 = scmp.eq.s32.totalorder %s19, 0
    %p130 = por %p128, %p129
    %s132 = sadd.s32 %s131, 1
    %p135 = scmp.eq.s32.totalorder %s13, 1
    %p136 = scmp.ne.s32.totalorder %s131, %s133
    %p137 = scmp.eq.s32.totalorder %s13, 0
    %p138 = por %p136, %p137
    %p139 = scmp.ne.s32.totalorder %s131, %s133
    %p140 = scmp.eq.s32.totalorder %s18, 1
    %p141 = por %p139, %p140
    %p142 = scmp.ne.s32.totalorder %s133, %s134
    %p143 = scmp.eq.s32.totalorder %s18, 0
    %p144 = por %p142, %p143
    %p145 = scmp.ne.s32.totalorder %s133, %s134
    %p146 = scmp.eq.s32.totalorder %s19, 1
    %p147 = por %p145, %p146
    %p149 = scmp.ne.s32.totalorder %s134, %s148
    %p150 = scmp.eq.s32.totalorder %s19, 0
    %p151 = por %p149, %p150
    %s153 = sadd.s32 %s152, 1
    %p156 = scmp.eq.s32.totalorder %s13, 1
    %p157 = scmp.ne.s32.totalorder %s152, %s154
    %p158 = scmp.eq.s32.totalorder %s13, 0
    %p159 = por %p157, %p158
    %p160 = scmp.ne.s32.totalorder %s152, %s154
    %p161 = scmp.eq.s32.totalorder %s18, 1
    %p162 = por %p160, %p161
    %p163 = scmp.ne.s32.totalorder %s154, %s155
    %p164 = scmp.eq.s32.totalorder %s18, 0
    %p165 = por %p163, %p164
    %p166 = scmp.ne.s32.totalorder %s154, %s155
    %p167 = scmp.eq.s32.totalorder %s19, 1
    %p168 = por %p166, %p167
    %p170 = scmp.ne.s32.totalorder %s155, %s169
    %p171 = scmp.eq.s32.totalorder %s19, 0
    %p172 = por %p170, %p171
    %s173 = ssub.s32 %s13, %s20
    %p174 = scmp.eq.s32.totalorder %s173, 0
    %s176 = sadd.s32 %s175, 1
    %s177 = scalar_select %p174, %s175, %s176
    %p180 = pneg %p174
    %p181 = scmp.eq.s32.totalorder %s13, 1
    %p182 = por %p180, %p181
    %p183 = scmp.ne.s32.totalorder %s175, %s178
    %p184 = scmp.eq.s32.totalorder %s13, 0
    %p185 = por %p183, %p184
    %p186 = scmp.ne.s32.totalorder %s175, %s178
    %p187 = scmp.eq.s32.totalorder %s18, 1
    %p188 = por %p186, %p187
    %p189 = scmp.ne.s32.totalorder %s178, %s179
    %p190 = scmp.eq.s32.totalorder %s18, 0
    %p191 = por %p189, %p190
    %p192 = scmp.ne.s32.totalorder %s178, %s179
    %p193 = scmp.eq.s32.totalorder %s19, 1
    %p194 = por %p192, %p193
    %p196 = scmp.ne.s32.totalorder %s179, %s195
    %p197 = scmp.eq.s32.totalorder %s19, 0
    %p198 = por %p196, %p197
    %p199 = scmp.le.s32.totalorder 1, %s13
    %p200 = scmp.lt.s32.totalorder %s13, 3
    %p201 = pnand %p199, %p200
    %p202 = pneg %p201
    // Predicated region
    $region9: #{run.5} parent=5 // pred_check
      _
    $region10: #{run.5} parent=5 // pred_check_branch
      %204 = sbr.rel (%p201) target = $region12
    $region11: #{run.5} parent=5 // pred_region
      %s205 = ssub.s32 %s13, 1
      // Predicated region
      $region13: #{run.5} parent=11 // pred_check
        %p206 = pneg %p60
      $region14: #{run.5} parent=11 // pred_check_branch
        %208 = sbr.rel (%p206) target = $region16
      $region15: #{run.5} parent=11 // pred_region
        _
      $region16: #{run.5} parent=11 // pred_fallthru
        _
      // Predicated region
      $region17: #{run.5} parent=11 // pred_check
        %p209 = pneg %p81
      $region18: #{run.5} parent=11 // pred_check_branch
        %211 = sbr.rel (%p209) target = $region20
      $region19: #{run.5} parent=11 // pred_region
        _
      $region20: #{run.5} parent=11 // pred_fallthru
        _
      // Predicated region
      $region21: #{run.5} parent=11 // pred_check
        %p212 = pneg %p102
      $region22: #{run.5} parent=11 // pred_check_branch
        %214 = sbr.rel (%p212) target = $region24
      $region23: #{run.5} parent=11 // pred_region
        _
      $region24: #{run.5} parent=11 // pred_fallthru
        _
      // Predicated region
      $region25: #{run.5} parent=11 // pred_check
        %p215 = pneg %p123
      $region26: #{run.5} parent=11 // pred_check_branch
        %217 = sbr.rel (%p215) target = $region28
      $region27: #{run.5} parent=11 // pred_region
        _
      $region28: #{run.5} parent=11 // pred_fallthru
        _
      // Predicated region
      $region29: #{run.5} parent=11 // pred_check
        %p218 = pneg %p144
      $region30: #{run.5} parent=11 // pred_check_branch
        %220 = sbr.rel (%p218) target = $region32
      $region31: #{run.5} parent=11 // pred_region
        _
      $region32: #{run.5} parent=11 // pred_fallthru
        _
      // Predicated region
      $region33: #{run.5} parent=11 // pred_check
        %p221 = pneg %p165
      $region34: #{run.5} parent=11 // pred_check_branch
        %223 = sbr.rel (%p221) target = $region36
      $region35: #{run.5} parent=11 // pred_region
        _
      $region36: #{run.5} parent=11 // pred_fallthru
        _
    $region12: #{run.5} parent=5 // pred_fallthru
      _
    %p224 = scmp.lt.s32.totalorder %s13, 2
    // Predicated region
    $region37: #{run.5} parent=5 // pred_check
      %p225 = pneg %p224
    $region38: #{run.5} parent=5 // pred_check_branch
      %227 = sbr.rel (%p225) target = $region40
    $region39: #{run.5} parent=5 // pred_region
      // Predicated region
      $region41: #{run.5} parent=39 // pred_check
        %p228 = pneg %p33
      $region42: #{run.5} parent=39 // pred_check_branch
        %230 = sbr.rel (%p228) target = $region44
      $region43: #{run.5} parent=39 // pred_region
        %s231 = smul.u32 8, %s13
        %p232 = scmp.lt.s32.totalorder %s231, 15
        %s233 = scalar_select %p232, %s231, 15
        %s234 = smul.addr %s233, 8
        %s235 = scalar_lea.vmem %s0, %s234
        %s236 = smul.u32 8, %s13
      $region44: #{run.5} parent=39 // pred_fallthru
        _
    $region40: #{run.5} parent=5 // pred_fallthru
      _
    %p237 = scmp.le.s32.totalorder 1, %s13
    %p238 = scmp.lt.s32.totalorder %s13, 3
    %p239 = pnand %p237, %p238
    %p240 = pneg %p239
    // Predicated region
    $region45: #{run.5} parent=5 // pred_check
      _
    $region46: #{run.5} parent=5 // pred_check_branch
      %242 = sbr.rel (%p239) target = $region48
    $region47: #{run.5} parent=5 // pred_region
      %s243 = ssub.s32 %s13, 1
      %s244 = smul.u32 8, %s18
      %p245 = scmp.lt.s32.totalorder %s244, 15
      %s246 = scalar_select %p245, %s244, 15
      %s247 = smul.addr %s246, 8
      %s248 = scalar_lea.vmem %s0, %s247
      %p249 = pneg %p39
      %p250 = pneg %p36
      %p251 = pneg %p60
      %p252 = pneg %p57
      %p253 = pneg %p81
      %p254 = pneg %p78
      %p255 = pneg %p102
      %p256 = pneg %p99
      %p257 = pneg %p123
      %p258 = pneg %p120
      %p259 = pneg %p144
      %p260 = pneg %p141
      %p261 = pneg %p165
      %p262 = pneg %p162
      %p263 = pneg %p191
      %p264 = pneg %p188
      %s265 = smul.u32 8, %s18
      %p266 = scmp.lt.s32.totalorder %s265, 15
      %s267 = scalar_select %p266, %s265, 15
      %s268 = smul.addr %s267, 8
      %s269 = scalar_lea.vmem %s7, %s268
      %s270 = smul.u32 8, %s18
      %p271 = scmp.lt.s32.totalorder %s270, 15
      %s272 = scalar_select %p271, %s270, 15
      %s273 = smul.addr %s272, 8
      %s274 = scalar_lea.vmem %s0, %s273
      %s275 = smul.u32 8, %s18
      %s276 = smul.u32 8, %s18
      %p277 = scmp.lt.s32.totalorder %s276, 15
      %s278 = scalar_select %p277, %s276, 15
      %s279 = smul.addr %s278, 8
      %s280 = scalar_lea.vmem %s7, %s279
      %s281 = smul.u32 8, %s18
      %v283 = vld [vmem:[%s274] sm:$0xff]
      %v284 = vld [vmem:[%s274 + $0x8] sm:$0xff]
      %v285 = vld [vmem:[%s274 + $0x10] sm:$0xff]
      %v286 = vld [vmem:[%s274 + $0x18] sm:$0xff]
      %v287 = vld [vmem:[%s274 + $0x20] sm:$0xff]
      %v288 = vld [vmem:[%s274 + $0x28] sm:$0xff]
      %v289 = vld [vmem:[%s274 + $0x30] sm:$0xff]
      %v290 = vld [vmem:[%s274 + $0x38] sm:$0xff]
      %v291 = vld [vmem:[%s1] sm:$0x1]
      %v292 = vld [vmem:[%s2] sm:$0x1]
      %vm293 = vcmask 261120
      %v294 = vsel %vm293, %v283, 0.0
      %295 = vadd.xlane.f32.xlu0 %v294
      %v296 = vpop.xlane.xlu0 %295
      %v297 = vsel %vm293, %v284, 0.0
      %298 = vadd.xlane.f32.xlu0 %v297
      %v299 = vpop.xlane.xlu0 %298
      %v300 = vsel %vm293, %v285, 0.0
      %301 = vadd.xlane.f32.xlu0 %v300
      %v302 = vpop.xlane.xlu0 %301
      %v303 = vsel %vm293, %v286, 0.0
      %304 = vadd.xlane.f32.xlu0 %v303
      %v305 = vpop.xlane.xlu0 %304
      %v306 = vsel %vm293, %v287, 0.0
      %307 = vadd.xlane.f32.xlu0 %v306
      %v308 = vpop.xlane.xlu0 %307
      %v309 = vsel %vm293, %v288, 0.0
      %310 = vadd.xlane.f32.xlu0 %v309
      %v311 = vpop.xlane.xlu0 %310
      %v312 = vsel %vm293, %v289, 0.0
      %313 = vadd.xlane.f32.xlu0 %v312
      %v314 = vpop.xlane.xlu0 %313
      %v315 = vsel %vm293, %v290, 0.0
      %316 = vadd.xlane.f32.xlu0 %v315
      %v317 = vpop.xlane.xlu0 %316
      %v318 = vrcp.pop 32.0
      %v319 = vmul.f32 32.0, %v318
      %v320 = vsub.f32 1.0, %v319
      %v321 = vmul.f32 %v318, %v320
      %v322 = vadd.f32 %v318, %v321
      %vm323 = vweird.f32 %v318
      %v324 = vsel %vm323, %v318, %v322
      %v325 = vmul.f32 %v296, %v324
      %v326 = vmul.f32 %v299, %v324
      %v327 = vmul.f32 %v302, %v324
      %v328 = vmul.f32 %v305, %v324
      %v329 = vmul.f32 %v308, %v324
      %v330 = vmul.f32 %v311, %v324
      %v331 = vmul.f32 %v314, %v324
      %v332 = vmul.f32 %v317, %v324
      %v333 = vsub.f32 %v283, %v325
      %v334 = vsub.f32 %v284, %v326
      %v335 = vsub.f32 %v285, %v327
      %v336 = vsub.f32 %v286, %v328
      %v337 = vsub.f32 %v287, %v329
      %v338 = vsub.f32 %v288, %v330
      %v339 = vsub.f32 %v289, %v331
      %v340 = vsub.f32 %v290, %v332
      %v341 = vmul.f32 %v333, %v333
      %v342 = vmul.f32 %v334, %v334
      %v343 = vmul.f32 %v335, %v335
      %v344 = vmul.f32 %v336, %v336
      %v345 = vmul.f32 %v337, %v337
      %v346 = vmul.f32 %v338, %v338
      %v347 = vmul.f32 %v339, %v339
      %v348 = vmul.f32 %v340, %v340
      %v349 = vsel %vm293, %v341, 0.0
      %350 = vadd.xlane.f32.xlu0 %v349
      %v351 = vpop.xlane.xlu0 %350
      %v352 = vsel %vm293, %v342, 0.0
      %353 = vadd.xlane.f32.xlu0 %v352
      %v354 = vpop.xlane.xlu0 %353
      %v355 = vsel %vm293, %v343, 0.0
      %356 = vadd.xlane.f32.xlu0 %v355
      %v357 = vpop.xlane.xlu0 %356
      %v358 = vsel %vm293, %v344, 0.0
      %359 = vadd.xlane.f32.xlu0 %v358
      %v360 = vpop.xlane.xlu0 %359
      %v361 = vsel %vm293, %v345, 0.0
      %362 = vadd.xlane.f32.xlu0 %v361
      %v363 = vpop.xlane.xlu0 %362
      %v364 = vsel %vm293, %v346, 0.0
      %365 = vadd.xlane.f32.xlu0 %v364
      %v366 = vpop.xlane.xlu0 %365
      %v367 = vsel %vm293, %v347, 0.0
      %368 = vadd.xlane.f32.xlu0 %v367
      %v369 = vpop.xlane.xlu0 %368
      %v370 = vsel %vm293, %v348, 0.0
      %371 = vadd.xlane.f32.xlu0 %v370
      %v372 = vpop.xlane.xlu0 %371
      %v373 = vmul.f32 %v351, %v324
      %v374 = vmul.f32 %v354, %v324
      %v375 = vmul.f32 %v357, %v324
      %v376 = vmul.f32 %v360, %v324
      %v377 = vmul.f32 %v363, %v324
      %v378 = vmul.f32 %v366, %v324
      %v379 = vmul.f32 %v369, %v324
      %v380 = vmul.f32 %v372, %v324
      %v381 = vadd.f32 %v373, 1e-05
      %v382 = vadd.f32 %v374, 1e-05
      %v383 = vadd.f32 %v375, 1e-05
      %v384 = vadd.f32 %v376, 1e-05
      %v385 = vadd.f32 %v377, 1e-05
      %v386 = vadd.f32 %v378, 1e-05
      %v387 = vadd.f32 %v379, 1e-05
      %v388 = vadd.f32 %v380, 1e-05
      %v389 = vrsqrt.pop %v381
      %v390 = vmul.f32 %v389, %v381
      %v391 = vmul.f32 %v390, %v389
      %v392 = vmul.f32 0.5, %v391
      %v393 = vsub.f32 1.5, %v392
      %v394 = vmul.f32 %v389, %v393
      %vm395 = vweird.f32 %v381
      %vm396 = vweird.f32 %v389
      %vm397 = vmor %vm395, %vm396
      %v398 = vsel %vm397, %v389, %v394
      %v399 = vrsqrt.pop %v382
      %v400 = vmul.f32 %v399, %v382
      %v401 = vmul.f32 %v400, %v399
      %v402 = vmul.f32 0.5, %v401
      %v403 = vsub.f32 1.5, %v402
      %v404 = vmul.f32 %v399, %v403
      %vm405 = vweird.f32 %v382
      %vm406 = vweird.f32 %v399
      %vm407 = vmor %vm405, %vm406
      %v408 = vsel %vm407, %v399, %v404
      %v409 = vrsqrt.pop %v383
      %v410 = vmul.f32 %v409, %v383
      %v411 = vmul.f32 %v410, %v409
      %v412 = vmul.f32 0.5, %v411
      %v413 = vsub.f32 1.5, %v412
      %v414 = vmul.f32 %v409, %v413
      %vm415 = vweird.f32 %v383
      %vm416 = vweird.f32 %v409
      %vm417 = vmor %vm415, %vm416
      %v418 = vsel %vm417, %v409, %v414
      %v419 = vrsqrt.pop %v384
      %v420 = vmul.f32 %v419, %v384
      %v421 = vmul.f32 %v420, %v419
      %v422 = vmul.f32 0.5, %v421
      %v423 = vsub.f32 1.5, %v422
      %v424 = vmul.f32 %v419, %v423
      %vm425 = vweird.f32 %v384
      %vm426 = vweird.f32 %v419
      %vm427 = vmor %vm425, %vm426
      %v428 = vsel %vm427, %v419, %v424
      %v429 = vrsqrt.pop %v385
      %v430 = vmul.f32 %v429, %v385
      %v431 = vmul.f32 %v430, %v429
      %v432 = vmul.f32 0.5, %v431
      %v433 = vsub.f32 1.5, %v432
      %v434 = vmul.f32 %v429, %v433
      %vm435 = vweird.f32 %v385
      %vm436 = vweird.f32 %v429
      %vm437 = vmor %vm435, %vm436
      %v438 = vsel %vm437, %v429, %v434
      %v439 = vrsqrt.pop %v386
      %v440 = vmul.f32 %v439, %v386
      %v441 = vmul.f32 %v440, %v439
      %v442 = vmul.f32 0.5, %v441
      %v443 = vsub.f32 1.5, %v442
      %v444 = vmul.f32 %v439, %v443
      %vm445 = vweird.f32 %v386
      %vm446 = vweird.f32 %v439
      %vm447 = vmor %vm445, %vm446
      %v448 = vsel %vm447, %v439, %v444
      %v449 = vrsqrt.pop %v387
      %v450 = vmul.f32 %v449, %v387
      %v451 = vmul.f32 %v450, %v449
      %v452 = vmul.f32 0.5, %v451
      %v453 = vsub.f32 1.5, %v452
      %v454 = vmul.f32 %v449, %v453
      %vm455 = vweird.f32 %v387
      %vm456 = vweird.f32 %v449
      %vm457 = vmor %vm455, %vm456
      %v458 = vsel %vm457, %v449, %v454
      %v459 = vrsqrt.pop %v388
      %v460 = vmul.f32 %v459, %v388
      %v461 = vmul.f32 %v460, %v459
      %v462 = vmul.f32 0.5, %v461
      %v463 = vsub.f32 1.5, %v462
      %v464 = vmul.f32 %v459, %v463
      %vm465 = vweird.f32 %v388
      %vm466 = vweird.f32 %v459
      %vm467 = vmor %vm465, %vm466
      %v468 = vsel %vm467, %v459, %v464
      %v469 = vmul.f32 %v333, %v398
      %v470 = vmul.f32 %v334, %v408
      %v471 = vmul.f32 %v335, %v418
      %v472 = vmul.f32 %v336, %v428
      %v473 = vmul.f32 %v337, %v438
      %v474 = vmul.f32 %v338, %v448
      %v475 = vmul.f32 %v339, %v458
      %v476 = vmul.f32 %v340, %v468
      %v478 = vperm.slane %v291, 0
      %v480 = vmul.f32 %v469, %v478
      %v481 = vmul.f32 %v470, %v478
      %v482 = vmul.f32 %v471, %v478
      %v483 = vmul.f32 %v472, %v478
      %v484 = vmul.f32 %v473, %v478
      %v485 = vmul.f32 %v474, %v478
      %v486 = vmul.f32 %v475, %v478
      %v487 = vmul.f32 %v476, %v478
      %v489 = vperm.slane %v292, 0
      %v491 = vadd.f32 %v480, %v489
      %v492 = vadd.f32 %v481, %v489
      %v493 = vadd.f32 %v482, %v489
      %v494 = vadd.f32 %v483, %v489
      %v495 = vadd.f32 %v484, %v489
      %v496 = vadd.f32 %v485, %v489
      %v497 = vadd.f32 %v486, %v489
      %v498 = vadd.f32 %v487, %v489
      %v499 = vpack.c.bf16 %v492, %v491
      %v500 = vpack.c.bf16 %v494, %v493
      %v501 = vpack.c.bf16 %v496, %v495
      %v502 = vpack.c.bf16 %v498, %v497
      %v503 = vld [vmem:[%s3] sm:$0xf]
      %v504 = vld [vmem:[%s3 + $0x4] sm:$0xf]
      %v505 = vld [vmem:[%s3 + $0x8] sm:$0xf]
      %v506 = vld [vmem:[%s3 + $0xc] sm:$0xf]
      %v507 = vld [vmem:[%s4] sm:$0x1]
      %v509 = vperm.slane %v507, 0
      %v515 = vunpack.c.l.b16 %v503
      %v516 = vunpack.c.l.b16 %v504
      %v517 = vunpack.c.l.b16 %v505
      %v518 = vunpack.c.l.b16 %v506
      %v519 = vpack.c.b16 %v516, %v515
      %v520 = vpack.c.b16 %v518, %v517
      %v524 = vsel %vm293, %v499, 0
      %v527 = vsel %vm293, %v500, 0
      %v530 = vsel %vm293, %v501, 0
      %v533 = vsel %vm293, %v502, 0
      %535 = vmatpush.bf16.msra.mxu0 0
      %536 = vmatpush.bf16.msra.mxu0 0
      %537 = vmatpush.bf16.msra.mxu0 0
      %538 = vmatpush.bf16.msra.mxu0 0
      %539 = vmatpush.bf16.msra.mxu0 0
      %540 = vmatpush.bf16.msra.mxu0 0
      %541 = vmatpush.bf16.msra.mxu0 %v520
      %542 = vmatpush.bf16.msra.mxu0 %v519
      %543 = vmatmul.bf16.gmra.mxu0 %v524
      %v544 = vpop.f32.mrf.mxu0
      %v545 = vadd.f32 %v509, %v544
      %v546 = vpop.f32.mrf.mxu0
      %v547 = vadd.f32 %v509, %v546
      %548 = vmatmul.bf16.gmra.mxu0 %v527
      %v549 = vpop.f32.mrf.mxu0
      %v550 = vadd.f32 %v509, %v549
      %v551 = vpop.f32.mrf.mxu0
      %v552 = vadd.f32 %v509, %v551
      %553 = vmatmul.bf16.gmra.mxu0 %v530
      %v554 = vpop.f32.mrf.mxu0
      %v555 = vadd.f32 %v509, %v554
      %v556 = vpop.f32.mrf.mxu0
      %v557 = vadd.f32 %v509, %v556
      %558 = vmatmul.bf16.gmra.mxu0 %v533
      %v559 = vpop.f32.mrf.mxu0
      %v560 = vadd.f32 %v509, %v559
      %v561 = vpop.f32.mrf.mxu0
      %v562 = vadd.f32 %v509, %v561
      %563 = vdwg.mxu0
      %v564 = vmul.f32 %v545, 0.5
      %v565 = vmul.f32 %v547, 0.5
      %v566 = vmul.f32 %v550, 0.5
      %v567 = vmul.f32 %v552, 0.5
      %v568 = vmul.f32 %v555, 0.5
      %v569 = vmul.f32 %v557, 0.5
      %v570 = vmul.f32 %v560, 0.5
      %v571 = vmul.f32 %v562, 0.5
      %v572 = vmul.f32 %v545, 0.70710677
      %v573 = vmul.f32 %v547, 0.70710677
      %v574 = vmul.f32 %v550, 0.70710677
      %v575 = vmul.f32 %v552, 0.70710677
      %v576 = vmul.f32 %v555, 0.70710677
      %v577 = vmul.f32 %v557, 0.70710677
      %v578 = vmul.f32 %v560, 0.70710677
      %v579 = vmul.f32 %v562, 0.70710677
      %v580 = vand.u32 2147483647, %v572
      %v581 = vand.u32 2147483647, %v573
      %v582 = vand.u32 2147483647, %v574
      %v583 = vand.u32 2147483647, %v575
      %v584 = vand.u32 2147483647, %v576
      %v585 = vand.u32 2147483647, %v577
      %v586 = vand.u32 2147483647, %v578
      %v587 = vand.u32 2147483647, %v579
      %v588 = vmul.f32 %v580, 0.5
      %v589 = vmul.f32 %v581, 0.5
      %v590 = vmul.f32 %v582, 0.5
      %v591 = vmul.f32 %v583, 0.5
      %v592 = vmul.f32 %v584, 0.5
      %v593 = vmul.f32 %v585, 0.5
      %v594 = vmul.f32 %v586, 0.5
      %v595 = vmul.f32 %v587, 0.5
      %v596 = vadd.f32 %v588, 1.0
      %v597 = vadd.f32 %v589, 1.0
      %v598 = vadd.f32 %v590, 1.0
      %v599 = vadd.f32 %v591, 1.0
      %v600 = vadd.f32 %v592, 1.0
      %v601 = vadd.f32 %v593, 1.0
      %v602 = vadd.f32 %v594, 1.0
      %v603 = vadd.f32 %v595, 1.0
      %v604 = vrcp.pop %v596
      %v605 = vmul.f32 %v596, %v604
      %v606 = vsub.f32 1.0, %v605
      %v607 = vmul.f32 %v604, %v606
      %v608 = vadd.f32 %v604, %v607
      %vm609 = vweird.f32 %v596
      %vm610 = vweird.f32 %v604
      %vm611 = vmor %vm609, %vm610
      %v612 = vsel %vm611, %v604, %v608
      %v613 = vand.u32 2147483647, %v596
      %vm614 = vcmp.eq.f32.partialorder %v613, 8.507059e+37
      %v615 = vand.u32 %v596, 2147483648
      %v616 = vor.u32 1.1754944e-38, %v615
      %v617 = vsel %vm614, %v616, %v612
      %v618 = vmul.f32 1.0, %v617
      %v619 = vrcp.pop %v597
      %v620 = vmul.f32 %v597, %v619
      %v621 = vsub.f32 1.0, %v620
      %v622 = vmul.f32 %v619, %v621
      %v623 = vadd.f32 %v619, %v622
      %vm624 = vweird.f32 %v597
      %vm625 = vweird.f32 %v619
      %vm626 = vmor %vm624, %vm625
      %v627 = vsel %vm626, %v619, %v623
      %v628 = vand.u32 2147483647, %v597
      %vm629 = vcmp.eq.f32.partialorder %v628, 8.507059e+37
      %v630 = vand.u32 %v597, 2147483648
      %v631 = vor.u32 1.1754944e-38, %v630
      %v632 = vsel %vm629, %v631, %v627
      %v633 = vmul.f32 1.0, %v632
      %v634 = vrcp.pop %v598
      %v635 = vmul.f32 %v598, %v634
      %v636 = vsub.f32 1.0, %v635
      %v637 = vmul.f32 %v634, %v636
      %v638 = vadd.f32 %v634, %v637
      %vm639 = vweird.f32 %v598
      %vm640 = vweird.f32 %v634
      %vm641 = vmor %vm639, %vm640
      %v642 = vsel %vm641, %v634, %v638
      %v643 = vand.u32 2147483647, %v598
      %vm644 = vcmp.eq.f32.partialorder %v643, 8.507059e+37
      %v645 = vand.u32 %v598, 2147483648
      %v646 = vor.u32 1.1754944e-38, %v645
      %v647 = vsel %vm644, %v646, %v642
      %v648 = vmul.f32 1.0, %v647
      %v649 = vrcp.pop %v599
      %v650 = vmul.f32 %v599, %v649
      %v651 = vsub.f32 1.0, %v650
      %v652 = vmul.f32 %v649, %v651
      %v653 = vadd.f32 %v649, %v652
      %vm654 = vweird.f32 %v599
      %vm655 = vweird.f32 %v649
      %vm656 = vmor %vm654, %vm655
      %v657 = vsel %vm656, %v649, %v653
      %v658 = vand.u32 2147483647, %v599
      %vm659 = vcmp.eq.f32.partialorder %v658, 8.507059e+37
      %v660 = vand.u32 %v599, 2147483648
      %v661 = vor.u32 1.1754944e-38, %v660
      %v662 = vsel %vm659, %v661, %v657
      %v663 = vmul.f32 1.0, %v662
      %v664 = vrcp.pop %v600
      %v665 = vmul.f32 %v600, %v664
      %v666 = vsub.f32 1.0, %v665
      %v667 = vmul.f32 %v664, %v666
      %v668 = vadd.f32 %v664, %v667
      %vm669 = vweird.f32 %v600
      %vm670 = vweird.f32 %v664
      %vm671 = vmor %vm669, %vm670
      %v672 = vsel %vm671, %v664, %v668
      %v673 = vand.u32 2147483647, %v600
      %vm674 = vcmp.eq.f32.partialorder %v673, 8.507059e+37
      %v675 = vand.u32 %v600, 2147483648
      %v676 = vor.u32 1.1754944e-38, %v675
      %v677 = vsel %vm674, %v676, %v672
      %v678 = vmul.f32 1.0, %v677
      %v679 = vrcp.pop %v601
      %v680 = vmul.f32 %v601, %v679
      %v681 = vsub.f32 1.0, %v680
      %v682 = vmul.f32 %v679, %v681
      %v683 = vadd.f32 %v679, %v682
      %vm684 = vweird.f32 %v601
      %vm685 = vweird.f32 %v679
      %vm686 = vmor %vm684, %vm685
      %v687 = vsel %vm686, %v679, %v683
      %v688 = vand.u32 2147483647, %v601
      %vm689 = vcmp.eq.f32.partialorder %v688, 8.507059e+37
      %v690 = vand.u32 %v601, 2147483648
      %v691 = vor.u32 1.1754944e-38, %v690
      %v692 = vsel %vm689, %v691, %v687
      %v693 = vmul.f32 1.0, %v692
      %v694 = vrcp.pop %v602
      %v695 = vmul.f32 %v602, %v694
      %v696 = vsub.f32 1.0, %v695
      %v697 = vmul.f32 %v694, %v696
      %v698 = vadd.f32 %v694, %v697
      %vm699 = vweird.f32 %v602
      %vm700 = vweird.f32 %v694
      %vm701 = vmor %vm699, %vm700
      %v702 = vsel %vm701, %v694, %v698
      %v703 = vand.u32 2147483647, %v602
      %vm704 = vcmp.eq.f32.partialorder %v703, 8.507059e+37
      %v705 = vand.u32 %v602, 2147483648
      %v706 = vor.u32 1.1754944e-38, %v705
      %v707 = vsel %vm704, %v706, %v702
      %v708 = vmul.f32 1.0, %v707
      %v709 = vrcp.pop %v603
      %v710 = vmul.f32 %v603, %v709
      %v711 = vsub.f32 1.0, %v710
      %v712 = vmul.f32 %v709, %v711
      %v713 = vadd.f32 %v709, %v712
      %vm714 = vweird.f32 %v603
      %vm715 = vweird.f32 %v709
      %vm716 = vmor %vm714, %vm715
      %v717 = vsel %vm716, %v709, %v713
      %v718 = vand.u32 2147483647, %v603
      %vm719 = vcmp.eq.f32.partialorder %v718, 8.507059e+37
      %v720 = vand.u32 %v603, 2147483648
      %v721 = vor.u32 1.1754944e-38, %v720
      %v722 = vsel %vm719, %v721, %v717
      %v723 = vmul.f32 1.0, %v722
      %v724 = vmul.f32 %v618, 0.17087276
      %v725 = vmul.f32 %v633, 0.17087276
      %v726 = vmul.f32 %v648, 0.17087276
      %v727 = vmul.f32 %v663, 0.17087276
      %v728 = vmul.f32 %v678, 0.17087276
      %v729 = vmul.f32 %v693, 0.17087276
      %v730 = vmul.f32 %v708, 0.17087276
      %v731 = vmul.f32 %v723, 0.17087276
      %v732 = vadd.f32 %v724, -0.82215226
      %v733 = vadd.f32 %v725, -0.82215226
      %v734 = vadd.f32 %v726, -0.82215226
      %v735 = vadd.f32 %v727, -0.82215226
      %v736 = vadd.f32 %v728, -0.82215226
      %v737 = vadd.f32 %v729, -0.82215226
      %v738 = vadd.f32 %v730, -0.82215226
      %v739 = vadd.f32 %v731, -0.82215226
      %v740 = vmul.f32 %v618, %v732
      %v741 = vmul.f32 %v633, %v733
      %v742 = vmul.f32 %v648, %v734
      %v743 = vmul.f32 %v663, %v735
      %v744 = vmul.f32 %v678, %v736
      %v745 = vmul.f32 %v693, %v737
      %v746 = vmul.f32 %v708, %v738
      %v747 = vmul.f32 %v723, %v739
      %v748 = vadd.f32 %v740, 1.4885159
      %v749 = vadd.f32 %v741, 1.4885159
      %v750 = vadd.f32 %v742, 1.4885159
      %v751 = vadd.f32 %v743, 1.4885159
      %v752 = vadd.f32 %v744, 1.4885159
      %v753 = vadd.f32 %v745, 1.4885159
      %v754 = vadd.f32 %v746, 1.4885159
      %v755 = vadd.f32 %v747, 1.4885159
      %v756 = vmul.f32 %v618, %v748
      %v757 = vmul.f32 %v633, %v749
      %v758 = vmul.f32 %v648, %v750
      %v759 = vmul.f32 %v663, %v751
      %v760 = vmul.f32 %v678, %v752
      %v761 = vmul.f32 %v693, %v753
      %v762 = vmul.f32 %v708, %v754
      %v763 = vmul.f32 %v723, %v755
      %v764 = vadd.f32 %v756, -1.135204
      %v765 = vadd.f32 %v757, -1.135204
      %v766 = vadd.f32 %v758, -1.135204
      %v767 = vadd.f32 %v759, -1.135204
      %v768 = vadd.f32 %v760, -1.135204
      %v769 = vadd.f32 %v761, -1.135204
      %v770 = vadd.f32 %v762, -1.135204
      %v771 = vadd.f32 %v763, -1.135204
      %v772 = vmul.f32 %v618, %v764
      %v773 = vmul.f32 %v633, %v765
      %v774 = vmul.f32 %v648, %v766
      %v775 = vmul.f32 %v663, %v767
      %v776 = vmul.f32 %v678, %v768
      %v777 = vmul.f32 %v693, %v769
      %v778 = vmul.f32 %v708, %v770
      %v779 = vmul.f32 %v723, %v771
      %v780 = vadd.f32 %v772, 0.27886808
      %v781 = vadd.f32 %v773, 0.27886808
      %v782 = vadd.f32 %v774, 0.27886808
      %v783 = vadd.f32 %v775, 0.27886808
      %v784 = vadd.f32 %v776, 0.27886808
      %v785 = vadd.f32 %v777, 0.27886808
      %v786 = vadd.f32 %v778, 0.27886808
      %v787 = vadd.f32 %v779, 0.27886808
      %v788 = vmul.f32 %v618, %v780
      %v789 = vmul.f32 %v633, %v781
      %v790 = vmul.f32 %v648, %v782
      %v791 = vmul.f32 %v663, %v783
      %v792 = vmul.f32 %v678, %v784
      %v793 = vmul.f32 %v693, %v785
      %v794 = vmul.f32 %v708, %v786
      %v795 = vmul.f32 %v723, %v787
      %v796 = vadd.f32 %v788, -0.18628806
      %v797 = vadd.f32 %v789, -0.18628806
      %v798 = vadd.f32 %v790, -0.18628806
      %v799 = vadd.f32 %v791, -0.18628806
      %v800 = vadd.f32 %v792, -0.18628806
      %v801 = vadd.f32 %v793, -0.18628806
      %v802 = vadd.f32 %v794, -0.18628806
      %v803 = vadd.f32 %v795, -0.18628806
      %v804 = vmul.f32 %v618, %v796
      %v805 = vmul.f32 %v633, %v797
      %v806 = vmul.f32 %v648, %v798
      %v807 = vmul.f32 %v663, %v799
      %v808 = vmul.f32 %v678, %v800
      %v809 = vmul.f32 %v693, %v801
      %v810 = vmul.f32 %v708, %v802
      %v811 = vmul.f32 %v723, %v803
      %v812 = vadd.f32 %v804, 0.09678418
      %v813 = vadd.f32 %v805, 0.09678418
      %v814 = vadd.f32 %v806, 0.09678418
      %v815 = vadd.f32 %v807, 0.09678418
      %v816 = vadd.f32 %v808, 0.09678418
      %v817 = vadd.f32 %v809, 0.09678418
      %v818 = vadd.f32 %v810, 0.09678418
      %v819 = vadd.f32 %v811, 0.09678418
      %v820 = vmul.f32 %v618, %v812
      %v821 = vmul.f32 %v633, %v813
      %v822 = vmul.f32 %v648, %v814
      %v823 = vmul.f32 %v663, %v815
      %v824 = vmul.f32 %v678, %v816
      %v825 = vmul.f32 %v693, %v817
      %v826 = vmul.f32 %v708, %v818
      %v827 = vmul.f32 %v723, %v819
      %v828 = vadd.f32 %v820, 0.37409195
      %v829 = vadd.f32 %v821, 0.37409195
      %v830 = vadd.f32 %v822, 0.37409195
      %v831 = vadd.f32 %v823, 0.37409195
      %v832 = vadd.f32 %v824, 0.37409195
      %v833 = vadd.f32 %v825, 0.37409195
      %v834 = vadd.f32 %v826, 0.37409195
      %v835 = vadd.f32 %v827, 0.37409195
      %v836 = vmul.f32 %v618, %v828
      %v837 = vmul.f32 %v633, %v829
      %v838 = vmul.f32 %v648, %v830
      %v839 = vmul.f32 %v663, %v831
      %v840 = vmul.f32 %v678, %v832
      %v841 = vmul.f32 %v693, %v833
      %v842 = vmul.f32 %v708, %v834
      %v843 = vmul.f32 %v723, %v835
      %v844 = vadd.f32 %v836, 1.0000237
      %v845 = vadd.f32 %v837, 1.0000237
      %v846 = vadd.f32 %v838, 1.0000237
      %v847 = vadd.f32 %v839, 1.0000237
      %v848 = vadd.f32 %v840, 1.0000237
      %v849 = vadd.f32 %v841, 1.0000237
      %v850 = vadd.f32 %v842, 1.0000237
      %v851 = vadd.f32 %v843, 1.0000237
      %v852 = vmul.f32 %v618, %v844
      %v853 = vmul.f32 %v633, %v845
      %v854 = vmul.f32 %v648, %v846
      %v855 = vmul.f32 %v663, %v847
      %v856 = vmul.f32 %v678, %v848
      %v857 = vmul.f32 %v693, %v849
      %v858 = vmul.f32 %v708, %v850
      %v859 = vmul.f32 %v723, %v851
      %v860 = vadd.f32 %v852, -1.2655122
      %v861 = vadd.f32 %v853, -1.2655122
      %v862 = vadd.f32 %v854, -1.2655122
      %v863 = vadd.f32 %v855, -1.2655122
      %v864 = vadd.f32 %v856, -1.2655122
      %v865 = vadd.f32 %v857, -1.2655122
      %v866 = vadd.f32 %v858, -1.2655122
      %v867 = vadd.f32 %v859, -1.2655122
      %v868 = vsub.f32 0.0, %v580
      %v869 = vsub.f32 0.0, %v581
      %v870 = vsub.f32 0.0, %v582
      %v871 = vsub.f32 0.0, %v583
      %v872 = vsub.f32 0.0, %v584
      %v873 = vsub.f32 0.0, %v585
      %v874 = vsub.f32 0.0, %v586
      %v875 = vsub.f32 0.0, %v587
      %v876 = vmul.f32 %v868, %v580
      %v877 = vmul.f32 %v869, %v581
      %v878 = vmul.f32 %v870, %v582
      %v879 = vmul.f32 %v871, %v583
      %v880 = vmul.f32 %v872, %v584
      %v881 = vmul.f32 %v873, %v585
      %v882 = vmul.f32 %v874, %v586
      %v883 = vmul.f32 %v875, %v587
      %v884 = vadd.f32 %v876, %v860
      %v885 = vadd.f32 %v877, %v861
      %v886 = vadd.f32 %v878, %v862
      %v887 = vadd.f32 %v879, %v863
      %v888 = vadd.f32 %v880, %v864
      %v889 = vadd.f32 %v881, %v865
      %v890 = vadd.f32 %v882, %v866
      %v891 = vadd.f32 %v883, %v867
      %v892 = vmul.f32 %v884, 1.442695
      %v893 = vpow.pop %v892
      %v894 = vmul.f32 %v885, 1.442695
      %v895 = vpow.pop %v894
      %v896 = vmul.f32 %v886, 1.442695
      %v897 = vpow.pop %v896
      %v898 = vmul.f32 %v887, 1.442695
      %v899 = vpow.pop %v898
      %v900 = vmul.f32 %v888, 1.442695
      %v901 = vpow.pop %v900
      %v902 = vmul.f32 %v889, 1.442695
      %v903 = vpow.pop %v902
      %v904 = vmul.f32 %v890, 1.442695
      %v905 = vpow.pop %v904
      %v906 = vmul.f32 %v891, 1.442695
      %v907 = vpow.pop %v906
      %v908 = vmul.f32 %v618, %v893
      %v909 = vmul.f32 %v633, %v895
      %v910 = vmul.f32 %v648, %v897
      %v911 = vmul.f32 %v663, %v899
      %v912 = vmul.f32 %v678, %v901
      %v913 = vmul.f32 %v693, %v903
      %v914 = vmul.f32 %v708, %v905
      %v915 = vmul.f32 %v723, %v907
      %vm916 = vcmp.ge.f32.partialorder %v572, 0.0
      %vm917 = vcmp.ge.f32.partialorder %v573, 0.0
      %vm918 = vcmp.ge.f32.partialorder %v574, 0.0
      %vm919 = vcmp.ge.f32.partialorder %v575, 0.0
      %vm920 = vcmp.ge.f32.partialorder %v576, 0.0
      %vm921 = vcmp.ge.f32.partialorder %v577, 0.0
      %vm922 = vcmp.ge.f32.partialorder %v578, 0.0
      %vm923 = vcmp.ge.f32.partialorder %v579, 0.0
      %v924 = vsub.f32 1.0, %v908
      %v925 = vsub.f32 1.0, %v909
      %v926 = vsub.f32 1.0, %v910
      %v927 = vsub.f32 1.0, %v911
      %v928 = vsub.f32 1.0, %v912
      %v929 = vsub.f32 1.0, %v913
      %v930 = vsub.f32 1.0, %v914
      %v931 = vsub.f32 1.0, %v915
      %v932 = vsub.f32 %v908, 1.0
      %v933 = vsub.f32 %v909, 1.0
      %v934 = vsub.f32 %v910, 1.0
      %v935 = vsub.f32 %v911, 1.0
      %v936 = vsub.f32 %v912, 1.0
      %v937 = vsub.f32 %v913, 1.0
      %v938 = vsub.f32 %v914, 1.0
      %v939 = vsub.f32 %v915, 1.0
      %v940 = vsel %vm916, %v924, %v932
      %v941 = vsel %vm917, %v925, %v933
      %v942 = vsel %vm918, %v926, %v934
      %v943 = vsel %vm919, %v927, %v935
      %v944 = vsel %vm920, %v928, %v936
      %v945 = vsel %vm921, %v929, %v937
      %v946 = vsel %vm922, %v930, %v938
      %v947 = vsel %vm923, %v931, %v939
      %v948 = vadd.f32 %v940, 1.0
      %v949 = vadd.f32 %v941, 1.0
      %v950 = vadd.f32 %v942, 1.0
      %v951 = vadd.f32 %v943, 1.0
      %v952 = vadd.f32 %v944, 1.0
      %v953 = vadd.f32 %v945, 1.0
      %v954 = vadd.f32 %v946, 1.0
      %v955 = vadd.f32 %v947, 1.0
      %v956 = vmul.f32 %v564, %v948
      %v957 = vmul.f32 %v565, %v949
      %v958 = vmul.f32 %v566, %v950
      %v959 = vmul.f32 %v567, %v951
      %v960 = vmul.f32 %v568, %v952
      %v961 = vmul.f32 %v569, %v953
      %v962 = vmul.f32 %v570, %v954
      %v963 = vmul.f32 %v571, %v955
      %v964 = vpack.c.bf16 %v957, %v956
      %v965 = vpack.c.bf16 %v959, %v958
      %v966 = vpack.c.bf16 %v961, %v960
      %v967 = vpack.c.bf16 %v963, %v962
      %v968 = vld [vmem:[%s5] sm:$0xf]
      %v969 = vld [vmem:[%s5 + $0x4] sm:$0xf]
      %v970 = vld [vmem:[%s5 + $0x8] sm:$0xf]
      %v971 = vld [vmem:[%s5 + $0xc] sm:$0xf]
      %v972 = vld [vmem:[%s5 + $0x10] sm:$0xf]
      %v973 = vld [vmem:[%s5 + $0x14] sm:$0xf]
      %v974 = vld [vmem:[%s5 + $0x18] sm:$0xf]
      %v975 = vld [vmem:[%s5 + $0x1c] sm:$0xf]
      %v976 = vld [vmem:[%s6] sm:$0x1]
      %v978 = vperm.slane %v976, 0
      %v988 = vunpack.c.l.b16 %v968
      %v989 = vunpack.c.l.b16 %v969
      %v990 = vunpack.c.l.b16 %v970
      %v991 = vunpack.c.l.b16 %v971
      %v992 = vunpack.c.l.b16 %v972
      %v993 = vunpack.c.l.b16 %v973
      %v994 = vunpack.c.l.b16 %v974
      %v995 = vunpack.c.l.b16 %v975
      %v996 = vpack.c.b16 %v989, %v988
      %v997 = vpack.c.b16 %v991, %v990
      %v998 = vpack.c.b16 %v993, %v992
      %v999 = vpack.c.b16 %v995, %v994
      %vm1004 = vcmask 523264
      %v1006 = vsel %vm1004, %v964, 0
      %v1009 = vsel %vm1004, %v965, 0
      %v1012 = vsel %vm1004, %v966, 0
      %v1015 = vsel %vm1004, %v967, 0
      %1017 = vmatpush.bf16.msra.mxu0 0
      %1018 = vmatpush.bf16.msra.mxu0 0
      %1019 = vmatpush.bf16.msra.mxu0 0
      %1020 = vmatpush.bf16.msra.mxu0 0
      %1021 = vmatpush.bf16.msra.mxu0 %v999
      %1022 = vmatpush.bf16.msra.mxu0 %v998
      %1023 = vmatpush.bf16.msra.mxu0 %v997
      %1024 = vmatpush.bf16.msra.mxu0 %v996
      %1025 = vmatmul.bf16.gmra.mxu0 %v1006
      %v1026 = vpop.f32.mrf.mxu0
      %v1027 = vadd.f32 %v978, %v1026
      %v1028 = vpop.f32.mrf.mxu0
      %v1029 = vadd.f32 %v978, %v1028
      %1030 = vmatmul.bf16.gmra.mxu0 %v1009
      %v1031 = vpop.f32.mrf.mxu0
      %v1032 = vadd.f32 %v978, %v1031
      %v1033 = vpop.f32.mrf.mxu0
      %v1034 = vadd.f32 %v978, %v1033
      %1035 = vmatmul.bf16.gmra.mxu0 %v1012
      %v1036 = vpop.f32.mrf.mxu0
      %v1037 = vadd.f32 %v978, %v1036
      %v1038 = vpop.f32.mrf.mxu0
      %v1039 = vadd.f32 %v978, %v1038
      %1040 = vmatmul.bf16.gmra.mxu0 %v1015
      %v1041 = vpop.f32.mrf.mxu0
      %v1042 = vadd.f32 %v978, %v1041
      %v1043 = vpop.f32.mrf.mxu0
      %v1044 = vadd.f32 %v978, %v1043
      %1045 = vdwg.mxu0
      %v1046 = vadd.f32 %v283, %v1027
      %v1047 = vadd.f32 %v284, %v1029
      %v1048 = vadd.f32 %v285, %v1032
      %v1049 = vadd.f32 %v286, %v1034
      %v1050 = vadd.f32 %v287, %v1037
      %v1051 = vadd.f32 %v288, %v1039
      %v1052 = vadd.f32 %v289, %v1042
      %v1053 = vadd.f32 %v290, %v1044
      %1054 = vst.msk [vmem:[%s280] sm:$0xff] %vm293, %v1046
      %1055 = vst.msk [vmem:[%s280 + $0x8] sm:$0xff] %vm293, %v1047
      %1056 = vst.msk [vmem:[%s280 + $0x10] sm:$0xff] %vm293, %v1048
      %1057 = vst.msk [vmem:[%s280 + $0x18] sm:$0xff] %vm293, %v1049
      %1058 = vst.msk [vmem:[%s280 + $0x20] sm:$0xff] %vm293, %v1050
      %1059 = vst.msk [vmem:[%s280 + $0x28] sm:$0xff] %vm293, %v1051
      %1060 = vst.msk [vmem:[%s280 + $0x30] sm:$0xff] %vm293, %v1052
      %1061 = vst.msk [vmem:[%s280 + $0x38] sm:$0xff] %vm293, %v1053
      %s1062 = smul.u32 8, %s18
      %p1063 = scmp.lt.s32.totalorder %s1062, 15
      %s1064 = scalar_select %p1063, %s1062, 15
      %s1065 = smul.addr %s1064, 8
      %s1066 = scalar_lea.vmem %s7, %s1065
      // Predicated region
      $region49: #{run.5} parent=47 // pred_check
        %p1067 = pneg %p188
      $region50: #{run.5} parent=47 // pred_check_branch
        %1069 = sbr.rel (%p1067) target = $region52
      $region51: #{run.5} parent=47 // pred_region
        %s1070 = smul.u32 8, %s18
      $region52: #{run.5} parent=47 // pred_fallthru
        _
    $region48: #{run.5} parent=5 // pred_fallthru
      _
    %p1071 = scmp.le.s32.totalorder 2, %s13
    // Predicated region
    $region53: #{run.5} parent=5 // pred_check
      %p1072 = pneg %p1071
    $region54: #{run.5} parent=5 // pred_check_branch
      %1074 = sbr.rel (%p1072) target = $region56
    $region55: #{run.5} parent=5 // pred_region
      %s1075 = ssub.s32 %s13, 2
      // Predicated region
      $region57: #{run.5} parent=55 // pred_check
        %p1076 = pneg %p194
      $region58: #{run.5} parent=55 // pred_check_branch
        %1078 = sbr.rel (%p1076) target = $region60
      $region59: #{run.5} parent=55 // pred_region
        %s1079 = smul.u32 8, %s19
        %p1080 = scmp.lt.s32.totalorder %s1079, 15
        %s1081 = scalar_select %p1080, %s1079, 15
        %s1082 = smul.addr %s1081, 8
        %s1083 = scalar_lea.vmem %s7, %s1082
      $region60: #{run.5} parent=55 // pred_fallthru
        _
    $region56: #{run.5} parent=5 // pred_fallthru
      _
  $region6: #{run.5} parent=0 // loop_footer
    %s17 = sadd.s32 1, %s13
  $region7: #{run.5} parent=0 // loop_footer_branch
    %12 = sbr.rel target = $region3
  $region8: #{run.5} parent=0 // loop_exit
    _

// kernel: run.4
$region0: #{run.4}
  #allocation0 [shape = 'u32[]', space=smem, size = 0x4, offset = 0x4, fixed_abs, tag = 'smem constant byte address 0x4 - core index']
  #allocation1 [shape = 'u32[72,128]{1,0:T(1,128)}', space=vmem, size = 0x9000, scoped, tag = 'internal scratch']
  %s0 = inlined_call_operand.vmem [shape: f32[8,16,32], index: 0, kind: input, shape index: {}]
  %s1 = inlined_call_operand.vmem [shape: f32[1,1,32], index: 1, kind: input, shape index: {}]
  %s2 = inlined_call_operand.vmem [shape: f32[1,1,32], index: 2, kind: input, shape index: {}]
  %s3 = inlined_call_operand.vmem [shape: bf16[32,96], index: 3, kind: input, shape index: {}]
  %s4 = inlined_call_operand.vmem [shape: f32[1,96], index: 4, kind: input, shape index: {}]
  %s5 = inlined_call_operand.vmem [shape: bf16[32,32], index: 5, kind: input, shape index: {}]
  %s6 = inlined_call_operand.vmem [shape: f32[1,32], index: 6, kind: input, shape index: {}]
  %s7 = inlined_call_operand.vmem [shape: f32[4,16,16], index: 7, kind: input, shape index: {}]
  %s8 = inlined_call_operand.vmem [shape: f32[8,16,32], index: 8, kind: output, shape index: {}]
  %s9 = sld [smem:[#allocation0]]
  $region65: #{run.4} parent=0
    _
  %s11 = ssub.s32 1, %s9
  %s12 = scalar_select 0, %s11, %s9
  loop: start=0, step=1, limit=4
  $region2: #{run.4} parent=0 // loop_pre_header
    _
  $region3: #{run.4} parent=0 // loop_header
    %s14 = sphi 0, %s18
    %p15 = scmp.ge.s32.totalorder %s14, 4
    %s24 = sphi 0, %s26
    %s27 = sphi 0, %s24
    %s28 = sphi 0, %s27
    %s44 = sphi 0, %s28
    %s48 = sphi 0, %s48
    %s50 = sphi 0, %s48
    %s51 = sphi 0, %s50
    %s65 = sphi 0, %s51
    %s69 = sphi 0, %s69
    %s71 = sphi 0, %s69
    %s72 = sphi 0, %s71
    %s86 = sphi 0, %s72
    %s90 = sphi 0, %s90
    %s92 = sphi 0, %s90
    %s93 = sphi 0, %s92
    %s107 = sphi 0, %s93
    %s111 = sphi 0, %s111
    %s113 = sphi 0, %s111
    %s114 = sphi 0, %s113
    %s128 = sphi 0, %s114
    %s132 = sphi 0, %s132
    %s134 = sphi 0, %s132
    %s135 = sphi 0, %s134
    %s149 = sphi 0, %s135
    %s153 = sphi 0, %s153
    %s155 = sphi 0, %s153
    %s156 = sphi 0, %s155
    %s170 = sphi 0, %s156
    %s174 = sphi 0, %s174
    %s176 = sphi 0, %s174
    %s177 = sphi 0, %s176
    %s191 = sphi 0, %s177
    %s197 = sphi 0, %s199
    %s200 = sphi 0, %s197
    %s201 = sphi 0, %s200
    %s217 = sphi 0, %s201
  $region4: #{run.4} parent=0 // loop_header_branch
    %17 = sbr.rel (%p15) target = $region8
  $region5: #{run.4} parent=0 // loop_body
    %s19 = ssub.s32 %s14, 1
    %s20 = ssub.s32 %s14, 2
    %s21 = sadd.s32 %s14, 1
    %s22 = ssub.s32 %s14, %s21
    %p23 = scmp.eq.s32.totalorder %s22, 0
    %s25 = sadd.s32 %s24, 1
    %s26 = scalar_select %p23, %s24, %s25
    %p29 = pneg %p23
    %p30 = scmp.eq.s32.totalorder %s14, 1
    %p31 = por %p29, %p30
    %p32 = scmp.ne.s32.totalorder %s24, %s27
    %p33 = scmp.eq.s32.totalorder %s14, 0
    %p34 = por %p32, %p33
    %p35 = scmp.ne.s32.totalorder %s24, %s27
    %p36 = scmp.eq.s32.totalorder %s19, 1
    %p37 = por %p35, %p36
    %p38 = scmp.ne.s32.totalorder %s27, %s28
    %p39 = scmp.eq.s32.totalorder %s19, 0
    %p40 = por %p38, %p39
    %p41 = scmp.ne.s32.totalorder %s27, %s28
    %p42 = scmp.eq.s32.totalorder %s20, 1
    %p43 = por %p41, %p42
    %p45 = scmp.ne.s32.totalorder %s28, %s44
    %p46 = scmp.eq.s32.totalorder %s20, 0
    %p47 = por %p45, %p46
    %s49 = sadd.s32 %s48, 1
    %p52 = scmp.eq.s32.totalorder %s14, 1
    %p53 = scmp.ne.s32.totalorder %s48, %s50
    %p54 = scmp.eq.s32.totalorder %s14, 0
    %p55 = por %p53, %p54
    %p56 = scmp.ne.s32.totalorder %s48, %s50
    %p57 = scmp.eq.s32.totalorder %s19, 1
    %p58 = por %p56, %p57
    %p59 = scmp.ne.s32.totalorder %s50, %s51
    %p60 = scmp.eq.s32.totalorder %s19, 0
    %p61 = por %p59, %p60
    %p62 = scmp.ne.s32.totalorder %s50, %s51
    %p63 = scmp.eq.s32.totalorder %s20, 1
    %p64 = por %p62, %p63
    %p66 = scmp.ne.s32.totalorder %s51, %s65
    %p67 = scmp.eq.s32.totalorder %s20, 0
    %p68 = por %p66, %p67
    %s70 = sadd.s32 %s69, 1
    %p73 = scmp.eq.s32.totalorder %s14, 1
    %p74 = scmp.ne.s32.totalorder %s69, %s71
    %p75 = scmp.eq.s32.totalorder %s14, 0
    %p76 = por %p74, %p75
    %p77 = scmp.ne.s32.totalorder %s69, %s71
    %p78 = scmp.eq.s32.totalorder %s19, 1
    %p79 = por %p77, %p78
    %p80 = scmp.ne.s32.totalorder %s71, %s72
    %p81 = scmp.eq.s32.totalorder %s19, 0
    %p82 = por %p80, %p81
    %p83 = scmp.ne.s32.totalorder %s71, %s72
    %p84 = scmp.eq.s32.totalorder %s20, 1
    %p85 = por %p83, %p84
    %p87 = scmp.ne.s32.totalorder %s72, %s86
    %p88 = scmp.eq.s32.totalorder %s20, 0
    %p89 = por %p87, %p88
    %s91 = sadd.s32 %s90, 1
    %p94 = scmp.eq.s32.totalorder %s14, 1
    %p95 = scmp.ne.s32.totalorder %s90, %s92
    %p96 = scmp.eq.s32.totalorder %s14, 0
    %p97 = por %p95, %p96
    %p98 = scmp.ne.s32.totalorder %s90, %s92
    %p99 = scmp.eq.s32.totalorder %s19, 1
    %p100 = por %p98, %p99
    %p101 = scmp.ne.s32.totalorder %s92, %s93
    %p102 = scmp.eq.s32.totalorder %s19, 0
    %p103 = por %p101, %p102
    %p104 = scmp.ne.s32.totalorder %s92, %s93
    %p105 = scmp.eq.s32.totalorder %s20, 1
    %p106 = por %p104, %p105
    %p108 = scmp.ne.s32.totalorder %s93, %s107
    %p109 = scmp.eq.s32.totalorder %s20, 0
    %p110 = por %p108, %p109
    %s112 = sadd.s32 %s111, 1
    %p115 = scmp.eq.s32.totalorder %s14, 1
    %p116 = scmp.ne.s32.totalorder %s111, %s113
    %p117 = scmp.eq.s32.totalorder %s14, 0
    %p118 = por %p116, %p117
    %p119 = scmp.ne.s32.totalorder %s111, %s113
    %p120 = scmp.eq.s32.totalorder %s19, 1
    %p121 = por %p119, %p120
    %p122 = scmp.ne.s32.totalorder %s113, %s114
    %p123 = scmp.eq.s32.totalorder %s19, 0
    %p124 = por %p122, %p123
    %p125 = scmp.ne.s32.totalorder %s113, %s114
    %p126 = scmp.eq.s32.totalorder %s20, 1
    %p127 = por %p125, %p126
    %p129 = scmp.ne.s32.totalorder %s114, %s128
    %p130 = scmp.eq.s32.totalorder %s20, 0
    %p131 = por %p129, %p130
    %s133 = sadd.s32 %s132, 1
    %p136 = scmp.eq.s32.totalorder %s14, 1
    %p137 = scmp.ne.s32.totalorder %s132, %s134
    %p138 = scmp.eq.s32.totalorder %s14, 0
    %p139 = por %p137, %p138
    %p140 = scmp.ne.s32.totalorder %s132, %s134
    %p141 = scmp.eq.s32.totalorder %s19, 1
    %p142 = por %p140, %p141
    %p143 = scmp.ne.s32.totalorder %s134, %s135
    %p144 = scmp.eq.s32.totalorder %s19, 0
    %p145 = por %p143, %p144
    %p146 = scmp.ne.s32.totalorder %s134, %s135
    %p147 = scmp.eq.s32.totalorder %s20, 1
    %p148 = por %p146, %p147
    %p150 = scmp.ne.s32.totalorder %s135, %s149
    %p151 = scmp.eq.s32.totalorder %s20, 0
    %p152 = por %p150, %p151
    %s154 = sadd.s32 %s153, 1
    %p157 = scmp.eq.s32.totalorder %s14, 1
    %p158 = scmp.ne.s32.totalorder %s153, %s155
    %p159 = scmp.eq.s32.totalorder %s14, 0
    %p160 = por %p158, %p159
    %p161 = scmp.ne.s32.totalorder %s153, %s155
    %p162 = scmp.eq.s32.totalorder %s19, 1
    %p163 = por %p161, %p162
    %p164 = scmp.ne.s32.totalorder %s155, %s156
    %p165 = scmp.eq.s32.totalorder %s19, 0
    %p166 = por %p164, %p165
    %p167 = scmp.ne.s32.totalorder %s155, %s156
    %p168 = scmp.eq.s32.totalorder %s20, 1
    %p169 = por %p167, %p168
    %p171 = scmp.ne.s32.totalorder %s156, %s170
    %p172 = scmp.eq.s32.totalorder %s20, 0
    %p173 = por %p171, %p172
    %s175 = sadd.s32 %s174, 1
    %p178 = scmp.eq.s32.totalorder %s14, 1
    %p179 = scmp.ne.s32.totalorder %s174, %s176
    %p180 = scmp.eq.s32.totalorder %s14, 0
    %p181 = por %p179, %p180
    %p182 = scmp.ne.s32.totalorder %s174, %s176
    %p183 = scmp.eq.s32.totalorder %s19, 1
    %p184 = por %p182, %p183
    %p185 = scmp.ne.s32.totalorder %s176, %s177
    %p186 = scmp.eq.s32.totalorder %s19, 0
    %p187 = por %p185, %p186
    %p188 = scmp.ne.s32.totalorder %s176, %s177
    %p189 = scmp.eq.s32.totalorder %s20, 1
    %p190 = por %p188, %p189
    %p192 = scmp.ne.s32.totalorder %s177, %s191
    %p193 = scmp.eq.s32.totalorder %s20, 0
    %p194 = por %p192, %p193
    %s195 = ssub.s32 %s14, %s21
    %p196 = scmp.eq.s32.totalorder %s195, 0
    %s198 = sadd.s32 %s197, 1
    %s199 = scalar_select %p196, %s197, %s198
    %p202 = pneg %p196
    %p203 = scmp.eq.s32.totalorder %s14, 1
    %p204 = por %p202, %p203
    %p205 = scmp.ne.s32.totalorder %s197, %s200
    %p206 = scmp.eq.s32.totalorder %s14, 0
    %p207 = por %p205, %p206
    %p208 = scmp.ne.s32.totalorder %s197, %s200
    %p209 = scmp.eq.s32.totalorder %s19, 1
    %p210 = por %p208, %p209
    %p211 = scmp.ne.s32.totalorder %s200, %s201
    %p212 = scmp.eq.s32.totalorder %s19, 0
    %p213 = por %p211, %p212
    %p214 = scmp.ne.s32.totalorder %s200, %s201
    %p215 = scmp.eq.s32.totalorder %s20, 1
    %p216 = por %p214, %p215
    %p218 = scmp.ne.s32.totalorder %s201, %s217
    %p219 = scmp.eq.s32.totalorder %s20, 0
    %p220 = por %p218, %p219
    %p221 = scmp.le.s32.totalorder 1, %s14
    %p222 = scmp.lt.s32.totalorder %s14, 3
    %p223 = pnand %p221, %p222
    %p224 = pneg %p223
    // Predicated region
    $region9: #{run.4} parent=5 // pred_check
      _
    $region10: #{run.4} parent=5 // pred_check_branch
      %226 = sbr.rel (%p223) target = $region12
    $region11: #{run.4} parent=5 // pred_region
      %s227 = ssub.s32 %s14, 1
      // Predicated region
      $region13: #{run.4} parent=11 // pred_check
        %p228 = pneg %p61
      $region14: #{run.4} parent=11 // pred_check_branch
        %230 = sbr.rel (%p228) target = $region16
      $region15: #{run.4} parent=11 // pred_region
        _
      $region16: #{run.4} parent=11 // pred_fallthru
        _
      // Predicated region
      $region17: #{run.4} parent=11 // pred_check
        %p231 = pneg %p82
      $region18: #{run.4} parent=11 // pred_check_branch
        %233 = sbr.rel (%p231) target = $region20
      $region19: #{run.4} parent=11 // pred_region
        _
      $region20: #{run.4} parent=11 // pred_fallthru
        _
      // Predicated region
      $region21: #{run.4} parent=11 // pred_check
        %p234 = pneg %p103
      $region22: #{run.4} parent=11 // pred_check_branch
        %236 = sbr.rel (%p234) target = $region24
      $region23: #{run.4} parent=11 // pred_region
        _
      $region24: #{run.4} parent=11 // pred_fallthru
        _
      // Predicated region
      $region25: #{run.4} parent=11 // pred_check
        %p237 = pneg %p124
      $region26: #{run.4} parent=11 // pred_check_branch
        %239 = sbr.rel (%p237) target = $region28
      $region27: #{run.4} parent=11 // pred_region
        _
      $region28: #{run.4} parent=11 // pred_fallthru
        _
      // Predicated region
      $region29: #{run.4} parent=11 // pred_check
        %p240 = pneg %p145
      $region30: #{run.4} parent=11 // pred_check_branch
        %242 = sbr.rel (%p240) target = $region32
      $region31: #{run.4} parent=11 // pred_region
        _
      $region32: #{run.4} parent=11 // pred_fallthru
        _
      // Predicated region
      $region33: #{run.4} parent=11 // pred_check
        %p243 = pneg %p166
      $region34: #{run.4} parent=11 // pred_check_branch
        %245 = sbr.rel (%p243) target = $region36
      $region35: #{run.4} parent=11 // pred_region
        _
      $region36: #{run.4} parent=11 // pred_fallthru
        _
      // Predicated region
      $region37: #{run.4} parent=11 // pred_check
        %p246 = pneg %p187
      $region38: #{run.4} parent=11 // pred_check_branch
        %248 = sbr.rel (%p246) target = $region40
      $region39: #{run.4} parent=11 // pred_region
        _
      $region40: #{run.4} parent=11 // pred_fallthru
        _
    $region12: #{run.4} parent=5 // pred_fallthru
      _
    %p249 = scmp.lt.s32.totalorder %s14, 2
    // Predicated region
    $region41: #{run.4} parent=5 // pred_check
      %p250 = pneg %p249
    $region42: #{run.4} parent=5 // pred_check_branch
      %252 = sbr.rel (%p250) target = $region44
    $region43: #{run.4} parent=5 // pred_region
      // Predicated region
      $region45: #{run.4} parent=43 // pred_check
        %p253 = pneg %p34
      $region46: #{run.4} parent=43 // pred_check_branch
        %255 = sbr.rel (%p253) target = $region48
      $region47: #{run.4} parent=43 // pred_region
        %s256 = smul.u32 4, %s14
        %p257 = scmp.lt.s32.totalorder %s256, 7
        %s258 = scalar_select %p257, %s256, 7
        %s259 = smul.addr %s258, 2
        %s260 = smul.addr %s259, 8
        %s261 = scalar_lea.vmem %s0, %s260
        %s262 = smul.u32 4, %s14
      $region48: #{run.4} parent=43 // pred_fallthru
        _
    $region44: #{run.4} parent=5 // pred_fallthru
      _
    %p263 = scmp.le.s32.totalorder 1, %s14
    %p264 = scmp.lt.s32.totalorder %s14, 3
    %p265 = pnand %p263, %p264
    %p266 = pneg %p265
    // Predicated region
    $region49: #{run.4} parent=5 // pred_check
      _
    $region50: #{run.4} parent=5 // pred_check_branch
      %268 = sbr.rel (%p265) target = $region52
    $region51: #{run.4} parent=5 // pred_region
      %s269 = ssub.s32 %s14, 1
      %s270 = smul.u32 4, %s19
      %p271 = scmp.lt.s32.totalorder %s270, 7
      %s272 = scalar_select %p271, %s270, 7
      %s273 = smul.addr %s272, 2
      %s274 = smul.addr %s273, 8
      %s275 = scalar_lea.vmem %s0, %s274
      %p276 = pneg %p40
      %p277 = pneg %p37
      %p278 = pneg %p61
      %p279 = pneg %p58
      %p280 = pneg %p82
      %p281 = pneg %p79
      %p282 = pneg %p103
      %p283 = pneg %p100
      %p284 = pneg %p124
      %p285 = pneg %p121
      %p286 = pneg %p145
      %p287 = pneg %p142
      %p288 = pneg %p166
      %p289 = pneg %p163
      %p290 = pneg %p187
      %p291 = pneg %p184
      %p292 = pneg %p213
      %p293 = pneg %p210
      %s294 = smul.u32 4, %s19
      %p295 = scmp.lt.s32.totalorder %s294, 7
      %s296 = scalar_select %p295, %s294, 7
      %s297 = smul.addr %s296, 2
      %s298 = smul.addr %s297, 8
      %s299 = scalar_lea.vmem %s8, %s298
      %s300 = smul.u32 4, %s19
      %p301 = scmp.lt.s32.totalorder %s300, 7
      %s302 = scalar_select %p301, %s300, 7
      %s303 = smul.addr %s302, 2
      %s304 = smul.addr %s303, 8
      %s305 = scalar_lea.vmem %s0, %s304
      %s306 = smul.u32 4, %s19
      %s307 = smul.u32 4, %s19
      %p308 = scmp.lt.s32.totalorder %s307, 7
      %s309 = scalar_select %p308, %s307, 7
      %s310 = smul.addr %s309, 2
      %s311 = smul.addr %s310, 8
      %s312 = scalar_lea.vmem %s8, %s311
      %s313 = smul.u32 4, %s19
      %v315 = vld [vmem:[%s305] sm:$0xff]
      %v316 = vld [vmem:[%s305 + $0x8] sm:$0xff]
      %v317 = vld [vmem:[%s305 + $0x10] sm:$0xff]
      %v318 = vld [vmem:[%s305 + $0x18] sm:$0xff]
      %v319 = vld [vmem:[%s305 + $0x20] sm:$0xff]
      %v320 = vld [vmem:[%s305 + $0x28] sm:$0xff]
      %v321 = vld [vmem:[%s305 + $0x30] sm:$0xff]
      %v322 = vld [vmem:[%s305 + $0x38] sm:$0xff]
      %v323 = vld [vmem:[%s1] sm:$0x1]
      %v324 = vld [vmem:[%s2] sm:$0x1]
      %vm325 = vcmask 261120
      %v326 = vsel %vm325, %v315, 0.0
      %327 = vadd.xlane.f32.xlu0 %v326
      %v328 = vpop.xlane.xlu0 %327
      %v329 = vsel %vm325, %v316, 0.0
      %330 = vadd.xlane.f32.xlu0 %v329
      %v331 = vpop.xlane.xlu0 %330
      %v332 = vsel %vm325, %v317, 0.0
      %333 = vadd.xlane.f32.xlu0 %v332
      %v334 = vpop.xlane.xlu0 %333
      %v335 = vsel %vm325, %v318, 0.0
      %336 = vadd.xlane.f32.xlu0 %v335
      %v337 = vpop.xlane.xlu0 %336
      %v338 = vsel %vm325, %v319, 0.0
      %339 = vadd.xlane.f32.xlu0 %v338
      %v340 = vpop.xlane.xlu0 %339
      %v341 = vsel %vm325, %v320, 0.0
      %342 = vadd.xlane.f32.xlu0 %v341
      %v343 = vpop.xlane.xlu0 %342
      %v344 = vsel %vm325, %v321, 0.0
      %345 = vadd.xlane.f32.xlu0 %v344
      %v346 = vpop.xlane.xlu0 %345
      %v347 = vsel %vm325, %v322, 0.0
      %348 = vadd.xlane.f32.xlu0 %v347
      %v349 = vpop.xlane.xlu0 %348
      %v350 = vrcp.pop 32.0
      %v351 = vmul.f32 32.0, %v350
      %v352 = vsub.f32 1.0, %v351
      %v353 = vmul.f32 %v350, %v352
      %v354 = vadd.f32 %v350, %v353
      %vm355 = vweird.f32 %v350
      %v356 = vsel %vm355, %v350, %v354
      %v357 = vmul.f32 %v328, %v356
      %v358 = vmul.f32 %v331, %v356
      %v359 = vmul.f32 %v334, %v356
      %v360 = vmul.f32 %v337, %v356
      %v361 = vmul.f32 %v340, %v356
      %v362 = vmul.f32 %v343, %v356
      %v363 = vmul.f32 %v346, %v356
      %v364 = vmul.f32 %v349, %v356
      %v365 = vsub.f32 %v315, %v357
      %v366 = vsub.f32 %v316, %v358
      %v367 = vsub.f32 %v317, %v359
      %v368 = vsub.f32 %v318, %v360
      %v369 = vsub.f32 %v319, %v361
      %v370 = vsub.f32 %v320, %v362
      %v371 = vsub.f32 %v321, %v363
      %v372 = vsub.f32 %v322, %v364
      %v373 = vmul.f32 %v365, %v365
      %v374 = vmul.f32 %v366, %v366
      %v375 = vmul.f32 %v367, %v367
      %v376 = vmul.f32 %v368, %v368
      %v377 = vmul.f32 %v369, %v369
      %v378 = vmul.f32 %v370, %v370
      %v379 = vmul.f32 %v371, %v371
      %v380 = vmul.f32 %v372, %v372
      %v381 = vsel %vm325, %v373, 0.0
      %382 = vadd.xlane.f32.xlu0 %v381
      %v383 = vpop.xlane.xlu0 %382
      %v384 = vsel %vm325, %v374, 0.0
      %385 = vadd.xlane.f32.xlu0 %v384
      %v386 = vpop.xlane.xlu0 %385
      %v387 = vsel %vm325, %v375, 0.0
      %388 = vadd.xlane.f32.xlu0 %v387
      %v389 = vpop.xlane.xlu0 %388
      %v390 = vsel %vm325, %v376, 0.0
      %391 = vadd.xlane.f32.xlu0 %v390
      %v392 = vpop.xlane.xlu0 %391
      %v393 = vsel %vm325, %v377, 0.0
      %394 = vadd.xlane.f32.xlu0 %v393
      %v395 = vpop.xlane.xlu0 %394
      %v396 = vsel %vm325, %v378, 0.0
      %397 = vadd.xlane.f32.xlu0 %v396
      %v398 = vpop.xlane.xlu0 %397
      %v399 = vsel %vm325, %v379, 0.0
      %400 = vadd.xlane.f32.xlu0 %v399
      %v401 = vpop.xlane.xlu0 %400
      %v402 = vsel %vm325, %v380, 0.0
      %403 = vadd.xlane.f32.xlu0 %v402
      %v404 = vpop.xlane.xlu0 %403
      %v405 = vmul.f32 %v383, %v356
      %v406 = vmul.f32 %v386, %v356
      %v407 = vmul.f32 %v389, %v356
      %v408 = vmul.f32 %v392, %v356
      %v409 = vmul.f32 %v395, %v356
      %v410 = vmul.f32 %v398, %v356
      %v411 = vmul.f32 %v401, %v356
      %v412 = vmul.f32 %v404, %v356
      %v413 = vadd.f32 %v405, 1e-05
      %v414 = vadd.f32 %v406, 1e-05
      %v415 = vadd.f32 %v407, 1e-05
      %v416 = vadd.f32 %v408, 1e-05
      %v417 = vadd.f32 %v409, 1e-05
      %v418 = vadd.f32 %v410, 1e-05
      %v419 = vadd.f32 %v411, 1e-05
      %v420 = vadd.f32 %v412, 1e-05
      %v421 = vrsqrt.pop %v413
      %v422 = vmul.f32 %v421, %v413
      %v423 = vmul.f32 %v422, %v421
      %v424 = vmul.f32 0.5, %v423
      %v425 = vsub.f32 1.5, %v424
      %v426 = vmul.f32 %v421, %v425
      %vm427 = vweird.f32 %v413
      %vm428 = vweird.f32 %v421
      %vm429 = vmor %vm427, %vm428
      %v430 = vsel %vm429, %v421, %v426
      %v431 = vrsqrt.pop %v414
      %v432 = vmul.f32 %v431, %v414
      %v433 = vmul.f32 %v432, %v431
      %v434 = vmul.f32 0.5, %v433
      %v435 = vsub.f32 1.5, %v434
      %v436 = vmul.f32 %v431, %v435
      %vm437 = vweird.f32 %v414
      %vm438 = vweird.f32 %v431
      %vm439 = vmor %vm437, %vm438
      %v440 = vsel %vm439, %v431, %v436
      %v441 = vrsqrt.pop %v415
      %v442 = vmul.f32 %v441, %v415
      %v443 = vmul.f32 %v442, %v441
      %v444 = vmul.f32 0.5, %v443
      %v445 = vsub.f32 1.5, %v444
      %v446 = vmul.f32 %v441, %v445
      %vm447 = vweird.f32 %v415
      %vm448 = vweird.f32 %v441
      %vm449 = vmor %vm447, %vm448
      %v450 = vsel %vm449, %v441, %v446
      %v451 = vrsqrt.pop %v416
      %v452 = vmul.f32 %v451, %v416
      %v453 = vmul.f32 %v452, %v451
      %v454 = vmul.f32 0.5, %v453
      %v455 = vsub.f32 1.5, %v454
      %v456 = vmul.f32 %v451, %v455
      %vm457 = vweird.f32 %v416
      %vm458 = vweird.f32 %v451
      %vm459 = vmor %vm457, %vm458
      %v460 = vsel %vm459, %v451, %v456
      %v461 = vrsqrt.pop %v417
      %v462 = vmul.f32 %v461, %v417
      %v463 = vmul.f32 %v462, %v461
      %v464 = vmul.f32 0.5, %v463
      %v465 = vsub.f32 1.5, %v464
      %v466 = vmul.f32 %v461, %v465
      %vm467 = vweird.f32 %v417
      %vm468 = vweird.f32 %v461
      %vm469 = vmor %vm467, %vm468
      %v470 = vsel %vm469, %v461, %v466
      %v471 = vrsqrt.pop %v418
      %v472 = vmul.f32 %v471, %v418
      %v473 = vmul.f32 %v472, %v471
      %v474 = vmul.f32 0.5, %v473
      %v475 = vsub.f32 1.5, %v474
      %v476 = vmul.f32 %v471, %v475
      %vm477 = vweird.f32 %v418
      %vm478 = vweird.f32 %v471
      %vm479 = vmor %vm477, %vm478
      %v480 = vsel %vm479, %v471, %v476
      %v481 = vrsqrt.pop %v419
      %v482 = vmul.f32 %v481, %v419
      %v483 = vmul.f32 %v482, %v481
      %v484 = vmul.f32 0.5, %v483
      %v485 = vsub.f32 1.5, %v484
      %v486 = vmul.f32 %v481, %v485
      %vm487 = vweird.f32 %v419
      %vm488 = vweird.f32 %v481
      %vm489 = vmor %vm487, %vm488
      %v490 = vsel %vm489, %v481, %v486
      %v491 = vrsqrt.pop %v420
      %v492 = vmul.f32 %v491, %v420
      %v493 = vmul.f32 %v492, %v491
      %v494 = vmul.f32 0.5, %v493
      %v495 = vsub.f32 1.5, %v494
      %v496 = vmul.f32 %v491, %v495
      %vm497 = vweird.f32 %v420
      %vm498 = vweird.f32 %v491
      %vm499 = vmor %vm497, %vm498
      %v500 = vsel %vm499, %v491, %v496
      %v501 = vmul.f32 %v365, %v430
      %v502 = vmul.f32 %v366, %v440
      %v503 = vmul.f32 %v367, %v450
      %v504 = vmul.f32 %v368, %v460
      %v505 = vmul.f32 %v369, %v470
      %v506 = vmul.f32 %v370, %v480
      %v507 = vmul.f32 %v371, %v490
      %v508 = vmul.f32 %v372, %v500
      %v510 = vperm.slane %v323, 0
      %v512 = vmul.f32 %v501, %v510
      %v513 = vmul.f32 %v502, %v510
      %v514 = vmul.f32 %v503, %v510
      %v515 = vmul.f32 %v504, %v510
      %v516 = vmul.f32 %v505, %v510
      %v517 = vmul.f32 %v506, %v510
      %v518 = vmul.f32 %v507, %v510
      %v519 = vmul.f32 %v508, %v510
      %v521 = vperm.slane %v324, 0
      %v523 = vadd.f32 %v512, %v521
      %v524 = vadd.f32 %v513, %v521
      %v525 = vadd.f32 %v514, %v521
      %v526 = vadd.f32 %v515, %v521
      %v527 = vadd.f32 %v516, %v521
      %v528 = vadd.f32 %v517, %v521
      %v529 = vadd.f32 %v518, %v521
      %v530 = vadd.f32 %v519, %v521
      %v531 = vpack.c.bf16 %v524, %v523
      %v532 = vpack.c.bf16 %v526, %v525
      %v533 = vpack.c.bf16 %v528, %v527
      %v534 = vpack.c.bf16 %v530, %v529
      %v535 = vld [vmem:[%s3] sm:$0xf]
      %v536 = vld [vmem:[%s3 + $0x4] sm:$0xf]
      %v537 = vld [vmem:[%s3 + $0x8] sm:$0xf]
      %v538 = vld [vmem:[%s3 + $0xc] sm:$0xf]
      %v539 = vld [vmem:[%s4] sm:$0x1]
      %v541 = vperm.slane %v539, 0
      %v547 = vunpack.c.l.b16 %v535
      %v548 = vunpack.c.l.b16 %v536
      %v549 = vunpack.c.l.b16 %v537
      %v550 = vunpack.c.l.b16 %v538
      %v551 = vpack.c.b16 %v548, %v547
      %v552 = vpack.c.b16 %v550, %v549
      %v556 = vsel %vm325, %v531, 0
      %v559 = vsel %vm325, %v532, 0
      %v562 = vsel %vm325, %v533, 0
      %v565 = vsel %vm325, %v534, 0
      %567 = vmatpush.bf16.msra.mxu0 0
      %568 = vmatpush.bf16.msra.mxu0 0
      %569 = vmatpush.bf16.msra.mxu0 0
      %570 = vmatpush.bf16.msra.mxu0 0
      %571 = vmatpush.bf16.msra.mxu0 0
      %572 = vmatpush.bf16.msra.mxu0 0
      %573 = vmatpush.bf16.msra.mxu0 %v552
      %574 = vmatpush.bf16.msra.mxu0 %v551
      %575 = vmatmul.bf16.gmra.mxu0 %v556
      %v576 = vpop.f32.mrf.mxu0
      %v577 = vadd.f32 %v541, %v576
      %v578 = vpop.f32.mrf.mxu0
      %v579 = vadd.f32 %v541, %v578
      %580 = vmatmul.bf16.gmra.mxu0 %v559
      %v581 = vpop.f32.mrf.mxu0
      %v582 = vadd.f32 %v541, %v581
      %v583 = vpop.f32.mrf.mxu0
      %v584 = vadd.f32 %v541, %v583
      %585 = vmatmul.bf16.gmra.mxu0 %v562
      %v586 = vpop.f32.mrf.mxu0
      %v587 = vadd.f32 %v541, %v586
      %v588 = vpop.f32.mrf.mxu0
      %v589 = vadd.f32 %v541, %v588
      %590 = vmatmul.bf16.gmra.mxu0 %v565
      %v591 = vpop.f32.mrf.mxu0
      %v592 = vadd.f32 %v541, %v591
      %v593 = vpop.f32.mrf.mxu0
      %v594 = vadd.f32 %v541, %v593
      %595 = vdwg.mxu0
      %v596 = vld [vmem:[%s7] sm:$0xff]
      %v597 = vld [vmem:[%s7 + $0x8] sm:$0xff]
      %v598 = vld [vmem:[%s7 + $0x10] sm:$0xff]
      %v599 = vld [vmem:[%s7 + $0x18] sm:$0xff]
      %v600 = vld [vmem:[%s7 + $0x20] sm:$0xff]
      %v601 = vld [vmem:[%s7 + $0x28] sm:$0xff]
      %v602 = vld [vmem:[%s7 + $0x30] sm:$0xff]
      %v603 = vld [vmem:[%s7 + $0x38] sm:$0xff]
      %v604 = vpack.c.bf16 %v577, %v577
      %v605 = vpack.c.bf16 %v579, %v579
      %v606 = vpack.c.bf16 %v582, %v582
      %v607 = vpack.c.bf16 %v584, %v584
      %v608 = vpack.c.bf16 %v587, %v587
      %v609 = vpack.c.bf16 %v589, %v589
      %v610 = vpack.c.bf16 %v592, %v592
      %v611 = vpack.c.bf16 %v594, %v594
      %v612 = vlaneseq
      %v613 = vand.u32 %v612, 127
      %vm614 = vcmp.ge.s32.totalorder %v613, 0
      %vm615 = vcmp.lt.s32.totalorder %v613, 8
      %vm616 = vmand %vm614, %vm615
      %v617 = vsel %vm616, 1, 0
      %v618 = vcvt.s32.f32 %v617
      %v619 = vpack.c.bf16 %v618, %v618
      %v620 = vunpack.c.l.bf16 %v604
      %v621 = vunpack.c.l.bf16 %v605
      %v622 = vunpack.c.l.bf16 %v606
      %v623 = vunpack.c.l.bf16 %v607
      %v624 = vunpack.c.l.bf16 %v608
      %v625 = vunpack.c.l.bf16 %v609
      %v626 = vunpack.c.l.bf16 %v610
      %v627 = vunpack.c.l.bf16 %v611
      %v628 = vunpack.c.l.bf16 %v619
      %v629 = vmul.f32 %v620, %v628
      %v630 = vmul.f32 %v621, %v628
      %v631 = vmul.f32 %v622, %v628
      %v632 = vmul.f32 %v623, %v628
      %v633 = vmul.f32 %v624, %v628
      %v634 = vmul.f32 %v625, %v628
      %v635 = vmul.f32 %v626, %v628
      %v636 = vmul.f32 %v627, %v628
      %v637 = vpack.c.bf16 %v629, %v629
      %v638 = vpack.c.bf16 %v630, %v630
      %v639 = vpack.c.bf16 %v631, %v631
      %v640 = vpack.c.bf16 %v632, %v632
      %v641 = vpack.c.bf16 %v633, %v633
      %v642 = vpack.c.bf16 %v634, %v634
      %v643 = vpack.c.bf16 %v635, %v635
      %v644 = vpack.c.bf16 %v636, %v636
      %v647 = vunpack.c.l.b16 %v637
      %v648 = vunpack.c.l.b16 %v638
      %v649 = vpack.c.b16 %v648, %v647
      %v652 = vunpack.c.l.b16 %v604
      %v653 = vunpack.c.l.b16 %v605
      %v654 = vpack.c.b16 %v653, %v652
      %655 = vrot.lane.b32.xlu0 %v654, 96
      %v656 = vpop.permute.xlu0 %655
      %v658 = vsel %vm325, %v649, 0
      %v661 = vsel %vm325, %v656, 0
      %663 = vmatpush.bf16.xpose.msra.mxu0 0
      %664 = vmatpush.bf16.xpose.msra.mxu0 0
      %665 = vmatpush.bf16.xpose.msra.mxu0 0
      %666 = vmatpush.bf16.xpose.msra.mxu0 0
      %667 = vmatpush.bf16.xpose.msra.mxu0 0
      %668 = vmatpush.bf16.xpose.msra.mxu0 0
      %669 = vmatpush.bf16.xpose.msra.mxu0 0
      %670 = vmatpush.bf16.xpose.msra.mxu0 %v661
      %671 = vmatmul.bf16.gmra.mxu0 %v658
      %v672 = vpop.f32.mrf.mxu0
      %v673 = vadd.f32 0.0, %v672
      %v674 = vpop.f32.mrf.mxu0
      %v675 = vadd.f32 0.0, %v674
      %676 = vdwg.mxu0
      %v679 = vunpack.c.l.b16 %v639
      %v680 = vunpack.c.l.b16 %v640
      %v681 = vpack.c.b16 %v680, %v679
      %v684 = vunpack.c.l.b16 %v606
      %v685 = vunpack.c.l.b16 %v607
      %v686 = vpack.c.b16 %v685, %v684
      %687 = vrot.lane.b32.xlu0 %v686, 96
      %v688 = vpop.permute.xlu0 %687
      %v690 = vsel %vm325, %v681, 0
      %v693 = vsel %vm325, %v688, 0
      %695 = vmatpush.bf16.xpose.msra.mxu0 0
      %696 = vmatpush.bf16.xpose.msra.mxu0 0
      %697 = vmatpush.bf16.xpose.msra.mxu0 0
      %698 = vmatpush.bf16.xpose.msra.mxu0 0
      %699 = vmatpush.bf16.xpose.msra.mxu0 0
      %700 = vmatpush.bf16.xpose.msra.mxu0 0
      %701 = vmatpush.bf16.xpose.msra.mxu0 0
      %702 = vmatpush.bf16.xpose.msra.mxu0 %v693
      %703 = vmatmul.bf16.gmra.mxu0 %v690
      %v704 = vpop.f32.mrf.mxu0
      %v705 = vadd.f32 0.0, %v704
      %v706 = vpop.f32.mrf.mxu0
      %v707 = vadd.f32 0.0, %v706
      %708 = vdwg.mxu0
      %v711 = vunpack.c.l.b16 %v641
      %v712 = vunpack.c.l.b16 %v642
      %v713 = vpack.c.b16 %v712, %v711
      %v716 = vunpack.c.l.b16 %v608
      %v717 = vunpack.c.l.b16 %v609
      %v718 = vpack.c.b16 %v717, %v716
      %719 = vrot.lane.b32.xlu0 %v718, 96
      %v720 = vpop.permute.xlu0 %719
      %v722 = vsel %vm325, %v713, 0
      %v725 = vsel %vm325, %v720, 0
      %727 = vmatpush.bf16.xpose.msra.mxu0 0
      %728 = vmatpush.bf16.xpose.msra.mxu0 0
      %729 = vmatpush.bf16.xpose.msra.mxu0 0
      %730 = vmatpush.bf16.xpose.msra.mxu0 0
      %731 = vmatpush.bf16.xpose.msra.mxu0 0
      %732 = vmatpush.bf16.xpose.msra.mxu0 0
      %733 = vmatpush.bf16.xpose.msra.mxu0 0
      %734 = vmatpush.bf16.xpose.msra.mxu0 %v725
      %735 = vmatmul.bf16.gmra.mxu0 %v722
      %v736 = vpop.f32.mrf.mxu0
      %v737 = vadd.f32 0.0, %v736
      %v738 = vpop.f32.mrf.mxu0
      %v739 = vadd.f32 0.0, %v738
      %740 = vdwg.mxu0
      %v743 = vunpack.c.l.b16 %v643
      %v744 = vunpack.c.l.b16 %v644
      %v745 = vpack.c.b16 %v744, %v743
      %v748 = vunpack.c.l.b16 %v610
      %v749 = vunpack.c.l.b16 %v611
      %v750 = vpack.c.b16 %v749, %v748
      %751 = vrot.lane.b32.xlu0 %v750, 96
      %v752 = vpop.permute.xlu0 %751
      %v754 = vsel %vm325, %v745, 0
      %v757 = vsel %vm325, %v752, 0
      %759 = vmatpush.bf16.xpose.msra.mxu0 0
      %760 = vmatpush.bf16.xpose.msra.mxu0 0
      %761 = vmatpush.bf16.xpose.msra.mxu0 0
      %762 = vmatpush.bf16.xpose.msra.mxu0 0
      %763 = vmatpush.bf16.xpose.msra.mxu0 0
      %764 = vmatpush.bf16.xpose.msra.mxu0 0
      %765 = vmatpush.bf16.xpose.msra.mxu0 0
      %766 = vmatpush.bf16.xpose.msra.mxu0 %v757
      %767 = vmatmul.bf16.gmra.mxu0 %v754
      %v768 = vpop.f32.mrf.mxu0
      %v769 = vadd.f32 0.0, %v768
      %v770 = vpop.f32.mrf.mxu0
      %v771 = vadd.f32 0.0, %v770
      %772 = vdwg.mxu0
      %v773 = vmul.f32 %v673, 0.35355338
      %v774 = vmul.f32 %v675, 0.35355338
      %v775 = vmul.f32 %v705, 0.35355338
      %v776 = vmul.f32 %v707, 0.35355338
      %v777 = vmul.f32 %v737, 0.35355338
      %v778 = vmul.f32 %v739, 0.35355338
      %v779 = vmul.f32 %v769, 0.35355338
      %v780 = vmul.f32 %v771, 0.35355338
      %v781 = vadd.f32 %v773, %v596
      %v782 = vadd.f32 %v774, %v597
      %v783 = vadd.f32 %v775, %v596
      %v784 = vadd.f32 %v776, %v597
      %v785 = vadd.f32 %v777, %v596
      %v786 = vadd.f32 %v778, %v597
      %v787 = vadd.f32 %v779, %v596
      %v788 = vadd.f32 %v780, %v597
      %vm789 = vcmask 130048
      %v790 = vsel %vm789, %v781, -inf
      %791 = vmax.xlane.f32.xlu0 %v790
      %v792 = vpop.xlane.xlu0 %791
      %v793 = vsel %vm789, %v782, -inf
      %794 = vmax.xlane.f32.xlu0 %v793
      %v795 = vpop.xlane.xlu0 %794
      %v796 = vsel %vm789, %v783, -inf
      %797 = vmax.xlane.f32.xlu0 %v796
      %v798 = vpop.xlane.xlu0 %797
      %v799 = vsel %vm789, %v784, -inf
      %800 = vmax.xlane.f32.xlu0 %v799
      %v801 = vpop.xlane.xlu0 %800
      %v802 = vsel %vm789, %v785, -inf
      %803 = vmax.xlane.f32.xlu0 %v802
      %v804 = vpop.xlane.xlu0 %803
      %v805 = vsel %vm789, %v786, -inf
      %806 = vmax.xlane.f32.xlu0 %v805
      %v807 = vpop.xlane.xlu0 %806
      %v808 = vsel %vm789, %v787, -inf
      %809 = vmax.xlane.f32.xlu0 %v808
      %v810 = vpop.xlane.xlu0 %809
      %v811 = vsel %vm789, %v788, -inf
      %812 = vmax.xlane.f32.xlu0 %v811
      %v813 = vpop.xlane.xlu0 %812
      %v814 = vsub.f32 %v781, %v792
      %v815 = vsub.f32 %v782, %v795
      %v816 = vsub.f32 %v783, %v798
      %v817 = vsub.f32 %v784, %v801
      %v818 = vsub.f32 %v785, %v804
      %v819 = vsub.f32 %v786, %v807
      %v820 = vsub.f32 %v787, %v810
      %v821 = vsub.f32 %v788, %v813
      %v822 = vmul.f32 %v814, 1.442695
      %v823 = vpow.pop %v822
      %v824 = vmul.f32 %v815, 1.442695
      %v825 = vpow.pop %v824
      %v826 = vmul.f32 %v816, 1.442695
      %v827 = vpow.pop %v826
      %v828 = vmul.f32 %v817, 1.442695
      %v829 = vpow.pop %v828
      %v830 = vmul.f32 %v818, 1.442695
      %v831 = vpow.pop %v830
      %v832 = vmul.f32 %v819, 1.442695
      %v833 = vpow.pop %v832
      %v834 = vmul.f32 %v820, 1.442695
      %v835 = vpow.pop %v834
      %v836 = vmul.f32 %v821, 1.442695
      %v837 = vpow.pop %v836
      %v838 = vsel %vm789, %v823, 0.0
      %839 = vadd.xlane.f32.xlu0 %v838
      %v840 = vpop.xlane.xlu0 %839
      %v841 = vsel %vm789, %v825, 0.0
      %842 = vadd.xlane.f32.xlu0 %v841
      %v843 = vpop.xlane.xlu0 %842
      %v844 = vsel %vm789, %v827, 0.0
      %845 = vadd.xlane.f32.xlu0 %v844
      %v846 = vpop.xlane.xlu0 %845
      %v847 = vsel %vm789, %v829, 0.0
      %848 = vadd.xlane.f32.xlu0 %v847
      %v849 = vpop.xlane.xlu0 %848
      %v850 = vsel %vm789, %v831, 0.0
      %851 = vadd.xlane.f32.xlu0 %v850
      %v852 = vpop.xlane.xlu0 %851
      %v853 = vsel %vm789, %v833, 0.0
      %854 = vadd.xlane.f32.xlu0 %v853
      %v855 = vpop.xlane.xlu0 %854
      %v856 = vsel %vm789, %v835, 0.0
      %857 = vadd.xlane.f32.xlu0 %v856
      %v858 = vpop.xlane.xlu0 %857
      %v859 = vsel %vm789, %v837, 0.0
      %860 = vadd.xlane.f32.xlu0 %v859
      %v861 = vpop.xlane.xlu0 %860
      %v862 = vrcp.pop %v840
      %v863 = vmul.f32 %v840, %v862
      %v864 = vsub.f32 1.0, %v863
      %v865 = vmul.f32 %v862, %v864
      %v866 = vadd.f32 %v862, %v865
      %vm867 = vweird.f32 %v840
      %vm868 = vweird.f32 %v862
      %vm869 = vmor %vm867, %vm868
      %v870 = vsel %vm869, %v862, %v866
      %v871 = vand.u32 2147483647, %v840
      %vm872 = vcmp.eq.f32.partialorder %v871, 8.507059e+37
      %v873 = vand.u32 %v840, 2147483648
      %v874 = vor.u32 1.1754944e-38, %v873
      %v875 = vsel %vm872, %v874, %v870
      %v876 = vmul.f32 %v823, %v875
      %v877 = vrcp.pop %v843
      %v878 = vmul.f32 %v843, %v877
      %v879 = vsub.f32 1.0, %v878
      %v880 = vmul.f32 %v877, %v879
      %v881 = vadd.f32 %v877, %v880
      %vm882 = vweird.f32 %v843
      %vm883 = vweird.f32 %v877
      %vm884 = vmor %vm882, %vm883
      %v885 = vsel %vm884, %v877, %v881
      %v886 = vand.u32 2147483647, %v843
      %vm887 = vcmp.eq.f32.partialorder %v886, 8.507059e+37
      %v888 = vand.u32 %v843, 2147483648
      %v889 = vor.u32 1.1754944e-38, %v888
      %v890 = vsel %vm887, %v889, %v885
      %v891 = vmul.f32 %v825, %v890
      %v892 = vrcp.pop %v846
      %v893 = vmul.f32 %v846, %v892
      %v894 = vsub.f32 1.0, %v893
      %v895 = vmul.f32 %v892, %v894
      %v896 = vadd.f32 %v892, %v895
      %vm897 = vweird.f32 %v846
      %vm898 = vweird.f32 %v892
      %vm899 = vmor %vm897, %vm898
      %v900 = vsel %vm899, %v892, %v896
      %v901 = vand.u32 2147483647, %v846
      %vm902 = vcmp.eq.f32.partialorder %v901, 8.507059e+37
      %v903 = vand.u32 %v846, 2147483648
      %v904 = vor.u32 1.1754944e-38, %v903
      %v905 = vsel %vm902, %v904, %v900
      %v906 = vmul.f32 %v827, %v905
      %v907 = vrcp.pop %v849
      %v908 = vmul.f32 %v849, %v907
      %v909 = vsub.f32 1.0, %v908
      %v910 = vmul.f32 %v907, %v909
      %v911 = vadd.f32 %v907, %v910
      %vm912 = vweird.f32 %v849
      %vm913 = vweird.f32 %v907
      %vm914 = vmor %vm912, %vm913
      %v915 = vsel %vm914, %v907, %v911
      %v916 = vand.u32 2147483647, %v849
      %vm917 = vcmp.eq.f32.partialorder %v916, 8.507059e+37
      %v918 = vand.u32 %v849, 2147483648
      %v919 = vor.u32 1.1754944e-38, %v918
      %v920 = vsel %vm917, %v919, %v915
      %v921 = vmul.f32 %v829, %v920
      %v922 = vrcp.pop %v852
      %v923 = vmul.f32 %v852, %v922
      %v924 = vsub.f32 1.0, %v923
      %v925 = vmul.f32 %v922, %v924
      %v926 = vadd.f32 %v922, %v925
      %vm927 = vweird.f32 %v852
      %vm928 = vweird.f32 %v922
      %vm929 = vmor %vm927, %vm928
      %v930 = vsel %vm929, %v922, %v926
      %v931 = vand.u32 2147483647, %v852
      %vm932 = vcmp.eq.f32.partialorder %v931, 8.507059e+37
      %v933 = vand.u32 %v852, 2147483648
      %v934 = vor.u32 1.1754944e-38, %v933
      %v935 = vsel %vm932, %v934, %v930
      %v936 = vmul.f32 %v831, %v935
      %v937 = vrcp.pop %v855
      %v938 = vmul.f32 %v855, %v937
      %v939 = vsub.f32 1.0, %v938
      %v940 = vmul.f32 %v937, %v939
      %v941 = vadd.f32 %v937, %v940
      %vm942 = vweird.f32 %v855
      %vm943 = vweird.f32 %v937
      %vm944 = vmor %vm942, %vm943
      %v945 = vsel %vm944, %v937, %v941
      %v946 = vand.u32 2147483647, %v855
      %vm947 = vcmp.eq.f32.partialorder %v946, 8.507059e+37
      %v948 = vand.u32 %v855, 2147483648
      %v949 = vor.u32 1.1754944e-38, %v948
      %v950 = vsel %vm947, %v949, %v945
      %v951 = vmul.f32 %v833, %v950
      %v952 = vrcp.pop %v858
      %v953 = vmul.f32 %v858, %v952
      %v954 = vsub.f32 1.0, %v953
      %v955 = vmul.f32 %v952, %v954
      %v956 = vadd.f32 %v952, %v955
      %vm957 = vweird.f32 %v858
      %vm958 = vweird.f32 %v952
      %vm959 = vmor %vm957, %vm958
      %v960 = vsel %vm959, %v952, %v956
      %v961 = vand.u32 2147483647, %v858
      %vm962 = vcmp.eq.f32.partialorder %v961, 8.507059e+37
      %v963 = vand.u32 %v858, 2147483648
      %v964 = vor.u32 1.1754944e-38, %v963
      %v965 = vsel %vm962, %v964, %v960
      %v966 = vmul.f32 %v835, %v965
      %v967 = vrcp.pop %v861
      %v968 = vmul.f32 %v861, %v967
      %v969 = vsub.f32 1.0, %v968
      %v970 = vmul.f32 %v967, %v969
      %v971 = vadd.f32 %v967, %v970
      %vm972 = vweird.f32 %v861
      %vm973 = vweird.f32 %v967
      %vm974 = vmor %vm972, %vm973
      %v975 = vsel %vm974, %v967, %v971
      %v976 = vand.u32 2147483647, %v861
      %vm977 = vcmp.eq.f32.partialorder %v976, 8.507059e+37
      %v978 = vand.u32 %v861, 2147483648
      %v979 = vor.u32 1.1754944e-38, %v978
      %v980 = vsel %vm977, %v979, %v975
      %v981 = vmul.f32 %v837, %v980
      %v982 = vpack.c.bf16 %v876, %v876
      %v983 = vpack.c.bf16 %v891, %v891
      %v984 = vpack.c.bf16 %v906, %v906
      %v985 = vpack.c.bf16 %v921, %v921
      %v986 = vpack.c.bf16 %v936, %v936
      %v987 = vpack.c.bf16 %v951, %v951
      %v988 = vpack.c.bf16 %v966, %v966
      %v989 = vpack.c.bf16 %v981, %v981
      %991 = vrot.lane.b32.xlu0 %v628, 64
      %v992 = vpop.permute.xlu0 %991
      %v994 = vmul.f32 %v620, %v992
      %v995 = vmul.f32 %v621, %v992
      %v996 = vmul.f32 %v622, %v992
      %v997 = vmul.f32 %v623, %v992
      %v998 = vmul.f32 %v624, %v992
      %v999 = vmul.f32 %v625, %v992
      %v1000 = vmul.f32 %v626, %v992
      %v1001 = vmul.f32 %v627, %v992
      %v1002 = vpack.c.bf16 %v994, %v994
      %v1003 = vpack.c.bf16 %v995, %v995
      %v1004 = vpack.c.bf16 %v996, %v996
      %v1005 = vpack.c.bf16 %v997, %v997
      %v1006 = vpack.c.bf16 %v998, %v998
      %v1007 = vpack.c.bf16 %v999, %v999
      %v1008 = vpack.c.bf16 %v1000, %v1000
      %v1009 = vpack.c.bf16 %v1001, %v1001
      %vm1010 = vcmp.ge.s32.totalorder %v613, 8
      %vm1011 = vcmp.lt.s32.totalorder %v613, 16
      %vm1012 = vmand %vm1010, %vm1011
      %v1013 = vsel %vm1012, 1, 0
      %v1014 = vcvt.s32.f32 %v1013
      %v1015 = vpack.c.bf16 %v1014, %v1014
      %v1016 = vunpack.c.l.bf16 %v1015
      %v1017 = vmul.f32 %v620, %v1016
      %v1018 = vmul.f32 %v621, %v1016
      %v1019 = vmul.f32 %v622, %v1016
      %v1020 = vmul.f32 %v623, %v1016
      %v1021 = vmul.f32 %v624, %v1016
      %v1022 = vmul.f32 %v625, %v1016
      %v1023 = vmul.f32 %v626, %v1016
      %v1024 = vmul.f32 %v627, %v1016
      %v1025 = vpack.c.bf16 %v1017, %v1017
      %v1026 = vpack.c.bf16 %v1018, %v1018
      %v1027 = vpack.c.bf16 %v1019, %v1019
      %v1028 = vpack.c.bf16 %v1020, %v1020
      %v1029 = vpack.c.bf16 %v1021, %v1021
      %v1030 = vpack.c.bf16 %v1022, %v1022
      %v1031 = vpack.c.bf16 %v1023, %v1023
      %v1032 = vpack.c.bf16 %v1024, %v1024
      %v1035 = vunpack.c.l.b16 %v1025
      %v1036 = vunpack.c.l.b16 %v1026
      %v1037 = vpack.c.b16 %v1036, %v1035
      %v1039 = vsel %vm325, %v1037, 0
      %1041 = vmatpush.bf16.xpose.msra.mxu0 0
      %1042 = vmatpush.bf16.xpose.msra.mxu0 0
      %1043 = vmatpush.bf16.xpose.msra.mxu0 0
      %1044 = vmatpush.bf16.xpose.msra.mxu0 0
      %1045 = vmatpush.bf16.xpose.msra.mxu0 0
      %1046 = vmatpush.bf16.xpose.msra.mxu0 0
      %1047 = vmatpush.bf16.xpose.msra.mxu0 0
      %1048 = vmatpush.bf16.xpose.msra.mxu0 %v661
      %1049 = vmatmul.bf16.gmra.mxu0 %v1039
      %v1050 = vpop.f32.mrf.mxu0
      %v1051 = vadd.f32 0.0, %v1050
      %v1052 = vpop.f32.mrf.mxu0
      %v1053 = vadd.f32 0.0, %v1052
      %1054 = vdwg.mxu0
      %v1057 = vunpack.c.l.b16 %v1027
      %v1058 = vunpack.c.l.b16 %v1028
      %v1059 = vpack.c.b16 %v1058, %v1057
      %v1061 = vsel %vm325, %v1059, 0
      %1063 = vmatpush.bf16.xpose.msra.mxu0 0
      %1064 = vmatpush.bf16.xpose.msra.mxu0 0
      %1065 = vmatpush.bf16.xpose.msra.mxu0 0
      %1066 = vmatpush.bf16.xpose.msra.mxu0 0
      %1067 = vmatpush.bf16.xpose.msra.mxu0 0
      %1068 = vmatpush.bf16.xpose.msra.mxu0 0
      %1069 = vmatpush.bf16.xpose.msra.mxu0 0
      %1070 = vmatpush.bf16.xpose.msra.mxu0 %v693
      %1071 = vmatmul.bf16.gmra.mxu0 %v1061
      %v1072 = vpop.f32.mrf.mxu0
      %v1073 = vadd.f32 0.0, %v1072
      %v1074 = vpop.f32.mrf.mxu0
      %v1075 = vadd.f32 0.0, %v1074
      %1076 = vdwg.mxu0
      %v1079 = vunpack.c.l.b16 %v1029
      %v1080 = vunpack.c.l.b16 %v1030
      %v1081 = vpack.c.b16 %v1080, %v1079
      %v1083 = vsel %vm325, %v1081, 0
      %1085 = vmatpush.bf16.xpose.msra.mxu0 0
      %1086 = vmatpush.bf16.xpose.msra.mxu0 0
      %1087 = vmatpush.bf16.xpose.msra.mxu0 0
      %1088 = vmatpush.bf16.xpose.msra.mxu0 0
      %1089 = vmatpush.bf16.xpose.msra.mxu0 0
      %1090 = vmatpush.bf16.xpose.msra.mxu0 0
      %1091 = vmatpush.bf16.xpose.msra.mxu0 0
      %1092 = vmatpush.bf16.xpose.msra.mxu0 %v725
      %1093 = vmatmul.bf16.gmra.mxu0 %v1083
      %v1094 = vpop.f32.mrf.mxu0
      %v1095 = vadd.f32 0.0, %v1094
      %v1096 = vpop.f32.mrf.mxu0
      %v1097 = vadd.f32 0.0, %v1096
      %1098 = vdwg.mxu0
      %v1101 = vunpack.c.l.b16 %v1031
      %v1102 = vunpack.c.l.b16 %v1032
      %v1103 = vpack.c.b16 %v1102, %v1101
      %v1105 = vsel %vm325, %v1103, 0
      %1107 = vmatpush.bf16.xpose.msra.mxu0 0
      %1108 = vmatpush.bf16.xpose.msra.mxu0 0
      %1109 = vmatpush.bf16.xpose.msra.mxu0 0
      %1110 = vmatpush.bf16.xpose.msra.mxu0 0
      %1111 = vmatpush.bf16.xpose.msra.mxu0 0
      %1112 = vmatpush.bf16.xpose.msra.mxu0 0
      %1113 = vmatpush.bf16.xpose.msra.mxu0 0
      %1114 = vmatpush.bf16.xpose.msra.mxu0 %v757
      %1115 = vmatmul.bf16.gmra.mxu0 %v1105
      %v1116 = vpop.f32.mrf.mxu0
      %v1117 = vadd.f32 0.0, %v1116
      %v1118 = vpop.f32.mrf.mxu0
      %v1119 = vadd.f32 0.0, %v1118
      %1120 = vdwg.mxu0
      %v1121 = vmul.f32 %v1051, 0.35355338
      %v1122 = vmul.f32 %v1053, 0.35355338
      %v1123 = vmul.f32 %v1073, 0.35355338
      %v1124 = vmul.f32 %v1075, 0.35355338
      %v1125 = vmul.f32 %v1095, 0.35355338
      %v1126 = vmul.f32 %v1097, 0.35355338
      %v1127 = vmul.f32 %v1117, 0.35355338
      %v1128 = vmul.f32 %v1119, 0.35355338
      %v1129 = vadd.f32 %v1121, %v598
      %v1130 = vadd.f32 %v1122, %v599
      %v1131 = vadd.f32 %v1123, %v598
      %v1132 = vadd.f32 %v1124, %v599
      %v1133 = vadd.f32 %v1125, %v598
      %v1134 = vadd.f32 %v1126, %v599
      %v1135 = vadd.f32 %v1127, %v598
      %v1136 = vadd.f32 %v1128, %v599
      %v1137 = vsel %vm789, %v1129, -inf
      %1138 = vmax.xlane.f32.xlu0 %v1137
      %v1139 = vpop.xlane.xlu0 %1138
      %v1140 = vsel %vm789, %v1130, -inf
      %1141 = vmax.xlane.f32.xlu0 %v1140
      %v1142 = vpop.xlane.xlu0 %1141
      %v1143 = vsel %vm789, %v1131, -inf
      %1144 = vmax.xlane.f32.xlu0 %v1143
      %v1145 = vpop.xlane.xlu0 %1144
      %v1146 = vsel %vm789, %v1132, -inf
      %1147 = vmax.xlane.f32.xlu0 %v1146
      %v1148 = vpop.xlane.xlu0 %1147
      %v1149 = vsel %vm789, %v1133, -inf
      %1150 = vmax.xlane.f32.xlu0 %v1149
      %v1151 = vpop.xlane.xlu0 %1150
      %v1152 = vsel %vm789, %v1134, -inf
      %1153 = vmax.xlane.f32.xlu0 %v1152
      %v1154 = vpop.xlane.xlu0 %1153
      %v1155 = vsel %vm789, %v1135, -inf
      %1156 = vmax.xlane.f32.xlu0 %v1155
      %v1157 = vpop.xlane.xlu0 %1156
      %v1158 = vsel %vm789, %v1136, -inf
      %1159 = vmax.xlane.f32.xlu0 %v1158
      %v1160 = vpop.xlane.xlu0 %1159
      %v1161 = vsub.f32 %v1129, %v1139
      %v1162 = vsub.f32 %v1130, %v1142
      %v1163 = vsub.f32 %v1131, %v1145
      %v1164 = vsub.f32 %v1132, %v1148
      %v1165 = vsub.f32 %v1133, %v1151
      %v1166 = vsub.f32 %v1134, %v1154
      %v1167 = vsub.f32 %v1135, %v1157
      %v1168 = vsub.f32 %v1136, %v1160
      %v1169 = vmul.f32 %v1161, 1.442695
      %v1170 = vpow.pop %v1169
      %v1171 = vmul.f32 %v1162, 1.442695
      %v1172 = vpow.pop %v1171
      %v1173 = vmul.f32 %v1163, 1.442695
      %v1174 = vpow.pop %v1173
      %v1175 = vmul.f32 %v1164, 1.442695
      %v1176 = vpow.pop %v1175
      %v1177 = vmul.f32 %v1165, 1.442695
      %v1178 = vpow.pop %v1177
      %v1179 = vmul.f32 %v1166, 1.442695
      %v1180 = vpow.pop %v1179
      %v1181 = vmul.f32 %v1167, 1.442695
      %v1182 = vpow.pop %v1181
      %v1183 = vmul.f32 %v1168, 1.442695
      %v1184 = vpow.pop %v1183
      %v1185 = vsel %vm789, %v1170, 0.0
      %1186 = vadd.xlane.f32.xlu0 %v1185
      %v1187 = vpop.xlane.xlu0 %1186
      %v1188 = vsel %vm789, %v1172, 0.0
      %1189 = vadd.xlane.f32.xlu0 %v1188
      %v1190 = vpop.xlane.xlu0 %1189
      %v1191 = vsel %vm789, %v1174, 0.0
      %1192 = vadd.xlane.f32.xlu0 %v1191
      %v1193 = vpop.xlane.xlu0 %1192
      %v1194 = vsel %vm789, %v1176, 0.0
      %1195 = vadd.xlane.f32.xlu0 %v1194
      %v1196 = vpop.xlane.xlu0 %1195
      %v1197 = vsel %vm789, %v1178, 0.0
      %1198 = vadd.xlane.f32.xlu0 %v1197
      %v1199 = vpop.xlane.xlu0 %1198
      %v1200 = vsel %vm789, %v1180, 0.0
      %1201 = vadd.xlane.f32.xlu0 %v1200
      %v1202 = vpop.xlane.xlu0 %1201
      %v1203 = vsel %vm789, %v1182, 0.0
      %1204 = vadd.xlane.f32.xlu0 %v1203
      %v1205 = vpop.xlane.xlu0 %1204
      %v1206 = vsel %vm789, %v1184, 0.0
      %1207 = vadd.xlane.f32.xlu0 %v1206
      %v1208 = vpop.xlane.xlu0 %1207
      %v1209 = vrcp.pop %v1187
      %v1210 = vmul.f32 %v1187, %v1209
      %v1211 = vsub.f32 1.0, %v1210
      %v1212 = vmul.f32 %v1209, %v1211
      %v1213 = vadd.f32 %v1209, %v1212
      %vm1214 = vweird.f32 %v1187
      %vm1215 = vweird.f32 %v1209
      %vm1216 = vmor %vm1214, %vm1215
      %v1217 = vsel %vm1216, %v1209, %v1213
      %v1218 = vand.u32 2147483647, %v1187
      %vm1219 = vcmp.eq.f32.partialorder %v1218, 8.507059e+37
      %v1220 = vand.u32 %v1187, 2147483648
      %v1221 = vor.u32 1.1754944e-38, %v1220
      %v1222 = vsel %vm1219, %v1221, %v1217
      %v1223 = vmul.f32 %v1170, %v1222
      %v1224 = vrcp.pop %v1190
      %v1225 = vmul.f32 %v1190, %v1224
      %v1226 = vsub.f32 1.0, %v1225
      %v1227 = vmul.f32 %v1224, %v1226
      %v1228 = vadd.f32 %v1224, %v1227
      %vm1229 = vweird.f32 %v1190
      %vm1230 = vweird.f32 %v1224
      %vm1231 = vmor %vm1229, %vm1230
      %v1232 = vsel %vm1231, %v1224, %v1228
      %v1233 = vand.u32 2147483647, %v1190
      %vm1234 = vcmp.eq.f32.partialorder %v1233, 8.507059e+37
      %v1235 = vand.u32 %v1190, 2147483648
      %v1236 = vor.u32 1.1754944e-38, %v1235
      %v1237 = vsel %vm1234, %v1236, %v1232
      %v1238 = vmul.f32 %v1172, %v1237
      %v1239 = vrcp.pop %v1193
      %v1240 = vmul.f32 %v1193, %v1239
      %v1241 = vsub.f32 1.0, %v1240
      %v1242 = vmul.f32 %v1239, %v1241
      %v1243 = vadd.f32 %v1239, %v1242
      %vm1244 = vweird.f32 %v1193
      %vm1245 = vweird.f32 %v1239
      %vm1246 = vmor %vm1244, %vm1245
      %v1247 = vsel %vm1246, %v1239, %v1243
      %v1248 = vand.u32 2147483647, %v1193
      %vm1249 = vcmp.eq.f32.partialorder %v1248, 8.507059e+37
      %v1250 = vand.u32 %v1193, 2147483648
      %v1251 = vor.u32 1.1754944e-38, %v1250
      %v1252 = vsel %vm1249, %v1251, %v1247
      %v1253 = vmul.f32 %v1174, %v1252
      %v1254 = vrcp.pop %v1196
      %v1255 = vmul.f32 %v1196, %v1254
      %v1256 = vsub.f32 1.0, %v1255
      %v1257 = vmul.f32 %v1254, %v1256
      %v1258 = vadd.f32 %v1254, %v1257
      %vm1259 = vweird.f32 %v1196
      %vm1260 = vweird.f32 %v1254
      %vm1261 = vmor %vm1259, %vm1260
      %v1262 = vsel %vm1261, %v1254, %v1258
      %v1263 = vand.u32 2147483647, %v1196
      %vm1264 = vcmp.eq.f32.partialorder %v1263, 8.507059e+37
      %v1265 = vand.u32 %v1196, 2147483648
      %v1266 = vor.u32 1.1754944e-38, %v1265
      %v1267 = vsel %vm1264, %v1266, %v1262
      %v1268 = vmul.f32 %v1176, %v1267
      %v1269 = vrcp.pop %v1199
      %v1270 = vmul.f32 %v1199, %v1269
      %v1271 = vsub.f32 1.0, %v1270
      %v1272 = vmul.f32 %v1269, %v1271
      %v1273 = vadd.f32 %v1269, %v1272
      %vm1274 = vweird.f32 %v1199
      %vm1275 = vweird.f32 %v1269
      %vm1276 = vmor %vm1274, %vm1275
      %v1277 = vsel %vm1276, %v1269, %v1273
      %v1278 = vand.u32 2147483647, %v1199
      %vm1279 = vcmp.eq.f32.partialorder %v1278, 8.507059e+37
      %v1280 = vand.u32 %v1199, 2147483648
      %v1281 = vor.u32 1.1754944e-38, %v1280
      %v1282 = vsel %vm1279, %v1281, %v1277
      %v1283 = vmul.f32 %v1178, %v1282
      %v1284 = vrcp.pop %v1202
      %v1285 = vmul.f32 %v1202, %v1284
      %v1286 = vsub.f32 1.0, %v1285
      %v1287 = vmul.f32 %v1284, %v1286
      %v1288 = vadd.f32 %v1284, %v1287
      %vm1289 = vweird.f32 %v1202
      %vm1290 = vweird.f32 %v1284
      %vm1291 = vmor %vm1289, %vm1290
      %v1292 = vsel %vm1291, %v1284, %v1288
      %v1293 = vand.u32 2147483647, %v1202
      %vm1294 = vcmp.eq.f32.partialorder %v1293, 8.507059e+37
      %v1295 = vand.u32 %v1202, 2147483648
      %v1296 = vor.u32 1.1754944e-38, %v1295
      %v1297 = vsel %vm1294, %v1296, %v1292
      %v1298 = vmul.f32 %v1180, %v1297
      %v1299 = vrcp.pop %v1205
      %v1300 = vmul.f32 %v1205, %v1299
      %v1301 = vsub.f32 1.0, %v1300
      %v1302 = vmul.f32 %v1299, %v1301
      %v1303 = vadd.f32 %v1299, %v1302
      %vm1304 = vweird.f32 %v1205
      %vm1305 = vweird.f32 %v1299
      %vm1306 = vmor %vm1304, %vm1305
      %v1307 = vsel %vm1306, %v1299, %v1303
      %v1308 = vand.u32 2147483647, %v1205
      %vm1309 = vcmp.eq.f32.partialorder %v1308, 8.507059e+37
      %v1310 = vand.u32 %v1205, 2147483648
      %v1311 = vor.u32 1.1754944e-38, %v1310
      %v1312 = vsel %vm1309, %v1311, %v1307
      %v1313 = vmul.f32 %v1182, %v1312
      %v1314 = vrcp.pop %v1208
      %v1315 = vmul.f32 %v1208, %v1314
      %v1316 = vsub.f32 1.0, %v1315
      %v1317 = vmul.f32 %v1314, %v1316
      %v1318 = vadd.f32 %v1314, %v1317
      %vm1319 = vweird.f32 %v1208
      %vm1320 = vweird.f32 %v1314
      %vm1321 = vmor %vm1319, %vm1320
      %v1322 = vsel %vm1321, %v1314, %v1318
      %v1323 = vand.u32 2147483647, %v1208
      %vm1324 = vcmp.eq.f32.partialorder %v1323, 8.507059e+37
      %v1325 = vand.u32 %v1208, 2147483648
      %v1326 = vor.u32 1.1754944e-38, %v1325
      %v1327 = vsel %vm1324, %v1326, %v1322
      %v1328 = vmul.f32 %v1184, %v1327
      %v1329 = vpack.c.bf16 %v1223, %v1223
      %v1330 = vpack.c.bf16 %v1238, %v1238
      %v1331 = vpack.c.bf16 %v1253, %v1253
      %v1332 = vpack.c.bf16 %v1268, %v1268
      %v1333 = vpack.c.bf16 %v1283, %v1283
      %v1334 = vpack.c.bf16 %v1298, %v1298
      %v1335 = vpack.c.bf16 %v1313, %v1313
      %v1336 = vpack.c.bf16 %v1328, %v1328
      %1338 = vrot.lane.b32.xlu0 %v1016, 64
      %v1339 = vpop.permute.xlu0 %1338
      %v1341 = vmul.f32 %v620, %v1339
      %v1342 = vmul.f32 %v621, %v1339
      %v1343 = vmul.f32 %v622, %v1339
      %v1344 = vmul.f32 %v623, %v1339
      %v1345 = vmul.f32 %v624, %v1339
      %v1346 = vmul.f32 %v625, %v1339
      %v1347 = vmul.f32 %v626, %v1339
      %v1348 = vmul.f32 %v627, %v1339
      %v1349 = vpack.c.bf16 %v1341, %v1341
      %v1350 = vpack.c.bf16 %v1342, %v1342
      %v1351 = vpack.c.bf16 %v1343, %v1343
      %v1352 = vpack.c.bf16 %v1344, %v1344
      %v1353 = vpack.c.bf16 %v1345, %v1345
      %v1354 = vpack.c.bf16 %v1346, %v1346
      %v1355 = vpack.c.bf16 %v1347, %v1347
      %v1356 = vpack.c.bf16 %v1348, %v1348
      %v1359 = vunpack.c.l.b16 %v1329
      %v1360 = vunpack.c.l.b16 %v1330
      %v1361 = vpack.c.b16 %v1360, %v1359
      %v1364 = vunpack.c.l.b16 %v1349
      %v1365 = vunpack.c.l.b16 %v1350
      %v1366 = vpack.c.b16 %v1365, %v1364
      %1367 = vrot.lane.b32.xlu0 %v1366, 64
      %v1368 = vpop.permute.xlu0 %1367
      %v1371 = vsel %vm789, %v1361, 0
      %1373 = vmatpush.bf16.msra.mxu0 0
      %1374 = vmatpush.bf16.msra.mxu0 0
      %1375 = vmatpush.bf16.msra.mxu0 0
      %1376 = vmatpush.bf16.msra.mxu0 0
      %1377 = vmatpush.bf16.msra.mxu0 0
      %1378 = vmatpush.bf16.msra.mxu0 0
      %1379 = vmatpush.bf16.msra.mxu0 0
      %1380 = vmatpush.bf16.msra.mxu0 %v1368
      %1381 = vmatmul.bf16.gmra.mxu0 %v1371
      %v1382 = vpop.f32.mrf.mxu0
      %v1383 = vadd.f32 0.0, %v1382
      %v1384 = vpop.f32.mrf.mxu0
      %v1385 = vadd.f32 0.0, %v1384
      %1386 = vdwg.mxu0
      %v1389 = vunpack.c.l.b16 %v1331
      %v1390 = vunpack.c.l.b16 %v1332
      %v1391 = vpack.c.b16 %v1390, %v1389
      %v1394 = vunpack.c.l.b16 %v1351
      %v1395 = vunpack.c.l.b16 %v1352
      %v1396 = vpack.c.b16 %v1395, %v1394
      %1397 = vrot.lane.b32.xlu0 %v1396, 64
      %v1398 = vpop.permute.xlu0 %1397
      %v1401 = vsel %vm789, %v1391, 0
      %1403 = vmatpush.bf16.msra.mxu0 0
      %1404 = vmatpush.bf16.msra.mxu0 0
      %1405 = vmatpush.bf16.msra.mxu0 0
      %1406 = vmatpush.bf16.msra.mxu0 0
      %1407 = vmatpush.bf16.msra.mxu0 0
      %1408 = vmatpush.bf16.msra.mxu0 0
      %1409 = vmatpush.bf16.msra.mxu0 0
      %1410 = vmatpush.bf16.msra.mxu0 %v1398
      %1411 = vmatmul.bf16.gmra.mxu0 %v1401
      %v1412 = vpop.f32.mrf.mxu0
      %v1413 = vadd.f32 0.0, %v1412
      %v1414 = vpop.f32.mrf.mxu0
      %v1415 = vadd.f32 0.0, %v1414
      %1416 = vdwg.mxu0
      %v1419 = vunpack.c.l.b16 %v1333
      %v1420 = vunpack.c.l.b16 %v1334
      %v1421 = vpack.c.b16 %v1420, %v1419
      %v1424 = vunpack.c.l.b16 %v1353
      %v1425 = vunpack.c.l.b16 %v1354
      %v1426 = vpack.c.b16 %v1425, %v1424
      %1427 = vrot.lane.b32.xlu0 %v1426, 64
      %v1428 = vpop.permute.xlu0 %1427
      %v1431 = vsel %vm789, %v1421, 0
      %1433 = vmatpush.bf16.msra.mxu0 0
      %1434 = vmatpush.bf16.msra.mxu0 0
      %1435 = vmatpush.bf16.msra.mxu0 0
      %1436 = vmatpush.bf16.msra.mxu0 0
      %1437 = vmatpush.bf16.msra.mxu0 0
      %1438 = vmatpush.bf16.msra.mxu0 0
      %1439 = vmatpush.bf16.msra.mxu0 0
      %1440 = vmatpush.bf16.msra.mxu0 %v1428
      %1441 = vmatmul.bf16.gmra.mxu0 %v1431
      %v1442 = vpop.f32.mrf.mxu0
      %v1443 = vadd.f32 0.0, %v1442
      %v1444 = vpop.f32.mrf.mxu0
      %v1445 = vadd.f32 0.0, %v1444
      %1446 = vdwg.mxu0
      %v1449 = vunpack.c.l.b16 %v1335
      %v1450 = vunpack.c.l.b16 %v1336
      %v1451 = vpack.c.b16 %v1450, %v1449
      %v1454 = vunpack.c.l.b16 %v1355
      %v1455 = vunpack.c.l.b16 %v1356
      %v1456 = vpack.c.b16 %v1455, %v1454
      %1457 = vrot.lane.b32.xlu0 %v1456, 64
      %v1458 = vpop.permute.xlu0 %1457
      %v1461 = vsel %vm789, %v1451, 0
      %1463 = vmatpush.bf16.msra.mxu0 0
      %1464 = vmatpush.bf16.msra.mxu0 0
      %1465 = vmatpush.bf16.msra.mxu0 0
      %1466 = vmatpush.bf16.msra.mxu0 0
      %1467 = vmatpush.bf16.msra.mxu0 0
      %1468 = vmatpush.bf16.msra.mxu0 0
      %1469 = vmatpush.bf16.msra.mxu0 0
      %1470 = vmatpush.bf16.msra.mxu0 %v1458
      %1471 = vmatmul.bf16.gmra.mxu0 %v1461
      %v1472 = vpop.f32.mrf.mxu0
      %v1473 = vadd.f32 0.0, %v1472
      %v1474 = vpop.f32.mrf.mxu0
      %v1475 = vadd.f32 0.0, %v1474
      %1476 = vdwg.mxu0
      %v1479 = vunpack.c.l.b16 %v982
      %v1480 = vunpack.c.l.b16 %v983
      %v1481 = vpack.c.b16 %v1480, %v1479
      %v1484 = vunpack.c.l.b16 %v1002
      %v1485 = vunpack.c.l.b16 %v1003
      %v1486 = vpack.c.b16 %v1485, %v1484
      %1487 = vrot.lane.b32.xlu0 %v1486, 64
      %v1488 = vpop.permute.xlu0 %1487
      %v1491 = vsel %vm789, %v1481, 0
      %1493 = vmatpush.bf16.msra.mxu0 0
      %1494 = vmatpush.bf16.msra.mxu0 0
      %1495 = vmatpush.bf16.msra.mxu0 0
      %1496 = vmatpush.bf16.msra.mxu0 0
      %1497 = vmatpush.bf16.msra.mxu0 0
      %1498 = vmatpush.bf16.msra.mxu0 0
      %1499 = vmatpush.bf16.msra.mxu0 0
      %1500 = vmatpush.bf16.msra.mxu0 %v1488
      %1501 = vmatmul.bf16.gmra.mxu0 %v1491
      %v1502 = vpop.f32.mrf.mxu0
      %v1503 = vadd.f32 %v1383, %v1502
      %v1504 = vpop.f32.mrf.mxu0
      %v1505 = vadd.f32 %v1385, %v1504
      %1506 = vdwg.mxu0
      %v1509 = vunpack.c.l.b16 %v984
      %v1510 = vunpack.c.l.b16 %v985
      %v1511 = vpack.c.b16 %v1510, %v1509
      %v1514 = vunpack.c.l.b16 %v1004
      %v1515 = vunpack.c.l.b16 %v1005
      %v1516 = vpack.c.b16 %v1515, %v1514
      %1517 = vrot.lane.b32.xlu0 %v1516, 64
      %v1518 = vpop.permute.xlu0 %1517
      %v1521 = vsel %vm789, %v1511, 0
      %1523 = vmatpush.bf16.msra.mxu0 0
      %1524 = vmatpush.bf16.msra.mxu0 0
      %1525 = vmatpush.bf16.msra.mxu0 0
      %1526 = vmatpush.bf16.msra.mxu0 0
      %1527 = vmatpush.bf16.msra.mxu0 0
      %1528 = vmatpush.bf16.msra.mxu0 0
      %1529 = vmatpush.bf16.msra.mxu0 0
      %1530 = vmatpush.bf16.msra.mxu0 %v1518
      %1531 = vmatmul.bf16.gmra.mxu0 %v1521
      %v1532 = vpop.f32.mrf.mxu0
      %v1533 = vadd.f32 %v1413, %v1532
      %v1534 = vpop.f32.mrf.mxu0
      %v1535 = vadd.f32 %v1415, %v1534
      %1536 = vdwg.mxu0
      %v1539 = vunpack.c.l.b16 %v986
      %v1540 = vunpack.c.l.b16 %v987
      %v1541 = vpack.c.b16 %v1540, %v1539
      %v1544 = vunpack.c.l.b16 %v1006
      %v1545 = vunpack.c.l.b16 %v1007
      %v1546 = vpack.c.b16 %v1545, %v1544
      %1547 = vrot.lane.b32.xlu0 %v1546, 64
      %v1548 = vpop.permute.xlu0 %1547
      %v1551 = vsel %vm789, %v1541, 0
      %1553 = vmatpush.bf16.msra.mxu0 0
      %1554 = vmatpush.bf16.msra.mxu0 0
      %1555 = vmatpush.bf16.msra.mxu0 0
      %1556 = vmatpush.bf16.msra.mxu0 0
      %1557 = vmatpush.bf16.msra.mxu0 0
      %1558 = vmatpush.bf16.msra.mxu0 0
      %1559 = vmatpush.bf16.msra.mxu0 0
      %1560 = vmatpush.bf16.msra.mxu0 %v1548
      %1561 = vmatmul.bf16.gmra.mxu0 %v1551
      %v1562 = vpop.f32.mrf.mxu0
      %v1563 = vadd.f32 %v1443, %v1562
      %v1564 = vpop.f32.mrf.mxu0
      %v1565 = vadd.f32 %v1445, %v1564
      %1566 = vdwg.mxu0
      %v1569 = vunpack.c.l.b16 %v988
      %v1570 = vunpack.c.l.b16 %v989
      %v1571 = vpack.c.b16 %v1570, %v1569
      %v1574 = vunpack.c.l.b16 %v1008
      %v1575 = vunpack.c.l.b16 %v1009
      %v1576 = vpack.c.b16 %v1575, %v1574
      %1577 = vrot.lane.b32.xlu0 %v1576, 64
      %v1578 = vpop.permute.xlu0 %1577
      %v1581 = vsel %vm789, %v1571, 0
      %1583 = vmatpush.bf16.msra.mxu0 0
      %1584 = vmatpush.bf16.msra.mxu0 0
      %1585 = vmatpush.bf16.msra.mxu0 0
      %1586 = vmatpush.bf16.msra.mxu0 0
      %1587 = vmatpush.bf16.msra.mxu0 0
      %1588 = vmatpush.bf16.msra.mxu0 0
      %1589 = vmatpush.bf16.msra.mxu0 0
      %1590 = vmatpush.bf16.msra.mxu0 %v1578
      %1591 = vmatmul.bf16.gmra.mxu0 %v1581
      %v1592 = vpop.f32.mrf.mxu0
      %v1593 = vadd.f32 %v1473, %v1592
      %v1594 = vpop.f32.mrf.mxu0
      %v1595 = vadd.f32 %v1475, %v1594
      %1596 = vdwg.mxu0
      %vm1597 = vcmp.ge.s32.totalorder %v613, 16
      %vm1598 = vcmp.lt.s32.totalorder %v613, 24
      %vm1599 = vmand %vm1597, %vm1598
      %v1600 = vsel %vm1599, 1, 0
      %v1601 = vcvt.s32.f32 %v1600
      %v1602 = vpack.c.bf16 %v1601, %v1601
      %v1603 = vunpack.c.l.bf16 %v1602
      %v1604 = vmul.f32 %v620, %v1603
      %v1605 = vmul.f32 %v621, %v1603
      %v1606 = vmul.f32 %v622, %v1603
      %v1607 = vmul.f32 %v623, %v1603
      %v1608 = vmul.f32 %v624, %v1603
      %v1609 = vmul.f32 %v625, %v1603
      %v1610 = vmul.f32 %v626, %v1603
      %v1611 = vmul.f32 %v627, %v1603
      %v1612 = vpack.c.bf16 %v1604, %v1604
      %v1613 = vpack.c.bf16 %v1605, %v1605
      %v1614 = vpack.c.bf16 %v1606, %v1606
      %v1615 = vpack.c.bf16 %v1607, %v1607
      %v1616 = vpack.c.bf16 %v1608, %v1608
      %v1617 = vpack.c.bf16 %v1609, %v1609
      %v1618 = vpack.c.bf16 %v1610, %v1610
      %v1619 = vpack.c.bf16 %v1611, %v1611
      %v1622 = vunpack.c.l.b16 %v1612
      %v1623 = vunpack.c.l.b16 %v1613
      %v1624 = vpack.c.b16 %v1623, %v1622
      %v1626 = vsel %vm325, %v1624, 0
      %1628 = vmatpush.bf16.xpose.msra.mxu0 0
      %1629 = vmatpush.bf16.xpose.msra.mxu0 0
      %1630 = vmatpush.bf16.xpose.msra.mxu0 0
      %1631 = vmatpush.bf16.xpose.msra.mxu0 0
      %1632 = vmatpush.bf16.xpose.msra.mxu0 0
      %1633 = vmatpush.bf16.xpose.msra.mxu0 0
      %1634 = vmatpush.bf16.xpose.msra.mxu0 0
      %1635 = vmatpush.bf16.xpose.msra.mxu0 %v661
      %1636 = vmatmul.bf16.gmra.mxu0 %v1626
      %v1637 = vpop.f32.mrf.mxu0
      %v1638 = vadd.f32 0.0, %v1637
      %v1639 = vpop.f32.mrf.mxu0
      %v1640 = vadd.f32 0.0, %v1639
      %1641 = vdwg.mxu0
      %v1644 = vunpack.c.l.b16 %v1614
      %v1645 = vunpack.c.l.b16 %v1615
      %v1646 = vpack.c.b16 %v1645, %v1644
      %v1648 = vsel %vm325, %v1646, 0
      %1650 = vmatpush.bf16.xpose.msra.mxu0 0
      %1651 = vmatpush.bf16.xpose.msra.mxu0 0
      %1652 = vmatpush.bf16.xpose.msra.mxu0 0
      %1653 = vmatpush.bf16.xpose.msra.mxu0 0
      %1654 = vmatpush.bf16.xpose.msra.mxu0 0
      %1655 = vmatpush.bf16.xpose.msra.mxu0 0
      %1656 = vmatpush.bf16.xpose.msra.mxu0 0
      %1657 = vmatpush.bf16.xpose.msra.mxu0 %v693
      %1658 = vmatmul.bf16.gmra.mxu0 %v1648
      %v1659 = vpop.f32.mrf.mxu0
      %v1660 = vadd.f32 0.0, %v1659
      %v1661 = vpop.f32.mrf.mxu0
      %v1662 = vadd.f32 0.0, %v1661
      %1663 = vdwg.mxu0
      %v1666 = vunpack.c.l.b16 %v1616
      %v1667 = vunpack.c.l.b16 %v1617
      %v1668 = vpack.c.b16 %v1667, %v1666
      %v1670 = vsel %vm325, %v1668, 0
      %1672 = vmatpush.bf16.xpose.msra.mxu0 0
      %1673 = vmatpush.bf16.xpose.msra.mxu0 0
      %1674 = vmatpush.bf16.xpose.msra.mxu0 0
      %1675 = vmatpush.bf16.xpose.msra.mxu0 0
      %1676 = vmatpush.bf16.xpose.msra.mxu0 0
      %1677 = vmatpush.bf16.xpose.msra.mxu0 0
      %1678 = vmatpush.bf16.xpose.msra.mxu0 0
      %1679 = vmatpush.bf16.xpose.msra.mxu0 %v725
      %1680 = vmatmul.bf16.gmra.mxu0 %v1670
      %v1681 = vpop.f32.mrf.mxu0
      %v1682 = vadd.f32 0.0, %v1681
      %v1683 = vpop.f32.mrf.mxu0
      %v1684 = vadd.f32 0.0, %v1683
      %1685 = vdwg.mxu0
      %v1688 = vunpack.c.l.b16 %v1618
      %v1689 = vunpack.c.l.b16 %v1619
      %v1690 = vpack.c.b16 %v1689, %v1688
      %v1692 = vsel %vm325, %v1690, 0
      %1694 = vmatpush.bf16.xpose.msra.mxu0 0
      %1695 = vmatpush.bf16.xpose.msra.mxu0 0
      %1696 = vmatpush.bf16.xpose.msra.mxu0 0
      %1697 = vmatpush.bf16.xpose.msra.mxu0 0
      %1698 = vmatpush.bf16.xpose.msra.mxu0 0
      %1699 = vmatpush.bf16.xpose.msra.mxu0 0
      %1700 = vmatpush.bf16.xpose.msra.mxu0 0
      %1701 = vmatpush.bf16.xpose.msra.mxu0 %v757
      %1702 = vmatmul.bf16.gmra.mxu0 %v1692
      %v1703 = vpop.f32.mrf.mxu0
      %v1704 = vadd.f32 0.0, %v1703
      %v1705 = vpop.f32.mrf.mxu0
      %v1706 = vadd.f32 0.0, %v1705
      %1707 = vdwg.mxu0
      %v1708 = vmul.f32 %v1638, 0.35355338
      %v1709 = vmul.f32 %v1640, 0.35355338
      %v1710 = vmul.f32 %v1660, 0.35355338
      %v1711 = vmul.f32 %v1662, 0.35355338
      %v1712 = vmul.f32 %v1682, 0.35355338
      %v1713 = vmul.f32 %v1684, 0.35355338
      %v1714 = vmul.f32 %v1704, 0.35355338
      %v1715 = vmul.f32 %v1706, 0.35355338
      %v1716 = vadd.f32 %v1708, %v600
      %v1717 = vadd.f32 %v1709, %v601
      %v1718 = vadd.f32 %v1710, %v600
      %v1719 = vadd.f32 %v1711, %v601
      %v1720 = vadd.f32 %v1712, %v600
      %v1721 = vadd.f32 %v1713, %v601
      %v1722 = vadd.f32 %v1714, %v600
      %v1723 = vadd.f32 %v1715, %v601
      %v1724 = vsel %vm789, %v1716, -inf
      %1725 = vmax.xlane.f32.xlu0 %v1724
      %v1726 = vpop.xlane.xlu0 %1725
      %v1727 = vsel %vm789, %v1717, -inf
      %1728 = vmax.xlane.f32.xlu0 %v1727
      %v1729 = vpop.xlane.xlu0 %1728
      %v1730 = vsel %vm789, %v1718, -inf
      %1731 = vmax.xlane.f32.xlu0 %v1730
      %v1732 = vpop.xlane.xlu0 %1731
      %v1733 = vsel %vm789, %v1719, -inf
      %1734 = vmax.xlane.f32.xlu0 %v1733
      %v1735 = vpop.xlane.xlu0 %1734
      %v1736 = vsel %vm789, %v1720, -inf
      %1737 = vmax.xlane.f32.xlu0 %v1736
      %v1738 = vpop.xlane.xlu0 %1737
      %v1739 = vsel %vm789, %v1721, -inf
      %1740 = vmax.xlane.f32.xlu0 %v1739
      %v1741 = vpop.xlane.xlu0 %1740
      %v1742 = vsel %vm789, %v1722, -inf
      %1743 = vmax.xlane.f32.xlu0 %v1742
      %v1744 = vpop.xlane.xlu0 %1743
      %v1745 = vsel %vm789, %v1723, -inf
      %1746 = vmax.xlane.f32.xlu0 %v1745
      %v1747 = vpop.xlane.xlu0 %1746
      %v1748 = vsub.f32 %v1716, %v1726
      %v1749 = vsub.f32 %v1717, %v1729
      %v1750 = vsub.f32 %v1718, %v1732
      %v1751 = vsub.f32 %v1719, %v1735
      %v1752 = vsub.f32 %v1720, %v1738
      %v1753 = vsub.f32 %v1721, %v1741
      %v1754 = vsub.f32 %v1722, %v1744
      %v1755 = vsub.f32 %v1723, %v1747
      %v1756 = vmul.f32 %v1748, 1.442695
      %v1757 = vpow.pop %v1756
      %v1758 = vmul.f32 %v1749, 1.442695
      %v1759 = vpow.pop %v1758
      %v1760 = vmul.f32 %v1750, 1.442695
      %v1761 = vpow.pop %v1760
      %v1762 = vmul.f32 %v1751, 1.442695
      %v1763 = vpow.pop %v1762
      %v1764 = vmul.f32 %v1752, 1.442695
      %v1765 = vpow.pop %v1764
      %v1766 = vmul.f32 %v1753, 1.442695
      %v1767 = vpow.pop %v1766
      %v1768 = vmul.f32 %v1754, 1.442695
      %v1769 = vpow.pop %v1768
      %v1770 = vmul.f32 %v1755, 1.442695
      %v1771 = vpow.pop %v1770
      %v1772 = vsel %vm789, %v1757, 0.0
      %1773 = vadd.xlane.f32.xlu0 %v1772
      %v1774 = vpop.xlane.xlu0 %1773
      %v1775 = vsel %vm789, %v1759, 0.0
      %1776 = vadd.xlane.f32.xlu0 %v1775
      %v1777 = vpop.xlane.xlu0 %1776
      %v1778 = vsel %vm789, %v1761, 0.0
      %1779 = vadd.xlane.f32.xlu0 %v1778
      %v1780 = vpop.xlane.xlu0 %1779
      %v1781 = vsel %vm789, %v1763, 0.0
      %1782 = vadd.xlane.f32.xlu0 %v1781
      %v1783 = vpop.xlane.xlu0 %1782
      %v1784 = vsel %vm789, %v1765, 0.0
      %1785 = vadd.xlane.f32.xlu0 %v1784
      %v1786 = vpop.xlane.xlu0 %1785
      %v1787 = vsel %vm789, %v1767, 0.0
      %1788 = vadd.xlane.f32.xlu0 %v1787
      %v1789 = vpop.xlane.xlu0 %1788
      %v1790 = vsel %vm789, %v1769, 0.0
      %1791 = vadd.xlane.f32.xlu0 %v1790
      %v1792 = vpop.xlane.xlu0 %1791
      %v1793 = vsel %vm789, %v1771, 0.0
      %1794 = vadd.xlane.f32.xlu0 %v1793
      %v1795 = vpop.xlane.xlu0 %1794
      %v1796 = vrcp.pop %v1774
      %v1797 = vmul.f32 %v1774, %v1796
      %v1798 = vsub.f32 1.0, %v1797
      %v1799 = vmul.f32 %v1796, %v1798
      %v1800 = vadd.f32 %v1796, %v1799
      %vm1801 = vweird.f32 %v1774
      %vm1802 = vweird.f32 %v1796
      %vm1803 = vmor %vm1801, %vm1802
      %v1804 = vsel %vm1803, %v1796, %v1800
      %v1805 = vand.u32 2147483647, %v1774
      %vm1806 = vcmp.eq.f32.partialorder %v1805, 8.507059e+37
      %v1807 = vand.u32 %v1774, 2147483648
      %v1808 = vor.u32 1.1754944e-38, %v1807
      %v1809 = vsel %vm1806, %v1808, %v1804
      %v1810 = vmul.f32 %v1757, %v1809
      %v1811 = vrcp.pop %v1777
      %v1812 = vmul.f32 %v1777, %v1811
      %v1813 = vsub.f32 1.0, %v1812
      %v1814 = vmul.f32 %v1811, %v1813
      %v1815 = vadd.f32 %v1811, %v1814
      %vm1816 = vweird.f32 %v1777
      %vm1817 = vweird.f32 %v1811
      %vm1818 = vmor %vm1816, %vm1817
      %v1819 = vsel %vm1818, %v1811, %v1815
      %v1820 = vand.u32 2147483647, %v1777
      %vm1821 = vcmp.eq.f32.partialorder %v1820, 8.507059e+37
      %v1822 = vand.u32 %v1777, 2147483648
      %v1823 = vor.u32 1.1754944e-38, %v1822
      %v1824 = vsel %vm1821, %v1823, %v1819
      %v1825 = vmul.f32 %v1759, %v1824
      %v1826 = vrcp.pop %v1780
      %v1827 = vmul.f32 %v1780, %v1826
      %v1828 = vsub.f32 1.0, %v1827
      %v1829 = vmul.f32 %v1826, %v1828
      %v1830 = vadd.f32 %v1826, %v1829
      %vm1831 = vweird.f32 %v1780
      %vm1832 = vweird.f32 %v1826
      %vm1833 = vmor %vm1831, %vm1832
      %v1834 = vsel %vm1833, %v1826, %v1830
      %v1835 = vand.u32 2147483647, %v1780
      %vm1836 = vcmp.eq.f32.partialorder %v1835, 8.507059e+37
      %v1837 = vand.u32 %v1780, 2147483648
      %v1838 = vor.u32 1.1754944e-38, %v1837
      %v1839 = vsel %vm1836, %v1838, %v1834
      %v1840 = vmul.f32 %v1761, %v1839
      %v1841 = vrcp.pop %v1783
      %v1842 = vmul.f32 %v1783, %v1841
      %v1843 = vsub.f32 1.0, %v1842
      %v1844 = vmul.f32 %v1841, %v1843
      %v1845 = vadd.f32 %v1841, %v1844
      %vm1846 = vweird.f32 %v1783
      %vm1847 = vweird.f32 %v1841
      %vm1848 = vmor %vm1846, %vm1847
      %v1849 = vsel %vm1848, %v1841, %v1845
      %v1850 = vand.u32 2147483647, %v1783
      %vm1851 = vcmp.eq.f32.partialorder %v1850, 8.507059e+37
      %v1852 = vand.u32 %v1783, 2147483648
      %v1853 = vor.u32 1.1754944e-38, %v1852
      %v1854 = vsel %vm1851, %v1853, %v1849
      %v1855 = vmul.f32 %v1763, %v1854
      %v1856 = vrcp.pop %v1786
      %v1857 = vmul.f32 %v1786, %v1856
      %v1858 = vsub.f32 1.0, %v1857
      %v1859 = vmul.f32 %v1856, %v1858
      %v1860 = vadd.f32 %v1856, %v1859
      %vm1861 = vweird.f32 %v1786
      %vm1862 = vweird.f32 %v1856
      %vm1863 = vmor %vm1861, %vm1862
      %v1864 = vsel %vm1863, %v1856, %v1860
      %v1865 = vand.u32 2147483647, %v1786
      %vm1866 = vcmp.eq.f32.partialorder %v1865, 8.507059e+37
      %v1867 = vand.u32 %v1786, 2147483648
      %v1868 = vor.u32 1.1754944e-38, %v1867
      %v1869 = vsel %vm1866, %v1868, %v1864
      %v1870 = vmul.f32 %v1765, %v1869
      %v1871 = vrcp.pop %v1789
      %v1872 = vmul.f32 %v1789, %v1871
      %v1873 = vsub.f32 1.0, %v1872
      %v1874 = vmul.f32 %v1871, %v1873
      %v1875 = vadd.f32 %v1871, %v1874
      %vm1876 = vweird.f32 %v1789
      %vm1877 = vweird.f32 %v1871
      %vm1878 = vmor %vm1876, %vm1877
      %v1879 = vsel %vm1878, %v1871, %v1875
      %v1880 = vand.u32 2147483647, %v1789
      %vm1881 = vcmp.eq.f32.partialorder %v1880, 8.507059e+37
      %v1882 = vand.u32 %v1789, 2147483648
      %v1883 = vor.u32 1.1754944e-38, %v1882
      %v1884 = vsel %vm1881, %v1883, %v1879
      %v1885 = vmul.f32 %v1767, %v1884
      %v1886 = vrcp.pop %v1792
      %v1887 = vmul.f32 %v1792, %v1886
      %v1888 = vsub.f32 1.0, %v1887
      %v1889 = vmul.f32 %v1886, %v1888
      %v1890 = vadd.f32 %v1886, %v1889
      %vm1891 = vweird.f32 %v1792
      %vm1892 = vweird.f32 %v1886
      %vm1893 = vmor %vm1891, %vm1892
      %v1894 = vsel %vm1893, %v1886, %v1890
      %v1895 = vand.u32 2147483647, %v1792
      %vm1896 = vcmp.eq.f32.partialorder %v1895, 8.507059e+37
      %v1897 = vand.u32 %v1792, 2147483648
      %v1898 = vor.u32 1.1754944e-38, %v1897
      %v1899 = vsel %vm1896, %v1898, %v1894
      %v1900 = vmul.f32 %v1769, %v1899
      %v1901 = vrcp.pop %v1795
      %v1902 = vmul.f32 %v1795, %v1901
      %v1903 = vsub.f32 1.0, %v1902
      %v1904 = vmul.f32 %v1901, %v1903
      %v1905 = vadd.f32 %v1901, %v1904
      %vm1906 = vweird.f32 %v1795
      %vm1907 = vweird.f32 %v1901
      %vm1908 = vmor %vm1906, %vm1907
      %v1909 = vsel %vm1908, %v1901, %v1905
      %v1910 = vand.u32 2147483647, %v1795
      %vm1911 = vcmp.eq.f32.partialorder %v1910, 8.507059e+37
      %v1912 = vand.u32 %v1795, 2147483648
      %v1913 = vor.u32 1.1754944e-38, %v1912
      %v1914 = vsel %vm1911, %v1913, %v1909
      %v1915 = vmul.f32 %v1771, %v1914
      %v1916 = vpack.c.bf16 %v1810, %v1810
      %v1917 = vpack.c.bf16 %v1825, %v1825
      %v1918 = vpack.c.bf16 %v1840, %v1840
      %v1919 = vpack.c.bf16 %v1855, %v1855
      %v1920 = vpack.c.bf16 %v1870, %v1870
      %v1921 = vpack.c.bf16 %v1885, %v1885
      %v1922 = vpack.c.bf16 %v1900, %v1900
      %v1923 = vpack.c.bf16 %v1915, %v1915
      %1925 = vrot.lane.b32.xlu0 %v1603, 64
      %v1926 = vpop.permute.xlu0 %1925
      %v1928 = vmul.f32 %v620, %v1926
      %v1929 = vmul.f32 %v621, %v1926
      %v1930 = vmul.f32 %v622, %v1926
      %v1931 = vmul.f32 %v623, %v1926
      %v1932 = vmul.f32 %v624, %v1926
      %v1933 = vmul.f32 %v625, %v1926
      %v1934 = vmul.f32 %v626, %v1926
      %v1935 = vmul.f32 %v627, %v1926
      %v1936 = vpack.c.bf16 %v1928, %v1928
      %v1937 = vpack.c.bf16 %v1929, %v1929
      %v1938 = vpack.c.bf16 %v1930, %v1930
      %v1939 = vpack.c.bf16 %v1931, %v1931
      %v1940 = vpack.c.bf16 %v1932, %v1932
      %v1941 = vpack.c.bf16 %v1933, %v1933
      %v1942 = vpack.c.bf16 %v1934, %v1934
      %v1943 = vpack.c.bf16 %v1935, %v1935
      %v1946 = vunpack.c.l.b16 %v1916
      %v1947 = vunpack.c.l.b16 %v1917
      %v1948 = vpack.c.b16 %v1947, %v1946
      %v1951 = vunpack.c.l.b16 %v1936
      %v1952 = vunpack.c.l.b16 %v1937
      %v1953 = vpack.c.b16 %v1952, %v1951
      %1954 = vrot.lane.b32.xlu0 %v1953, 64
      %v1955 = vpop.permute.xlu0 %1954
      %v1958 = vsel %vm789, %v1948, 0
      %1960 = vmatpush.bf16.msra.mxu0 0
      %1961 = vmatpush.bf16.msra.mxu0 0
      %1962 = vmatpush.bf16.msra.mxu0 0
      %1963 = vmatpush.bf16.msra.mxu0 0
      %1964 = vmatpush.bf16.msra.mxu0 0
      %1965 = vmatpush.bf16.msra.mxu0 0
      %1966 = vmatpush.bf16.msra.mxu0 0
      %1967 = vmatpush.bf16.msra.mxu0 %v1955
      %1968 = vmatmul.bf16.gmra.mxu0 %v1958
      %v1969 = vpop.f32.mrf.mxu0
      %v1970 = vadd.f32 0.0, %v1969
      %v1971 = vpop.f32.mrf.mxu0
      %v1972 = vadd.f32 0.0, %v1971
      %1973 = vdwg.mxu0
      %v1976 = vunpack.c.l.b16 %v1918
      %v1977 = vunpack.c.l.b16 %v1919
      %v1978 = vpack.c.b16 %v1977, %v1976
      %v1981 = vunpack.c.l.b16 %v1938
      %v1982 = vunpack.c.l.b16 %v1939
      %v1983 = vpack.c.b16 %v1982, %v1981
      %1984 = vrot.lane.b32.xlu0 %v1983, 64
      %v1985 = vpop.permute.xlu0 %1984
      %v1988 = vsel %vm789, %v1978, 0
      %1990 = vmatpush.bf16.msra.mxu0 0
      %1991 = vmatpush.bf16.msra.mxu0 0
      %1992 = vmatpush.bf16.msra.mxu0 0
      %1993 = vmatpush.bf16.msra.mxu0 0
      %1994 = vmatpush.bf16.msra.mxu0 0
      %1995 = vmatpush.bf16.msra.mxu0 0
      %1996 = vmatpush.bf16.msra.mxu0 0
      %1997 = vmatpush.bf16.msra.mxu0 %v1985
      %1998 = vmatmul.bf16.gmra.mxu0 %v1988
      %v1999 = vpop.f32.mrf.mxu0
      %v2000 = vadd.f32 0.0, %v1999
      %v2001 = vpop.f32.mrf.mxu0
      %v2002 = vadd.f32 0.0, %v2001
      %2003 = vdwg.mxu0
      %v2006 = vunpack.c.l.b16 %v1920
      %v2007 = vunpack.c.l.b16 %v1921
      %v2008 = vpack.c.b16 %v2007, %v2006
      %v2011 = vunpack.c.l.b16 %v1940
      %v2012 = vunpack.c.l.b16 %v1941
      %v2013 = vpack.c.b16 %v2012, %v2011
      %2014 = vrot.lane.b32.xlu0 %v2013, 64
      %v2015 = vpop.permute.xlu0 %2014
      %v2018 = vsel %vm789, %v2008, 0
      %2020 = vmatpush.bf16.msra.mxu0 0
      %2021 = vmatpush.bf16.msra.mxu0 0
      %2022 = vmatpush.bf16.msra.mxu0 0
      %2023 = vmatpush.bf16.msra.mxu0 0
      %2024 = vmatpush.bf16.msra.mxu0 0
      %2025 = vmatpush.bf16.msra.mxu0 0
      %2026 = vmatpush.bf16.msra.mxu0 0
      %2027 = vmatpush.bf16.msra.mxu0 %v2015
      %2028 = vmatmul.bf16.gmra.mxu0 %v2018
      %v2029 = vpop.f32.mrf.mxu0
      %v2030 = vadd.f32 0.0, %v2029
      %v2031 = vpop.f32.mrf.mxu0
      %v2032 = vadd.f32 0.0, %v2031
      %2033 = vdwg.mxu0
      %v2036 = vunpack.c.l.b16 %v1922
      %v2037 = vunpack.c.l.b16 %v1923
      %v2038 = vpack.c.b16 %v2037, %v2036
      %v2041 = vunpack.c.l.b16 %v1942
      %v2042 = vunpack.c.l.b16 %v1943
      %v2043 = vpack.c.b16 %v2042, %v2041
      %2044 = vrot.lane.b32.xlu0 %v2043, 64
      %v2045 = vpop.permute.xlu0 %2044
      %v2048 = vsel %vm789, %v2038, 0
      %2050 = vmatpush.bf16.msra.mxu0 0
      %2051 = vmatpush.bf16.msra.mxu0 0
      %2052 = vmatpush.bf16.msra.mxu0 0
      %2053 = vmatpush.bf16.msra.mxu0 0
      %2054 = vmatpush.bf16.msra.mxu0 0
      %2055 = vmatpush.bf16.msra.mxu0 0
      %2056 = vmatpush.bf16.msra.mxu0 0
      %2057 = vmatpush.bf16.msra.mxu0 %v2045
      %2058 = vmatmul.bf16.gmra.mxu0 %v2048
      %v2059 = vpop.f32.mrf.mxu0
      %v2060 = vadd.f32 0.0, %v2059
      %v2061 = vpop.f32.mrf.mxu0
      %v2062 = vadd.f32 0.0, %v2061
      %2063 = vdwg.mxu0
      %v2064 = vadd.f32 %v1503, %v1970
      %v2065 = vadd.f32 %v1505, %v1972
      %v2066 = vadd.f32 %v1533, %v2000
      %v2067 = vadd.f32 %v1535, %v2002
      %v2068 = vadd.f32 %v1563, %v2030
      %v2069 = vadd.f32 %v1565, %v2032
      %v2070 = vadd.f32 %v1593, %v2060
      %v2071 = vadd.f32 %v1595, %v2062
      %vm2072 = vcmp.ge.s32.totalorder %v613, 24
      %vm2073 = vcmp.lt.s32.totalorder %v613, 32
      %vm2074 = vmand %vm2072, %vm2073
      %v2075 = vsel %vm2074, 1, 0
      %v2076 = vcvt.s32.f32 %v2075
      %v2077 = vpack.c.bf16 %v2076, %v2076
      %v2078 = vunpack.c.l.bf16 %v2077
      %v2079 = vmul.f32 %v620, %v2078
      %v2080 = vmul.f32 %v621, %v2078
      %v2081 = vmul.f32 %v622, %v2078
      %v2082 = vmul.f32 %v623, %v2078
      %v2083 = vmul.f32 %v624, %v2078
      %v2084 = vmul.f32 %v625, %v2078
      %v2085 = vmul.f32 %v626, %v2078
      %v2086 = vmul.f32 %v627, %v2078
      %v2087 = vpack.c.bf16 %v2079, %v2079
      %v2088 = vpack.c.bf16 %v2080, %v2080
      %v2089 = vpack.c.bf16 %v2081, %v2081
      %v2090 = vpack.c.bf16 %v2082, %v2082
      %v2091 = vpack.c.bf16 %v2083, %v2083
      %v2092 = vpack.c.bf16 %v2084, %v2084
      %v2093 = vpack.c.bf16 %v2085, %v2085
      %v2094 = vpack.c.bf16 %v2086, %v2086
      %v2097 = vunpack.c.l.b16 %v2087
      %v2098 = vunpack.c.l.b16 %v2088
      %v2099 = vpack.c.b16 %v2098, %v2097
      %v2101 = vsel %vm325, %v2099, 0
      %2103 = vmatpush.bf16.xpose.msra.mxu0 0
      %2104 = vmatpush.bf16.xpose.msra.mxu0 0
      %2105 = vmatpush.bf16.xpose.msra.mxu0 0
      %2106 = vmatpush.bf16.xpose.msra.mxu0 0
      %2107 = vmatpush.bf16.xpose.msra.mxu0 0
      %2108 = vmatpush.bf16.xpose.msra.mxu0 0
      %2109 = vmatpush.bf16.xpose.msra.mxu0 0
      %2110 = vmatpush.bf16.xpose.msra.mxu0 %v661
      %2111 = vmatmul.bf16.gmra.mxu0 %v2101
      %v2112 = vpop.f32.mrf.mxu0
      %v2113 = vadd.f32 0.0, %v2112
      %v2114 = vpop.f32.mrf.mxu0
      %v2115 = vadd.f32 0.0, %v2114
      %2116 = vdwg.mxu0
      %v2119 = vunpack.c.l.b16 %v2089
      %v2120 = vunpack.c.l.b16 %v2090
      %v2121 = vpack.c.b16 %v2120, %v2119
      %v2123 = vsel %vm325, %v2121, 0
      %2125 = vmatpush.bf16.xpose.msra.mxu0 0
      %2126 = vmatpush.bf16.xpose.msra.mxu0 0
      %2127 = vmatpush.bf16.xpose.msra.mxu0 0
      %2128 = vmatpush.bf16.xpose.msra.mxu0 0
      %2129 = vmatpush.bf16.xpose.msra.mxu0 0
      %2130 = vmatpush.bf16.xpose.msra.mxu0 0
      %2131 = vmatpush.bf16.xpose.msra.mxu0 0
      %2132 = vmatpush.bf16.xpose.msra.mxu0 %v693
      %2133 = vmatmul.bf16.gmra.mxu0 %v2123
      %v2134 = vpop.f32.mrf.mxu0
      %v2135 = vadd.f32 0.0, %v2134
      %v2136 = vpop.f32.mrf.mxu0
      %v2137 = vadd.f32 0.0, %v2136
      %2138 = vdwg.mxu0
      %v2141 = vunpack.c.l.b16 %v2091
      %v2142 = vunpack.c.l.b16 %v2092
      %v2143 = vpack.c.b16 %v2142, %v2141
      %v2145 = vsel %vm325, %v2143, 0
      %2147 = vmatpush.bf16.xpose.msra.mxu0 0
      %2148 = vmatpush.bf16.xpose.msra.mxu0 0
      %2149 = vmatpush.bf16.xpose.msra.mxu0 0
      %2150 = vmatpush.bf16.xpose.msra.mxu0 0
      %2151 = vmatpush.bf16.xpose.msra.mxu0 0
      %2152 = vmatpush.bf16.xpose.msra.mxu0 0
      %2153 = vmatpush.bf16.xpose.msra.mxu0 0
      %2154 = vmatpush.bf16.xpose.msra.mxu0 %v725
      %2155 = vmatmul.bf16.gmra.mxu0 %v2145
      %v2156 = vpop.f32.mrf.mxu0
      %v2157 = vadd.f32 0.0, %v2156
      %v2158 = vpop.f32.mrf.mxu0
      %v2159 = vadd.f32 0.0, %v2158
      %2160 = vdwg.mxu0
      %v2163 = vunpack.c.l.b16 %v2093
      %v2164 = vunpack.c.l.b16 %v2094
      %v2165 = vpack.c.b16 %v2164, %v2163
      %v2167 = vsel %vm325, %v2165, 0
      %2169 = vmatpush.bf16.xpose.msra.mxu0 0
      %2170 = vmatpush.bf16.xpose.msra.mxu0 0
      %2171 = vmatpush.bf16.xpose.msra.mxu0 0
      %2172 = vmatpush.bf16.xpose.msra.mxu0 0
      %2173 = vmatpush.bf16.xpose.msra.mxu0 0
      %2174 = vmatpush.bf16.xpose.msra.mxu0 0
      %2175 = vmatpush.bf16.xpose.msra.mxu0 0
      %2176 = vmatpush.bf16.xpose.msra.mxu0 %v757
      %2177 = vmatmul.bf16.gmra.mxu0 %v2167
      %v2178 = vpop.f32.mrf.mxu0
      %v2179 = vadd.f32 0.0, %v2178
      %v2180 = vpop.f32.mrf.mxu0
      %v2181 = vadd.f32 0.0, %v2180
      %2182 = vdwg.mxu0
      %v2183 = vmul.f32 %v2113, 0.35355338
      %v2184 = vmul.f32 %v2115, 0.35355338
      %v2185 = vmul.f32 %v2135, 0.35355338
      %v2186 = vmul.f32 %v2137, 0.35355338
      %v2187 = vmul.f32 %v2157, 0.35355338
      %v2188 = vmul.f32 %v2159, 0.35355338
      %v2189 = vmul.f32 %v2179, 0.35355338
      %v2190 = vmul.f32 %v2181, 0.35355338
      %v2191 = vadd.f32 %v2183, %v602
      %v2192 = vadd.f32 %v2184, %v603
      %v2193 = vadd.f32 %v2185, %v602
      %v2194 = vadd.f32 %v2186, %v603
      %v2195 = vadd.f32 %v2187, %v602
      %v2196 = vadd.f32 %v2188, %v603
      %v2197 = vadd.f32 %v2189, %v602
      %v2198 = vadd.f32 %v2190, %v603
      %v2199 = vsel %vm789, %v2191, -inf
      %2200 = vmax.xlane.f32.xlu0 %v2199
      %v2201 = vpop.xlane.xlu0 %2200
      %v2202 = vsel %vm789, %v2192, -inf
      %2203 = vmax.xlane.f32.xlu0 %v2202
      %v2204 = vpop.xlane.xlu0 %2203
      %v2205 = vsel %vm789, %v2193, -inf
      %2206 = vmax.xlane.f32.xlu0 %v2205
      %v2207 = vpop.xlane.xlu0 %2206
      %v2208 = vsel %vm789, %v2194, -inf
      %2209 = vmax.xlane.f32.xlu0 %v2208
      %v2210 = vpop.xlane.xlu0 %2209
      %v2211 = vsel %vm789, %v2195, -inf
      %2212 = vmax.xlane.f32.xlu0 %v2211
      %v2213 = vpop.xlane.xlu0 %2212
      %v2214 = vsel %vm789, %v2196, -inf
      %2215 = vmax.xlane.f32.xlu0 %v2214
      %v2216 = vpop.xlane.xlu0 %2215
      %v2217 = vsel %vm789, %v2197, -inf
      %2218 = vmax.xlane.f32.xlu0 %v2217
      %v2219 = vpop.xlane.xlu0 %2218
      %v2220 = vsel %vm789, %v2198, -inf
      %2221 = vmax.xlane.f32.xlu0 %v2220
      %v2222 = vpop.xlane.xlu0 %2221
      %v2223 = vsub.f32 %v2191, %v2201
      %v2224 = vsub.f32 %v2192, %v2204
      %v2225 = vsub.f32 %v2193, %v2207
      %v2226 = vsub.f32 %v2194, %v2210
      %v2227 = vsub.f32 %v2195, %v2213
      %v2228 = vsub.f32 %v2196, %v2216
      %v2229 = vsub.f32 %v2197, %v2219
      %v2230 = vsub.f32 %v2198, %v2222
      %v2231 = vmul.f32 %v2223, 1.442695
      %v2232 = vpow.pop %v2231
      %v2233 = vmul.f32 %v2224, 1.442695
      %v2234 = vpow.pop %v2233
      %v2235 = vmul.f32 %v2225, 1.442695
      %v2236 = vpow.pop %v2235
      %v2237 = vmul.f32 %v2226, 1.442695
      %v2238 = vpow.pop %v2237
      %v2239 = vmul.f32 %v2227, 1.442695
      %v2240 = vpow.pop %v2239
      %v2241 = vmul.f32 %v2228, 1.442695
      %v2242 = vpow.pop %v2241
      %v2243 = vmul.f32 %v2229, 1.442695
      %v2244 = vpow.pop %v2243
      %v2245 = vmul.f32 %v2230, 1.442695
      %v2246 = vpow.pop %v2245
      %v2247 = vsel %vm789, %v2232, 0.0
      %2248 = vadd.xlane.f32.xlu0 %v2247
      %v2249 = vpop.xlane.xlu0 %2248
      %v2250 = vsel %vm789, %v2234, 0.0
      %2251 = vadd.xlane.f32.xlu0 %v2250
      %v2252 = vpop.xlane.xlu0 %2251
      %v2253 = vsel %vm789, %v2236, 0.0
      %2254 = vadd.xlane.f32.xlu0 %v2253
      %v2255 = vpop.xlane.xlu0 %2254
      %v2256 = vsel %vm789, %v2238, 0.0
      %2257 = vadd.xlane.f32.xlu0 %v2256
      %v2258 = vpop.xlane.xlu0 %2257
      %v2259 = vsel %vm789, %v2240, 0.0
      %2260 = vadd.xlane.f32.xlu0 %v2259
      %v2261 = vpop.xlane.xlu0 %2260
      %v2262 = vsel %vm789, %v2242, 0.0
      %2263 = vadd.xlane.f32.xlu0 %v2262
      %v2264 = vpop.xlane.xlu0 %2263
      %v2265 = vsel %vm789, %v2244, 0.0
      %2266 = vadd.xlane.f32.xlu0 %v2265
      %v2267 = vpop.xlane.xlu0 %2266
      %v2268 = vsel %vm789, %v2246, 0.0
      %2269 = vadd.xlane.f32.xlu0 %v2268
      %v2270 = vpop.xlane.xlu0 %2269
      %v2271 = vrcp.pop %v2249
      %v2272 = vmul.f32 %v2249, %v2271
      %v2273 = vsub.f32 1.0, %v2272
      %v2274 = vmul.f32 %v2271, %v2273
      %v2275 = vadd.f32 %v2271, %v2274
      %vm2276 = vweird.f32 %v2249
      %vm2277 = vweird.f32 %v2271
      %vm2278 = vmor %vm2276, %vm2277
      %v2279 = vsel %vm2278, %v2271, %v2275
      %v2280 = vand.u32 2147483647, %v2249
      %vm2281 = vcmp.eq.f32.partialorder %v2280, 8.507059e+37
      %v2282 = vand.u32 %v2249, 2147483648
      %v2283 = vor.u32 1.1754944e-38, %v2282
      %v2284 = vsel %vm2281, %v2283, %v2279
      %v2285 = vmul.f32 %v2232, %v2284
      %v2286 = vrcp.pop %v2252
      %v2287 = vmul.f32 %v2252, %v2286
      %v2288 = vsub.f32 1.0, %v2287
      %v2289 = vmul.f32 %v2286, %v2288
      %v2290 = vadd.f32 %v2286, %v2289
      %vm2291 = vweird.f32 %v2252
      %vm2292 = vweird.f32 %v2286
      %vm2293 = vmor %vm2291, %vm2292
      %v2294 = vsel %vm2293, %v2286, %v2290
      %v2295 = vand.u32 2147483647, %v2252
      %vm2296 = vcmp.eq.f32.partialorder %v2295, 8.507059e+37
      %v2297 = vand.u32 %v2252, 2147483648
      %v2298 = vor.u32 1.1754944e-38, %v2297
      %v2299 = vsel %vm2296, %v2298, %v2294
      %v2300 = vmul.f32 %v2234, %v2299
      %v2301 = vrcp.pop %v2255
      %v2302 = vmul.f32 %v2255, %v2301
      %v2303 = vsub.f32 1.0, %v2302
      %v2304 = vmul.f32 %v2301, %v2303
      %v2305 = vadd.f32 %v2301, %v2304
      %vm2306 = vweird.f32 %v2255
      %vm2307 = vweird.f32 %v2301
      %vm2308 = vmor %vm2306, %vm2307
      %v2309 = vsel %vm2308, %v2301, %v2305
      %v2310 = vand.u32 2147483647, %v2255
      %vm2311 = vcmp.eq.f32.partialorder %v2310, 8.507059e+37
      %v2312 = vand.u32 %v2255, 2147483648
      %v2313 = vor.u32 1.1754944e-38, %v2312
      %v2314 = vsel %vm2311, %v2313, %v2309
      %v2315 = vmul.f32 %v2236, %v2314
      %v2316 = vrcp.pop %v2258
      %v2317 = vmul.f32 %v2258, %v2316
      %v2318 = vsub.f32 1.0, %v2317
      %v2319 = vmul.f32 %v2316, %v2318
      %v2320 = vadd.f32 %v2316, %v2319
      %vm2321 = vweird.f32 %v2258
      %vm2322 = vweird.f32 %v2316
      %vm2323 = vmor %vm2321, %vm2322
      %v2324 = vsel %vm2323, %v2316, %v2320
      %v2325 = vand.u32 2147483647, %v2258
      %vm2326 = vcmp.eq.f32.partialorder %v2325, 8.507059e+37
      %v2327 = vand.u32 %v2258, 2147483648
      %v2328 = vor.u32 1.1754944e-38, %v2327
      %v2329 = vsel %vm2326, %v2328, %v2324
      %v2330 = vmul.f32 %v2238, %v2329
      %v2331 = vrcp.pop %v2261
      %v2332 = vmul.f32 %v2261, %v2331
      %v2333 = vsub.f32 1.0, %v2332
      %v2334 = vmul.f32 %v2331, %v2333
      %v2335 = vadd.f32 %v2331, %v2334
      %vm2336 = vweird.f32 %v2261
      %vm2337 = vweird.f32 %v2331
      %vm2338 = vmor %vm2336, %vm2337
      %v2339 = vsel %vm2338, %v2331, %v2335
      %v2340 = vand.u32 2147483647, %v2261
      %vm2341 = vcmp.eq.f32.partialorder %v2340, 8.507059e+37
      %v2342 = vand.u32 %v2261, 2147483648
      %v2343 = vor.u32 1.1754944e-38, %v2342
      %v2344 = vsel %vm2341, %v2343, %v2339
      %v2345 = vmul.f32 %v2240, %v2344
      %v2346 = vrcp.pop %v2264
      %v2347 = vmul.f32 %v2264, %v2346
      %v2348 = vsub.f32 1.0, %v2347
      %v2349 = vmul.f32 %v2346, %v2348
      %v2350 = vadd.f32 %v2346, %v2349
      %vm2351 = vweird.f32 %v2264
      %vm2352 = vweird.f32 %v2346
      %vm2353 = vmor %vm2351, %vm2352
      %v2354 = vsel %vm2353, %v2346, %v2350
      %v2355 = vand.u32 2147483647, %v2264
      %vm2356 = vcmp.eq.f32.partialorder %v2355, 8.507059e+37
      %v2357 = vand.u32 %v2264, 2147483648
      %v2358 = vor.u32 1.1754944e-38, %v2357
      %v2359 = vsel %vm2356, %v2358, %v2354
      %v2360 = vmul.f32 %v2242, %v2359
      %v2361 = vrcp.pop %v2267
      %v2362 = vmul.f32 %v2267, %v2361
      %v2363 = vsub.f32 1.0, %v2362
      %v2364 = vmul.f32 %v2361, %v2363
      %v2365 = vadd.f32 %v2361, %v2364
      %vm2366 = vweird.f32 %v2267
      %vm2367 = vweird.f32 %v2361
      %vm2368 = vmor %vm2366, %vm2367
      %v2369 = vsel %vm2368, %v2361, %v2365
      %v2370 = vand.u32 2147483647, %v2267
      %vm2371 = vcmp.eq.f32.partialorder %v2370, 8.507059e+37
      %v2372 = vand.u32 %v2267, 2147483648
      %v2373 = vor.u32 1.1754944e-38, %v2372
      %v2374 = vsel %vm2371, %v2373, %v2369
      %v2375 = vmul.f32 %v2244, %v2374
      %v2376 = vrcp.pop %v2270
      %v2377 = vmul.f32 %v2270, %v2376
      %v2378 = vsub.f32 1.0, %v2377
      %v2379 = vmul.f32 %v2376, %v2378
      %v2380 = vadd.f32 %v2376, %v2379
      %vm2381 = vweird.f32 %v2270
      %vm2382 = vweird.f32 %v2376
      %vm2383 = vmor %vm2381, %vm2382
      %v2384 = vsel %vm2383, %v2376, %v2380
      %v2385 = vand.u32 2147483647, %v2270
      %vm2386 = vcmp.eq.f32.partialorder %v2385, 8.507059e+37
      %v2387 = vand.u32 %v2270, 2147483648
      %v2388 = vor.u32 1.1754944e-38, %v2387
      %v2389 = vsel %vm2386, %v2388, %v2384
      %v2390 = vmul.f32 %v2246, %v2389
      %v2391 = vpack.c.bf16 %v2285, %v2285
      %v2392 = vpack.c.bf16 %v2300, %v2300
      %v2393 = vpack.c.bf16 %v2315, %v2315
      %v2394 = vpack.c.bf16 %v2330, %v2330
      %v2395 = vpack.c.bf16 %v2345, %v2345
      %v2396 = vpack.c.bf16 %v2360, %v2360
      %v2397 = vpack.c.bf16 %v2375, %v2375
      %v2398 = vpack.c.bf16 %v2390, %v2390
      %2400 = vrot.lane.b32.xlu0 %v2078, 64
      %v2401 = vpop.permute.xlu0 %2400
      %v2403 = vmul.f32 %v620, %v2401
      %v2404 = vmul.f32 %v621, %v2401
      %v2405 = vmul.f32 %v622, %v2401
      %v2406 = vmul.f32 %v623, %v2401
      %v2407 = vmul.f32 %v624, %v2401
      %v2408 = vmul.f32 %v625, %v2401
      %v2409 = vmul.f32 %v626, %v2401
      %v2410 = vmul.f32 %v627, %v2401
      %v2411 = vpack.c.bf16 %v2403, %v2403
      %v2412 = vpack.c.bf16 %v2404, %v2404
      %v2413 = vpack.c.bf16 %v2405, %v2405
      %v2414 = vpack.c.bf16 %v2406, %v2406
      %v2415 = vpack.c.bf16 %v2407, %v2407
      %v2416 = vpack.c.bf16 %v2408, %v2408
      %v2417 = vpack.c.bf16 %v2409, %v2409
      %v2418 = vpack.c.bf16 %v2410, %v2410
      %v2421 = vunpack.c.l.b16 %v2391
      %v2422 = vunpack.c.l.b16 %v2392
      %v2423 = vpack.c.b16 %v2422, %v2421
      %v2426 = vunpack.c.l.b16 %v2411
      %v2427 = vunpack.c.l.b16 %v2412
      %v2428 = vpack.c.b16 %v2427, %v2426
      %2429 = vrot.lane.b32.xlu0 %v2428, 64
      %v2430 = vpop.permute.xlu0 %2429
      %v2433 = vsel %vm789, %v2423, 0
      %2435 = vmatpush.bf16.msra.mxu0 0
      %2436 = vmatpush.bf16.msra.mxu0 0
      %2437 = vmatpush.bf16.msra.mxu0 0
      %2438 = vmatpush.bf16.msra.mxu0 0
      %2439 = vmatpush.bf16.msra.mxu0 0
      %2440 = vmatpush.bf16.msra.mxu0 0
      %2441 = vmatpush.bf16.msra.mxu0 0
      %2442 = vmatpush.bf16.msra.mxu0 %v2430
      %2443 = vmatmul.bf16.gmra.mxu0 %v2433
      %v2444 = vpop.f32.mrf.mxu0
      %v2445 = vadd.f32 0.0, %v2444
      %v2446 = vpop.f32.mrf.mxu0
      %v2447 = vadd.f32 0.0, %v2446
      %2448 = vdwg.mxu0
      %v2451 = vunpack.c.l.b16 %v2393
      %v2452 = vunpack.c.l.b16 %v2394
      %v2453 = vpack.c.b16 %v2452, %v2451
      %v2456 = vunpack.c.l.b16 %v2413
      %v2457 = vunpack.c.l.b16 %v2414
      %v2458 = vpack.c.b16 %v2457, %v2456
      %2459 = vrot.lane.b32.xlu0 %v2458, 64
      %v2460 = vpop.permute.xlu0 %2459
      %v2463 = vsel %vm789, %v2453, 0
      %2465 = vmatpush.bf16.msra.mxu0 0
      %2466 = vmatpush.bf16.msra.mxu0 0
      %2467 = vmatpush.bf16.msra.mxu0 0
      %2468 = vmatpush.bf16.msra.mxu0 0
      %2469 = vmatpush.bf16.msra.mxu0 0
      %2470 = vmatpush.bf16.msra.mxu0 0
      %2471 = vmatpush.bf16.msra.mxu0 0
      %2472 = vmatpush.bf16.msra.mxu0 %v2460
      %2473 = vmatmul.bf16.gmra.mxu0 %v2463
      %v2474 = vpop.f32.mrf.mxu0
      %v2475 = vadd.f32 0.0, %v2474
      %v2476 = vpop.f32.mrf.mxu0
      %v2477 = vadd.f32 0.0, %v2476
      %2478 = vdwg.mxu0
      %v2481 = vunpack.c.l.b16 %v2395
      %v2482 = vunpack.c.l.b16 %v2396
      %v2483 = vpack.c.b16 %v2482, %v2481
      %v2486 = vunpack.c.l.b16 %v2415
      %v2487 = vunpack.c.l.b16 %v2416
      %v2488 = vpack.c.b16 %v2487, %v2486
      %2489 = vrot.lane.b32.xlu0 %v2488, 64
      %v2490 = vpop.permute.xlu0 %2489
      %v2493 = vsel %vm789, %v2483, 0
      %2495 = vmatpush.bf16.msra.mxu0 0
      %2496 = vmatpush.bf16.msra.mxu0 0
      %2497 = vmatpush.bf16.msra.mxu0 0
      %2498 = vmatpush.bf16.msra.mxu0 0
      %2499 = vmatpush.bf16.msra.mxu0 0
      %2500 = vmatpush.bf16.msra.mxu0 0
      %2501 = vmatpush.bf16.msra.mxu0 0
      %2502 = vmatpush.bf16.msra.mxu0 %v2490
      %2503 = vmatmul.bf16.gmra.mxu0 %v2493
      %v2504 = vpop.f32.mrf.mxu0
      %v2505 = vadd.f32 0.0, %v2504
      %v2506 = vpop.f32.mrf.mxu0
      %v2507 = vadd.f32 0.0, %v2506
      %2508 = vdwg.mxu0
      %v2511 = vunpack.c.l.b16 %v2397
      %v2512 = vunpack.c.l.b16 %v2398
      %v2513 = vpack.c.b16 %v2512, %v2511
      %v2516 = vunpack.c.l.b16 %v2417
      %v2517 = vunpack.c.l.b16 %v2418
      %v2518 = vpack.c.b16 %v2517, %v2516
      %2519 = vrot.lane.b32.xlu0 %v2518, 64
      %v2520 = vpop.permute.xlu0 %2519
      %v2523 = vsel %vm789, %v2513, 0
      %2525 = vmatpush.bf16.msra.mxu0 0
      %2526 = vmatpush.bf16.msra.mxu0 0
      %2527 = vmatpush.bf16.msra.mxu0 0
      %2528 = vmatpush.bf16.msra.mxu0 0
      %2529 = vmatpush.bf16.msra.mxu0 0
      %2530 = vmatpush.bf16.msra.mxu0 0
      %2531 = vmatpush.bf16.msra.mxu0 0
      %2532 = vmatpush.bf16.msra.mxu0 %v2520
      %2533 = vmatmul.bf16.gmra.mxu0 %v2523
      %v2534 = vpop.f32.mrf.mxu0
      %v2535 = vadd.f32 0.0, %v2534
      %v2536 = vpop.f32.mrf.mxu0
      %v2537 = vadd.f32 0.0, %v2536
      %2538 = vdwg.mxu0
      %v2539 = vadd.f32 %v2064, %v2445
      %v2540 = vadd.f32 %v2065, %v2447
      %v2541 = vadd.f32 %v2066, %v2475
      %v2542 = vadd.f32 %v2067, %v2477
      %v2543 = vadd.f32 %v2068, %v2505
      %v2544 = vadd.f32 %v2069, %v2507
      %v2545 = vadd.f32 %v2070, %v2535
      %v2546 = vadd.f32 %v2071, %v2537
      %v2547 = vpack.c.bf16 %v2540, %v2539
      %v2548 = vpack.c.bf16 %v2542, %v2541
      %v2549 = vpack.c.bf16 %v2544, %v2543
      %v2550 = vpack.c.bf16 %v2546, %v2545
      %v2551 = vld [vmem:[%s5] sm:$0xf]
      %v2552 = vld [vmem:[%s5 + $0x4] sm:$0xf]
      %v2553 = vld [vmem:[%s5 + $0x8] sm:$0xf]
      %v2554 = vld [vmem:[%s5 + $0xc] sm:$0xf]
      %v2555 = vld [vmem:[%s6] sm:$0x1]
      %v2557 = vperm.slane %v2555, 0
      %v2563 = vunpack.c.l.b16 %v2551
      %v2564 = vunpack.c.l.b16 %v2552
      %v2565 = vunpack.c.l.b16 %v2553
      %v2566 = vunpack.c.l.b16 %v2554
      %v2567 = vpack.c.b16 %v2564, %v2563
      %v2568 = vpack.c.b16 %v2566, %v2565
      %v2572 = vsel %vm325, %v2547, 0
      %v2575 = vsel %vm325, %v2548, 0
      %v2578 = vsel %vm325, %v2549, 0
      %v2581 = vsel %vm325, %v2550, 0
      %2583 = vmatpush.bf16.msra.mxu0 0
      %2584 = vmatpush.bf16.msra.mxu0 0
      %2585 = vmatpush.bf16.msra.mxu0 0
      %2586 = vmatpush.bf16.msra.mxu0 0
      %2587 = vmatpush.bf16.msra.mxu0 0
      %2588 = vmatpush.bf16.msra.mxu0 0
      %2589 = vmatpush.bf16.msra.mxu0 %v2568
      %2590 = vmatpush.bf16.msra.mxu0 %v2567
      %2591 = vmatmul.bf16.gmra.mxu0 %v2572
      %v2592 = vpop.f32.mrf.mxu0
      %v2593 = vadd.f32 %v2557, %v2592
      %v2594 = vpop.f32.mrf.mxu0
      %v2595 = vadd.f32 %v2557, %v2594
      %2596 = vmatmul.bf16.gmra.mxu0 %v2575
      %v2597 = vpop.f32.mrf.mxu0
      %v2598 = vadd.f32 %v2557, %v2597
      %v2599 = vpop.f32.mrf.mxu0
      %v2600 = vadd.f32 %v2557, %v2599
      %2601 = vmatmul.bf16.gmra.mxu0 %v2578
      %v2602 = vpop.f32.mrf.mxu0
      %v2603 = vadd.f32 %v2557, %v2602
      %v2604 = vpop.f32.mrf.mxu0
      %v2605 = vadd.f32 %v2557, %v2604
      %2606 = vmatmul.bf16.gmra.mxu0 %v2581
      %v2607 = vpop.f32.mrf.mxu0
      %v2608 = vadd.f32 %v2557, %v2607
      %v2609 = vpop.f32.mrf.mxu0
      %v2610 = vadd.f32 %v2557, %v2609
      %2611 = vdwg.mxu0
      %v2612 = vadd.f32 %v315, %v2593
      %v2613 = vadd.f32 %v316, %v2595
      %v2614 = vadd.f32 %v317, %v2598
      %v2615 = vadd.f32 %v318, %v2600
      %v2616 = vadd.f32 %v319, %v2603
      %v2617 = vadd.f32 %v320, %v2605
      %v2618 = vadd.f32 %v321, %v2608
      %v2619 = vadd.f32 %v322, %v2610
      %2620 = vst.msk [vmem:[%s312] sm:$0xff] %vm325, %v2612
      %2621 = vst.msk [vmem:[%s312 + $0x8] sm:$0xff] %vm325, %v2613
      %2622 = vst.msk [vmem:[%s312 + $0x10] sm:$0xff] %vm325, %v2614
      %2623 = vst.msk [vmem:[%s312 + $0x18] sm:$0xff] %vm325, %v2615
      %2624 = vst.msk [vmem:[%s312 + $0x20] sm:$0xff] %vm325, %v2616
      %2625 = vst.msk [vmem:[%s312 + $0x28] sm:$0xff] %vm325, %v2617
      %2626 = vst.msk [vmem:[%s312 + $0x30] sm:$0xff] %vm325, %v2618
      %2627 = vst.msk [vmem:[%s312 + $0x38] sm:$0xff] %vm325, %v2619
      %s2628 = smul.u32 4, %s19
      %p2629 = scmp.lt.s32.totalorder %s2628, 7
      %s2630 = scalar_select %p2629, %s2628, 7
      %s2631 = smul.addr %s2630, 2
      %s2632 = smul.addr %s2631, 8
      %s2633 = scalar_lea.vmem %s8, %s2632
      // Predicated region
      $region53: #{run.4} parent=51 // pred_check
        %p2634 = pneg %p210
      $region54: #{run.4} parent=51 // pred_check_branch
        %2636 = sbr.rel (%p2634) target = $region56
      $region55: #{run.4} parent=51 // pred_region
        %s2637 = smul.u32 4, %s19
      $region56: #{run.4} parent=51 // pred_fallthru
        _
    $region52: #{run.4} parent=5 // pred_fallthru
      _
    %p2638 = scmp.le.s32.totalorder 2, %s14
    // Predicated region
    $region57: #{run.4} parent=5 // pred_check
      %p2639 = pneg %p2638
    $region58: #{run.4} parent=5 // pred_check_branch
      %2641 = sbr.rel (%p2639) target = $region60
    $region59: #{run.4} parent=5 // pred_region
      %s2642 = ssub.s32 %s14, 2
      // Predicated region
      $region61: #{run.4} parent=59 // pred_check
        %p2643 = pneg %p216
      $region62: #{run.4} parent=59 // pred_check_branch
        %2645 = sbr.rel (%p2643) target = $region64
      $region63: #{run.4} parent=59 // pred_region
        %s2646 = smul.u32 4, %s20
        %p2647 = scmp.lt.s32.totalorder %s2646, 7
        %s2648 = scalar_select %p2647, %s2646, 7
        %s2649 = smul.addr %s2648, 2
        %s2650 = smul.addr %s2649, 8
        %s2651 = scalar_lea.vmem %s8, %s2650
      $region64: #{run.4} parent=59 // pred_fallthru
        _
    $region60: #{run.4} parent=5 // pred_fallthru
      _
  $region6: #{run.4} parent=0 // loop_footer
    %s18 = sadd.s32 1, %s14
  $region7: #{run.4} parent=0 // loop_footer_branch
    %13 = sbr.rel target = $region3
  $region8: #{run.4} parent=0 // loop_exit
    _

// kernel: run.6
$region0: #{run.6}
  #allocation0 [shape = 'u32[]', space=smem, size = 0x4, offset = 0x4, fixed_abs, tag = 'smem constant byte address 0x4 - core index']
  #allocation1 [shape = 'u32[72,128]{1,0:T(1,128)}', space=vmem, size = 0x9000, scoped, tag = 'internal scratch']
  %s0 = inlined_call_operand.vmem [shape: f32[8,16,32], index: 0, kind: input, shape index: {}]
  %s1 = inlined_call_operand.vmem [shape: f32[1,1,32], index: 1, kind: input, shape index: {}]
  %s2 = inlined_call_operand.vmem [shape: f32[1,1,32], index: 2, kind: input, shape index: {}]
  %s3 = inlined_call_operand.vmem [shape: bf16[32,96], index: 3, kind: input, shape index: {}]
  %s4 = inlined_call_operand.vmem [shape: f32[1,96], index: 4, kind: input, shape index: {}]
  %s5 = inlined_call_operand.vmem [shape: bf16[32,32], index: 5, kind: input, shape index: {}]
  %s6 = inlined_call_operand.vmem [shape: f32[1,32], index: 6, kind: input, shape index: {}]
  %s7 = inlined_call_operand.vmem [shape: f32[4,16,16], index: 7, kind: input, shape index: {}]
  %s8 = inlined_call_operand.vmem [shape: f32[4,16,16], index: 8, kind: input, shape index: {}]
  %s9 = inlined_call_operand.vmem [shape: f32[8,16,32], index: 9, kind: output, shape index: {}]
  %s10 = sld [smem:[#allocation0]]
  $region69: #{run.6} parent=0
    _
  %s12 = ssub.s32 1, %s10
  %s13 = scalar_select 0, %s12, %s10
  loop: start=0, step=1, limit=4
  $region2: #{run.6} parent=0 // loop_pre_header
    _
  $region3: #{run.6} parent=0 // loop_header
    %s15 = sphi 0, %s19
    %p16 = scmp.ge.s32.totalorder %s15, 4
    %s25 = sphi 0, %s27
    %s28 = sphi 0, %s25
    %s29 = sphi 0, %s28
    %s45 = sphi 0, %s29
    %s49 = sphi 0, %s49
    %s51 = sphi 0, %s49
    %s52 = sphi 0, %s51
    %s66 = sphi 0, %s52
    %s70 = sphi 0, %s70
    %s72 = sphi 0, %s70
    %s73 = sphi 0, %s72
    %s87 = sphi 0, %s73
    %s91 = sphi 0, %s91
    %s93 = sphi 0, %s91
    %s94 = sphi 0, %s93
    %s108 = sphi 0, %s94
    %s112 = sphi 0, %s112
    %s114 = sphi 0, %s112
    %s115 = sphi 0, %s114
    %s129 = sphi 0, %s115
    %s133 = sphi 0, %s133
    %s135 = sphi 0, %s133
    %s136 = sphi 0, %s135
    %s150 = sphi 0, %s136
    %s154 = sphi 0, %s154
    %s156 = sphi 0, %s154
    %s157 = sphi 0, %s156
    %s171 = sphi 0, %s157
    %s175 = sphi 0, %s175
    %s177 = sphi 0, %s175
    %s178 = sphi 0, %s177
    %s192 = sphi 0, %s178
    %s196 = sphi 0, %s196
    %s198 = sphi 0, %s196
    %s199 = sphi 0, %s198
    %s213 = sphi 0, %s199
    %s219 = sphi 0, %s221
    %s222 = sphi 0, %s219
    %s223 = sphi 0, %s222
    %s239 = sphi 0, %s223
  $region4: #{run.6} parent=0 // loop_header_branch
    %18 = sbr.rel (%p16) target = $region8
  $region5: #{run.6} parent=0 // loop_body
    %s20 = ssub.s32 %s15, 1
    %s21 = ssub.s32 %s15, 2
    %s22 = sadd.s32 %s15, 1
    %s23 = ssub.s32 %s15, %s22
    %p24 = scmp.eq.s32.totalorder %s23, 0
    %s26 = sadd.s32 %s25, 1
    %s27 = scalar_select %p24, %s25, %s26
    %p30 = pneg %p24
    %p31 = scmp.eq.s32.totalorder %s15, 1
    %p32 = por %p30, %p31
    %p33 = scmp.ne.s32.totalorder %s25, %s28
    %p34 = scmp.eq.s32.totalorder %s15, 0
    %p35 = por %p33, %p34
    %p36 = scmp.ne.s32.totalorder %s25, %s28
    %p37 = scmp.eq.s32.totalorder %s20, 1
    %p38 = por %p36, %p37
    %p39 = scmp.ne.s32.totalorder %s28, %s29
    %p40 = scmp.eq.s32.totalorder %s20, 0
    %p41 = por %p39, %p40
    %p42 = scmp.ne.s32.totalorder %s28, %s29
    %p43 = scmp.eq.s32.totalorder %s21, 1
    %p44 = por %p42, %p43
    %p46 = scmp.ne.s32.totalorder %s29, %s45
    %p47 = scmp.eq.s32.totalorder %s21, 0
    %p48 = por %p46, %p47
    %s50 = sadd.s32 %s49, 1
    %p53 = scmp.eq.s32.totalorder %s15, 1
    %p54 = scmp.ne.s32.totalorder %s49, %s51
    %p55 = scmp.eq.s32.totalorder %s15, 0
    %p56 = por %p54, %p55
    %p57 = scmp.ne.s32.totalorder %s49, %s51
    %p58 = scmp.eq.s32.totalorder %s20, 1
    %p59 = por %p57, %p58
    %p60 = scmp.ne.s32.totalorder %s51, %s52
    %p61 = scmp.eq.s32.totalorder %s20, 0
    %p62 = por %p60, %p61
    %p63 = scmp.ne.s32.totalorder %s51, %s52
    %p64 = scmp.eq.s32.totalorder %s21, 1
    %p65 = por %p63, %p64
    %p67 = scmp.ne.s32.totalorder %s52, %s66
    %p68 = scmp.eq.s32.totalorder %s21, 0
    %p69 = por %p67, %p68
    %s71 = sadd.s32 %s70, 1
    %p74 = scmp.eq.s32.totalorder %s15, 1
    %p75 = scmp.ne.s32.totalorder %s70, %s72
    %p76 = scmp.eq.s32.totalorder %s15, 0
    %p77 = por %p75, %p76
    %p78 = scmp.ne.s32.totalorder %s70, %s72
    %p79 = scmp.eq.s32.totalorder %s20, 1
    %p80 = por %p78, %p79
    %p81 = scmp.ne.s32.totalorder %s72, %s73
    %p82 = scmp.eq.s32.totalorder %s20, 0
    %p83 = por %p81, %p82
    %p84 = scmp.ne.s32.totalorder %s72, %s73
    %p85 = scmp.eq.s32.totalorder %s21, 1
    %p86 = por %p84, %p85
    %p88 = scmp.ne.s32.totalorder %s73, %s87
    %p89 = scmp.eq.s32.totalorder %s21, 0
    %p90 = por %p88, %p89
    %s92 = sadd.s32 %s91, 1
    %p95 = scmp.eq.s32.totalorder %s15, 1
    %p96 = scmp.ne.s32.totalorder %s91, %s93
    %p97 = scmp.eq.s32.totalorder %s15, 0
    %p98 = por %p96, %p97
    %p99 = scmp.ne.s32.totalorder %s91, %s93
    %p100 = scmp.eq.s32.totalorder %s20, 1
    %p101 = por %p99, %p100
    %p102 = scmp.ne.s32.totalorder %s93, %s94
    %p103 = scmp.eq.s32.totalorder %s20, 0
    %p104 = por %p102, %p103
    %p105 = scmp.ne.s32.totalorder %s93, %s94
    %p106 = scmp.eq.s32.totalorder %s21, 1
    %p107 = por %p105, %p106
    %p109 = scmp.ne.s32.totalorder %s94, %s108
    %p110 = scmp.eq.s32.totalorder %s21, 0
    %p111 = por %p109, %p110
    %s113 = sadd.s32 %s112, 1
    %p116 = scmp.eq.s32.totalorder %s15, 1
    %p117 = scmp.ne.s32.totalorder %s112, %s114
    %p118 = scmp.eq.s32.totalorder %s15, 0
    %p119 = por %p117, %p118
    %p120 = scmp.ne.s32.totalorder %s112, %s114
    %p121 = scmp.eq.s32.totalorder %s20, 1
    %p122 = por %p120, %p121
    %p123 = scmp.ne.s32.totalorder %s114, %s115
    %p124 = scmp.eq.s32.totalorder %s20, 0
    %p125 = por %p123, %p124
    %p126 = scmp.ne.s32.totalorder %s114, %s115
    %p127 = scmp.eq.s32.totalorder %s21, 1
    %p128 = por %p126, %p127
    %p130 = scmp.ne.s32.totalorder %s115, %s129
    %p131 = scmp.eq.s32.totalorder %s21, 0
    %p132 = por %p130, %p131
    %s134 = sadd.s32 %s133, 1
    %p137 = scmp.eq.s32.totalorder %s15, 1
    %p138 = scmp.ne.s32.totalorder %s133, %s135
    %p139 = scmp.eq.s32.totalorder %s15, 0
    %p140 = por %p138, %p139
    %p141 = scmp.ne.s32.totalorder %s133, %s135
    %p142 = scmp.eq.s32.totalorder %s20, 1
    %p143 = por %p141, %p142
    %p144 = scmp.ne.s32.totalorder %s135, %s136
    %p145 = scmp.eq.s32.totalorder %s20, 0
    %p146 = por %p144, %p145
    %p147 = scmp.ne.s32.totalorder %s135, %s136
    %p148 = scmp.eq.s32.totalorder %s21, 1
    %p149 = por %p147, %p148
    %p151 = scmp.ne.s32.totalorder %s136, %s150
    %p152 = scmp.eq.s32.totalorder %s21, 0
    %p153 = por %p151, %p152
    %s155 = sadd.s32 %s154, 1
    %p158 = scmp.eq.s32.totalorder %s15, 1
    %p159 = scmp.ne.s32.totalorder %s154, %s156
    %p160 = scmp.eq.s32.totalorder %s15, 0
    %p161 = por %p159, %p160
    %p162 = scmp.ne.s32.totalorder %s154, %s156
    %p163 = scmp.eq.s32.totalorder %s20, 1
    %p164 = por %p162, %p163
    %p165 = scmp.ne.s32.totalorder %s156, %s157
    %p166 = scmp.eq.s32.totalorder %s20, 0
    %p167 = por %p165, %p166
    %p168 = scmp.ne.s32.totalorder %s156, %s157
    %p169 = scmp.eq.s32.totalorder %s21, 1
    %p170 = por %p168, %p169
    %p172 = scmp.ne.s32.totalorder %s157, %s171
    %p173 = scmp.eq.s32.totalorder %s21, 0
    %p174 = por %p172, %p173
    %s176 = sadd.s32 %s175, 1
    %p179 = scmp.eq.s32.totalorder %s15, 1
    %p180 = scmp.ne.s32.totalorder %s175, %s177
    %p181 = scmp.eq.s32.totalorder %s15, 0
    %p182 = por %p180, %p181
    %p183 = scmp.ne.s32.totalorder %s175, %s177
    %p184 = scmp.eq.s32.totalorder %s20, 1
    %p185 = por %p183, %p184
    %p186 = scmp.ne.s32.totalorder %s177, %s178
    %p187 = scmp.eq.s32.totalorder %s20, 0
    %p188 = por %p186, %p187
    %p189 = scmp.ne.s32.totalorder %s177, %s178
    %p190 = scmp.eq.s32.totalorder %s21, 1
    %p191 = por %p189, %p190
    %p193 = scmp.ne.s32.totalorder %s178, %s192
    %p194 = scmp.eq.s32.totalorder %s21, 0
    %p195 = por %p193, %p194
    %s197 = sadd.s32 %s196, 1
    %p200 = scmp.eq.s32.totalorder %s15, 1
    %p201 = scmp.ne.s32.totalorder %s196, %s198
    %p202 = scmp.eq.s32.totalorder %s15, 0
    %p203 = por %p201, %p202
    %p204 = scmp.ne.s32.totalorder %s196, %s198
    %p205 = scmp.eq.s32.totalorder %s20, 1
    %p206 = por %p204, %p205
    %p207 = scmp.ne.s32.totalorder %s198, %s199
    %p208 = scmp.eq.s32.totalorder %s20, 0
    %p209 = por %p207, %p208
    %p210 = scmp.ne.s32.totalorder %s198, %s199
    %p211 = scmp.eq.s32.totalorder %s21, 1
    %p212 = por %p210, %p211
    %p214 = scmp.ne.s32.totalorder %s199, %s213
    %p215 = scmp.eq.s32.totalorder %s21, 0
    %p216 = por %p214, %p215
    %s217 = ssub.s32 %s15, %s22
    %p218 = scmp.eq.s32.totalorder %s217, 0
    %s220 = sadd.s32 %s219, 1
    %s221 = scalar_select %p218, %s219, %s220
    %p224 = pneg %p218
    %p225 = scmp.eq.s32.totalorder %s15, 1
    %p226 = por %p224, %p225
    %p227 = scmp.ne.s32.totalorder %s219, %s222
    %p228 = scmp.eq.s32.totalorder %s15, 0
    %p229 = por %p227, %p228
    %p230 = scmp.ne.s32.totalorder %s219, %s222
    %p231 = scmp.eq.s32.totalorder %s20, 1
    %p232 = por %p230, %p231
    %p233 = scmp.ne.s32.totalorder %s222, %s223
    %p234 = scmp.eq.s32.totalorder %s20, 0
    %p235 = por %p233, %p234
    %p236 = scmp.ne.s32.totalorder %s222, %s223
    %p237 = scmp.eq.s32.totalorder %s21, 1
    %p238 = por %p236, %p237
    %p240 = scmp.ne.s32.totalorder %s223, %s239
    %p241 = scmp.eq.s32.totalorder %s21, 0
    %p242 = por %p240, %p241
    %p243 = scmp.le.s32.totalorder 1, %s15
    %p244 = scmp.lt.s32.totalorder %s15, 3
    %p245 = pnand %p243, %p244
    %p246 = pneg %p245
    // Predicated region
    $region9: #{run.6} parent=5 // pred_check
      _
    $region10: #{run.6} parent=5 // pred_check_branch
      %248 = sbr.rel (%p245) target = $region12
    $region11: #{run.6} parent=5 // pred_region
      %s249 = ssub.s32 %s15, 1
      // Predicated region
      $region13: #{run.6} parent=11 // pred_check
        %p250 = pneg %p62
      $region14: #{run.6} parent=11 // pred_check_branch
        %252 = sbr.rel (%p250) target = $region16
      $region15: #{run.6} parent=11 // pred_region
        _
      $region16: #{run.6} parent=11 // pred_fallthru
        _
      // Predicated region
      $region17: #{run.6} parent=11 // pred_check
        %p253 = pneg %p83
      $region18: #{run.6} parent=11 // pred_check_branch
        %255 = sbr.rel (%p253) target = $region20
      $region19: #{run.6} parent=11 // pred_region
        _
      $region20: #{run.6} parent=11 // pred_fallthru
        _
      // Predicated region
      $region21: #{run.6} parent=11 // pred_check
        %p256 = pneg %p104
      $region22: #{run.6} parent=11 // pred_check_branch
        %258 = sbr.rel (%p256) target = $region24
      $region23: #{run.6} parent=11 // pred_region
        _
      $region24: #{run.6} parent=11 // pred_fallthru
        _
      // Predicated region
      $region25: #{run.6} parent=11 // pred_check
        %p259 = pneg %p125
      $region26: #{run.6} parent=11 // pred_check_branch
        %261 = sbr.rel (%p259) target = $region28
      $region27: #{run.6} parent=11 // pred_region
        _
      $region28: #{run.6} parent=11 // pred_fallthru
        _
      // Predicated region
      $region29: #{run.6} parent=11 // pred_check
        %p262 = pneg %p146
      $region30: #{run.6} parent=11 // pred_check_branch
        %264 = sbr.rel (%p262) target = $region32
      $region31: #{run.6} parent=11 // pred_region
        _
      $region32: #{run.6} parent=11 // pred_fallthru
        _
      // Predicated region
      $region33: #{run.6} parent=11 // pred_check
        %p265 = pneg %p167
      $region34: #{run.6} parent=11 // pred_check_branch
        %267 = sbr.rel (%p265) target = $region36
      $region35: #{run.6} parent=11 // pred_region
        _
      $region36: #{run.6} parent=11 // pred_fallthru
        _
      // Predicated region
      $region37: #{run.6} parent=11 // pred_check
        %p268 = pneg %p188
      $region38: #{run.6} parent=11 // pred_check_branch
        %270 = sbr.rel (%p268) target = $region40
      $region39: #{run.6} parent=11 // pred_region
        _
      $region40: #{run.6} parent=11 // pred_fallthru
        _
      // Predicated region
      $region41: #{run.6} parent=11 // pred_check
        %p271 = pneg %p209
      $region42: #{run.6} parent=11 // pred_check_branch
        %273 = sbr.rel (%p271) target = $region44
      $region43: #{run.6} parent=11 // pred_region
        _
      $region44: #{run.6} parent=11 // pred_fallthru
        _
    $region12: #{run.6} parent=5 // pred_fallthru
      _
    %p274 = scmp.lt.s32.totalorder %s15, 2
    // Predicated region
    $region45: #{run.6} parent=5 // pred_check
      %p275 = pneg %p274
    $region46: #{run.6} parent=5 // pred_check_branch
      %277 = sbr.rel (%p275) target = $region48
    $region47: #{run.6} parent=5 // pred_region
      // Predicated region
      $region49: #{run.6} parent=47 // pred_check
        %p278 = pneg %p35
      $region50: #{run.6} parent=47 // pred_check_branch
        %280 = sbr.rel (%p278) target = $region52
      $region51: #{run.6} parent=47 // pred_region
        %s281 = smul.u32 4, %s15
        %p282 = scmp.lt.s32.totalorder %s281, 7
        %s283 = scalar_select %p282, %s281, 7
        %s284 = smul.addr %s283, 2
        %s285 = smul.addr %s284, 8
        %s286 = scalar_lea.vmem %s0, %s285
        %s287 = smul.u32 4, %s15
      $region52: #{run.6} parent=47 // pred_fallthru
        _
    $region48: #{run.6} parent=5 // pred_fallthru
      _
    %p288 = scmp.le.s32.totalorder 1, %s15
    %p289 = scmp.lt.s32.totalorder %s15, 3
    %p290 = pnand %p288, %p289
    %p291 = pneg %p290
    // Predicated region
    $region53: #{run.6} parent=5 // pred_check
      _
    $region54: #{run.6} parent=5 // pred_check_branch
      %293 = sbr.rel (%p290) target = $region56
    $region55: #{run.6} parent=5 // pred_region
      %s294 = ssub.s32 %s15, 1
      %s295 = smul.u32 4, %s20
      %p296 = scmp.lt.s32.totalorder %s295, 7
      %s297 = scalar_select %p296, %s295, 7
      %s298 = smul.addr %s297, 2
      %s299 = smul.addr %s298, 8
      %s300 = scalar_lea.vmem %s0, %s299
      %p301 = pneg %p41
      %p302 = pneg %p38
      %p303 = pneg %p62
      %p304 = pneg %p59
      %p305 = pneg %p83
      %p306 = pneg %p80
      %p307 = pneg %p104
      %p308 = pneg %p101
      %p309 = pneg %p125
      %p310 = pneg %p122
      %p311 = pneg %p146
      %p312 = pneg %p143
      %p313 = pneg %p167
      %p314 = pneg %p164
      %p315 = pneg %p188
      %p316 = pneg %p185
      %p317 = pneg %p209
      %p318 = pneg %p206
      %p319 = pneg %p235
      %p320 = pneg %p232
      %s321 = smul.u32 4, %s20
      %p322 = scmp.lt.s32.totalorder %s321, 7
      %s323 = scalar_select %p322, %s321, 7
      %s324 = smul.addr %s323, 2
      %s325 = smul.addr %s324, 8
      %s326 = scalar_lea.vmem %s9, %s325
      %s327 = smul.u32 4, %s20
      %p328 = scmp.lt.s32.totalorder %s327, 7
      %s329 = scalar_select %p328, %s327, 7
      %s330 = smul.addr %s329, 2
      %s331 = smul.addr %s330, 8
      %s332 = scalar_lea.vmem %s0, %s331
      %s333 = smul.u32 4, %s20
      %s334 = smul.u32 4, %s20
      %p335 = scmp.lt.s32.totalorder %s334, 7
      %s336 = scalar_select %p335, %s334, 7
      %s337 = smul.addr %s336, 2
      %s338 = smul.addr %s337, 8
      %s339 = scalar_lea.vmem %s9, %s338
      %s340 = smul.u32 4, %s20
      %v342 = vld [vmem:[%s332] sm:$0xff]
      %v343 = vld [vmem:[%s332 + $0x8] sm:$0xff]
      %v344 = vld [vmem:[%s332 + $0x10] sm:$0xff]
      %v345 = vld [vmem:[%s332 + $0x18] sm:$0xff]
      %v346 = vld [vmem:[%s332 + $0x20] sm:$0xff]
      %v347 = vld [vmem:[%s332 + $0x28] sm:$0xff]
      %v348 = vld [vmem:[%s332 + $0x30] sm:$0xff]
      %v349 = vld [vmem:[%s332 + $0x38] sm:$0xff]
      %v350 = vld [vmem:[%s1] sm:$0x1]
      %v351 = vld [vmem:[%s2] sm:$0x1]
      %vm352 = vcmask 261120
      %v353 = vsel %vm352, %v342, 0.0
      %354 = vadd.xlane.f32.xlu0 %v353
      %v355 = vpop.xlane.xlu0 %354
      %v356 = vsel %vm352, %v343, 0.0
      %357 = vadd.xlane.f32.xlu0 %v356
      %v358 = vpop.xlane.xlu0 %357
      %v359 = vsel %vm352, %v344, 0.0
      %360 = vadd.xlane.f32.xlu0 %v359
      %v361 = vpop.xlane.xlu0 %360
      %v362 = vsel %vm352, %v345, 0.0
      %363 = vadd.xlane.f32.xlu0 %v362
      %v364 = vpop.xlane.xlu0 %363
      %v365 = vsel %vm352, %v346, 0.0
      %366 = vadd.xlane.f32.xlu0 %v365
      %v367 = vpop.xlane.xlu0 %366
      %v368 = vsel %vm352, %v347, 0.0
      %369 = vadd.xlane.f32.xlu0 %v368
      %v370 = vpop.xlane.xlu0 %369
      %v371 = vsel %vm352, %v348, 0.0
      %372 = vadd.xlane.f32.xlu0 %v371
      %v373 = vpop.xlane.xlu0 %372
      %v374 = vsel %vm352, %v349, 0.0
      %375 = vadd.xlane.f32.xlu0 %v374
      %v376 = vpop.xlane.xlu0 %375
      %v377 = vrcp.pop 32.0
      %v378 = vmul.f32 32.0, %v377
      %v379 = vsub.f32 1.0, %v378
      %v380 = vmul.f32 %v377, %v379
      %v381 = vadd.f32 %v377, %v380
      %vm382 = vweird.f32 %v377
      %v383 = vsel %vm382, %v377, %v381
      %v384 = vmul.f32 %v355, %v383
      %v385 = vmul.f32 %v358, %v383
      %v386 = vmul.f32 %v361, %v383
      %v387 = vmul.f32 %v364, %v383
      %v388 = vmul.f32 %v367, %v383
      %v389 = vmul.f32 %v370, %v383
      %v390 = vmul.f32 %v373, %v383
      %v391 = vmul.f32 %v376, %v383
      %v392 = vsub.f32 %v342, %v384
      %v393 = vsub.f32 %v343, %v385
      %v394 = vsub.f32 %v344, %v386
      %v395 = vsub.f32 %v345, %v387
      %v396 = vsub.f32 %v346, %v388
      %v397 = vsub.f32 %v347, %v389
      %v398 = vsub.f32 %v348, %v390
      %v399 = vsub.f32 %v349, %v391
      %v400 = vmul.f32 %v392, %v392
      %v401 = vmul.f32 %v393, %v393
      %v402 = vmul.f32 %v394, %v394
      %v403 = vmul.f32 %v395, %v395
      %v404 = vmul.f32 %v396, %v396
      %v405 = vmul.f32 %v397, %v397
      %v406 = vmul.f32 %v398, %v398
      %v407 = vmul.f32 %v399, %v399
      %v408 = vsel %vm352, %v400, 0.0
      %409 = vadd.xlane.f32.xlu0 %v408
      %v410 = vpop.xlane.xlu0 %409
      %v411 = vsel %vm352, %v401, 0.0
      %412 = vadd.xlane.f32.xlu0 %v411
      %v413 = vpop.xlane.xlu0 %412
      %v414 = vsel %vm352, %v402, 0.0
      %415 = vadd.xlane.f32.xlu0 %v414
      %v416 = vpop.xlane.xlu0 %415
      %v417 = vsel %vm352, %v403, 0.0
      %418 = vadd.xlane.f32.xlu0 %v417
      %v419 = vpop.xlane.xlu0 %418
      %v420 = vsel %vm352, %v404, 0.0
      %421 = vadd.xlane.f32.xlu0 %v420
      %v422 = vpop.xlane.xlu0 %421
      %v423 = vsel %vm352, %v405, 0.0
      %424 = vadd.xlane.f32.xlu0 %v423
      %v425 = vpop.xlane.xlu0 %424
      %v426 = vsel %vm352, %v406, 0.0
      %427 = vadd.xlane.f32.xlu0 %v426
      %v428 = vpop.xlane.xlu0 %427
      %v429 = vsel %vm352, %v407, 0.0
      %430 = vadd.xlane.f32.xlu0 %v429
      %v431 = vpop.xlane.xlu0 %430
      %v432 = vmul.f32 %v410, %v383
      %v433 = vmul.f32 %v413, %v383
      %v434 = vmul.f32 %v416, %v383
      %v435 = vmul.f32 %v419, %v383
      %v436 = vmul.f32 %v422, %v383
      %v437 = vmul.f32 %v425, %v383
      %v438 = vmul.f32 %v428, %v383
      %v439 = vmul.f32 %v431, %v383
      %v440 = vadd.f32 %v432, 1e-05
      %v441 = vadd.f32 %v433, 1e-05
      %v442 = vadd.f32 %v434, 1e-05
      %v443 = vadd.f32 %v435, 1e-05
      %v444 = vadd.f32 %v436, 1e-05
      %v445 = vadd.f32 %v437, 1e-05
      %v446 = vadd.f32 %v438, 1e-05
      %v447 = vadd.f32 %v439, 1e-05
      %v448 = vrsqrt.pop %v440
      %v449 = vmul.f32 %v448, %v440
      %v450 = vmul.f32 %v449, %v448
      %v451 = vmul.f32 0.5, %v450
      %v452 = vsub.f32 1.5, %v451
      %v453 = vmul.f32 %v448, %v452
      %vm454 = vweird.f32 %v440
      %vm455 = vweird.f32 %v448
      %vm456 = vmor %vm454, %vm455
      %v457 = vsel %vm456, %v448, %v453
      %v458 = vrsqrt.pop %v441
      %v459 = vmul.f32 %v458, %v441
      %v460 = vmul.f32 %v459, %v458
      %v461 = vmul.f32 0.5, %v460
      %v462 = vsub.f32 1.5, %v461
      %v463 = vmul.f32 %v458, %v462
      %vm464 = vweird.f32 %v441
      %vm465 = vweird.f32 %v458
      %vm466 = vmor %vm464, %vm465
      %v467 = vsel %vm466, %v458, %v463
      %v468 = vrsqrt.pop %v442
      %v469 = vmul.f32 %v468, %v442
      %v470 = vmul.f32 %v469, %v468
      %v471 = vmul.f32 0.5, %v470
      %v472 = vsub.f32 1.5, %v471
      %v473 = vmul.f32 %v468, %v472
      %vm474 = vweird.f32 %v442
      %vm475 = vweird.f32 %v468
      %vm476 = vmor %vm474, %vm475
      %v477 = vsel %vm476, %v468, %v473
      %v478 = vrsqrt.pop %v443
      %v479 = vmul.f32 %v478, %v443
      %v480 = vmul.f32 %v479, %v478
      %v481 = vmul.f32 0.5, %v480
      %v482 = vsub.f32 1.5, %v481
      %v483 = vmul.f32 %v478, %v482
      %vm484 = vweird.f32 %v443
      %vm485 = vweird.f32 %v478
      %vm486 = vmor %vm484, %vm485
      %v487 = vsel %vm486, %v478, %v483
      %v488 = vrsqrt.pop %v444
      %v489 = vmul.f32 %v488, %v444
      %v490 = vmul.f32 %v489, %v488
      %v491 = vmul.f32 0.5, %v490
      %v492 = vsub.f32 1.5, %v491
      %v493 = vmul.f32 %v488, %v492
      %vm494 = vweird.f32 %v444
      %vm495 = vweird.f32 %v488
      %vm496 = vmor %vm494, %vm495
      %v497 = vsel %vm496, %v488, %v493
      %v498 = vrsqrt.pop %v445
      %v499 = vmul.f32 %v498, %v445
      %v500 = vmul.f32 %v499, %v498
      %v501 = vmul.f32 0.5, %v500
      %v502 = vsub.f32 1.5, %v501
      %v503 = vmul.f32 %v498, %v502
      %vm504 = vweird.f32 %v445
      %vm505 = vweird.f32 %v498
      %vm506 = vmor %vm504, %vm505
      %v507 = vsel %vm506, %v498, %v503
      %v508 = vrsqrt.pop %v446
      %v509 = vmul.f32 %v508, %v446
      %v510 = vmul.f32 %v509, %v508
      %v511 = vmul.f32 0.5, %v510
      %v512 = vsub.f32 1.5, %v511
      %v513 = vmul.f32 %v508, %v512
      %vm514 = vweird.f32 %v446
      %vm515 = vweird.f32 %v508
      %vm516 = vmor %vm514, %vm515
      %v517 = vsel %vm516, %v508, %v513
      %v518 = vrsqrt.pop %v447
      %v519 = vmul.f32 %v518, %v447
      %v520 = vmul.f32 %v519, %v518
      %v521 = vmul.f32 0.5, %v520
      %v522 = vsub.f32 1.5, %v521
      %v523 = vmul.f32 %v518, %v522
      %vm524 = vweird.f32 %v447
      %vm525 = vweird.f32 %v518
      %vm526 = vmor %vm524, %vm525
      %v527 = vsel %vm526, %v518, %v523
      %v528 = vmul.f32 %v392, %v457
      %v529 = vmul.f32 %v393, %v467
      %v530 = vmul.f32 %v394, %v477
      %v531 = vmul.f32 %v395, %v487
      %v532 = vmul.f32 %v396, %v497
      %v533 = vmul.f32 %v397, %v507
      %v534 = vmul.f32 %v398, %v517
      %v535 = vmul.f32 %v399, %v527
      %v537 = vperm.slane %v350, 0
      %v539 = vmul.f32 %v528, %v537
      %v540 = vmul.f32 %v529, %v537
      %v541 = vmul.f32 %v530, %v537
      %v542 = vmul.f32 %v531, %v537
      %v543 = vmul.f32 %v532, %v537
      %v544 = vmul.f32 %v533, %v537
      %v545 = vmul.f32 %v534, %v537
      %v546 = vmul.f32 %v535, %v537
      %v548 = vperm.slane %v351, 0
      %v550 = vadd.f32 %v539, %v548
      %v551 = vadd.f32 %v540, %v548
      %v552 = vadd.f32 %v541, %v548
      %v553 = vadd.f32 %v542, %v548
      %v554 = vadd.f32 %v543, %v548
      %v555 = vadd.f32 %v544, %v548
      %v556 = vadd.f32 %v545, %v548
      %v557 = vadd.f32 %v546, %v548
      %v558 = vpack.c.bf16 %v551, %v550
      %v559 = vpack.c.bf16 %v553, %v552
      %v560 = vpack.c.bf16 %v555, %v554
      %v561 = vpack.c.bf16 %v557, %v556
      %v562 = vld [vmem:[%s3] sm:$0xf]
      %v563 = vld [vmem:[%s3 + $0x4] sm:$0xf]
      %v564 = vld [vmem:[%s3 + $0x8] sm:$0xf]
      %v565 = vld [vmem:[%s3 + $0xc] sm:$0xf]
      %v566 = vld [vmem:[%s4] sm:$0x1]
      %v568 = vperm.slane %v566, 0
      %v574 = vunpack.c.l.b16 %v562
      %v575 = vunpack.c.l.b16 %v563
      %v576 = vunpack.c.l.b16 %v564
      %v577 = vunpack.c.l.b16 %v565
      %v578 = vpack.c.b16 %v575, %v574
      %v579 = vpack.c.b16 %v577, %v576
      %v583 = vsel %vm352, %v558, 0
      %v586 = vsel %vm352, %v559, 0
      %v589 = vsel %vm352, %v560, 0
      %v592 = vsel %vm352, %v561, 0
      %594 = vmatpush.bf16.msra.mxu0 0
      %595 = vmatpush.bf16.msra.mxu0 0
      %596 = vmatpush.bf16.msra.mxu0 0
      %597 = vmatpush.bf16.msra.mxu0 0
      %598 = vmatpush.bf16.msra.mxu0 0
      %599 = vmatpush.bf16.msra.mxu0 0
      %600 = vmatpush.bf16.msra.mxu0 %v579
      %601 = vmatpush.bf16.msra.mxu0 %v578
      %602 = vmatmul.bf16.gmra.mxu0 %v583
      %v603 = vpop.f32.mrf.mxu0
      %v604 = vadd.f32 %v568, %v603
      %v605 = vpop.f32.mrf.mxu0
      %v606 = vadd.f32 %v568, %v605
      %607 = vmatmul.bf16.gmra.mxu0 %v586
      %v608 = vpop.f32.mrf.mxu0
      %v609 = vadd.f32 %v568, %v608
      %v610 = vpop.f32.mrf.mxu0
      %v611 = vadd.f32 %v568, %v610
      %612 = vmatmul.bf16.gmra.mxu0 %v589
      %v613 = vpop.f32.mrf.mxu0
      %v614 = vadd.f32 %v568, %v613
      %v615 = vpop.f32.mrf.mxu0
      %v616 = vadd.f32 %v568, %v615
      %617 = vmatmul.bf16.gmra.mxu0 %v592
      %v618 = vpop.f32.mrf.mxu0
      %v619 = vadd.f32 %v568, %v618
      %v620 = vpop.f32.mrf.mxu0
      %v621 = vadd.f32 %v568, %v620
      %622 = vdwg.mxu0
      %v623 = vld [vmem:[%s7] sm:$0xff]
      %v624 = vld [vmem:[%s7 + $0x8] sm:$0xff]
      %v625 = vld [vmem:[%s7 + $0x10] sm:$0xff]
      %v626 = vld [vmem:[%s7 + $0x18] sm:$0xff]
      %v627 = vld [vmem:[%s7 + $0x20] sm:$0xff]
      %v628 = vld [vmem:[%s7 + $0x28] sm:$0xff]
      %v629 = vld [vmem:[%s7 + $0x30] sm:$0xff]
      %v630 = vld [vmem:[%s7 + $0x38] sm:$0xff]
      %v631 = vld [vmem:[%s8] sm:$0xff]
      %v632 = vld [vmem:[%s8 + $0x8] sm:$0xff]
      %v633 = vld [vmem:[%s8 + $0x10] sm:$0xff]
      %v634 = vld [vmem:[%s8 + $0x18] sm:$0xff]
      %v635 = vld [vmem:[%s8 + $0x20] sm:$0xff]
      %v636 = vld [vmem:[%s8 + $0x28] sm:$0xff]
      %v637 = vld [vmem:[%s8 + $0x30] sm:$0xff]
      %v638 = vld [vmem:[%s8 + $0x38] sm:$0xff]
      %v639 = vpack.c.bf16 %v604, %v604
      %v640 = vpack.c.bf16 %v606, %v606
      %v641 = vpack.c.bf16 %v609, %v609
      %v642 = vpack.c.bf16 %v611, %v611
      %v643 = vpack.c.bf16 %v614, %v614
      %v644 = vpack.c.bf16 %v616, %v616
      %v645 = vpack.c.bf16 %v619, %v619
      %v646 = vpack.c.bf16 %v621, %v621
      %v647 = vlaneseq
      %v648 = vand.u32 %v647, 127
      %vm649 = vcmp.ge.s32.totalorder %v648, 0
      %vm650 = vcmp.lt.s32.totalorder %v648, 8
      %vm651 = vmand %vm649, %vm650
      %v652 = vsel %vm651, 1, 0
      %v653 = vcvt.s32.f32 %v652
      %v654 = vpack.c.bf16 %v653, %v653
      %v655 = vunpack.c.l.bf16 %v639
      %v656 = vunpack.c.l.bf16 %v640
      %v657 = vunpack.c.l.bf16 %v641
      %v658 = vunpack.c.l.bf16 %v642
      %v659 = vunpack.c.l.bf16 %v643
      %v660 = vunpack.c.l.bf16 %v644
      %v661 = vunpack.c.l.bf16 %v645
      %v662 = vunpack.c.l.bf16 %v646
      %v663 = vunpack.c.l.bf16 %v654
      %v664 = vmul.f32 %v655, %v663
      %v665 = vmul.f32 %v656, %v663
      %v666 = vmul.f32 %v657, %v663
      %v667 = vmul.f32 %v658, %v663
      %v668 = vmul.f32 %v659, %v663
      %v669 = vmul.f32 %v660, %v663
      %v670 = vmul.f32 %v661, %v663
      %v671 = vmul.f32 %v662, %v663
      %v672 = vpack.c.bf16 %v664, %v664
      %v673 = vpack.c.bf16 %v665, %v665
      %v674 = vpack.c.bf16 %v666, %v666
      %v675 = vpack.c.bf16 %v667, %v667
      %v676 = vpack.c.bf16 %v668, %v668
      %v677 = vpack.c.bf16 %v669, %v669
      %v678 = vpack.c.bf16 %v670, %v670
      %v679 = vpack.c.bf16 %v671, %v671
      %v682 = vunpack.c.l.b16 %v672
      %v683 = vunpack.c.l.b16 %v673
      %v684 = vpack.c.b16 %v683, %v682
      %v687 = vunpack.c.l.b16 %v639
      %v688 = vunpack.c.l.b16 %v640
      %v689 = vpack.c.b16 %v688, %v687
      %690 = vrot.lane.b32.xlu0 %v689, 96
      %v691 = vpop.permute.xlu0 %690
      %v693 = vsel %vm352, %v684, 0
      %v696 = vsel %vm352, %v691, 0
      %698 = vmatpush.bf16.xpose.msra.mxu0 0
      %699 = vmatpush.bf16.xpose.msra.mxu0 0
      %700 = vmatpush.bf16.xpose.msra.mxu0 0
      %701 = vmatpush.bf16.xpose.msra.mxu0 0
      %702 = vmatpush.bf16.xpose.msra.mxu0 0
      %703 = vmatpush.bf16.xpose.msra.mxu0 0
      %704 = vmatpush.bf16.xpose.msra.mxu0 0
      %705 = vmatpush.bf16.xpose.msra.mxu0 %v696
      %706 = vmatmul.bf16.gmra.mxu0 %v693
      %v707 = vpop.f32.mrf.mxu0
      %v708 = vadd.f32 0.0, %v707
      %v709 = vpop.f32.mrf.mxu0
      %v710 = vadd.f32 0.0, %v709
      %711 = vdwg.mxu0
      %v714 = vunpack.c.l.b16 %v674
      %v715 = vunpack.c.l.b16 %v675
      %v716 = vpack.c.b16 %v715, %v714
      %v719 = vunpack.c.l.b16 %v641
      %v720 = vunpack.c.l.b16 %v642
      %v721 = vpack.c.b16 %v720, %v719
      %722 = vrot.lane.b32.xlu0 %v721, 96
      %v723 = vpop.permute.xlu0 %722
      %v725 = vsel %vm352, %v716, 0
      %v728 = vsel %vm352, %v723, 0
      %730 = vmatpush.bf16.xpose.msra.mxu0 0
      %731 = vmatpush.bf16.xpose.msra.mxu0 0
      %732 = vmatpush.bf16.xpose.msra.mxu0 0
      %733 = vmatpush.bf16.xpose.msra.mxu0 0
      %734 = vmatpush.bf16.xpose.msra.mxu0 0
      %735 = vmatpush.bf16.xpose.msra.mxu0 0
      %736 = vmatpush.bf16.xpose.msra.mxu0 0
      %737 = vmatpush.bf16.xpose.msra.mxu0 %v728
      %738 = vmatmul.bf16.gmra.mxu0 %v725
      %v739 = vpop.f32.mrf.mxu0
      %v740 = vadd.f32 0.0, %v739
      %v741 = vpop.f32.mrf.mxu0
      %v742 = vadd.f32 0.0, %v741
      %743 = vdwg.mxu0
      %v746 = vunpack.c.l.b16 %v676
      %v747 = vunpack.c.l.b16 %v677
      %v748 = vpack.c.b16 %v747, %v746
      %v751 = vunpack.c.l.b16 %v643
      %v752 = vunpack.c.l.b16 %v644
      %v753 = vpack.c.b16 %v752, %v751
      %754 = vrot.lane.b32.xlu0 %v753, 96
      %v755 = vpop.permute.xlu0 %754
      %v757 = vsel %vm352, %v748, 0
      %v760 = vsel %vm352, %v755, 0
      %762 = vmatpush.bf16.xpose.msra.mxu0 0
      %763 = vmatpush.bf16.xpose.msra.mxu0 0
      %764 = vmatpush.bf16.xpose.msra.mxu0 0
      %765 = vmatpush.bf16.xpose.msra.mxu0 0
      %766 = vmatpush.bf16.xpose.msra.mxu0 0
      %767 = vmatpush.bf16.xpose.msra.mxu0 0
      %768 = vmatpush.bf16.xpose.msra.mxu0 0
      %769 = vmatpush.bf16.xpose.msra.mxu0 %v760
      %770 = vmatmul.bf16.gmra.mxu0 %v757
      %v771 = vpop.f32.mrf.mxu0
      %v772 = vadd.f32 0.0, %v771
      %v773 = vpop.f32.mrf.mxu0
      %v774 = vadd.f32 0.0, %v773
      %775 = vdwg.mxu0
      %v778 = vunpack.c.l.b16 %v678
      %v779 = vunpack.c.l.b16 %v679
      %v780 = vpack.c.b16 %v779, %v778
      %v783 = vunpack.c.l.b16 %v645
      %v784 = vunpack.c.l.b16 %v646
      %v785 = vpack.c.b16 %v784, %v783
      %786 = vrot.lane.b32.xlu0 %v785, 96
      %v787 = vpop.permute.xlu0 %786
      %v789 = vsel %vm352, %v780, 0
      %v792 = vsel %vm352, %v787, 0
      %794 = vmatpush.bf16.xpose.msra.mxu0 0
      %795 = vmatpush.bf16.xpose.msra.mxu0 0
      %796 = vmatpush.bf16.xpose.msra.mxu0 0
      %797 = vmatpush.bf16.xpose.msra.mxu0 0
      %798 = vmatpush.bf16.xpose.msra.mxu0 0
      %799 = vmatpush.bf16.xpose.msra.mxu0 0
      %800 = vmatpush.bf16.xpose.msra.mxu0 0
      %801 = vmatpush.bf16.xpose.msra.mxu0 %v792
      %802 = vmatmul.bf16.gmra.mxu0 %v789
      %v803 = vpop.f32.mrf.mxu0
      %v804 = vadd.f32 0.0, %v803
      %v805 = vpop.f32.mrf.mxu0
      %v806 = vadd.f32 0.0, %v805
      %807 = vdwg.mxu0
      %v808 = vmul.f32 %v708, 0.35355338
      %v809 = vmul.f32 %v710, 0.35355338
      %v810 = vmul.f32 %v740, 0.35355338
      %v811 = vmul.f32 %v742, 0.35355338
      %v812 = vmul.f32 %v772, 0.35355338
      %v813 = vmul.f32 %v774, 0.35355338
      %v814 = vmul.f32 %v804, 0.35355338
      %v815 = vmul.f32 %v806, 0.35355338
      %v816 = vadd.f32 %v808, %v623
      %v817 = vadd.f32 %v809, %v624
      %v818 = vadd.f32 %v810, %v623
      %v819 = vadd.f32 %v811, %v624
      %v820 = vadd.f32 %v812, %v623
      %v821 = vadd.f32 %v813, %v624
      %v822 = vadd.f32 %v814, %v623
      %v823 = vadd.f32 %v815, %v624
      %v824 = vadd.f32 %v816, %v631
      %v825 = vadd.f32 %v817, %v632
      %v826 = vadd.f32 %v818, %v633
      %v827 = vadd.f32 %v819, %v634
      %v828 = vadd.f32 %v820, %v635
      %v829 = vadd.f32 %v821, %v636
      %v830 = vadd.f32 %v822, %v637
      %v831 = vadd.f32 %v823, %v638
      %vm832 = vcmask 130048
      %v833 = vsel %vm832, %v824, -inf
      %834 = vmax.xlane.f32.xlu0 %v833
      %v835 = vpop.xlane.xlu0 %834
      %v836 = vsel %vm832, %v825, -inf
      %837 = vmax.xlane.f32.xlu0 %v836
      %v838 = vpop.xlane.xlu0 %837
      %v839 = vsel %vm832, %v826, -inf
      %840 = vmax.xlane.f32.xlu0 %v839
      %v841 = vpop.xlane.xlu0 %840
      %v842 = vsel %vm832, %v827, -inf
      %843 = vmax.xlane.f32.xlu0 %v842
      %v844 = vpop.xlane.xlu0 %843
      %v845 = vsel %vm832, %v828, -inf
      %846 = vmax.xlane.f32.xlu0 %v845
      %v847 = vpop.xlane.xlu0 %846
      %v848 = vsel %vm832, %v829, -inf
      %849 = vmax.xlane.f32.xlu0 %v848
      %v850 = vpop.xlane.xlu0 %849
      %v851 = vsel %vm832, %v830, -inf
      %852 = vmax.xlane.f32.xlu0 %v851
      %v853 = vpop.xlane.xlu0 %852
      %v854 = vsel %vm832, %v831, -inf
      %855 = vmax.xlane.f32.xlu0 %v854
      %v856 = vpop.xlane.xlu0 %855
      %v857 = vsub.f32 %v824, %v835
      %v858 = vsub.f32 %v825, %v838
      %v859 = vsub.f32 %v826, %v841
      %v860 = vsub.f32 %v827, %v844
      %v861 = vsub.f32 %v828, %v847
      %v862 = vsub.f32 %v829, %v850
      %v863 = vsub.f32 %v830, %v853
      %v864 = vsub.f32 %v831, %v856
      %v865 = vmul.f32 %v857, 1.442695
      %v866 = vpow.pop %v865
      %v867 = vmul.f32 %v858, 1.442695
      %v868 = vpow.pop %v867
      %v869 = vmul.f32 %v859, 1.442695
      %v870 = vpow.pop %v869
      %v871 = vmul.f32 %v860, 1.442695
      %v872 = vpow.pop %v871
      %v873 = vmul.f32 %v861, 1.442695
      %v874 = vpow.pop %v873
      %v875 = vmul.f32 %v862, 1.442695
      %v876 = vpow.pop %v875
      %v877 = vmul.f32 %v863, 1.442695
      %v878 = vpow.pop %v877
      %v879 = vmul.f32 %v864, 1.442695
      %v880 = vpow.pop %v879
      %v881 = vsel %vm832, %v866, 0.0
      %882 = vadd.xlane.f32.xlu0 %v881
      %v883 = vpop.xlane.xlu0 %882
      %v884 = vsel %vm832, %v868, 0.0
      %885 = vadd.xlane.f32.xlu0 %v884
      %v886 = vpop.xlane.xlu0 %885
      %v887 = vsel %vm832, %v870, 0.0
      %888 = vadd.xlane.f32.xlu0 %v887
      %v889 = vpop.xlane.xlu0 %888
      %v890 = vsel %vm832, %v872, 0.0
      %891 = vadd.xlane.f32.xlu0 %v890
      %v892 = vpop.xlane.xlu0 %891
      %v893 = vsel %vm832, %v874, 0.0
      %894 = vadd.xlane.f32.xlu0 %v893
      %v895 = vpop.xlane.xlu0 %894
      %v896 = vsel %vm832, %v876, 0.0
      %897 = vadd.xlane.f32.xlu0 %v896
      %v898 = vpop.xlane.xlu0 %897
      %v899 = vsel %vm832, %v878, 0.0
      %900 = vadd.xlane.f32.xlu0 %v899
      %v901 = vpop.xlane.xlu0 %900
      %v902 = vsel %vm832, %v880, 0.0
      %903 = vadd.xlane.f32.xlu0 %v902
      %v904 = vpop.xlane.xlu0 %903
      %v905 = vrcp.pop %v883
      %v906 = vmul.f32 %v883, %v905
      %v907 = vsub.f32 1.0, %v906
      %v908 = vmul.f32 %v905, %v907
      %v909 = vadd.f32 %v905, %v908
      %vm910 = vweird.f32 %v883
      %vm911 = vweird.f32 %v905
      %vm912 = vmor %vm910, %vm911
      %v913 = vsel %vm912, %v905, %v909
      %v914 = vand.u32 2147483647, %v883
      %vm915 = vcmp.eq.f32.partialorder %v914, 8.507059e+37
      %v916 = vand.u32 %v883, 2147483648
      %v917 = vor.u32 1.1754944e-38, %v916
      %v918 = vsel %vm915, %v917, %v913
      %v919 = vmul.f32 %v866, %v918
      %v920 = vrcp.pop %v886
      %v921 = vmul.f32 %v886, %v920
      %v922 = vsub.f32 1.0, %v921
      %v923 = vmul.f32 %v920, %v922
      %v924 = vadd.f32 %v920, %v923
      %vm925 = vweird.f32 %v886
      %vm926 = vweird.f32 %v920
      %vm927 = vmor %vm925, %vm926
      %v928 = vsel %vm927, %v920, %v924
      %v929 = vand.u32 2147483647, %v886
      %vm930 = vcmp.eq.f32.partialorder %v929, 8.507059e+37
      %v931 = vand.u32 %v886, 2147483648
      %v932 = vor.u32 1.1754944e-38, %v931
      %v933 = vsel %vm930, %v932, %v928
      %v934 = vmul.f32 %v868, %v933
      %v935 = vrcp.pop %v889
      %v936 = vmul.f32 %v889, %v935
      %v937 = vsub.f32 1.0, %v936
      %v938 = vmul.f32 %v935, %v937
      %v939 = vadd.f32 %v935, %v938
      %vm940 = vweird.f32 %v889
      %vm941 = vweird.f32 %v935
      %vm942 = vmor %vm940, %vm941
      %v943 = vsel %vm942, %v935, %v939
      %v944 = vand.u32 2147483647, %v889
      %vm945 = vcmp.eq.f32.partialorder %v944, 8.507059e+37
      %v946 = vand.u32 %v889, 2147483648
      %v947 = vor.u32 1.1754944e-38, %v946
      %v948 = vsel %vm945, %v947, %v943
      %v949 = vmul.f32 %v870, %v948
      %v950 = vrcp.pop %v892
      %v951 = vmul.f32 %v892, %v950
      %v952 = vsub.f32 1.0, %v951
      %v953 = vmul.f32 %v950, %v952
      %v954 = vadd.f32 %v950, %v953
      %vm955 = vweird.f32 %v892
      %vm956 = vweird.f32 %v950
      %vm957 = vmor %vm955, %vm956
      %v958 = vsel %vm957, %v950, %v954
      %v959 = vand.u32 2147483647, %v892
      %vm960 = vcmp.eq.f32.partialorder %v959, 8.507059e+37
      %v961 = vand.u32 %v892, 2147483648
      %v962 = vor.u32 1.1754944e-38, %v961
      %v963 = vsel %vm960, %v962, %v958
      %v964 = vmul.f32 %v872, %v963
      %v965 = vrcp.pop %v895
      %v966 = vmul.f32 %v895, %v965
      %v967 = vsub.f32 1.0, %v966
      %v968 = vmul.f32 %v965, %v967
      %v969 = vadd.f32 %v965, %v968
      %vm970 = vweird.f32 %v895
      %vm971 = vweird.f32 %v965
      %vm972 = vmor %vm970, %vm971
      %v973 = vsel %vm972, %v965, %v969
      %v974 = vand.u32 2147483647, %v895
      %vm975 = vcmp.eq.f32.partialorder %v974, 8.507059e+37
      %v976 = vand.u32 %v895, 2147483648
      %v977 = vor.u32 1.1754944e-38, %v976
      %v978 = vsel %vm975, %v977, %v973
      %v979 = vmul.f32 %v874, %v978
      %v980 = vrcp.pop %v898
      %v981 = vmul.f32 %v898, %v980
      %v982 = vsub.f32 1.0, %v981
      %v983 = vmul.f32 %v980, %v982
      %v984 = vadd.f32 %v980, %v983
      %vm985 = vweird.f32 %v898
      %vm986 = vweird.f32 %v980
      %vm987 = vmor %vm985, %vm986
      %v988 = vsel %vm987, %v980, %v984
      %v989 = vand.u32 2147483647, %v898
      %vm990 = vcmp.eq.f32.partialorder %v989, 8.507059e+37
      %v991 = vand.u32 %v898, 2147483648
      %v992 = vor.u32 1.1754944e-38, %v991
      %v993 = vsel %vm990, %v992, %v988
      %v994 = vmul.f32 %v876, %v993
      %v995 = vrcp.pop %v901
      %v996 = vmul.f32 %v901, %v995
      %v997 = vsub.f32 1.0, %v996
      %v998 = vmul.f32 %v995, %v997
      %v999 = vadd.f32 %v995, %v998
      %vm1000 = vweird.f32 %v901
      %vm1001 = vweird.f32 %v995
      %vm1002 = vmor %vm1000, %vm1001
      %v1003 = vsel %vm1002, %v995, %v999
      %v1004 = vand.u32 2147483647, %v901
      %vm1005 = vcmp.eq.f32.partialorder %v1004, 8.507059e+37
      %v1006 = vand.u32 %v901, 2147483648
      %v1007 = vor.u32 1.1754944e-38, %v1006
      %v1008 = vsel %vm1005, %v1007, %v1003
      %v1009 = vmul.f32 %v878, %v1008
      %v1010 = vrcp.pop %v904
      %v1011 = vmul.f32 %v904, %v1010
      %v1012 = vsub.f32 1.0, %v1011
      %v1013 = vmul.f32 %v1010, %v1012
      %v1014 = vadd.f32 %v1010, %v1013
      %vm1015 = vweird.f32 %v904
      %vm1016 = vweird.f32 %v1010
      %vm1017 = vmor %vm1015, %vm1016
      %v1018 = vsel %vm1017, %v1010, %v1014
      %v1019 = vand.u32 2147483647, %v904
      %vm1020 = vcmp.eq.f32.partialorder %v1019, 8.507059e+37
      %v1021 = vand.u32 %v904, 2147483648
      %v1022 = vor.u32 1.1754944e-38, %v1021
      %v1023 = vsel %vm1020, %v1022, %v1018
      %v1024 = vmul.f32 %v880, %v1023
      %v1025 = vpack.c.bf16 %v919, %v919
      %v1026 = vpack.c.bf16 %v934, %v934
      %v1027 = vpack.c.bf16 %v949, %v949
      %v1028 = vpack.c.bf16 %v964, %v964
      %v1029 = vpack.c.bf16 %v979, %v979
      %v1030 = vpack.c.bf16 %v994, %v994
      %v1031 = vpack.c.bf16 %v1009, %v1009
      %v1032 = vpack.c.bf16 %v1024, %v1024
      %1034 = vrot.lane.b32.xlu0 %v663, 64
      %v1035 = vpop.permute.xlu0 %1034
      %v1037 = vmul.f32 %v655, %v1035
      %v1038 = vmul.f32 %v656, %v1035
      %v1039 = vmul.f32 %v657, %v1035
      %v1040 = vmul.f32 %v658, %v1035
      %v1041 = vmul.f32 %v659, %v1035
      %v1042 = vmul.f32 %v660, %v1035
      %v1043 = vmul.f32 %v661, %v1035
      %v1044 = vmul.f32 %v662, %v1035
      %v1045 = vpack.c.bf16 %v1037, %v1037
      %v1046 = vpack.c.bf16 %v1038, %v1038
      %v1047 = vpack.c.bf16 %v1039, %v1039
      %v1048 = vpack.c.bf16 %v1040, %v1040
      %v1049 = vpack.c.bf16 %v1041, %v1041
      %v1050 = vpack.c.bf16 %v1042, %v1042
      %v1051 = vpack.c.bf16 %v1043, %v1043
      %v1052 = vpack.c.bf16 %v1044, %v1044
      %vm1053 = vcmp.ge.s32.totalorder %v648, 8
      %vm1054 = vcmp.lt.s32.totalorder %v648, 16
      %vm1055 = vmand %vm1053, %vm1054
      %v1056 = vsel %vm1055, 1, 0
      %v1057 = vcvt.s32.f32 %v1056
      %v1058 = vpack.c.bf16 %v1057, %v1057
      %v1059 = vunpack.c.l.bf16 %v1058
      %v1060 = vmul.f32 %v655, %v1059
      %v1061 = vmul.f32 %v656, %v1059
      %v1062 = vmul.f32 %v657, %v1059
      %v1063 = vmul.f32 %v658, %v1059
      %v1064 = vmul.f32 %v659, %v1059
      %v1065 = vmul.f32 %v660, %v1059
      %v1066 = vmul.f32 %v661, %v1059
      %v1067 = vmul.f32 %v662, %v1059
      %v1068 = vpack.c.bf16 %v1060, %v1060
      %v1069 = vpack.c.bf16 %v1061, %v1061
      %v1070 = vpack.c.bf16 %v1062, %v1062
      %v1071 = vpack.c.bf16 %v1063, %v1063
      %v1072 = vpack.c.bf16 %v1064, %v1064
      %v1073 = vpack.c.bf16 %v1065, %v1065
      %v1074 = vpack.c.bf16 %v1066, %v1066
      %v1075 = vpack.c.bf16 %v1067, %v1067
      %v1078 = vunpack.c.l.b16 %v1068
      %v1079 = vunpack.c.l.b16 %v1069
      %v1080 = vpack.c.b16 %v1079, %v1078
      %v1082 = vsel %vm352, %v1080, 0
      %1084 = vmatpush.bf16.xpose.msra.mxu0 0
      %1085 = vmatpush.bf16.xpose.msra.mxu0 0
      %1086 = vmatpush.bf16.xpose.msra.mxu0 0
      %1087 = vmatpush.bf16.xpose.msra.mxu0 0
      %1088 = vmatpush.bf16.xpose.msra.mxu0 0
      %1089 = vmatpush.bf16.xpose.msra.mxu0 0
      %1090 = vmatpush.bf16.xpose.msra.mxu0 0
      %1091 = vmatpush.bf16.xpose.msra.mxu0 %v696
      %1092 = vmatmul.bf16.gmra.mxu0 %v1082
      %v1093 = vpop.f32.mrf.mxu0
      %v1094 = vadd.f32 0.0, %v1093
      %v1095 = vpop.f32.mrf.mxu0
      %v1096 = vadd.f32 0.0, %v1095
      %1097 = vdwg.mxu0
      %v1100 = vunpack.c.l.b16 %v1070
      %v1101 = vunpack.c.l.b16 %v1071
      %v1102 = vpack.c.b16 %v1101, %v1100
      %v1104 = vsel %vm352, %v1102, 0
      %1106 = vmatpush.bf16.xpose.msra.mxu0 0
      %1107 = vmatpush.bf16.xpose.msra.mxu0 0
      %1108 = vmatpush.bf16.xpose.msra.mxu0 0
      %1109 = vmatpush.bf16.xpose.msra.mxu0 0
      %1110 = vmatpush.bf16.xpose.msra.mxu0 0
      %1111 = vmatpush.bf16.xpose.msra.mxu0 0
      %1112 = vmatpush.bf16.xpose.msra.mxu0 0
      %1113 = vmatpush.bf16.xpose.msra.mxu0 %v728
      %1114 = vmatmul.bf16.gmra.mxu0 %v1104
      %v1115 = vpop.f32.mrf.mxu0
      %v1116 = vadd.f32 0.0, %v1115
      %v1117 = vpop.f32.mrf.mxu0
      %v1118 = vadd.f32 0.0, %v1117
      %1119 = vdwg.mxu0
      %v1122 = vunpack.c.l.b16 %v1072
      %v1123 = vunpack.c.l.b16 %v1073
      %v1124 = vpack.c.b16 %v1123, %v1122
      %v1126 = vsel %vm352, %v1124, 0
      %1128 = vmatpush.bf16.xpose.msra.mxu0 0
      %1129 = vmatpush.bf16.xpose.msra.mxu0 0
      %1130 = vmatpush.bf16.xpose.msra.mxu0 0
      %1131 = vmatpush.bf16.xpose.msra.mxu0 0
      %1132 = vmatpush.bf16.xpose.msra.mxu0 0
      %1133 = vmatpush.bf16.xpose.msra.mxu0 0
      %1134 = vmatpush.bf16.xpose.msra.mxu0 0
      %1135 = vmatpush.bf16.xpose.msra.mxu0 %v760
      %1136 = vmatmul.bf16.gmra.mxu0 %v1126
      %v1137 = vpop.f32.mrf.mxu0
      %v1138 = vadd.f32 0.0, %v1137
      %v1139 = vpop.f32.mrf.mxu0
      %v1140 = vadd.f32 0.0, %v1139
      %1141 = vdwg.mxu0
      %v1144 = vunpack.c.l.b16 %v1074
      %v1145 = vunpack.c.l.b16 %v1075
      %v1146 = vpack.c.b16 %v1145, %v1144
      %v1148 = vsel %vm352, %v1146, 0
      %1150 = vmatpush.bf16.xpose.msra.mxu0 0
      %1151 = vmatpush.bf16.xpose.msra.mxu0 0
      %1152 = vmatpush.bf16.xpose.msra.mxu0 0
      %1153 = vmatpush.bf16.xpose.msra.mxu0 0
      %1154 = vmatpush.bf16.xpose.msra.mxu0 0
      %1155 = vmatpush.bf16.xpose.msra.mxu0 0
      %1156 = vmatpush.bf16.xpose.msra.mxu0 0
      %1157 = vmatpush.bf16.xpose.msra.mxu0 %v792
      %1158 = vmatmul.bf16.gmra.mxu0 %v1148
      %v1159 = vpop.f32.mrf.mxu0
      %v1160 = vadd.f32 0.0, %v1159
      %v1161 = vpop.f32.mrf.mxu0
      %v1162 = vadd.f32 0.0, %v1161
      %1163 = vdwg.mxu0
      %v1164 = vmul.f32 %v1094, 0.35355338
      %v1165 = vmul.f32 %v1096, 0.35355338
      %v1166 = vmul.f32 %v1116, 0.35355338
      %v1167 = vmul.f32 %v1118, 0.35355338
      %v1168 = vmul.f32 %v1138, 0.35355338
      %v1169 = vmul.f32 %v1140, 0.35355338
      %v1170 = vmul.f32 %v1160, 0.35355338
      %v1171 = vmul.f32 %v1162, 0.35355338
      %v1172 = vadd.f32 %v1164, %v625
      %v1173 = vadd.f32 %v1165, %v626
      %v1174 = vadd.f32 %v1166, %v625
      %v1175 = vadd.f32 %v1167, %v626
      %v1176 = vadd.f32 %v1168, %v625
      %v1177 = vadd.f32 %v1169, %v626
      %v1178 = vadd.f32 %v1170, %v625
      %v1179 = vadd.f32 %v1171, %v626
      %v1180 = vadd.f32 %v1172, %v631
      %v1181 = vadd.f32 %v1173, %v632
      %v1182 = vadd.f32 %v1174, %v633
      %v1183 = vadd.f32 %v1175, %v634
      %v1184 = vadd.f32 %v1176, %v635
      %v1185 = vadd.f32 %v1177, %v636
      %v1186 = vadd.f32 %v1178, %v637
      %v1187 = vadd.f32 %v1179, %v638
      %v1188 = vsel %vm832, %v1180, -inf
      %1189 = vmax.xlane.f32.xlu0 %v1188
      %v1190 = vpop.xlane.xlu0 %1189
      %v1191 = vsel %vm832, %v1181, -inf
      %1192 = vmax.xlane.f32.xlu0 %v1191
      %v1193 = vpop.xlane.xlu0 %1192
      %v1194 = vsel %vm832, %v1182, -inf
      %1195 = vmax.xlane.f32.xlu0 %v1194
      %v1196 = vpop.xlane.xlu0 %1195
      %v1197 = vsel %vm832, %v1183, -inf
      %1198 = vmax.xlane.f32.xlu0 %v1197
      %v1199 = vpop.xlane.xlu0 %1198
      %v1200 = vsel %vm832, %v1184, -inf
      %1201 = vmax.xlane.f32.xlu0 %v1200
      %v1202 = vpop.xlane.xlu0 %1201
      %v1203 = vsel %vm832, %v1185, -inf
      %1204 = vmax.xlane.f32.xlu0 %v1203
      %v1205 = vpop.xlane.xlu0 %1204
      %v1206 = vsel %vm832, %v1186, -inf
      %1207 = vmax.xlane.f32.xlu0 %v1206
      %v1208 = vpop.xlane.xlu0 %1207
      %v1209 = vsel %vm832, %v1187, -inf
      %1210 = vmax.xlane.f32.xlu0 %v1209
      %v1211 = vpop.xlane.xlu0 %1210
      %v1212 = vsub.f32 %v1180, %v1190
      %v1213 = vsub.f32 %v1181, %v1193
      %v1214 = vsub.f32 %v1182, %v1196
      %v1215 = vsub.f32 %v1183, %v1199
      %v1216 = vsub.f32 %v1184, %v1202
      %v1217 = vsub.f32 %v1185, %v1205
      %v1218 = vsub.f32 %v1186, %v1208
      %v1219 = vsub.f32 %v1187, %v1211
      %v1220 = vmul.f32 %v1212, 1.442695
      %v1221 = vpow.pop %v1220
      %v1222 = vmul.f32 %v1213, 1.442695
      %v1223 = vpow.pop %v1222
      %v1224 = vmul.f32 %v1214, 1.442695
      %v1225 = vpow.pop %v1224
      %v1226 = vmul.f32 %v1215, 1.442695
      %v1227 = vpow.pop %v1226
      %v1228 = vmul.f32 %v1216, 1.442695
      %v1229 = vpow.pop %v1228
      %v1230 = vmul.f32 %v1217, 1.442695
      %v1231 = vpow.pop %v1230
      %v1232 = vmul.f32 %v1218, 1.442695
      %v1233 = vpow.pop %v1232
      %v1234 = vmul.f32 %v1219, 1.442695
      %v1235 = vpow.pop %v1234
      %v1236 = vsel %vm832, %v1221, 0.0
      %1237 = vadd.xlane.f32.xlu0 %v1236
      %v1238 = vpop.xlane.xlu0 %1237
      %v1239 = vsel %vm832, %v1223, 0.0
      %1240 = vadd.xlane.f32.xlu0 %v1239
      %v1241 = vpop.xlane.xlu0 %1240
      %v1242 = vsel %vm832, %v1225, 0.0
      %1243 = vadd.xlane.f32.xlu0 %v1242
      %v1244 = vpop.xlane.xlu0 %1243
      %v1245 = vsel %vm832, %v1227, 0.0
      %1246 = vadd.xlane.f32.xlu0 %v1245
      %v1247 = vpop.xlane.xlu0 %1246
      %v1248 = vsel %vm832, %v1229, 0.0
      %1249 = vadd.xlane.f32.xlu0 %v1248
      %v1250 = vpop.xlane.xlu0 %1249
      %v1251 = vsel %vm832, %v1231, 0.0
      %1252 = vadd.xlane.f32.xlu0 %v1251
      %v1253 = vpop.xlane.xlu0 %1252
      %v1254 = vsel %vm832, %v1233, 0.0
      %1255 = vadd.xlane.f32.xlu0 %v1254
      %v1256 = vpop.xlane.xlu0 %1255
      %v1257 = vsel %vm832, %v1235, 0.0
      %1258 = vadd.xlane.f32.xlu0 %v1257
      %v1259 = vpop.xlane.xlu0 %1258
      %v1260 = vrcp.pop %v1238
      %v1261 = vmul.f32 %v1238, %v1260
      %v1262 = vsub.f32 1.0, %v1261
      %v1263 = vmul.f32 %v1260, %v1262
      %v1264 = vadd.f32 %v1260, %v1263
      %vm1265 = vweird.f32 %v1238
      %vm1266 = vweird.f32 %v1260
      %vm1267 = vmor %vm1265, %vm1266
      %v1268 = vsel %vm1267, %v1260, %v1264
      %v1269 = vand.u32 2147483647, %v1238
      %vm1270 = vcmp.eq.f32.partialorder %v1269, 8.507059e+37
      %v1271 = vand.u32 %v1238, 2147483648
      %v1272 = vor.u32 1.1754944e-38, %v1271
      %v1273 = vsel %vm1270, %v1272, %v1268
      %v1274 = vmul.f32 %v1221, %v1273
      %v1275 = vrcp.pop %v1241
      %v1276 = vmul.f32 %v1241, %v1275
      %v1277 = vsub.f32 1.0, %v1276
      %v1278 = vmul.f32 %v1275, %v1277
      %v1279 = vadd.f32 %v1275, %v1278
      %vm1280 = vweird.f32 %v1241
      %vm1281 = vweird.f32 %v1275
      %vm1282 = vmor %vm1280, %vm1281
      %v1283 = vsel %vm1282, %v1275, %v1279
      %v1284 = vand.u32 2147483647, %v1241
      %vm1285 = vcmp.eq.f32.partialorder %v1284, 8.507059e+37
      %v1286 = vand.u32 %v1241, 2147483648
      %v1287 = vor.u32 1.1754944e-38, %v1286
      %v1288 = vsel %vm1285, %v1287, %v1283
      %v1289 = vmul.f32 %v1223, %v1288
      %v1290 = vrcp.pop %v1244
      %v1291 = vmul.f32 %v1244, %v1290
      %v1292 = vsub.f32 1.0, %v1291
      %v1293 = vmul.f32 %v1290, %v1292
      %v1294 = vadd.f32 %v1290, %v1293
      %vm1295 = vweird.f32 %v1244
      %vm1296 = vweird.f32 %v1290
      %vm1297 = vmor %vm1295, %vm1296
      %v1298 = vsel %vm1297, %v1290, %v1294
      %v1299 = vand.u32 2147483647, %v1244
      %vm1300 = vcmp.eq.f32.partialorder %v1299, 8.507059e+37
      %v1301 = vand.u32 %v1244, 2147483648
      %v1302 = vor.u32 1.1754944e-38, %v1301
      %v1303 = vsel %vm1300, %v1302, %v1298
      %v1304 = vmul.f32 %v1225, %v1303
      %v1305 = vrcp.pop %v1247
      %v1306 = vmul.f32 %v1247, %v1305
      %v1307 = vsub.f32 1.0, %v1306
      %v1308 = vmul.f32 %v1305, %v1307
      %v1309 = vadd.f32 %v1305, %v1308
      %vm1310 = vweird.f32 %v1247
      %vm1311 = vweird.f32 %v1305
      %vm1312 = vmor %vm1310, %vm1311
      %v1313 = vsel %vm1312, %v1305, %v1309
      %v1314 = vand.u32 2147483647, %v1247
      %vm1315 = vcmp.eq.f32.partialorder %v1314, 8.507059e+37
      %v1316 = vand.u32 %v1247, 2147483648
      %v1317 = vor.u32 1.1754944e-38, %v1316
      %v1318 = vsel %vm1315, %v1317, %v1313
      %v1319 = vmul.f32 %v1227, %v1318
      %v1320 = vrcp.pop %v1250
      %v1321 = vmul.f32 %v1250, %v1320
      %v1322 = vsub.f32 1.0, %v1321
      %v1323 = vmul.f32 %v1320, %v1322
      %v1324 = vadd.f32 %v1320, %v1323
      %vm1325 = vweird.f32 %v1250
      %vm1326 = vweird.f32 %v1320
      %vm1327 = vmor %vm1325, %vm1326
      %v1328 = vsel %vm1327, %v1320, %v1324
      %v1329 = vand.u32 2147483647, %v1250
      %vm1330 = vcmp.eq.f32.partialorder %v1329, 8.507059e+37
      %v1331 = vand.u32 %v1250, 2147483648
      %v1332 = vor.u32 1.1754944e-38, %v1331
      %v1333 = vsel %vm1330, %v1332, %v1328
      %v1334 = vmul.f32 %v1229, %v1333
      %v1335 = vrcp.pop %v1253
      %v1336 = vmul.f32 %v1253, %v1335
      %v1337 = vsub.f32 1.0, %v1336
      %v1338 = vmul.f32 %v1335, %v1337
      %v1339 = vadd.f32 %v1335, %v1338
      %vm1340 = vweird.f32 %v1253
      %vm1341 = vweird.f32 %v1335
      %vm1342 = vmor %vm1340, %vm1341
      %v1343 = vsel %vm1342, %v1335, %v1339
      %v1344 = vand.u32 2147483647, %v1253
      %vm1345 = vcmp.eq.f32.partialorder %v1344, 8.507059e+37
      %v1346 = vand.u32 %v1253, 2147483648
      %v1347 = vor.u32 1.1754944e-38, %v1346
      %v1348 = vsel %vm1345, %v1347, %v1343
      %v1349 = vmul.f32 %v1231, %v1348
      %v1350 = vrcp.pop %v1256
      %v1351 = vmul.f32 %v1256, %v1350
      %v1352 = vsub.f32 1.0, %v1351
      %v1353 = vmul.f32 %v1350, %v1352
      %v1354 = vadd.f32 %v1350, %v1353
      %vm1355 = vweird.f32 %v1256
      %vm1356 = vweird.f32 %v1350
      %vm1357 = vmor %vm1355, %vm1356
      %v1358 = vsel %vm1357, %v1350, %v1354
      %v1359 = vand.u32 2147483647, %v1256
      %vm1360 = vcmp.eq.f32.partialorder %v1359, 8.507059e+37
      %v1361 = vand.u32 %v1256, 2147483648
      %v1362 = vor.u32 1.1754944e-38, %v1361
      %v1363 = vsel %vm1360, %v1362, %v1358
      %v1364 = vmul.f32 %v1233, %v1363
      %v1365 = vrcp.pop %v1259
      %v1366 = vmul.f32 %v1259, %v1365
      %v1367 = vsub.f32 1.0, %v1366
      %v1368 = vmul.f32 %v1365, %v1367
      %v1369 = vadd.f32 %v1365, %v1368
      %vm1370 = vweird.f32 %v1259
      %vm1371 = vweird.f32 %v1365
      %vm1372 = vmor %vm1370, %vm1371
      %v1373 = vsel %vm1372, %v1365, %v1369
      %v1374 = vand.u32 2147483647, %v1259
      %vm1375 = vcmp.eq.f32.partialorder %v1374, 8.507059e+37
      %v1376 = vand.u32 %v1259, 2147483648
      %v1377 = vor.u32 1.1754944e-38, %v1376
      %v1378 = vsel %vm1375, %v1377, %v1373
      %v1379 = vmul.f32 %v1235, %v1378
      %v1380 = vpack.c.bf16 %v1274, %v1274
      %v1381 = vpack.c.bf16 %v1289, %v1289
      %v1382 = vpack.c.bf16 %v1304, %v1304
      %v1383 = vpack.c.bf16 %v1319, %v1319
      %v1384 = vpack.c.bf16 %v1334, %v1334
      %v1385 = vpack.c.bf16 %v1349, %v1349
      %v1386 = vpack.c.bf16 %v1364, %v1364
      %v1387 = vpack.c.bf16 %v1379, %v1379
      %1389 = vrot.lane.b32.xlu0 %v1059, 64
      %v1390 = vpop.permute.xlu0 %1389
      %v1392 = vmul.f32 %v655, %v1390
      %v1393 = vmul.f32 %v656, %v1390
      %v1394 = vmul.f32 %v657, %v1390
      %v1395 = vmul.f32 %v658, %v1390
      %v1396 = vmul.f32 %v659, %v1390
      %v1397 = vmul.f32 %v660, %v1390
      %v1398 = vmul.f32 %v661, %v1390
      %v1399 = vmul.f32 %v662, %v1390
      %v1400 = vpack.c.bf16 %v1392, %v1392
      %v1401 = vpack.c.bf16 %v1393, %v1393
      %v1402 = vpack.c.bf16 %v1394, %v1394
      %v1403 = vpack.c.bf16 %v1395, %v1395
      %v1404 = vpack.c.bf16 %v1396, %v1396
      %v1405 = vpack.c.bf16 %v1397, %v1397
      %v1406 = vpack.c.bf16 %v1398, %v1398
      %v1407 = vpack.c.bf16 %v1399, %v1399
      %v1410 = vunpack.c.l.b16 %v1380
      %v1411 = vunpack.c.l.b16 %v1381
      %v1412 = vpack.c.b16 %v1411, %v1410
      %v1415 = vunpack.c.l.b16 %v1400
      %v1416 = vunpack.c.l.b16 %v1401
      %v1417 = vpack.c.b16 %v1416, %v1415
      %1418 = vrot.lane.b32.xlu0 %v1417, 64
      %v1419 = vpop.permute.xlu0 %1418
      %v1422 = vsel %vm832, %v1412, 0
      %1424 = vmatpush.bf16.msra.mxu0 0
      %1425 = vmatpush.bf16.msra.mxu0 0
      %1426 = vmatpush.bf16.msra.mxu0 0
      %1427 = vmatpush.bf16.msra.mxu0 0
      %1428 = vmatpush.bf16.msra.mxu0 0
      %1429 = vmatpush.bf16.msra.mxu0 0
      %1430 = vmatpush.bf16.msra.mxu0 0
      %1431 = vmatpush.bf16.msra.mxu0 %v1419
      %1432 = vmatmul.bf16.gmra.mxu0 %v1422
      %v1433 = vpop.f32.mrf.mxu0
      %v1434 = vadd.f32 0.0, %v1433
      %v1435 = vpop.f32.mrf.mxu0
      %v1436 = vadd.f32 0.0, %v1435
      %1437 = vdwg.mxu0
      %v1440 = vunpack.c.l.b16 %v1382
      %v1441 = vunpack.c.l.b16 %v1383
      %v1442 = vpack.c.b16 %v1441, %v1440
      %v1445 = vunpack.c.l.b16 %v1402
      %v1446 = vunpack.c.l.b16 %v1403
      %v1447 = vpack.c.b16 %v1446, %v1445
      %1448 = vrot.lane.b32.xlu0 %v1447, 64
      %v1449 = vpop.permute.xlu0 %1448
      %v1452 = vsel %vm832, %v1442, 0
      %1454 = vmatpush.bf16.msra.mxu0 0
      %1455 = vmatpush.bf16.msra.mxu0 0
      %1456 = vmatpush.bf16.msra.mxu0 0
      %1457 = vmatpush.bf16.msra.mxu0 0
      %1458 = vmatpush.bf16.msra.mxu0 0
      %1459 = vmatpush.bf16.msra.mxu0 0
      %1460 = vmatpush.bf16.msra.mxu0 0
      %1461 = vmatpush.bf16.msra.mxu0 %v1449
      %1462 = vmatmul.bf16.gmra.mxu0 %v1452
      %v1463 = vpop.f32.mrf.mxu0
      %v1464 = vadd.f32 0.0, %v1463
      %v1465 = vpop.f32.mrf.mxu0
      %v1466 = vadd.f32 0.0, %v1465
      %1467 = vdwg.mxu0
      %v1470 = vunpack.c.l.b16 %v1384
      %v1471 = vunpack.c.l.b16 %v1385
      %v1472 = vpack.c.b16 %v1471, %v1470
      %v1475 = vunpack.c.l.b16 %v1404
      %v1476 = vunpack.c.l.b16 %v1405
      %v1477 = vpack.c.b16 %v1476, %v1475
      %1478 = vrot.lane.b32.xlu0 %v1477, 64
      %v1479 = vpop.permute.xlu0 %1478
      %v1482 = vsel %vm832, %v1472, 0
      %1484 = vmatpush.bf16.msra.mxu0 0
      %1485 = vmatpush.bf16.msra.mxu0 0
      %1486 = vmatpush.bf16.msra.mxu0 0
      %1487 = vmatpush.bf16.msra.mxu0 0
      %1488 = vmatpush.bf16.msra.mxu0 0
      %1489 = vmatpush.bf16.msra.mxu0 0
      %1490 = vmatpush.bf16.msra.mxu0 0
      %1491 = vmatpush.bf16.msra.mxu0 %v1479
      %1492 = vmatmul.bf16.gmra.mxu0 %v1482
      %v1493 = vpop.f32.mrf.mxu0
      %v1494 = vadd.f32 0.0, %v1493
      %v1495 = vpop.f32.mrf.mxu0
      %v1496 = vadd.f32 0.0, %v1495
      %1497 = vdwg.mxu0
      %v1500 = vunpack.c.l.b16 %v1386
      %v1501 = vunpack.c.l.b16 %v1387
      %v1502 = vpack.c.b16 %v1501, %v1500
      %v1505 = vunpack.c.l.b16 %v1406
      %v1506 = vunpack.c.l.b16 %v1407
      %v1507 = vpack.c.b16 %v1506, %v1505
      %1508 = vrot.lane.b32.xlu0 %v1507, 64
      %v1509 = vpop.permute.xlu0 %1508
      %v1512 = vsel %vm832, %v1502, 0
      %1514 = vmatpush.bf16.msra.mxu0 0
      %1515 = vmatpush.bf16.msra.mxu0 0
      %1516 = vmatpush.bf16.msra.mxu0 0
      %1517 = vmatpush.bf16.msra.mxu0 0
      %1518 = vmatpush.bf16.msra.mxu0 0
      %1519 = vmatpush.bf16.msra.mxu0 0
      %1520 = vmatpush.bf16.msra.mxu0 0
      %1521 = vmatpush.bf16.msra.mxu0 %v1509
      %1522 = vmatmul.bf16.gmra.mxu0 %v1512
      %v1523 = vpop.f32.mrf.mxu0
      %v1524 = vadd.f32 0.0, %v1523
      %v1525 = vpop.f32.mrf.mxu0
      %v1526 = vadd.f32 0.0, %v1525
      %1527 = vdwg.mxu0
      %v1530 = vunpack.c.l.b16 %v1025
      %v1531 = vunpack.c.l.b16 %v1026
      %v1532 = vpack.c.b16 %v1531, %v1530
      %v1535 = vunpack.c.l.b16 %v1045
      %v1536 = vunpack.c.l.b16 %v1046
      %v1537 = vpack.c.b16 %v1536, %v1535
      %1538 = vrot.lane.b32.xlu0 %v1537, 64
      %v1539 = vpop.permute.xlu0 %1538
      %v1542 = vsel %vm832, %v1532, 0
      %1544 = vmatpush.bf16.msra.mxu0 0
      %1545 = vmatpush.bf16.msra.mxu0 0
      %1546 = vmatpush.bf16.msra.mxu0 0
      %1547 = vmatpush.bf16.msra.mxu0 0
      %1548 = vmatpush.bf16.msra.mxu0 0
      %1549 = vmatpush.bf16.msra.mxu0 0
      %1550 = vmatpush.bf16.msra.mxu0 0
      %1551 = vmatpush.bf16.msra.mxu0 %v1539
      %1552 = vmatmul.bf16.gmra.mxu0 %v1542
      %v1553 = vpop.f32.mrf.mxu0
      %v1554 = vadd.f32 %v1434, %v1553
      %v1555 = vpop.f32.mrf.mxu0
      %v1556 = vadd.f32 %v1436, %v1555
      %1557 = vdwg.mxu0
      %v1560 = vunpack.c.l.b16 %v1027
      %v1561 = vunpack.c.l.b16 %v1028
      %v1562 = vpack.c.b16 %v1561, %v1560
      %v1565 = vunpack.c.l.b16 %v1047
      %v1566 = vunpack.c.l.b16 %v1048
      %v1567 = vpack.c.b16 %v1566, %v1565
      %1568 = vrot.lane.b32.xlu0 %v1567, 64
      %v1569 = vpop.permute.xlu0 %1568
      %v1572 = vsel %vm832, %v1562, 0
      %1574 = vmatpush.bf16.msra.mxu0 0
      %1575 = vmatpush.bf16.msra.mxu0 0
      %1576 = vmatpush.bf16.msra.mxu0 0
      %1577 = vmatpush.bf16.msra.mxu0 0
      %1578 = vmatpush.bf16.msra.mxu0 0
      %1579 = vmatpush.bf16.msra.mxu0 0
      %1580 = vmatpush.bf16.msra.mxu0 0
      %1581 = vmatpush.bf16.msra.mxu0 %v1569
      %1582 = vmatmul.bf16.gmra.mxu0 %v1572
      %v1583 = vpop.f32.mrf.mxu0
      %v1584 = vadd.f32 %v1464, %v1583
      %v1585 = vpop.f32.mrf.mxu0
      %v1586 = vadd.f32 %v1466, %v1585
      %1587 = vdwg.mxu0
      %v1590 = vunpack.c.l.b16 %v1029
      %v1591 = vunpack.c.l.b16 %v1030
      %v1592 = vpack.c.b16 %v1591, %v1590
      %v1595 = vunpack.c.l.b16 %v1049
      %v1596 = vunpack.c.l.b16 %v1050
      %v1597 = vpack.c.b16 %v1596, %v1595
      %1598 = vrot.lane.b32.xlu0 %v1597, 64
      %v1599 = vpop.permute.xlu0 %1598
      %v1602 = vsel %vm832, %v1592, 0
      %1604 = vmatpush.bf16.msra.mxu0 0
      %1605 = vmatpush.bf16.msra.mxu0 0
      %1606 = vmatpush.bf16.msra.mxu0 0
      %1607 = vmatpush.bf16.msra.mxu0 0
      %1608 = vmatpush.bf16.msra.mxu0 0
      %1609 = vmatpush.bf16.msra.mxu0 0
      %1610 = vmatpush.bf16.msra.mxu0 0
      %1611 = vmatpush.bf16.msra.mxu0 %v1599
      %1612 = vmatmul.bf16.gmra.mxu0 %v1602
      %v1613 = vpop.f32.mrf.mxu0
      %v1614 = vadd.f32 %v1494, %v1613
      %v1615 = vpop.f32.mrf.mxu0
      %v1616 = vadd.f32 %v1496, %v1615
      %1617 = vdwg.mxu0
      %v1620 = vunpack.c.l.b16 %v1031
      %v1621 = vunpack.c.l.b16 %v1032
      %v1622 = vpack.c.b16 %v1621, %v1620
      %v1625 = vunpack.c.l.b16 %v1051
      %v1626 = vunpack.c.l.b16 %v1052
      %v1627 = vpack.c.b16 %v1626, %v1625
      %1628 = vrot.lane.b32.xlu0 %v1627, 64
      %v1629 = vpop.permute.xlu0 %1628
      %v1632 = vsel %vm832, %v1622, 0
      %1634 = vmatpush.bf16.msra.mxu0 0
      %1635 = vmatpush.bf16.msra.mxu0 0
      %1636 = vmatpush.bf16.msra.mxu0 0
      %1637 = vmatpush.bf16.msra.mxu0 0
      %1638 = vmatpush.bf16.msra.mxu0 0
      %1639 = vmatpush.bf16.msra.mxu0 0
      %1640 = vmatpush.bf16.msra.mxu0 0
      %1641 = vmatpush.bf16.msra.mxu0 %v1629
      %1642 = vmatmul.bf16.gmra.mxu0 %v1632
      %v1643 = vpop.f32.mrf.mxu0
      %v1644 = vadd.f32 %v1524, %v1643
      %v1645 = vpop.f32.mrf.mxu0
      %v1646 = vadd.f32 %v1526, %v1645
      %1647 = vdwg.mxu0
      %vm1648 = vcmp.ge.s32.totalorder %v648, 16
      %vm1649 = vcmp.lt.s32.totalorder %v648, 24
      %vm1650 = vmand %vm1648, %vm1649
      %v1651 = vsel %vm1650, 1, 0
      %v1652 = vcvt.s32.f32 %v1651
      %v1653 = vpack.c.bf16 %v1652, %v1652
      %v1654 = vunpack.c.l.bf16 %v1653
      %v1655 = vmul.f32 %v655, %v1654
      %v1656 = vmul.f32 %v656, %v1654
      %v1657 = vmul.f32 %v657, %v1654
      %v1658 = vmul.f32 %v658, %v1654
      %v1659 = vmul.f32 %v659, %v1654
      %v1660 = vmul.f32 %v660, %v1654
      %v1661 = vmul.f32 %v661, %v1654
      %v1662 = vmul.f32 %v662, %v1654
      %v1663 = vpack.c.bf16 %v1655, %v1655
      %v1664 = vpack.c.bf16 %v1656, %v1656
      %v1665 = vpack.c.bf16 %v1657, %v1657
      %v1666 = vpack.c.bf16 %v1658, %v1658
      %v1667 = vpack.c.bf16 %v1659, %v1659
      %v1668 = vpack.c.bf16 %v1660, %v1660
      %v1669 = vpack.c.bf16 %v1661, %v1661
      %v1670 = vpack.c.bf16 %v1662, %v1662
      %v1673 = vunpack.c.l.b16 %v1663
      %v1674 = vunpack.c.l.b16 %v1664
      %v1675 = vpack.c.b16 %v1674, %v1673
      %v1677 = vsel %vm352, %v1675, 0
      %1679 = vmatpush.bf16.xpose.msra.mxu0 0
      %1680 = vmatpush.bf16.xpose.msra.mxu0 0
      %1681 = vmatpush.bf16.xpose.msra.mxu0 0
      %1682 = vmatpush.bf16.xpose.msra.mxu0 0
      %1683 = vmatpush.bf16.xpose.msra.mxu0 0
      %1684 = vmatpush.bf16.xpose.msra.mxu0 0
      %1685 = vmatpush.bf16.xpose.msra.mxu0 0
      %1686 = vmatpush.bf16.xpose.msra.mxu0 %v696
      %1687 = vmatmul.bf16.gmra.mxu0 %v1677
      %v1688 = vpop.f32.mrf.mxu0
      %v1689 = vadd.f32 0.0, %v1688
      %v1690 = vpop.f32.mrf.mxu0
      %v1691 = vadd.f32 0.0, %v1690
      %1692 = vdwg.mxu0
      %v1695 = vunpack.c.l.b16 %v1665
      %v1696 = vunpack.c.l.b16 %v1666
      %v1697 = vpack.c.b16 %v1696, %v1695
      %v1699 = vsel %vm352, %v1697, 0
      %1701 = vmatpush.bf16.xpose.msra.mxu0 0
      %1702 = vmatpush.bf16.xpose.msra.mxu0 0
      %1703 = vmatpush.bf16.xpose.msra.mxu0 0
      %1704 = vmatpush.bf16.xpose.msra.mxu0 0
      %1705 = vmatpush.bf16.xpose.msra.mxu0 0
      %1706 = vmatpush.bf16.xpose.msra.mxu0 0
      %1707 = vmatpush.bf16.xpose.msra.mxu0 0
      %1708 = vmatpush.bf16.xpose.msra.mxu0 %v728
      %1709 = vmatmul.bf16.gmra.mxu0 %v1699
      %v1710 = vpop.f32.mrf.mxu0
      %v1711 = vadd.f32 0.0, %v1710
      %v1712 = vpop.f32.mrf.mxu0
      %v1713 = vadd.f32 0.0, %v1712
      %1714 = vdwg.mxu0
      %v1717 = vunpack.c.l.b16 %v1667
      %v1718 = vunpack.c.l.b16 %v1668
      %v1719 = vpack.c.b16 %v1718, %v1717
      %v1721 = vsel %vm352, %v1719, 0
      %1723 = vmatpush.bf16.xpose.msra.mxu0 0
      %1724 = vmatpush.bf16.xpose.msra.mxu0 0
      %1725 = vmatpush.bf16.xpose.msra.mxu0 0
      %1726 = vmatpush.bf16.xpose.msra.mxu0 0
      %1727 = vmatpush.bf16.xpose.msra.mxu0 0
      %1728 = vmatpush.bf16.xpose.msra.mxu0 0
      %1729 = vmatpush.bf16.xpose.msra.mxu0 0
      %1730 = vmatpush.bf16.xpose.msra.mxu0 %v760
      %1731 = vmatmul.bf16.gmra.mxu0 %v1721
      %v1732 = vpop.f32.mrf.mxu0
      %v1733 = vadd.f32 0.0, %v1732
      %v1734 = vpop.f32.mrf.mxu0
      %v1735 = vadd.f32 0.0, %v1734
      %1736 = vdwg.mxu0
      %v1739 = vunpack.c.l.b16 %v1669
      %v1740 = vunpack.c.l.b16 %v1670
      %v1741 = vpack.c.b16 %v1740, %v1739
      %v1743 = vsel %vm352, %v1741, 0
      %1745 = vmatpush.bf16.xpose.msra.mxu0 0
      %1746 = vmatpush.bf16.xpose.msra.mxu0 0
      %1747 = vmatpush.bf16.xpose.msra.mxu0 0
      %1748 = vmatpush.bf16.xpose.msra.mxu0 0
      %1749 = vmatpush.bf16.xpose.msra.mxu0 0
      %1750 = vmatpush.bf16.xpose.msra.mxu0 0
      %1751 = vmatpush.bf16.xpose.msra.mxu0 0
      %1752 = vmatpush.bf16.xpose.msra.mxu0 %v792
      %1753 = vmatmul.bf16.gmra.mxu0 %v1743
      %v1754 = vpop.f32.mrf.mxu0
      %v1755 = vadd.f32 0.0, %v1754
      %v1756 = vpop.f32.mrf.mxu0
      %v1757 = vadd.f32 0.0, %v1756
      %1758 = vdwg.mxu0
      %v1759 = vmul.f32 %v1689, 0.35355338
      %v1760 = vmul.f32 %v1691, 0.35355338
      %v1761 = vmul.f32 %v1711, 0.35355338
      %v1762 = vmul.f32 %v1713, 0.35355338
      %v1763 = vmul.f32 %v1733, 0.35355338
      %v1764 = vmul.f32 %v1735, 0.35355338
      %v1765 = vmul.f32 %v1755, 0.35355338
      %v1766 = vmul.f32 %v1757, 0.35355338
      %v1767 = vadd.f32 %v1759, %v627
      %v1768 = vadd.f32 %v1760, %v628
      %v1769 = vadd.f32 %v1761, %v627
      %v1770 = vadd.f32 %v1762, %v628
      %v1771 = vadd.f32 %v1763, %v627
      %v1772 = vadd.f32 %v1764, %v628
      %v1773 = vadd.f32 %v1765, %v627
      %v1774 = vadd.f32 %v1766, %v628
      %v1775 = vadd.f32 %v1767, %v631
      %v1776 = vadd.f32 %v1768, %v632
      %v1777 = vadd.f32 %v1769, %v633
      %v1778 = vadd.f32 %v1770, %v634
      %v1779 = vadd.f32 %v1771, %v635
      %v1780 = vadd.f32 %v1772, %v636
      %v1781 = vadd.f32 %v1773, %v637
      %v1782 = vadd.f32 %v1774, %v638
      %v1783 = vsel %vm832, %v1775, -inf
      %1784 = vmax.xlane.f32.xlu0 %v1783
      %v1785 = vpop.xlane.xlu0 %1784
      %v1786 = vsel %vm832, %v1776, -inf
      %1787 = vmax.xlane.f32.xlu0 %v1786
      %v1788 = vpop.xlane.xlu0 %1787
      %v1789 = vsel %vm832, %v1777, -inf
      %1790 = vmax.xlane.f32.xlu0 %v1789
      %v1791 = vpop.xlane.xlu0 %1790
      %v1792 = vsel %vm832, %v1778, -inf
      %1793 = vmax.xlane.f32.xlu0 %v1792
      %v1794 = vpop.xlane.xlu0 %1793
      %v1795 = vsel %vm832, %v1779, -inf
      %1796 = vmax.xlane.f32.xlu0 %v1795
      %v1797 = vpop.xlane.xlu0 %1796
      %v1798 = vsel %vm832, %v1780, -inf
      %1799 = vmax.xlane.f32.xlu0 %v1798
      %v1800 = vpop.xlane.xlu0 %1799
      %v1801 = vsel %vm832, %v1781, -inf
      %1802 = vmax.xlane.f32.xlu0 %v1801
      %v1803 = vpop.xlane.xlu0 %1802
      %v1804 = vsel %vm832, %v1782, -inf
      %1805 = vmax.xlane.f32.xlu0 %v1804
      %v1806 = vpop.xlane.xlu0 %1805
      %v1807 = vsub.f32 %v1775, %v1785
      %v1808 = vsub.f32 %v1776, %v1788
      %v1809 = vsub.f32 %v1777, %v1791
      %v1810 = vsub.f32 %v1778, %v1794
      %v1811 = vsub.f32 %v1779, %v1797
      %v1812 = vsub.f32 %v1780, %v1800
      %v1813 = vsub.f32 %v1781, %v1803
      %v1814 = vsub.f32 %v1782, %v1806
      %v1815 = vmul.f32 %v1807, 1.442695
      %v1816 = vpow.pop %v1815
      %v1817 = vmul.f32 %v1808, 1.442695
      %v1818 = vpow.pop %v1817
      %v1819 = vmul.f32 %v1809, 1.442695
      %v1820 = vpow.pop %v1819
      %v1821 = vmul.f32 %v1810, 1.442695
      %v1822 = vpow.pop %v1821
      %v1823 = vmul.f32 %v1811, 1.442695
      %v1824 = vpow.pop %v1823
      %v1825 = vmul.f32 %v1812, 1.442695
      %v1826 = vpow.pop %v1825
      %v1827 = vmul.f32 %v1813, 1.442695
      %v1828 = vpow.pop %v1827
      %v1829 = vmul.f32 %v1814, 1.442695
      %v1830 = vpow.pop %v1829
      %v1831 = vsel %vm832, %v1816, 0.0
      %1832 = vadd.xlane.f32.xlu0 %v1831
      %v1833 = vpop.xlane.xlu0 %1832
      %v1834 = vsel %vm832, %v1818, 0.0
      %1835 = vadd.xlane.f32.xlu0 %v1834
      %v1836 = vpop.xlane.xlu0 %1835
      %v1837 = vsel %vm832, %v1820, 0.0
      %1838 = vadd.xlane.f32.xlu0 %v1837
      %v1839 = vpop.xlane.xlu0 %1838
      %v1840 = vsel %vm832, %v1822, 0.0
      %1841 = vadd.xlane.f32.xlu0 %v1840
      %v1842 = vpop.xlane.xlu0 %1841
      %v1843 = vsel %vm832, %v1824, 0.0
      %1844 = vadd.xlane.f32.xlu0 %v1843
      %v1845 = vpop.xlane.xlu0 %1844
      %v1846 = vsel %vm832, %v1826, 0.0
      %1847 = vadd.xlane.f32.xlu0 %v1846
      %v1848 = vpop.xlane.xlu0 %1847
      %v1849 = vsel %vm832, %v1828, 0.0
      %1850 = vadd.xlane.f32.xlu0 %v1849
      %v1851 = vpop.xlane.xlu0 %1850
      %v1852 = vsel %vm832, %v1830, 0.0
      %1853 = vadd.xlane.f32.xlu0 %v1852
      %v1854 = vpop.xlane.xlu0 %1853
      %v1855 = vrcp.pop %v1833
      %v1856 = vmul.f32 %v1833, %v1855
      %v1857 = vsub.f32 1.0, %v1856
      %v1858 = vmul.f32 %v1855, %v1857
      %v1859 = vadd.f32 %v1855, %v1858
      %vm1860 = vweird.f32 %v1833
      %vm1861 = vweird.f32 %v1855
      %vm1862 = vmor %vm1860, %vm1861
      %v1863 = vsel %vm1862, %v1855, %v1859
      %v1864 = vand.u32 2147483647, %v1833
      %vm1865 = vcmp.eq.f32.partialorder %v1864, 8.507059e+37
      %v1866 = vand.u32 %v1833, 2147483648
      %v1867 = vor.u32 1.1754944e-38, %v1866
      %v1868 = vsel %vm1865, %v1867, %v1863
      %v1869 = vmul.f32 %v1816, %v1868
      %v1870 = vrcp.pop %v1836
      %v1871 = vmul.f32 %v1836, %v1870
      %v1872 = vsub.f32 1.0, %v1871
      %v1873 = vmul.f32 %v1870, %v1872
      %v1874 = vadd.f32 %v1870, %v1873
      %vm1875 = vweird.f32 %v1836
      %vm1876 = vweird.f32 %v1870
      %vm1877 = vmor %vm1875, %vm1876
      %v1878 = vsel %vm1877, %v1870, %v1874
      %v1879 = vand.u32 2147483647, %v1836
      %vm1880 = vcmp.eq.f32.partialorder %v1879, 8.507059e+37
      %v1881 = vand.u32 %v1836, 2147483648
      %v1882 = vor.u32 1.1754944e-38, %v1881
      %v1883 = vsel %vm1880, %v1882, %v1878
      %v1884 = vmul.f32 %v1818, %v1883
      %v1885 = vrcp.pop %v1839
      %v1886 = vmul.f32 %v1839, %v1885
      %v1887 = vsub.f32 1.0, %v1886
      %v1888 = vmul.f32 %v1885, %v1887
      %v1889 = vadd.f32 %v1885, %v1888
      %vm1890 = vweird.f32 %v1839
      %vm1891 = vweird.f32 %v1885
      %vm1892 = vmor %vm1890, %vm1891
      %v1893 = vsel %vm1892, %v1885, %v1889
      %v1894 = vand.u32 2147483647, %v1839
      %vm1895 = vcmp.eq.f32.partialorder %v1894, 8.507059e+37
      %v1896 = vand.u32 %v1839, 2147483648
      %v1897 = vor.u32 1.1754944e-38, %v1896
      %v1898 = vsel %vm1895, %v1897, %v1893
      %v1899 = vmul.f32 %v1820, %v1898
      %v1900 = vrcp.pop %v1842
      %v1901 = vmul.f32 %v1842, %v1900
      %v1902 = vsub.f32 1.0, %v1901
      %v1903 = vmul.f32 %v1900, %v1902
      %v1904 = vadd.f32 %v1900, %v1903
      %vm1905 = vweird.f32 %v1842
      %vm1906 = vweird.f32 %v1900
      %vm1907 = vmor %vm1905, %vm1906
      %v1908 = vsel %vm1907, %v1900, %v1904
      %v1909 = vand.u32 2147483647, %v1842
      %vm1910 = vcmp.eq.f32.partialorder %v1909, 8.507059e+37
      %v1911 = vand.u32 %v1842, 2147483648
      %v1912 = vor.u32 1.1754944e-38, %v1911
      %v1913 = vsel %vm1910, %v1912, %v1908
      %v1914 = vmul.f32 %v1822, %v1913
      %v1915 = vrcp.pop %v1845
      %v1916 = vmul.f32 %v1845, %v1915
      %v1917 = vsub.f32 1.0, %v1916
      %v1918 = vmul.f32 %v1915, %v1917
      %v1919 = vadd.f32 %v1915, %v1918
      %vm1920 = vweird.f32 %v1845
      %vm1921 = vweird.f32 %v1915
      %vm1922 = vmor %vm1920, %vm1921
      %v1923 = vsel %vm1922, %v1915, %v1919
      %v1924 = vand.u32 2147483647, %v1845
      %vm1925 = vcmp.eq.f32.partialorder %v1924, 8.507059e+37
      %v1926 = vand.u32 %v1845, 2147483648
      %v1927 = vor.u32 1.1754944e-38, %v1926
      %v1928 = vsel %vm1925, %v1927, %v1923
      %v1929 = vmul.f32 %v1824, %v1928
      %v1930 = vrcp.pop %v1848
      %v1931 = vmul.f32 %v1848, %v1930
      %v1932 = vsub.f32 1.0, %v1931
      %v1933 = vmul.f32 %v1930, %v1932
      %v1934 = vadd.f32 %v1930, %v1933
      %vm1935 = vweird.f32 %v1848
      %vm1936 = vweird.f32 %v1930
      %vm1937 = vmor %vm1935, %vm1936
      %v1938 = vsel %vm1937, %v1930, %v1934
      %v1939 = vand.u32 2147483647, %v1848
      %vm1940 = vcmp.eq.f32.partialorder %v1939, 8.507059e+37
      %v1941 = vand.u32 %v1848, 2147483648
      %v1942 = vor.u32 1.1754944e-38, %v1941
      %v1943 = vsel %vm1940, %v1942, %v1938
      %v1944 = vmul.f32 %v1826, %v1943
      %v1945 = vrcp.pop %v1851
      %v1946 = vmul.f32 %v1851, %v1945
      %v1947 = vsub.f32 1.0, %v1946
      %v1948 = vmul.f32 %v1945, %v1947
      %v1949 = vadd.f32 %v1945, %v1948
      %vm1950 = vweird.f32 %v1851
      %vm1951 = vweird.f32 %v1945
      %vm1952 = vmor %vm1950, %vm1951
      %v1953 = vsel %vm1952, %v1945, %v1949
      %v1954 = vand.u32 2147483647, %v1851
      %vm1955 = vcmp.eq.f32.partialorder %v1954, 8.507059e+37
      %v1956 = vand.u32 %v1851, 2147483648
      %v1957 = vor.u32 1.1754944e-38, %v1956
      %v1958 = vsel %vm1955, %v1957, %v1953
      %v1959 = vmul.f32 %v1828, %v1958
      %v1960 = vrcp.pop %v1854
      %v1961 = vmul.f32 %v1854, %v1960
      %v1962 = vsub.f32 1.0, %v1961
      %v1963 = vmul.f32 %v1960, %v1962
      %v1964 = vadd.f32 %v1960, %v1963
      %vm1965 = vweird.f32 %v1854
      %vm1966 = vweird.f32 %v1960
      %vm1967 = vmor %vm1965, %vm1966
      %v1968 = vsel %vm1967, %v1960, %v1964
      %v1969 = vand.u32 2147483647, %v1854
      %vm1970 = vcmp.eq.f32.partialorder %v1969, 8.507059e+37
      %v1971 = vand.u32 %v1854, 2147483648
      %v1972 = vor.u32 1.1754944e-38, %v1971
      %v1973 = vsel %vm1970, %v1972, %v1968
      %v1974 = vmul.f32 %v1830, %v1973
      %v1975 = vpack.c.bf16 %v1869, %v1869
      %v1976 = vpack.c.bf16 %v1884, %v1884
      %v1977 = vpack.c.bf16 %v1899, %v1899
      %v1978 = vpack.c.bf16 %v1914, %v1914
      %v1979 = vpack.c.bf16 %v1929, %v1929
      %v1980 = vpack.c.bf16 %v1944, %v1944
      %v1981 = vpack.c.bf16 %v1959, %v1959
      %v1982 = vpack.c.bf16 %v1974, %v1974
      %1984 = vrot.lane.b32.xlu0 %v1654, 64
      %v1985 = vpop.permute.xlu0 %1984
      %v1987 = vmul.f32 %v655, %v1985
      %v1988 = vmul.f32 %v656, %v1985
      %v1989 = vmul.f32 %v657, %v1985
      %v1990 = vmul.f32 %v658, %v1985
      %v1991 = vmul.f32 %v659, %v1985
      %v1992 = vmul.f32 %v660, %v1985
      %v1993 = vmul.f32 %v661, %v1985
      %v1994 = vmul.f32 %v662, %v1985
      %v1995 = vpack.c.bf16 %v1987, %v1987
      %v1996 = vpack.c.bf16 %v1988, %v1988
      %v1997 = vpack.c.bf16 %v1989, %v1989
      %v1998 = vpack.c.bf16 %v1990, %v1990
      %v1999 = vpack.c.bf16 %v1991, %v1991
      %v2000 = vpack.c.bf16 %v1992, %v1992
      %v2001 = vpack.c.bf16 %v1993, %v1993
      %v2002 = vpack.c.bf16 %v1994, %v1994
      %v2005 = vunpack.c.l.b16 %v1975
      %v2006 = vunpack.c.l.b16 %v1976
      %v2007 = vpack.c.b16 %v2006, %v2005
      %v2010 = vunpack.c.l.b16 %v1995
      %v2011 = vunpack.c.l.b16 %v1996
      %v2012 = vpack.c.b16 %v2011, %v2010
      %2013 = vrot.lane.b32.xlu0 %v2012, 64
      %v2014 = vpop.permute.xlu0 %2013
      %v2017 = vsel %vm832, %v2007, 0
      %2019 = vmatpush.bf16.msra.mxu0 0
      %2020 = vmatpush.bf16.msra.mxu0 0
      %2021 = vmatpush.bf16.msra.mxu0 0
      %2022 = vmatpush.bf16.msra.mxu0 0
      %2023 = vmatpush.bf16.msra.mxu0 0
      %2024 = vmatpush.bf16.msra.mxu0 0
      %2025 = vmatpush.bf16.msra.mxu0 0
      %2026 = vmatpush.bf16.msra.mxu0 %v2014
      %2027 = vmatmul.bf16.gmra.mxu0 %v2017
      %v2028 = vpop.f32.mrf.mxu0
      %v2029 = vadd.f32 0.0, %v2028
      %v2030 = vpop.f32.mrf.mxu0
      %v2031 = vadd.f32 0.0, %v2030
      %2032 = vdwg.mxu0
      %v2035 = vunpack.c.l.b16 %v1977
      %v2036 = vunpack.c.l.b16 %v1978
      %v2037 = vpack.c.b16 %v2036, %v2035
      %v2040 = vunpack.c.l.b16 %v1997
      %v2041 = vunpack.c.l.b16 %v1998
      %v2042 = vpack.c.b16 %v2041, %v2040
      %2043 = vrot.lane.b32.xlu0 %v2042, 64
      %v2044 = vpop.permute.xlu0 %2043
      %v2047 = vsel %vm832, %v2037, 0
      %2049 = vmatpush.bf16.msra.mxu0 0
      %2050 = vmatpush.bf16.msra.mxu0 0
      %2051 = vmatpush.bf16.msra.mxu0 0
      %2052 = vmatpush.bf16.msra.mxu0 0
      %2053 = vmatpush.bf16.msra.mxu0 0
      %2054 = vmatpush.bf16.msra.mxu0 0
      %2055 = vmatpush.bf16.msra.mxu0 0
      %2056 = vmatpush.bf16.msra.mxu0 %v2044
      %2057 = vmatmul.bf16.gmra.mxu0 %v2047
      %v2058 = vpop.f32.mrf.mxu0
      %v2059 = vadd.f32 0.0, %v2058
      %v2060 = vpop.f32.mrf.mxu0
      %v2061 = vadd.f32 0.0, %v2060
      %2062 = vdwg.mxu0
      %v2065 = vunpack.c.l.b16 %v1979
      %v2066 = vunpack.c.l.b16 %v1980
      %v2067 = vpack.c.b16 %v2066, %v2065
      %v2070 = vunpack.c.l.b16 %v1999
      %v2071 = vunpack.c.l.b16 %v2000
      %v2072 = vpack.c.b16 %v2071, %v2070
      %2073 = vrot.lane.b32.xlu0 %v2072, 64
      %v2074 = vpop.permute.xlu0 %2073
      %v2077 = vsel %vm832, %v2067, 0
      %2079 = vmatpush.bf16.msra.mxu0 0
      %2080 = vmatpush.bf16.msra.mxu0 0
      %2081 = vmatpush.bf16.msra.mxu0 0
      %2082 = vmatpush.bf16.msra.mxu0 0
      %2083 = vmatpush.bf16.msra.mxu0 0
      %2084 = vmatpush.bf16.msra.mxu0 0
      %2085 = vmatpush.bf16.msra.mxu0 0
      %2086 = vmatpush.bf16.msra.mxu0 %v2074
      %2087 = vmatmul.bf16.gmra.mxu0 %v2077
      %v2088 = vpop.f32.mrf.mxu0
      %v2089 = vadd.f32 0.0, %v2088
      %v2090 = vpop.f32.mrf.mxu0
      %v2091 = vadd.f32 0.0, %v2090
      %2092 = vdwg.mxu0
      %v2095 = vunpack.c.l.b16 %v1981
      %v2096 = vunpack.c.l.b16 %v1982
      %v2097 = vpack.c.b16 %v2096, %v2095
      %v2100 = vunpack.c.l.b16 %v2001
      %v2101 = vunpack.c.l.b16 %v2002
      %v2102 = vpack.c.b16 %v2101, %v2100
      %2103 = vrot.lane.b32.xlu0 %v2102, 64
      %v2104 = vpop.permute.xlu0 %2103
      %v2107 = vsel %vm832, %v2097, 0
      %2109 = vmatpush.bf16.msra.mxu0 0
      %2110 = vmatpush.bf16.msra.mxu0 0
      %2111 = vmatpush.bf16.msra.mxu0 0
      %2112 = vmatpush.bf16.msra.mxu0 0
      %2113 = vmatpush.bf16.msra.mxu0 0
      %2114 = vmatpush.bf16.msra.mxu0 0
      %2115 = vmatpush.bf16.msra.mxu0 0
      %2116 = vmatpush.bf16.msra.mxu0 %v2104
      %2117 = vmatmul.bf16.gmra.mxu0 %v2107
      %v2118 = vpop.f32.mrf.mxu0
      %v2119 = vadd.f32 0.0, %v2118
      %v2120 = vpop.f32.mrf.mxu0
      %v2121 = vadd.f32 0.0, %v2120
      %2122 = vdwg.mxu0
      %v2123 = vadd.f32 %v1554, %v2029
      %v2124 = vadd.f32 %v1556, %v2031
      %v2125 = vadd.f32 %v1584, %v2059
      %v2126 = vadd.f32 %v1586, %v2061
      %v2127 = vadd.f32 %v1614, %v2089
      %v2128 = vadd.f32 %v1616, %v2091
      %v2129 = vadd.f32 %v1644, %v2119
      %v2130 = vadd.f32 %v1646, %v2121
      %vm2131 = vcmp.ge.s32.totalorder %v648, 24
      %vm2132 = vcmp.lt.s32.totalorder %v648, 32
      %vm2133 = vmand %vm2131, %vm2132
      %v2134 = vsel %vm2133, 1, 0
      %v2135 = vcvt.s32.f32 %v2134
      %v2136 = vpack.c.bf16 %v2135, %v2135
      %v2137 = vunpack.c.l.bf16 %v2136
      %v2138 = vmul.f32 %v655, %v2137
      %v2139 = vmul.f32 %v656, %v2137
      %v2140 = vmul.f32 %v657, %v2137
      %v2141 = vmul.f32 %v658, %v2137
      %v2142 = vmul.f32 %v659, %v2137
      %v2143 = vmul.f32 %v660, %v2137
      %v2144 = vmul.f32 %v661, %v2137
      %v2145 = vmul.f32 %v662, %v2137
      %v2146 = vpack.c.bf16 %v2138, %v2138
      %v2147 = vpack.c.bf16 %v2139, %v2139
      %v2148 = vpack.c.bf16 %v2140, %v2140
      %v2149 = vpack.c.bf16 %v2141, %v2141
      %v2150 = vpack.c.bf16 %v2142, %v2142
      %v2151 = vpack.c.bf16 %v2143, %v2143
      %v2152 = vpack.c.bf16 %v2144, %v2144
      %v2153 = vpack.c.bf16 %v2145, %v2145
      %v2156 = vunpack.c.l.b16 %v2146
      %v2157 = vunpack.c.l.b16 %v2147
      %v2158 = vpack.c.b16 %v2157, %v2156
      %v2160 = vsel %vm352, %v2158, 0
      %2162 = vmatpush.bf16.xpose.msra.mxu0 0
      %2163 = vmatpush.bf16.xpose.msra.mxu0 0
      %2164 = vmatpush.bf16.xpose.msra.mxu0 0
      %2165 = vmatpush.bf16.xpose.msra.mxu0 0
      %2166 = vmatpush.bf16.xpose.msra.mxu0 0
      %2167 = vmatpush.bf16.xpose.msra.mxu0 0
      %2168 = vmatpush.bf16.xpose.msra.mxu0 0
      %2169 = vmatpush.bf16.xpose.msra.mxu0 %v696
      %2170 = vmatmul.bf16.gmra.mxu0 %v2160
      %v2171 = vpop.f32.mrf.mxu0
      %v2172 = vadd.f32 0.0, %v2171
      %v2173 = vpop.f32.mrf.mxu0
      %v2174 = vadd.f32 0.0, %v2173
      %2175 = vdwg.mxu0
      %v2178 = vunpack.c.l.b16 %v2148
      %v2179 = vunpack.c.l.b16 %v2149
      %v2180 = vpack.c.b16 %v2179, %v2178
      %v2182 = vsel %vm352, %v2180, 0
      %2184 = vmatpush.bf16.xpose.msra.mxu0 0
      %2185 = vmatpush.bf16.xpose.msra.mxu0 0
      %2186 = vmatpush.bf16.xpose.msra.mxu0 0
      %2187 = vmatpush.bf16.xpose.msra.mxu0 0
      %2188 = vmatpush.bf16.xpose.msra.mxu0 0
      %2189 = vmatpush.bf16.xpose.msra.mxu0 0
      %2190 = vmatpush.bf16.xpose.msra.mxu0 0
      %2191 = vmatpush.bf16.xpose.msra.mxu0 %v728
      %2192 = vmatmul.bf16.gmra.mxu0 %v2182
      %v2193 = vpop.f32.mrf.mxu0
      %v2194 = vadd.f32 0.0, %v2193
      %v2195 = vpop.f32.mrf.mxu0
      %v2196 = vadd.f32 0.0, %v2195
      %2197 = vdwg.mxu0
      %v2200 = vunpack.c.l.b16 %v2150
      %v2201 = vunpack.c.l.b16 %v2151
      %v2202 = vpack.c.b16 %v2201, %v2200
      %v2204 = vsel %vm352, %v2202, 0
      %2206 = vmatpush.bf16.xpose.msra.mxu0 0
      %2207 = vmatpush.bf16.xpose.msra.mxu0 0
      %2208 = vmatpush.bf16.xpose.msra.mxu0 0
      %2209 = vmatpush.bf16.xpose.msra.mxu0 0
      %2210 = vmatpush.bf16.xpose.msra.mxu0 0
      %2211 = vmatpush.bf16.xpose.msra.mxu0 0
      %2212 = vmatpush.bf16.xpose.msra.mxu0 0
      %2213 = vmatpush.bf16.xpose.msra.mxu0 %v760
      %2214 = vmatmul.bf16.gmra.mxu0 %v2204
      %v2215 = vpop.f32.mrf.mxu0
      %v2216 = vadd.f32 0.0, %v2215
      %v2217 = vpop.f32.mrf.mxu0
      %v2218 = vadd.f32 0.0, %v2217
      %2219 = vdwg.mxu0
      %v2222 = vunpack.c.l.b16 %v2152
      %v2223 = vunpack.c.l.b16 %v2153
      %v2224 = vpack.c.b16 %v2223, %v2222
      %v2226 = vsel %vm352, %v2224, 0
      %2228 = vmatpush.bf16.xpose.msra.mxu0 0
      %2229 = vmatpush.bf16.xpose.msra.mxu0 0
      %2230 = vmatpush.bf16.xpose.msra.mxu0 0
      %2231 = vmatpush.bf16.xpose.msra.mxu0 0
      %2232 = vmatpush.bf16.xpose.msra.mxu0 0
      %2233 = vmatpush.bf16.xpose.msra.mxu0 0
      %2234 = vmatpush.bf16.xpose.msra.mxu0 0
      %2235 = vmatpush.bf16.xpose.msra.mxu0 %v792
      %2236 = vmatmul.bf16.gmra.mxu0 %v2226
      %v2237 = vpop.f32.mrf.mxu0
      %v2238 = vadd.f32 0.0, %v2237
      %v2239 = vpop.f32.mrf.mxu0
      %v2240 = vadd.f32 0.0, %v2239
      %2241 = vdwg.mxu0
      %v2242 = vmul.f32 %v2172, 0.35355338
      %v2243 = vmul.f32 %v2174, 0.35355338
      %v2244 = vmul.f32 %v2194, 0.35355338
      %v2245 = vmul.f32 %v2196, 0.35355338
      %v2246 = vmul.f32 %v2216, 0.35355338
      %v2247 = vmul.f32 %v2218, 0.35355338
      %v2248 = vmul.f32 %v2238, 0.35355338
      %v2249 = vmul.f32 %v2240, 0.35355338
      %v2250 = vadd.f32 %v2242, %v629
      %v2251 = vadd.f32 %v2243, %v630
      %v2252 = vadd.f32 %v2244, %v629
      %v2253 = vadd.f32 %v2245, %v630
      %v2254 = vadd.f32 %v2246, %v629
      %v2255 = vadd.f32 %v2247, %v630
      %v2256 = vadd.f32 %v2248, %v629
      %v2257 = vadd.f32 %v2249, %v630
      %v2258 = vadd.f32 %v2250, %v631
      %v2259 = vadd.f32 %v2251, %v632
      %v2260 = vadd.f32 %v2252, %v633
      %v2261 = vadd.f32 %v2253, %v634
      %v2262 = vadd.f32 %v2254, %v635
      %v2263 = vadd.f32 %v2255, %v636
      %v2264 = vadd.f32 %v2256, %v637
      %v2265 = vadd.f32 %v2257, %v638
      %v2266 = vsel %vm832, %v2258, -inf
      %2267 = vmax.xlane.f32.xlu0 %v2266
      %v2268 = vpop.xlane.xlu0 %2267
      %v2269 = vsel %vm832, %v2259, -inf
      %2270 = vmax.xlane.f32.xlu0 %v2269
      %v2271 = vpop.xlane.xlu0 %2270
      %v2272 = vsel %vm832, %v2260, -inf
      %2273 = vmax.xlane.f32.xlu0 %v2272
      %v2274 = vpop.xlane.xlu0 %2273
      %v2275 = vsel %vm832, %v2261, -inf
      %2276 = vmax.xlane.f32.xlu0 %v2275
      %v2277 = vpop.xlane.xlu0 %2276
      %v2278 = vsel %vm832, %v2262, -inf
      %2279 = vmax.xlane.f32.xlu0 %v2278
      %v2280 = vpop.xlane.xlu0 %2279
      %v2281 = vsel %vm832, %v2263, -inf
      %2282 = vmax.xlane.f32.xlu0 %v2281
      %v2283 = vpop.xlane.xlu0 %2282
      %v2284 = vsel %vm832, %v2264, -inf
      %2285 = vmax.xlane.f32.xlu0 %v2284
      %v2286 = vpop.xlane.xlu0 %2285
      %v2287 = vsel %vm832, %v2265, -inf
      %2288 = vmax.xlane.f32.xlu0 %v2287
      %v2289 = vpop.xlane.xlu0 %2288
      %v2290 = vsub.f32 %v2258, %v2268
      %v2291 = vsub.f32 %v2259, %v2271
      %v2292 = vsub.f32 %v2260, %v2274
      %v2293 = vsub.f32 %v2261, %v2277
      %v2294 = vsub.f32 %v2262, %v2280
      %v2295 = vsub.f32 %v2263, %v2283
      %v2296 = vsub.f32 %v2264, %v2286
      %v2297 = vsub.f32 %v2265, %v2289
      %v2298 = vmul.f32 %v2290, 1.442695
      %v2299 = vpow.pop %v2298
      %v2300 = vmul.f32 %v2291, 1.442695
      %v2301 = vpow.pop %v2300
      %v2302 = vmul.f32 %v2292, 1.442695
      %v2303 = vpow.pop %v2302
      %v2304 = vmul.f32 %v2293, 1.442695
      %v2305 = vpow.pop %v2304
      %v2306 = vmul.f32 %v2294, 1.442695
      %v2307 = vpow.pop %v2306
      %v2308 = vmul.f32 %v2295, 1.442695
      %v2309 = vpow.pop %v2308
      %v2310 = vmul.f32 %v2296, 1.442695
      %v2311 = vpow.pop %v2310
      %v2312 = vmul.f32 %v2297, 1.442695
      %v2313 = vpow.pop %v2312
      %v2314 = vsel %vm832, %v2299, 0.0
      %2315 = vadd.xlane.f32.xlu0 %v2314
      %v2316 = vpop.xlane.xlu0 %2315
      %v2317 = vsel %vm832, %v2301, 0.0
      %2318 = vadd.xlane.f32.xlu0 %v2317
      %v2319 = vpop.xlane.xlu0 %2318
      %v2320 = vsel %vm832, %v2303, 0.0
      %2321 = vadd.xlane.f32.xlu0 %v2320
      %v2322 = vpop.xlane.xlu0 %2321
      %v2323 = vsel %vm832, %v2305, 0.0
      %2324 = vadd.xlane.f32.xlu0 %v2323
      %v2325 = vpop.xlane.xlu0 %2324
      %v2326 = vsel %vm832, %v2307, 0.0
      %2327 = vadd.xlane.f32.xlu0 %v2326
      %v2328 = vpop.xlane.xlu0 %2327
      %v2329 = vsel %vm832, %v2309, 0.0
      %2330 = vadd.xlane.f32.xlu0 %v2329
      %v2331 = vpop.xlane.xlu0 %2330
      %v2332 = vsel %vm832, %v2311, 0.0
      %2333 = vadd.xlane.f32.xlu0 %v2332
      %v2334 = vpop.xlane.xlu0 %2333
      %v2335 = vsel %vm832, %v2313, 0.0
      %2336 = vadd.xlane.f32.xlu0 %v2335
      %v2337 = vpop.xlane.xlu0 %2336
      %v2338 = vrcp.pop %v2316
      %v2339 = vmul.f32 %v2316, %v2338
      %v2340 = vsub.f32 1.0, %v2339
      %v2341 = vmul.f32 %v2338, %v2340
      %v2342 = vadd.f32 %v2338, %v2341
      %vm2343 = vweird.f32 %v2316
      %vm2344 = vweird.f32 %v2338
      %vm2345 = vmor %vm2343, %vm2344
      %v2346 = vsel %vm2345, %v2338, %v2342
      %v2347 = vand.u32 2147483647, %v2316
      %vm2348 = vcmp.eq.f32.partialorder %v2347, 8.507059e+37
      %v2349 = vand.u32 %v2316, 2147483648
      %v2350 = vor.u32 1.1754944e-38, %v2349
      %v2351 = vsel %vm2348, %v2350, %v2346
      %v2352 = vmul.f32 %v2299, %v2351
      %v2353 = vrcp.pop %v2319
      %v2354 = vmul.f32 %v2319, %v2353
      %v2355 = vsub.f32 1.0, %v2354
      %v2356 = vmul.f32 %v2353, %v2355
      %v2357 = vadd.f32 %v2353, %v2356
      %vm2358 = vweird.f32 %v2319
      %vm2359 = vweird.f32 %v2353
      %vm2360 = vmor %vm2358, %vm2359
      %v2361 = vsel %vm2360, %v2353, %v2357
      %v2362 = vand.u32 2147483647, %v2319
      %vm2363 = vcmp.eq.f32.partialorder %v2362, 8.507059e+37
      %v2364 = vand.u32 %v2319, 2147483648
      %v2365 = vor.u32 1.1754944e-38, %v2364
      %v2366 = vsel %vm2363, %v2365, %v2361
      %v2367 = vmul.f32 %v2301, %v2366
      %v2368 = vrcp.pop %v2322
      %v2369 = vmul.f32 %v2322, %v2368
      %v2370 = vsub.f32 1.0, %v2369
      %v2371 = vmul.f32 %v2368, %v2370
      %v2372 = vadd.f32 %v2368, %v2371
      %vm2373 = vweird.f32 %v2322
      %vm2374 = vweird.f32 %v2368
      %vm2375 = vmor %vm2373, %vm2374
      %v2376 = vsel %vm2375, %v2368, %v2372
      %v2377 = vand.u32 2147483647, %v2322
      %vm2378 = vcmp.eq.f32.partialorder %v2377, 8.507059e+37
      %v2379 = vand.u32 %v2322, 2147483648
      %v2380 = vor.u32 1.1754944e-38, %v2379
      %v2381 = vsel %vm2378, %v2380, %v2376
      %v2382 = vmul.f32 %v2303, %v2381
      %v2383 = vrcp.pop %v2325
      %v2384 = vmul.f32 %v2325, %v2383
      %v2385 = vsub.f32 1.0, %v2384
      %v2386 = vmul.f32 %v2383, %v2385
      %v2387 = vadd.f32 %v2383, %v2386
      %vm2388 = vweird.f32 %v2325
      %vm2389 = vweird.f32 %v2383
      %vm2390 = vmor %vm2388, %vm2389
      %v2391 = vsel %vm2390, %v2383, %v2387
      %v2392 = vand.u32 2147483647, %v2325
      %vm2393 = vcmp.eq.f32.partialorder %v2392, 8.507059e+37
      %v2394 = vand.u32 %v2325, 2147483648
      %v2395 = vor.u32 1.1754944e-38, %v2394
      %v2396 = vsel %vm2393, %v2395, %v2391
      %v2397 = vmul.f32 %v2305, %v2396
      %v2398 = vrcp.pop %v2328
      %v2399 = vmul.f32 %v2328, %v2398
      %v2400 = vsub.f32 1.0, %v2399
      %v2401 = vmul.f32 %v2398, %v2400
      %v2402 = vadd.f32 %v2398, %v2401
      %vm2403 = vweird.f32 %v2328
      %vm2404 = vweird.f32 %v2398
      %vm2405 = vmor %vm2403, %vm2404
      %v2406 = vsel %vm2405, %v2398, %v2402
      %v2407 = vand.u32 2147483647, %v2328
      %vm2408 = vcmp.eq.f32.partialorder %v2407, 8.507059e+37
      %v2409 = vand.u32 %v2328, 2147483648
      %v2410 = vor.u32 1.1754944e-38, %v2409
      %v2411 = vsel %vm2408, %v2410, %v2406
      %v2412 = vmul.f32 %v2307, %v2411
      %v2413 = vrcp.pop %v2331
      %v2414 = vmul.f32 %v2331, %v2413
      %v2415 = vsub.f32 1.0, %v2414
      %v2416 = vmul.f32 %v2413, %v2415
      %v2417 = vadd.f32 %v2413, %v2416
      %vm2418 = vweird.f32 %v2331
      %vm2419 = vweird.f32 %v2413
      %vm2420 = vmor %vm2418, %vm2419
      %v2421 = vsel %vm2420, %v2413, %v2417
      %v2422 = vand.u32 2147483647, %v2331
      %vm2423 = vcmp.eq.f32.partialorder %v2422, 8.507059e+37
      %v2424 = vand.u32 %v2331, 2147483648
      %v2425 = vor.u32 1.1754944e-38, %v2424
      %v2426 = vsel %vm2423, %v2425, %v2421
      %v2427 = vmul.f32 %v2309, %v2426
      %v2428 = vrcp.pop %v2334
      %v2429 = vmul.f32 %v2334, %v2428
      %v2430 = vsub.f32 1.0, %v2429
      %v2431 = vmul.f32 %v2428, %v2430
      %v2432 = vadd.f32 %v2428, %v2431
      %vm2433 = vweird.f32 %v2334
      %vm2434 = vweird.f32 %v2428
      %vm2435 = vmor %vm2433, %vm2434
      %v2436 = vsel %vm2435, %v2428, %v2432
      %v2437 = vand.u32 2147483647, %v2334
      %vm2438 = vcmp.eq.f32.partialorder %v2437, 8.507059e+37
      %v2439 = vand.u32 %v2334, 2147483648
      %v2440 = vor.u32 1.1754944e-38, %v2439
      %v2441 = vsel %vm2438, %v2440, %v2436
      %v2442 = vmul.f32 %v2311, %v2441
      %v2443 = vrcp.pop %v2337
      %v2444 = vmul.f32 %v2337, %v2443
      %v2445 = vsub.f32 1.0, %v2444
      %v2446 = vmul.f32 %v2443, %v2445
      %v2447 = vadd.f32 %v2443, %v2446
      %vm2448 = vweird.f32 %v2337
      %vm2449 = vweird.f32 %v2443
      %vm2450 = vmor %vm2448, %vm2449
      %v2451 = vsel %vm2450, %v2443, %v2447
      %v2452 = vand.u32 2147483647, %v2337
      %vm2453 = vcmp.eq.f32.partialorder %v2452, 8.507059e+37
      %v2454 = vand.u32 %v2337, 2147483648
      %v2455 = vor.u32 1.1754944e-38, %v2454
      %v2456 = vsel %vm2453, %v2455, %v2451
      %v2457 = vmul.f32 %v2313, %v2456
      %v2458 = vpack.c.bf16 %v2352, %v2352
      %v2459 = vpack.c.bf16 %v2367, %v2367
      %v2460 = vpack.c.bf16 %v2382, %v2382
      %v2461 = vpack.c.bf16 %v2397, %v2397
      %v2462 = vpack.c.bf16 %v2412, %v2412
      %v2463 = vpack.c.bf16 %v2427, %v2427
      %v2464 = vpack.c.bf16 %v2442, %v2442
      %v2465 = vpack.c.bf16 %v2457, %v2457
      %2467 = vrot.lane.b32.xlu0 %v2137, 64
      %v2468 = vpop.permute.xlu0 %2467
      %v2470 = vmul.f32 %v655, %v2468
      %v2471 = vmul.f32 %v656, %v2468
      %v2472 = vmul.f32 %v657, %v2468
      %v2473 = vmul.f32 %v658, %v2468
      %v2474 = vmul.f32 %v659, %v2468
      %v2475 = vmul.f32 %v660, %v2468
      %v2476 = vmul.f32 %v661, %v2468
      %v2477 = vmul.f32 %v662, %v2468
      %v2478 = vpack.c.bf16 %v2470, %v2470
      %v2479 = vpack.c.bf16 %v2471, %v2471
      %v2480 = vpack.c.bf16 %v2472, %v2472
      %v2481 = vpack.c.bf16 %v2473, %v2473
      %v2482 = vpack.c.bf16 %v2474, %v2474
      %v2483 = vpack.c.bf16 %v2475, %v2475
      %v2484 = vpack.c.bf16 %v2476, %v2476
      %v2485 = vpack.c.bf16 %v2477, %v2477
      %v2488 = vunpack.c.l.b16 %v2458
      %v2489 = vunpack.c.l.b16 %v2459
      %v2490 = vpack.c.b16 %v2489, %v2488
      %v2493 = vunpack.c.l.b16 %v2478
      %v2494 = vunpack.c.l.b16 %v2479
      %v2495 = vpack.c.b16 %v2494, %v2493
      %2496 = vrot.lane.b32.xlu0 %v2495, 64
      %v2497 = vpop.permute.xlu0 %2496
      %v2500 = vsel %vm832, %v2490, 0
      %2502 = vmatpush.bf16.msra.mxu0 0
      %2503 = vmatpush.bf16.msra.mxu0 0
      %2504 = vmatpush.bf16.msra.mxu0 0
      %2505 = vmatpush.bf16.msra.mxu0 0
      %2506 = vmatpush.bf16.msra.mxu0 0
      %2507 = vmatpush.bf16.msra.mxu0 0
      %2508 = vmatpush.bf16.msra.mxu0 0
      %2509 = vmatpush.bf16.msra.mxu0 %v2497
      %2510 = vmatmul.bf16.gmra.mxu0 %v2500
      %v2511 = vpop.f32.mrf.mxu0
      %v2512 = vadd.f32 0.0, %v2511
      %v2513 = vpop.f32.mrf.mxu0
      %v2514 = vadd.f32 0.0, %v2513
      %2515 = vdwg.mxu0
      %v2518 = vunpack.c.l.b16 %v2460
      %v2519 = vunpack.c.l.b16 %v2461
      %v2520 = vpack.c.b16 %v2519, %v2518
      %v2523 = vunpack.c.l.b16 %v2480
      %v2524 = vunpack.c.l.b16 %v2481
      %v2525 = vpack.c.b16 %v2524, %v2523
      %2526 = vrot.lane.b32.xlu0 %v2525, 64
      %v2527 = vpop.permute.xlu0 %2526
      %v2530 = vsel %vm832, %v2520, 0
      %2532 = vmatpush.bf16.msra.mxu0 0
      %2533 = vmatpush.bf16.msra.mxu0 0
      %2534 = vmatpush.bf16.msra.mxu0 0
      %2535 = vmatpush.bf16.msra.mxu0 0
      %2536 = vmatpush.bf16.msra.mxu0 0
      %2537 = vmatpush.bf16.msra.mxu0 0
      %2538 = vmatpush.bf16.msra.mxu0 0
      %2539 = vmatpush.bf16.msra.mxu0 %v2527
      %2540 = vmatmul.bf16.gmra.mxu0 %v2530
      %v2541 = vpop.f32.mrf.mxu0
      %v2542 = vadd.f32 0.0, %v2541
      %v2543 = vpop.f32.mrf.mxu0
      %v2544 = vadd.f32 0.0, %v2543
      %2545 = vdwg.mxu0
      %v2548 = vunpack.c.l.b16 %v2462
      %v2549 = vunpack.c.l.b16 %v2463
      %v2550 = vpack.c.b16 %v2549, %v2548
      %v2553 = vunpack.c.l.b16 %v2482
      %v2554 = vunpack.c.l.b16 %v2483
      %v2555 = vpack.c.b16 %v2554, %v2553
      %2556 = vrot.lane.b32.xlu0 %v2555, 64
      %v2557 = vpop.permute.xlu0 %2556
      %v2560 = vsel %vm832, %v2550, 0
      %2562 = vmatpush.bf16.msra.mxu0 0
      %2563 = vmatpush.bf16.msra.mxu0 0
      %2564 = vmatpush.bf16.msra.mxu0 0
      %2565 = vmatpush.bf16.msra.mxu0 0
      %2566 = vmatpush.bf16.msra.mxu0 0
      %2567 = vmatpush.bf16.msra.mxu0 0
      %2568 = vmatpush.bf16.msra.mxu0 0
      %2569 = vmatpush.bf16.msra.mxu0 %v2557
      %2570 = vmatmul.bf16.gmra.mxu0 %v2560
      %v2571 = vpop.f32.mrf.mxu0
      %v2572 = vadd.f32 0.0, %v2571
      %v2573 = vpop.f32.mrf.mxu0
      %v2574 = vadd.f32 0.0, %v2573
      %2575 = vdwg.mxu0
      %v2578 = vunpack.c.l.b16 %v2464
      %v2579 = vunpack.c.l.b16 %v2465
      %v2580 = vpack.c.b16 %v2579, %v2578
      %v2583 = vunpack.c.l.b16 %v2484
      %v2584 = vunpack.c.l.b16 %v2485
      %v2585 = vpack.c.b16 %v2584, %v2583
      %2586 = vrot.lane.b32.xlu0 %v2585, 64
      %v2587 = vpop.permute.xlu0 %2586
      %v2590 = vsel %vm832, %v2580, 0
      %2592 = vmatpush.bf16.msra.mxu0 0
      %2593 = vmatpush.bf16.msra.mxu0 0
      %2594 = vmatpush.bf16.msra.mxu0 0
      %2595 = vmatpush.bf16.msra.mxu0 0
      %2596 = vmatpush.bf16.msra.mxu0 0
      %2597 = vmatpush.bf16.msra.mxu0 0
      %2598 = vmatpush.bf16.msra.mxu0 0
      %2599 = vmatpush.bf16.msra.mxu0 %v2587
      %2600 = vmatmul.bf16.gmra.mxu0 %v2590
      %v2601 = vpop.f32.mrf.mxu0
      %v2602 = vadd.f32 0.0, %v2601
      %v2603 = vpop.f32.mrf.mxu0
      %v2604 = vadd.f32 0.0, %v2603
      %2605 = vdwg.mxu0
      %v2606 = vadd.f32 %v2123, %v2512
      %v2607 = vadd.f32 %v2124, %v2514
      %v2608 = vadd.f32 %v2125, %v2542
      %v2609 = vadd.f32 %v2126, %v2544
      %v2610 = vadd.f32 %v2127, %v2572
      %v2611 = vadd.f32 %v2128, %v2574
      %v2612 = vadd.f32 %v2129, %v2602
      %v2613 = vadd.f32 %v2130, %v2604
      %v2614 = vpack.c.bf16 %v2607, %v2606
      %v2615 = vpack.c.bf16 %v2609, %v2608
      %v2616 = vpack.c.bf16 %v2611, %v2610
      %v2617 = vpack.c.bf16 %v2613, %v2612
      %v2618 = vld [vmem:[%s5] sm:$0xf]
      %v2619 = vld [vmem:[%s5 + $0x4] sm:$0xf]
      %v2620 = vld [vmem:[%s5 + $0x8] sm:$0xf]
      %v2621 = vld [vmem:[%s5 + $0xc] sm:$0xf]
      %v2622 = vld [vmem:[%s6] sm:$0x1]
      %v2624 = vperm.slane %v2622, 0
      %v2630 = vunpack.c.l.b16 %v2618
      %v2631 = vunpack.c.l.b16 %v2619
      %v2632 = vunpack.c.l.b16 %v2620
      %v2633 = vunpack.c.l.b16 %v2621
      %v2634 = vpack.c.b16 %v2631, %v2630
      %v2635 = vpack.c.b16 %v2633, %v2632
      %v2639 = vsel %vm352, %v2614, 0
      %v2642 = vsel %vm352, %v2615, 0
      %v2645 = vsel %vm352, %v2616, 0
      %v2648 = vsel %vm352, %v2617, 0
      %2650 = vmatpush.bf16.msra.mxu0 0
      %2651 = vmatpush.bf16.msra.mxu0 0
      %2652 = vmatpush.bf16.msra.mxu0 0
      %2653 = vmatpush.bf16.msra.mxu0 0
      %2654 = vmatpush.bf16.msra.mxu0 0
      %2655 = vmatpush.bf16.msra.mxu0 0
      %2656 = vmatpush.bf16.msra.mxu0 %v2635
      %2657 = vmatpush.bf16.msra.mxu0 %v2634
      %2658 = vmatmul.bf16.gmra.mxu0 %v2639
      %v2659 = vpop.f32.mrf.mxu0
      %v2660 = vadd.f32 %v2624, %v2659
      %v2661 = vpop.f32.mrf.mxu0
      %v2662 = vadd.f32 %v2624, %v2661
      %2663 = vmatmul.bf16.gmra.mxu0 %v2642
      %v2664 = vpop.f32.mrf.mxu0
      %v2665 = vadd.f32 %v2624, %v2664
      %v2666 = vpop.f32.mrf.mxu0
      %v2667 = vadd.f32 %v2624, %v2666
      %2668 = vmatmul.bf16.gmra.mxu0 %v2645
      %v2669 = vpop.f32.mrf.mxu0
      %v2670 = vadd.f32 %v2624, %v2669
      %v2671 = vpop.f32.mrf.mxu0
      %v2672 = vadd.f32 %v2624, %v2671
      %2673 = vmatmul.bf16.gmra.mxu0 %v2648
      %v2674 = vpop.f32.mrf.mxu0
      %v2675 = vadd.f32 %v2624, %v2674
      %v2676 = vpop.f32.mrf.mxu0
      %v2677 = vadd.f32 %v2624, %v2676
      %2678 = vdwg.mxu0
      %v2679 = vadd.f32 %v342, %v2660
      %v2680 = vadd.f32 %v343, %v2662
      %v2681 = vadd.f32 %v344, %v2665
      %v2682 = vadd.f32 %v345, %v2667
      %v2683 = vadd.f32 %v346, %v2670
      %v2684 = vadd.f32 %v347, %v2672
      %v2685 = vadd.f32 %v348, %v2675
      %v2686 = vadd.f32 %v349, %v2677
      %2687 = vst.msk [vmem:[%s339] sm:$0xff] %vm352, %v2679
      %2688 = vst.msk [vmem:[%s339 + $0x8] sm:$0xff] %vm352, %v2680
      %2689 = vst.msk [vmem:[%s339 + $0x10] sm:$0xff] %vm352, %v2681
      %2690 = vst.msk [vmem:[%s339 + $0x18] sm:$0xff] %vm352, %v2682
      %2691 = vst.msk [vmem:[%s339 + $0x20] sm:$0xff] %vm352, %v2683
      %2692 = vst.msk [vmem:[%s339 + $0x28] sm:$0xff] %vm352, %v2684
      %2693 = vst.msk [vmem:[%s339 + $0x30] sm:$0xff] %vm352, %v2685
      %2694 = vst.msk [vmem:[%s339 + $0x38] sm:$0xff] %vm352, %v2686
      %s2695 = smul.u32 4, %s20
      %p2696 = scmp.lt.s32.totalorder %s2695, 7
      %s2697 = scalar_select %p2696, %s2695, 7
      %s2698 = smul.addr %s2697, 2
      %s2699 = smul.addr %s2698, 8
      %s2700 = scalar_lea.vmem %s9, %s2699
      // Predicated region
      $region57: #{run.6} parent=55 // pred_check
        %p2701 = pneg %p232
      $region58: #{run.6} parent=55 // pred_check_branch
        %2703 = sbr.rel (%p2701) target = $region60
      $region59: #{run.6} parent=55 // pred_region
        %s2704 = smul.u32 4, %s20
      $region60: #{run.6} parent=55 // pred_fallthru
        _
    $region56: #{run.6} parent=5 // pred_fallthru
      _
    %p2705 = scmp.le.s32.totalorder 2, %s15
    // Predicated region
    $region61: #{run.6} parent=5 // pred_check
      %p2706 = pneg %p2705
    $region62: #{run.6} parent=5 // pred_check_branch
      %2708 = sbr.rel (%p2706) target = $region64
    $region63: #{run.6} parent=5 // pred_region
      %s2709 = ssub.s32 %s15, 2
      // Predicated region
      $region65: #{run.6} parent=63 // pred_check
        %p2710 = pneg %p238
      $region66: #{run.6} parent=63 // pred_check_branch
        %2712 = sbr.rel (%p2710) target = $region68
      $region67: #{run.6} parent=63 // pred_region
        %s2713 = smul.u32 4, %s21
        %p2714 = scmp.lt.s32.totalorder %s2713, 7
        %s2715 = scalar_select %p2714, %s2713, 7
        %s2716 = smul.addr %s2715, 2
        %s2717 = smul.addr %s2716, 8
        %s2718 = scalar_lea.vmem %s9, %s2717
      $region68: #{run.6} parent=63 // pred_fallthru
        _
    $region64: #{run.6} parent=5 // pred_fallthru
      _
  $region6: #{run.6} parent=0 // loop_footer
    %s19 = sadd.s32 1, %s15
  $region7: #{run.6} parent=0 // loop_footer_branch
    %14 = sbr.rel target = $region3
  $region8: #{run.6} parent=0 // loop_exit
    _

</llo_original>
